<compile_context>
chip_gen: v6e
topology: v6e:2x2x1
jax: 0.10.0
libtpu: 0.0.40
codegen_flags: <defaults>
</compile_context>

<pallas_src>
import functools

import jax
import jax.numpy as jnp
from jax.experimental import pallas as pl
from jax.experimental.pallas import tpu as pltpu

IN_DIM = 28 * 28   # 784
MID = 500


def _ceil_to(x, m):
    return ((x + m - 1) // m) * m


MID_P = _ceil_to(MID, 128)     # 512 = 4 * 128 lanes


# --------------------------------------------------------------------------- #
# Generation probing (wrapper-side only; safe fallbacks everywhere)
# --------------------------------------------------------------------------- #
def _tpu_device_kind():
    try:
        d = jax.devices()[0]
        return d.device_kind.lower() if d.platform == "tpu" else ""
    except Exception:
        return ""


def _is_megacore_tpu():
    # Only v7x has 2 TensorCores per chip; splitting the grid on v5e/v6e just
    # doubles per-step overhead and quarter-fills the MXU.
    return "v7" in _tpu_device_kind()


def _default_act_dtype():
    # bf16 VPU/EUP exists on v6e/v7x; v5e (and unknown chips) keep f32 softplus.
    kind = _tpu_device_kind()
    if ("v6" in kind) or ("v7" in kind) or ("trillium" in kind):
        return jnp.bfloat16
    return jnp.float32


# --------------------------------------------------------------------------- #
# Kernel
# --------------------------------------------------------------------------- #
def ltae_kernel(act_dtype,
                x_ref,
                w1_ref, b1_ref, w2_ref, b2_ref, w3_ref, b3_ref,
                alpha_ref, beta_ref, eps_ref,
                w4_ref, b4_ref, w5_ref, b5_ref, w6_ref, b6_ref,
                enc_ref, lat_ref, trans_ref, dec_ref):
    f32 = jnp.float32
    bf16 = jnp.bfloat16

    def act(acc_f32):
        # Numerically stable softplus on the f32 MXU accumulator, evaluated in
        # `act_dtype` (bf16 on v6e/v7x: 2 elems/lane on VPU/EUP, half the bytes
        # for the (tb, 512) intermediates).  Result is the bf16 MXU operand of
        # the next layer, so no extra cast pass is needed.
        y = acc_f32.astype(act_dtype)
        sp = jnp.maximum(y, 0) + jnp.log(1 + jnp.exp(-jnp.abs(y)))
        return sp.astype(bf16)

    # ----- encoder: bf16 operands on the MXU, f32 accumulation -----
    x = x_ref[...].astype(bf16)                                      # (tb, 784)
    h = act(jnp.dot(x, w1_ref[...], preferred_element_type=f32) + b1_ref[...])
    h = act(jnp.dot(h, w2_ref[...], preferred_element_type=f32) + b2_ref[...])
    z = jnp.dot(h, w3_ref[...], preferred_element_type=f32) + b3_ref[...]
    enc_ref[...] = z                                                 # (tb, H) f32

    # ----- latent -----
    lat = alpha_ref[...] * (z + beta_ref[...])
    lat_ref[...] = lat

    # ----- transform (standard norm, unbiased std like torch.Tensor.std) -----
    hdim = z.shape[1]                       # true hidden size (no padding)
    mean = jnp.sum(z, axis=1, keepdims=True) * (1.0 / hdim)
    centered = z - mean
    var = jnp.sum(centered * centered, axis=1, keepdims=True) * (1.0 / (hdim - 1))
    trans_ref[...] = centered * jax.lax.rsqrt(var)      # rsqrt on EUP, no divide

    # ----- decoder -----
    d = (lat + eps_ref[...]).astype(bf16)
    d = act(jnp.dot(d, w4_ref[...], preferred_element_type=f32) + b4_ref[...])
    d = act(jnp.dot(d, w5_ref[...], preferred_element_type=f32) + b5_ref[...])
    logits = jnp.dot(d, w6_ref[...], preferred_element_type=f32) + b6_ref[...]
    # sigmoid(x) = 0.5 + 0.5*tanh(0.5*x): one EUP transcendental per element.
    dec_ref[...] = 0.5 + 0.5 * jnp.tanh(0.5 * logits)


# --------------------------------------------------------------------------- #
# Parameter preparation (call ONCE; result is reused across forward calls)
# --------------------------------------------------------------------------- #
def prepare_params(params):
    """Zero-pad the 500-wide hidden dims to 512 and cast matmul weights to bf16
    (MXU operands).  Biases / alpha / beta stay f32.  Hidden (H) and input (784)
    dims are left unpadded.  Idempotent; hoist out of any hot loop."""
    if params.get("_prepared", False):
        return params
    H = params["w3"].shape[1]

    def pad(a, shape, dtype):
        out = jnp.zeros(shape, dtype)
        return out.at[: a.shape[0], : a.shape[1]].set(a.astype(dtype))

    return dict(
        _prepared=True,
        w1=pad(params["w1"], (IN_DIM, MID_P), jnp.bfloat16),
        b1=pad(params["b1"], (1, MID_P), jnp.float32),
        w2=pad(params["w2"], (MID_P, MID_P), jnp.bfloat16),
        b2=pad(params["b2"], (1, MID_P), jnp.float32),
        w3=pad(params["w3"], (MID_P, H), jnp.bfloat16),
        b3=params["b3"].astype(jnp.float32),
        alpha=params["alpha"].astype(jnp.float32),
        beta=params["beta"].astype(jnp.float32),
        w4=pad(params["w4"], (H, MID_P), jnp.bfloat16),
        b4=pad(params["b4"], (1, MID_P), jnp.float32),
        w5=pad(params["w5"], (MID_P, MID_P), jnp.bfloat16),
        b5=pad(params["b5"], (1, MID_P), jnp.float32),
        w6=pad(params["w6"], (MID_P, IN_DIM), jnp.bfloat16),
        b6=params["b6"].astype(jnp.float32),
    )


def _pick_batch_tiling(B, tb_max, megacore):
    """Minimal-waste batch tiling: as few steps as possible with tiles <= tb_max;
    on v7x force >=2 steps (both TensorCores) once the batch is >= 256 rows so the
    per-core tile never drops below 128."""
    n = max(1, pl.cdiv(B, tb_max))
    if megacore and n < 2 and B >= 256:
        n = 2
    tb = min(tb_max, _ceil_to(pl.cdiv(B, n), 8))
    tb = max(tb, 8)
    grid_b = pl.cdiv(B, tb)
    return tb, grid_b


# --------------------------------------------------------------------------- #
# Forward wrapper
# --------------------------------------------------------------------------- #
def latent_autoencoder_forward(x, params, eps, *, tb_max=512, act_dtype=None):
    """x: [B, 784] f32, params: module-shaped dict (raw f32 or prepare_params()
    output), eps: [B, H] f32.  Returns (x_encoded, x_latent, x_transformed,
    x_decoded), all f32, unpadded."""
    B, in_dim = x.shape
    assert in_dim == IN_DIM
    pp = prepare_params(params)          # no-op if already prepared
    H = pp["w3"].shape[1]
    assert H >= 2, "hidden_size must be >= 2 (std over dim=1 needs >= 2 features)"
    assert eps.shape == (B, H)

    if act_dtype is None:
        act_dtype = _default_act_dtype()

    tb, grid_b = _pick_batch_tiling(B, tb_max, _is_megacore_tpu())

    row = lambda i: (i, 0)   # tiled over batch (last block may overhang B)
    rep = lambda i: (0, 0)   # constant block index -> fetched once, stays resident

    in_specs = [
        pl.BlockSpec((tb, IN_DIM), row),        # x (f32; cast to bf16 in kernel)
        pl.BlockSpec((IN_DIM, MID_P), rep),     # w1 (bf16)
        pl.BlockSpec((1, MID_P), rep),          # b1
        pl.BlockSpec((MID_P, MID_P), rep),      # w2
        pl.BlockSpec((1, MID_P), rep),          # b2
        pl.BlockSpec((MID_P, H), rep),          # w3
        pl.BlockSpec((1, H), rep),              # b3
        pl.BlockSpec((1, H), rep),              # alpha
        pl.BlockSpec((1, H), rep),              # beta
        pl.BlockSpec((tb, H), row),             # eps
        pl.BlockSpec((H, MID_P), rep),          # w4
        pl.BlockSpec((1, MID_P), rep),          # b4
        pl.BlockSpec((MID_P, MID_P), rep),      # w5
        pl.BlockSpec((1, MID_P), rep),          # b5
        pl.BlockSpec((MID_P, IN_DIM), rep),     # w6
        pl.BlockSpec((1, IN_DIM), rep),         # b6
    ]
    out_specs = [
        pl.BlockSpec((tb, H), row),             # x_encoded
        pl.BlockSpec((tb, H), row),             # x_latent
        pl.BlockSpec((tb, H), row),             # x_transformed
        pl.BlockSpec((tb, IN_DIM), row),        # x_decoded
    ]
    out_shape = [
        jax.ShapeDtypeStruct((B, H), jnp.float32),
        jax.ShapeDtypeStruct((B, H), jnp.float32),
        jax.ShapeDtypeStruct((B, H), jnp.float32),
        jax.ShapeDtypeStruct((B, IN_DIM), jnp.float32),
    ]

    call = pl.pallas_call(
        functools.partial(ltae_kernel, act_dtype),
        grid=(grid_b,),
        in_specs=in_specs,
        out_specs=out_specs,
        out_shape=out_shape,
        compiler_params=pltpu.CompilerParams(
            dimension_semantics=("parallel",),
            # ~16 MiB actually needed at tb=512 (resident bf16 weights x2 buffers
            # + f32 activation tiles); 32 MiB leaves headroom on every generation.
            vmem_limit_bytes=32 << 20,
        ),
    )
    enc, lat, trans, dec = call(
        x,
        pp["w1"], pp["b1"], pp["w2"], pp["b2"], pp["w3"], pp["b3"],
        pp["alpha"], pp["beta"], eps,
        pp["w4"], pp["b4"], pp["w5"], pp["b5"], pp["w6"], pp["b6"],
    )
    return enc, lat, trans, dec


# --------------------------------------------------------------------------- #
# Parameter init + references (for the self-check)
# --------------------------------------------------------------------------- #
def init_params(key, hidden_size):
    """Deterministic synthetic parameters (shapes match the PyTorch module)."""
    keys = jax.random.split(key, 8)

    def linear(k, fan_in, fan_out):
        bound = 1.0 / jnp.sqrt(fan_in)
        kw, kb = jax.random.split(k)
        w = jax.random.uniform(kw, (fan_in, fan_out), jnp.float32, -bound, bound)
        b = jax.random.uniform(kb, (1, fan_out), jnp.float32, -bound, bound)
        return w, b

    w1, b1 = linear(keys[0], IN_DIM, MID)
    w2, b2 = linear(keys[1], MID, MID)
    w3, b3 = linear(keys[2], MID, hidden_size)
    w4, b4 = linear(keys[3], hidden_size, MID)
    w5, b5 = linear(keys[4], MID, MID)
    w6, b6 = linear(keys[5], MID, IN_DIM)
    xav = jnp.sqrt(2.0 / (1.0 + hidden_size))   # xavier_normal_ for (1, hidden)
    alpha = xav * jax.random.normal(keys[6], (1, hidden_size), jnp.float32)
    beta = xav * jax.random.normal(keys[7], (1, hidden_size), jnp.float32)
    return dict(w1=w1, b1=b1, w2=w2, b2=b2, w3=w3, b3=b3,
                w4=w4, b4=b4, w5=w5, b5=b5, w6=w6, b6=b6,
                alpha=alpha, beta=beta)


def reference_forward(x, params, eps, *,
                      matmul_dtype=jnp.float32, act_dtype=jnp.float32):
    """Pure-JAX reference.  Defaults reproduce the PyTorch f32 semantics; passing
    matmul_dtype/act_dtype=bf16 emulates the kernel's quantization for a tighter
    structural check."""
    f32 = jnp.float32
    mm = lambda a, w: jnp.dot(a.astype(matmul_dtype), w.astype(matmul_dtype),
                              preferred_element_type=f32)

    def sp(acc):
        y = acc.astype(act_dtype)
        return (jnp.maximum(y, 0) + jnp.log(1 + jnp.exp(-jnp.abs(y)))).astype(f32)

    h = sp(mm(x, params["w1"]) + params["b1"])
    h = sp(mm(h, params["w2"]) + params["b2"])
    z = mm(h, params["w3"]) + params["b3"]
    lat = params["alpha"] * (z + params["beta"])
    mean = z.mean(axis=1, keepdims=True)
    var = jnp.sum((z - mean) ** 2, axis=1, keepdims=True) / (z.shape[1] - 1)
    trans = (z - mean) / jnp.sqrt(var)
    d = lat + eps
    d = sp(mm(d, params["w4"]) + params["b4"])
    d = sp(mm(d, params["w5"]) + params["b5"])
    dec = jax.nn.sigmoid(mm(d, params["w6"]) + params["b6"])
    return z, lat, trans, dec


if __name__ == "__main__":
    hidden_size = 32
    batch = 60        # not a multiple of 8: exercises the overhanging last block
    sigma = 0.01

    key = jax.random.PRNGKey(0)
    k_params, k_x, k_eps = jax.random.split(key, 3)

    params = init_params(k_params, hidden_size)
    x = jax.random.uniform(k_x, (batch, IN_DIM), jnp.float32)      # MNIST-like [0,1)
    eps = sigma * jax.random.normal(k_eps, (batch, hidden_size), jnp.float32)

    act_dtype = _default_act_dtype()
    prepared = prepare_params(params)        # hoisted: done once, reused per call

    outs = latent_autoencoder_forward(x, prepared, eps, act_dtype=act_dtype)
    outs = jax.block_until_ready(outs)

    # Structural check vs a reference that emulates the kernel's bf16 operands /
    # activation dtype, plus a looser check vs the exact f32 (PyTorch) semantics.
    ref_matched = reference_forward(x, params, eps,
                                    matmul_dtype=jnp.bfloat16, act_dtype=act_dtype)
    ref_f32 = reference_forward(x, params, eps)

    if act_dtype == jnp.bfloat16:
        # bf16 transcendentals (Mosaic vs XLA) add ~1e-2-level differences.
        tol_matched = (5e-2, 5e-2, 2.0e-1, 3e-2)
        tol_f32 = (1.5e-1, 1.5e-1, 3.5e-1, 6e-2)
    else:
        tol_matched = (3e-3, 3e-3, 2e-2, 3e-3)
        tol_f32 = (6e-2, 6e-2, 1.5e-1, 3e-2)

    names = ("encoded", "latent", "transformed", "decoded")
    exp_shapes = ((batch, hidden_size),) * 3 + ((batch, IN_DIM),)
    for name, o, rm, rf, shp, tm_, tf_ in zip(
            names, outs, ref_matched, ref_f32, exp_shapes, tol_matched, tol_f32):
        assert o.shape == shp and o.dtype == jnp.float32, (name, o.shape, o.dtype)
        err_m = float(jnp.max(jnp.abs(o - rm)))
        err_f = float(jnp.max(jnp.abs(o - rf)))
        assert err_m < tm_, (name, "vs matched reference", err_m)
        assert err_f < tf_, (name, "vs f32 reference", err_f)

    print("KERNEL_OK")
</pallas_src>

<mosaic_0001>
module attributes {stable_mosaic.version = 11 : i64} {
  func.func @ltae_kernel(%arg0: i32, %arg1: memref<64x784xf32, #tpu.memory_space<vmem>>, %arg2: memref<784x512xbf16, #tpu.memory_space<vmem>>, %arg3: memref<1x512xf32, #tpu.memory_space<vmem>>, %arg4: memref<512x512xbf16, #tpu.memory_space<vmem>>, %arg5: memref<1x512xf32, #tpu.memory_space<vmem>>, %arg6: memref<512x32xbf16, #tpu.memory_space<vmem>>, %arg7: memref<1x32xf32, #tpu.memory_space<vmem>>, %arg8: memref<1x32xf32, #tpu.memory_space<vmem>>, %arg9: memref<1x32xf32, #tpu.memory_space<vmem>>, %arg10: memref<64x32xf32, #tpu.memory_space<vmem>>, %arg11: memref<32x512xbf16, #tpu.memory_space<vmem>>, %arg12: memref<1x512xf32, #tpu.memory_space<vmem>>, %arg13: memref<512x512xbf16, #tpu.memory_space<vmem>>, %arg14: memref<1x512xf32, #tpu.memory_space<vmem>>, %arg15: memref<512x784xbf16, #tpu.memory_space<vmem>>, %arg16: memref<1x784xf32, #tpu.memory_space<vmem>>, %arg17: memref<64x32xf32, #tpu.memory_space<vmem>>, %arg18: memref<64x32xf32, #tpu.memory_space<vmem>>, %arg19: memref<64x32xf32, #tpu.memory_space<vmem>>, %arg20: memref<64x784xf32, #tpu.memory_space<vmem>>) attributes {dimension_semantics = [#tpu.dimension_semantics<parallel>], iteration_bounds = array<i64: 1>, scalar_prefetch = 0 : i64, scratch_operands = 0 : i64, tpu.core_type = #tpu.core_type<tc>, window_params = [{transform_indices = @transform_0, window_bounds = array<i64: 64, 784>}, {pipeline_mode = #tpu.pipeline_mode<synchronous>, transform_indices = @transform_1, window_bounds = array<i64: 784, 512>}, {pipeline_mode = #tpu.pipeline_mode<synchronous>, transform_indices = @transform_2, window_bounds = array<i64: 1, 512>}, {pipeline_mode = #tpu.pipeline_mode<synchronous>, transform_indices = @transform_3, window_bounds = array<i64: 512, 512>}, {pipeline_mode = #tpu.pipeline_mode<synchronous>, transform_indices = @transform_4, window_bounds = array<i64: 1, 512>}, {pipeline_mode = #tpu.pipeline_mode<synchronous>, transform_indices = @transform_5, window_bounds = array<i64: 512, 32>}, {pipeline_mode = #tpu.pipeline_mode<synchronous>, transform_indices = @transform_6, window_bounds = array<i64: 1, 32>}, {pipeline_mode = #tpu.pipeline_mode<synchronous>, transform_indices = @transform_7, window_bounds = array<i64: 1, 32>}, {pipeline_mode = #tpu.pipeline_mode<synchronous>, transform_indices = @transform_8, window_bounds = array<i64: 1, 32>}, {transform_indices = @transform_9, window_bounds = array<i64: 64, 32>}, {pipeline_mode = #tpu.pipeline_mode<synchronous>, transform_indices = @transform_10, window_bounds = array<i64: 32, 512>}, {pipeline_mode = #tpu.pipeline_mode<synchronous>, transform_indices = @transform_11, window_bounds = array<i64: 1, 512>}, {pipeline_mode = #tpu.pipeline_mode<synchronous>, transform_indices = @transform_12, window_bounds = array<i64: 512, 512>}, {pipeline_mode = #tpu.pipeline_mode<synchronous>, transform_indices = @transform_13, window_bounds = array<i64: 1, 512>}, {pipeline_mode = #tpu.pipeline_mode<synchronous>, transform_indices = @transform_14, window_bounds = array<i64: 512, 784>}, {pipeline_mode = #tpu.pipeline_mode<synchronous>, transform_indices = @transform_15, window_bounds = array<i64: 1, 784>}, {transform_indices = @transform_16, window_bounds = array<i64: 64, 32>}, {transform_indices = @transform_17, window_bounds = array<i64: 64, 32>}, {transform_indices = @transform_18, window_bounds = array<i64: 64, 32>}, {transform_indices = @transform_19, window_bounds = array<i64: 64, 784>}]} {
    %c0 = arith.constant 0 : index
    %c0_0 = arith.constant 0 : index
    %0 = vector.load %arg1[%c0, %c0_0] : memref<64x784xf32, #tpu.memory_space<vmem>>, vector<64x784xf32>
    %1 = arith.truncf %0 : vector<64x784xf32> to vector<64x784xbf16>
    %c0_1 = arith.constant 0 : index
    %c0_2 = arith.constant 0 : index
    %2 = vector.load %arg2[%c0_1, %c0_2] : memref<784x512xbf16, #tpu.memory_space<vmem>>, vector<784x512xbf16>
    %cst = arith.constant dense<0.000000e+00> : vector<64x512xf32>
    %3 = tpu.matmul %1, %2, %cst {dimension_numbers = #tpu.dot_dimension_numbers<[1], [0], [0], [1], [0, 0, 1, 1], [], []>} : vector<64x784xbf16>, vector<784x512xbf16>, vector<64x512xf32> -> vector<64x512xf32>
    %c0_3 = arith.constant 0 : index
    %c0_4 = arith.constant 0 : index
    %4 = vector.load %arg3[%c0_3, %c0_4] : memref<1x512xf32, #tpu.memory_space<vmem>>, vector<1x512xf32>
    %5 = vector.broadcast %4 : vector<1x512xf32> to vector<64x512xf32>
    %6 = arith.addf %3, %5 : vector<64x512xf32>
    %cst_5 = arith.constant 0.000000e+00 : f32
    %7 = vector.broadcast %cst_5 : f32 to vector<64x512xf32>
    %8 = arith.maximumf %6, %7 : vector<64x512xf32>
    %9 = math.absf %6 : vector<64x512xf32>
    %cst_6 = arith.constant 0.000000e+00 : f32
    %10 = vector.broadcast %cst_6 : f32 to vector<64x512xf32>
    %11 = arith.subf %10, %9 : vector<64x512xf32>
    %12 = math.exp %11 : vector<64x512xf32>
    %cst_7 = arith.constant 1.000000e+00 : f32
    %13 = vector.broadcast %cst_7 : f32 to vector<64x512xf32>
    %14 = arith.addf %13, %12 : vector<64x512xf32>
    %15 = math.log %14 : vector<64x512xf32>
    %16 = arith.addf %8, %15 : vector<64x512xf32>
    %17 = arith.truncf %16 : vector<64x512xf32> to vector<64x512xbf16>
    %c0_8 = arith.constant 0 : index
    %c0_9 = arith.constant 0 : index
    %18 = vector.load %arg4[%c0_8, %c0_9] : memref<512x512xbf16, #tpu.memory_space<vmem>>, vector<512x512xbf16>
    %cst_10 = arith.constant dense<0.000000e+00> : vector<64x512xf32>
    %19 = tpu.matmul %17, %18, %cst_10 {dimension_numbers = #tpu.dot_dimension_numbers<[1], [0], [0], [1], [0, 0, 1, 1], [], []>} : vector<64x512xbf16>, vector<512x512xbf16>, vector<64x512xf32> -> vector<64x512xf32>
    %c0_11 = arith.constant 0 : index
    %c0_12 = arith.constant 0 : index
    %20 = vector.load %arg5[%c0_11, %c0_12] : memref<1x512xf32, #tpu.memory_space<vmem>>, vector<1x512xf32>
    %21 = vector.broadcast %20 : vector<1x512xf32> to vector<64x512xf32>
    %22 = arith.addf %19, %21 : vector<64x512xf32>
    %cst_13 = arith.constant 0.000000e+00 : f32
    %23 = vector.broadcast %cst_13 : f32 to vector<64x512xf32>
    %24 = arith.maximumf %22, %23 : vector<64x512xf32>
    %25 = math.absf %22 : vector<64x512xf32>
    %cst_14 = arith.constant 0.000000e+00 : f32
    %26 = vector.broadcast %cst_14 : f32 to vector<64x512xf32>
    %27 = arith.subf %26, %25 : vector<64x512xf32>
    %28 = math.exp %27 : vector<64x512xf32>
    %cst_15 = arith.constant 1.000000e+00 : f32
    %29 = vector.broadcast %cst_15 : f32 to vector<64x512xf32>
    %30 = arith.addf %29, %28 : vector<64x512xf32>
    %31 = math.log %30 : vector<64x512xf32>
    %32 = arith.addf %24, %31 : vector<64x512xf32>
    %33 = arith.truncf %32 : vector<64x512xf32> to vector<64x512xbf16>
    %c0_16 = arith.constant 0 : index
    %c0_17 = arith.constant 0 : index
    %34 = vector.load %arg6[%c0_16, %c0_17] : memref<512x32xbf16, #tpu.memory_space<vmem>>, vector<512x32xbf16>
    %cst_18 = arith.constant dense<0.000000e+00> : vector<64x32xf32>
    %35 = tpu.matmul %33, %34, %cst_18 {dimension_numbers = #tpu.dot_dimension_numbers<[1], [0], [0], [1], [0, 0, 1, 1], [], []>} : vector<64x512xbf16>, vector<512x32xbf16>, vector<64x32xf32> -> vector<64x32xf32>
    %c0_19 = arith.constant 0 : index
    %c0_20 = arith.constant 0 : index
    %36 = vector.load %arg7[%c0_19, %c0_20] : memref<1x32xf32, #tpu.memory_space<vmem>>, vector<1x32xf32>
    %37 = vector.broadcast %36 : vector<1x32xf32> to vector<64x32xf32>
    %38 = arith.addf %35, %37 : vector<64x32xf32>
    %c0_21 = arith.constant 0 : index
    %c0_22 = arith.constant 0 : index
    %39 = vector.load %arg17[%c0_21, %c0_22] : memref<64x32xf32, #tpu.memory_space<vmem>>, vector<64x32xf32>
    tpu.vector_store %arg17[%c0_21, %c0_22], %38 {strides = array<i32>} : memref<64x32xf32, #tpu.memory_space<vmem>>, vector<64x32xf32>,
    %c0_23 = arith.constant 0 : index
    %c0_24 = arith.constant 0 : index
    %40 = vector.load %arg8[%c0_23, %c0_24] : memref<1x32xf32, #tpu.memory_space<vmem>>, vector<1x32xf32>
    %c0_25 = arith.constant 0 : index
    %c0_26 = arith.constant 0 : index
    %41 = vector.load %arg9[%c0_25, %c0_26] : memref<1x32xf32, #tpu.memory_space<vmem>>, vector<1x32xf32>
    %42 = vector.broadcast %41 : vector<1x32xf32> to vector<64x32xf32>
    %43 = arith.addf %38, %42 : vector<64x32xf32>
    %44 = vector.broadcast %40 : vector<1x32xf32> to vector<64x32xf32>
    %45 = arith.mulf %44, %43 : vector<64x32xf32>
    %c0_27 = arith.constant 0 : index
    %c0_28 = arith.constant 0 : index
    %46 = vector.load %arg18[%c0_27, %c0_28] : memref<64x32xf32, #tpu.memory_space<vmem>>, vector<64x32xf32>
    tpu.vector_store %arg18[%c0_27, %c0_28], %45 {strides = array<i32>} : memref<64x32xf32, #tpu.memory_space<vmem>>, vector<64x32xf32>,
    %cst_29 = arith.constant dense<0.000000e+00> : vector<64xf32>
    %47 = vector.multi_reduction <add>, %38, %cst_29 [1] : vector<64x32xf32> to vector<64xf32>
    %48 = vector.shape_cast %47 : vector<64xf32> to vector<64x1xf32>
    %cst_30 = arith.constant 3.125000e-02 : f32
    %49 = vector.broadcast %cst_30 : f32 to vector<64x1xf32>
    %50 = arith.mulf %48, %49 : vector<64x1xf32>
    %51 = vector.broadcast %50 : vector<64x1xf32> to vector<64x32xf32>
    %52 = arith.subf %38, %51 : vector<64x32xf32>
    %53 = arith.mulf %52, %52 : vector<64x32xf32>
    %cst_31 = arith.constant dense<0.000000e+00> : vector<64xf32>
    %54 = vector.multi_reduction <add>, %53, %cst_31 [1] : vector<64x32xf32> to vector<64xf32>
    %55 = vector.shape_cast %54 : vector<64xf32> to vector<64x1xf32>
    %cst_32 = arith.constant 0.0322580636 : f32
    %56 = vector.broadcast %cst_32 : f32 to vector<64x1xf32>
    %57 = arith.mulf %55, %56 : vector<64x1xf32>
    %58 = math.rsqrt %57 : vector<64x1xf32>
    %59 = vector.broadcast %58 : vector<64x1xf32> to vector<64x32xf32>
    %60 = arith.mulf %52, %59 : vector<64x32xf32>
    %c0_33 = arith.constant 0 : index
    %c0_34 = arith.constant 0 : index
    %61 = vector.load %arg19[%c0_33, %c0_34] : memref<64x32xf32, #tpu.memory_space<vmem>>, vector<64x32xf32>
    tpu.vector_store %arg19[%c0_33, %c0_34], %60 {strides = array<i32>} : memref<64x32xf32, #tpu.memory_space<vmem>>, vector<64x32xf32>,
    %c0_35 = arith.constant 0 : index
    %c0_36 = arith.constant 0 : index
    %62 = vector.load %arg10[%c0_35, %c0_36] : memref<64x32xf32, #tpu.memory_space<vmem>>, vector<64x32xf32>
    %63 = arith.addf %45, %62 : vector<64x32xf32>
    %64 = arith.truncf %63 : vector<64x32xf32> to vector<64x32xbf16>
    %c0_37 = arith.constant 0 : index
    %c0_38 = arith.constant 0 : index
    %65 = vector.load %arg11[%c0_37, %c0_38] : memref<32x512xbf16, #tpu.memory_space<vmem>>, vector<32x512xbf16>
    %cst_39 = arith.constant dense<0.000000e+00> : vector<64x512xf32>
    %66 = tpu.matmul %64, %65, %cst_39 {dimension_numbers = #tpu.dot_dimension_numbers<[1], [0], [0], [1], [0, 0, 1, 1], [], []>} : vector<64x32xbf16>, vector<32x512xbf16>, vector<64x512xf32> -> vector<64x512xf32>
    %c0_40 = arith.constant 0 : index
    %c0_41 = arith.constant 0 : index
    %67 = vector.load %arg12[%c0_40, %c0_41] : memref<1x512xf32, #tpu.memory_space<vmem>>, vector<1x512xf32>
    %68 = vector.broadcast %67 : vector<1x512xf32> to vector<64x512xf32>
    %69 = arith.addf %66, %68 : vector<64x512xf32>
    %cst_42 = arith.constant 0.000000e+00 : f32
    %70 = vector.broadcast %cst_42 : f32 to vector<64x512xf32>
    %71 = arith.maximumf %69, %70 : vector<64x512xf32>
    %72 = math.absf %69 : vector<64x512xf32>
    %cst_43 = arith.constant 0.000000e+00 : f32
    %73 = vector.broadcast %cst_43 : f32 to vector<64x512xf32>
    %74 = arith.subf %73, %72 : vector<64x512xf32>
    %75 = math.exp %74 : vector<64x512xf32>
    %cst_44 = arith.constant 1.000000e+00 : f32
    %76 = vector.broadcast %cst_44 : f32 to vector<64x512xf32>
    %77 = arith.addf %76, %75 : vector<64x512xf32>
    %78 = math.log %77 : vector<64x512xf32>
    %79 = arith.addf %71, %78 : vector<64x512xf32>
    %80 = arith.truncf %79 : vector<64x512xf32> to vector<64x512xbf16>
    %c0_45 = arith.constant 0 : index
    %c0_46 = arith.constant 0 : index
    %81 = vector.load %arg13[%c0_45, %c0_46] : memref<512x512xbf16, #tpu.memory_space<vmem>>, vector<512x512xbf16>
    %cst_47 = arith.constant dense<0.000000e+00> : vector<64x512xf32>
    %82 = tpu.matmul %80, %81, %cst_47 {dimension_numbers = #tpu.dot_dimension_numbers<[1], [0], [0], [1], [0, 0, 1, 1], [], []>} : vector<64x512xbf16>, vector<512x512xbf16>, vector<64x512xf32> -> vector<64x512xf32>
    %c0_48 = arith.constant 0 : index
    %c0_49 = arith.constant 0 : index
    %83 = vector.load %arg14[%c0_48, %c0_49] : memref<1x512xf32, #tpu.memory_space<vmem>>, vector<1x512xf32>
    %84 = vector.broadcast %83 : vector<1x512xf32> to vector<64x512xf32>
    %85 = arith.addf %82, %84 : vector<64x512xf32>
    %cst_50 = arith.constant 0.000000e+00 : f32
    %86 = vector.broadcast %cst_50 : f32 to vector<64x512xf32>
    %87 = arith.maximumf %85, %86 : vector<64x512xf32>
    %88 = math.absf %85 : vector<64x512xf32>
    %cst_51 = arith.constant 0.000000e+00 : f32
    %89 = vector.broadcast %cst_51 : f32 to vector<64x512xf32>
    %90 = arith.subf %89, %88 : vector<64x512xf32>
    %91 = math.exp %90 : vector<64x512xf32>
    %cst_52 = arith.constant 1.000000e+00 : f32
    %92 = vector.broadcast %cst_52 : f32 to vector<64x512xf32>
    %93 = arith.addf %92, %91 : vector<64x512xf32>
    %94 = math.log %93 : vector<64x512xf32>
    %95 = arith.addf %87, %94 : vector<64x512xf32>
    %96 = arith.truncf %95 : vector<64x512xf32> to vector<64x512xbf16>
    %c0_53 = arith.constant 0 : index
    %c0_54 = arith.constant 0 : index
    %97 = vector.load %arg15[%c0_53, %c0_54] : memref<512x784xbf16, #tpu.memory_space<vmem>>, vector<512x784xbf16>
    %cst_55 = arith.constant dense<0.000000e+00> : vector<64x784xf32>
    %98 = tpu.matmul %96, %97, %cst_55 {dimension_numbers = #tpu.dot_dimension_numbers<[1], [0], [0], [1], [0, 0, 1, 1], [], []>} : vector<64x512xbf16>, vector<512x784xbf16>, vector<64x784xf32> -> vector<64x784xf32>
    %c0_56 = arith.constant 0 : index
    %c0_57 = arith.constant 0 : index
    %99 = vector.load %arg16[%c0_56, %c0_57] : memref<1x784xf32, #tpu.memory_space<vmem>>, vector<1x784xf32>
    %100 = vector.broadcast %99 : vector<1x784xf32> to vector<64x784xf32>
    %101 = arith.addf %98, %100 : vector<64x784xf32>
    %cst_58 = arith.constant 5.000000e-01 : f32
    %102 = vector.broadcast %cst_58 : f32 to vector<64x784xf32>
    %103 = arith.mulf %102, %101 : vector<64x784xf32>
    %104 = math.tanh %103 : vector<64x784xf32>
    %cst_59 = arith.constant 5.000000e-01 : f32
    %105 = vector.broadcast %cst_59 : f32 to vector<64x784xf32>
    %106 = arith.mulf %105, %104 : vector<64x784xf32>
    %cst_60 = arith.constant 5.000000e-01 : f32
    %107 = vector.broadcast %cst_60 : f32 to vector<64x784xf32>
    %108 = arith.addf %107, %106 : vector<64x784xf32>
    %c0_61 = arith.constant 0 : index
    %c0_62 = arith.constant 0 : index
    %109 = vector.load %arg20[%c0_61, %c0_62] : memref<64x784xf32, #tpu.memory_space<vmem>>, vector<64x784xf32>
    tpu.vector_store %arg20[%c0_61, %c0_62], %108 {strides = array<i32>} : memref<64x784xf32, #tpu.memory_space<vmem>>, vector<64x784xf32>,
    return
  }
  func.func @transform_0(%arg0: i32) -> (i32, i32) {
    %c0_i32 = arith.constant 0 : i32
    %c0_i32_0 = arith.constant 0 : i32
    return %arg0, %c0_i32 : i32, i32
  }
  func.func @transform_1(%arg0: i32) -> (i32, i32) {
    %c0_i32 = arith.constant 0 : i32
    %c0_i32_0 = arith.constant 0 : i32
    %c0_i32_1 = arith.constant 0 : i32
    return %c0_i32, %c0_i32_0 : i32, i32
  }
  func.func @transform_2(%arg0: i32) -> (i32, i32) {
    %c0_i32 = arith.constant 0 : i32
    %c0_i32_0 = arith.constant 0 : i32
    %c0_i32_1 = arith.constant 0 : i32
    return %c0_i32, %c0_i32_0 : i32, i32
  }
  func.func @transform_3(%arg0: i32) -> (i32, i32) {
    %c0_i32 = arith.constant 0 : i32
    %c0_i32_0 = arith.constant 0 : i32
    %c0_i32_1 = arith.constant 0 : i32
    return %c0_i32, %c0_i32_0 : i32, i32
  }
  func.func @transform_4(%arg0: i32) -> (i32, i32) {
    %c0_i32 = arith.constant 0 : i32
    %c0_i32_0 = arith.constant 0 : i32
    %c0_i32_1 = arith.constant 0 : i32
    return %c0_i32, %c0_i32_0 : i32, i32
  }
  func.func @transform_5(%arg0: i32) -> (i32, i32) {
    %c0_i32 = arith.constant 0 : i32
    %c0_i32_0 = arith.constant 0 : i32
    %c0_i32_1 = arith.constant 0 : i32
    return %c0_i32, %c0_i32_0 : i32, i32
  }
  func.func @transform_6(%arg0: i32) -> (i32, i32) {
    %c0_i32 = arith.constant 0 : i32
    %c0_i32_0 = arith.constant 0 : i32
    %c0_i32_1 = arith.constant 0 : i32
    return %c0_i32, %c0_i32_0 : i32, i32
  }
  func.func @transform_7(%arg0: i32) -> (i32, i32) {
    %c0_i32 = arith.constant 0 : i32
    %c0_i32_0 = arith.constant 0 : i32
    %c0_i32_1 = arith.constant 0 : i32
    return %c0_i32, %c0_i32_0 : i32, i32
  }
  func.func @transform_8(%arg0: i32) -> (i32, i32) {
    %c0_i32 = arith.constant 0 : i32
    %c0_i32_0 = arith.constant 0 : i32
    %c0_i32_1 = arith.constant 0 : i32
    return %c0_i32, %c0_i32_0 : i32, i32
  }
  func.func @transform_9(%arg0: i32) -> (i32, i32) {
    %c0_i32 = arith.constant 0 : i32
    %c0_i32_0 = arith.constant 0 : i32
    return %arg0, %c0_i32 : i32, i32
  }
  func.func @transform_10(%arg0: i32) -> (i32, i32) {
    %c0_i32 = arith.constant 0 : i32
    %c0_i32_0 = arith.constant 0 : i32
    %c0_i32_1 = arith.constant 0 : i32
    return %c0_i32, %c0_i32_0 : i32, i32
  }
  func.func @transform_11(%arg0: i32) -> (i32, i32) {
    %c0_i32 = arith.constant 0 : i32
    %c0_i32_0 = arith.constant 0 : i32
    %c0_i32_1 = arith.constant 0 : i32
    return %c0_i32, %c0_i32_0 : i32, i32
  }
  func.func @transform_12(%arg0: i32) -> (i32, i32) {
    %c0_i32 = arith.constant 0 : i32
    %c0_i32_0 = arith.constant 0 : i32
    %c0_i32_1 = arith.constant 0 : i32
    return %c0_i32, %c0_i32_0 : i32, i32
  }
  func.func @transform_13(%arg0: i32) -> (i32, i32) {
    %c0_i32 = arith.constant 0 : i32
    %c0_i32_0 = arith.constant 0 : i32
    %c0_i32_1 = arith.constant 0 : i32
    return %c0_i32, %c0_i32_0 : i32, i32
  }
  func.func @transform_14(%arg0: i32) -> (i32, i32) {
    %c0_i32 = arith.constant 0 : i32
    %c0_i32_0 = arith.constant 0 : i32
    %c0_i32_1 = arith.constant 0 : i32
    return %c0_i32, %c0_i32_0 : i32, i32
  }
  func.func @transform_15(%arg0: i32) -> (i32, i32) {
    %c0_i32 = arith.constant 0 : i32
    %c0_i32_0 = arith.constant 0 : i32
    %c0_i32_1 = arith.constant 0 : i32
    return %c0_i32, %c0_i32_0 : i32, i32
  }
  func.func @transform_16(%arg0: i32) -> (i32, i32) {
    %c0_i32 = arith.constant 0 : i32
    %c0_i32_0 = arith.constant 0 : i32
    return %arg0, %c0_i32 : i32, i32
  }
  func.func @transform_17(%arg0: i32) -> (i32, i32) {
    %c0_i32 = arith.constant 0 : i32
    %c0_i32_0 = arith.constant 0 : i32
    return %arg0, %c0_i32 : i32, i32
  }
  func.func @transform_18(%arg0: i32) -> (i32, i32) {
    %c0_i32 = arith.constant 0 : i32
    %c0_i32_0 = arith.constant 0 : i32
    return %arg0, %c0_i32 : i32, i32
  }
  func.func @transform_19(%arg0: i32) -> (i32, i32) {
    %c0_i32 = arith.constant 0 : i32
    %c0_i32_0 = arith.constant 0 : i32
    return %arg0, %c0_i32 : i32, i32
  }
}

</mosaic_0001>

<llo_original>
// kernel: tpu_custom_call.1
$region0: #{tpu_custom_call.1}
  #allocation0 [shape = 'u32[]', space=smem, size = 0x4, offset = 0x4, fixed_abs, tag = 'smem constant byte address 0x4 - core index']
  #allocation1 [shape = 'u32[144,128]{1,0:T(1,128)}', space=vmem, size = 0x12000, scoped, tag = 'internal scratch']
  %s0 = inlined_call_operand.hbm [shape: f32[60,784], index: 0, kind: input, shape index: {}]
  %s1 = inlined_call_operand.vmem [shape: bf16[784,512], index: 1, kind: input, shape index: {}]
  %s2 = inlined_call_operand.vmem [shape: f32[1,512], index: 2, kind: input, shape index: {}]
  %s3 = inlined_call_operand.vmem [shape: bf16[512,512], index: 3, kind: input, shape index: {}]
  %s4 = inlined_call_operand.vmem [shape: f32[1,512], index: 4, kind: input, shape index: {}]
  %s5 = inlined_call_operand.vmem [shape: bf16[512,32], index: 5, kind: input, shape index: {}]
  %s6 = inlined_call_operand.vmem [shape: f32[1,32], index: 6, kind: input, shape index: {}]
  %s7 = inlined_call_operand.vmem [shape: f32[1,32], index: 7, kind: input, shape index: {}]
  %s8 = inlined_call_operand.vmem [shape: f32[1,32], index: 8, kind: input, shape index: {}]
  %s9 = inlined_call_operand.vmem [shape: f32[60,32], index: 9, kind: input, shape index: {}]
  %s10 = inlined_call_operand.vmem [shape: bf16[32,512], index: 10, kind: input, shape index: {}]
  %s11 = inlined_call_operand.vmem [shape: f32[1,512], index: 11, kind: input, shape index: {}]
  %s12 = inlined_call_operand.vmem [shape: bf16[512,512], index: 12, kind: input, shape index: {}]
  %s13 = inlined_call_operand.vmem [shape: f32[1,512], index: 13, kind: input, shape index: {}]
  %s14 = inlined_call_operand.vmem [shape: bf16[512,784], index: 14, kind: input, shape index: {}]
  %s15 = inlined_call_operand.vmem [shape: f32[1,784], index: 15, kind: input, shape index: {}]
  %s16 = inlined_call_operand.vmem [shape: f32[60,32], index: 16, kind: output, shape index: {0}]
  %s17 = inlined_call_operand.vmem [shape: f32[60,32], index: 17, kind: output, shape index: {1}]
  %s18 = inlined_call_operand.vmem [shape: f32[60,32], index: 18, kind: output, shape index: {2}]
  %s19 = inlined_call_operand.hbm [shape: f32[60,784], index: 19, kind: output, shape index: {3}]
  %20 = xla_tuple %s16, %s17, %s18, %s19
  %s21 = sld [smem:[#allocation0]]
  $region102: #{tpu_custom_call.1} parent=0
    _
  %s23 = ssub.s32 1, %s21
  %s24 = scalar_select 0, %s23, %s21
  $region1: #{tpu_custom_call.1} parent=0
    #allocation2 [shape = 'u8[229376]{0}', space=vmem, size = 0x38000, scoped, tag = 'input window, operand 0, single buffered']
    #allocation3 [shape = 's32[1]{0}', space=sflag, size = 0x4, scoped, tag = 'scoped memory for tpu_custom_call.1']
    #allocation4 [shape = 's32[1]{0}', space=sflag, size = 0x4, scoped, tag = 'scoped memory for tpu_custom_call.1']
    #allocation5 [shape = 'u8[229376]{0}', space=vmem, size = 0x38000, scoped, tag = 'output window, operand 3, single buffered']
    %25 = vsyncpa [#allocation3], 0
    %26 = vsyncpa [#allocation4], 0
    // Predicated region
    $region2: #{tpu_custom_call.1} parent=1 // pred_check
      _
    $region3: #{tpu_custom_call.1} parent=1 // pred_check_branch
      %28 = sbr.rel (0) target = $region5
    $region4: #{tpu_custom_call.1} parent=1 // pred_region
      %s30 = ssub.s32 7168, 7168
      %31 = vsyncadd [#allocation3], %s30
      %s32 = sshll.u32 [#allocation2], 4
      %s33 = int_to_ptr.vmem [resolvable:$true] %s32
      %38 = dma.hbm_to_vmem [thread:$0]  %s0, 7168, %s33, [#allocation3], 896, 896, 56
    $region5: #{tpu_custom_call.1} parent=1 // pred_fallthru
      _
    // Predicated region
    $region6: #{tpu_custom_call.1} parent=1 // pred_check
      _
    $region7: #{tpu_custom_call.1} parent=1 // pred_check_branch
      %40 = sbr.rel (0) target = $region9
    $region8: #{tpu_custom_call.1} parent=1 // pred_region
      _
    $region9: #{tpu_custom_call.1} parent=1 // pred_fallthru
      _
    // Predicated region
    $region10: #{tpu_custom_call.1} parent=1 // pred_check
      _
    $region11: #{tpu_custom_call.1} parent=1 // pred_check_branch
      %42 = sbr.rel (0) target = $region13
    $region12: #{tpu_custom_call.1} parent=1 // pred_region
      _
    $region13: #{tpu_custom_call.1} parent=1 // pred_fallthru
      _
    // Predicated region
    $region14: #{tpu_custom_call.1} parent=1 // pred_check
      _
    $region15: #{tpu_custom_call.1} parent=1 // pred_check_branch
      %44 = sbr.rel (0) target = $region17
    $region16: #{tpu_custom_call.1} parent=1 // pred_region
      _
    $region17: #{tpu_custom_call.1} parent=1 // pred_fallthru
      _
    // Predicated region
    $region18: #{tpu_custom_call.1} parent=1 // pred_check
      _
    $region19: #{tpu_custom_call.1} parent=1 // pred_check_branch
      %46 = sbr.rel (0) target = $region21
    $region20: #{tpu_custom_call.1} parent=1 // pred_region
      _
    $region21: #{tpu_custom_call.1} parent=1 // pred_fallthru
      _
    // Predicated region
    $region22: #{tpu_custom_call.1} parent=1 // pred_check
      _
    $region23: #{tpu_custom_call.1} parent=1 // pred_check_branch
      %48 = sbr.rel (0) target = $region25
    $region24: #{tpu_custom_call.1} parent=1 // pred_region
      _
    $region25: #{tpu_custom_call.1} parent=1 // pred_fallthru
      _
    // Predicated region
    $region26: #{tpu_custom_call.1} parent=1 // pred_check
      _
    $region27: #{tpu_custom_call.1} parent=1 // pred_check_branch
      %50 = sbr.rel (0) target = $region29
    $region28: #{tpu_custom_call.1} parent=1 // pred_region
      _
    $region29: #{tpu_custom_call.1} parent=1 // pred_fallthru
      _
    // Predicated region
    $region30: #{tpu_custom_call.1} parent=1 // pred_check
      _
    $region31: #{tpu_custom_call.1} parent=1 // pred_check_branch
      %52 = sbr.rel (0) target = $region33
    $region32: #{tpu_custom_call.1} parent=1 // pred_region
      _
    $region33: #{tpu_custom_call.1} parent=1 // pred_fallthru
      _
    // Predicated region
    $region34: #{tpu_custom_call.1} parent=1 // pred_check
      _
    $region35: #{tpu_custom_call.1} parent=1 // pred_check_branch
      %54 = sbr.rel (0) target = $region37
    $region36: #{tpu_custom_call.1} parent=1 // pred_region
      _
    $region37: #{tpu_custom_call.1} parent=1 // pred_fallthru
      _
    // Predicated region
    $region38: #{tpu_custom_call.1} parent=1 // pred_check
      _
    $region39: #{tpu_custom_call.1} parent=1 // pred_check_branch
      %56 = sbr.rel (0) target = $region41
    $region40: #{tpu_custom_call.1} parent=1 // pred_region
      _
    $region41: #{tpu_custom_call.1} parent=1 // pred_fallthru
      _
    // Predicated region
    $region42: #{tpu_custom_call.1} parent=1 // pred_check
      _
    $region43: #{tpu_custom_call.1} parent=1 // pred_check_branch
      %58 = sbr.rel (0) target = $region45
    $region44: #{tpu_custom_call.1} parent=1 // pred_region
      _
    $region45: #{tpu_custom_call.1} parent=1 // pred_fallthru
      _
    // Predicated region
    $region46: #{tpu_custom_call.1} parent=1 // pred_check
      _
    $region47: #{tpu_custom_call.1} parent=1 // pred_check_branch
      %60 = sbr.rel (0) target = $region49
    $region48: #{tpu_custom_call.1} parent=1 // pred_region
      _
    $region49: #{tpu_custom_call.1} parent=1 // pred_fallthru
      _
    // Predicated region
    $region50: #{tpu_custom_call.1} parent=1 // pred_check
      _
    $region51: #{tpu_custom_call.1} parent=1 // pred_check_branch
      %62 = sbr.rel (0) target = $region53
    $region52: #{tpu_custom_call.1} parent=1 // pred_region
      _
    $region53: #{tpu_custom_call.1} parent=1 // pred_fallthru
      _
    // Predicated region
    $region54: #{tpu_custom_call.1} parent=1 // pred_check
      _
    $region55: #{tpu_custom_call.1} parent=1 // pred_check_branch
      %64 = sbr.rel (0) target = $region57
    $region56: #{tpu_custom_call.1} parent=1 // pred_region
      _
    $region57: #{tpu_custom_call.1} parent=1 // pred_fallthru
      _
    // Predicated region
    $region58: #{tpu_custom_call.1} parent=1 // pred_check
      _
    $region59: #{tpu_custom_call.1} parent=1 // pred_check_branch
      %66 = sbr.rel (0) target = $region61
    $region60: #{tpu_custom_call.1} parent=1 // pred_region
      _
    $region61: #{tpu_custom_call.1} parent=1 // pred_fallthru
      _
    // Predicated region
    $region62: #{tpu_custom_call.1} parent=1 // pred_check
      _
    $region63: #{tpu_custom_call.1} parent=1 // pred_check_branch
      %68 = sbr.rel (0) target = $region65
    $region64: #{tpu_custom_call.1} parent=1 // pred_region
      _
    $region65: #{tpu_custom_call.1} parent=1 // pred_fallthru
      _
    // Predicated region
    $region66: #{tpu_custom_call.1} parent=1 // pred_check
      _
    $region67: #{tpu_custom_call.1} parent=1 // pred_check_branch
      %70 = sbr.rel (0) target = $region69
    $region68: #{tpu_custom_call.1} parent=1 // pred_region
      %71 = dma.done [#allocation3], 7168
    $region69: #{tpu_custom_call.1} parent=1 // pred_fallthru
      _
    %v73 = vld [vmem:[#allocation2] sm:$0xff]
    %v74 = vld [vmem:[#allocation2 + $0x8] sm:$0xff]
    %v75 = vld [vmem:[#allocation2 + $0x10] sm:$0xff]
    %v76 = vld [vmem:[#allocation2 + $0x18] sm:$0xff]
    %v77 = vld [vmem:[#allocation2 + $0x20] sm:$0xff]
    %v78 = vld [vmem:[#allocation2 + $0x28] sm:$0xff]
    %v79 = vld [vmem:[#allocation2 + $0x30] sm:$0xff]
    %v80 = vld [vmem:[#allocation2 + $0x38] sm:$0xff]
    %v81 = vld [vmem:[#allocation2 + $0x40] sm:$0xff]
    %v82 = vld [vmem:[#allocation2 + $0x48] sm:$0xff]
    %v83 = vld [vmem:[#allocation2 + $0x50] sm:$0xff]
    %v84 = vld [vmem:[#allocation2 + $0x58] sm:$0xff]
    %v85 = vld [vmem:[#allocation2 + $0x60] sm:$0xff]
    %v86 = vld [vmem:[#allocation2 + $0x68] sm:$0xff]
    %v87 = vld [vmem:[#allocation2 + $0x70] sm:$0xff]
    %v88 = vld [vmem:[#allocation2 + $0x78] sm:$0xff]
    %v89 = vld [vmem:[#allocation2 + $0x80] sm:$0xff]
    %v90 = vld [vmem:[#allocation2 + $0x88] sm:$0xff]
    %v91 = vld [vmem:[#allocation2 + $0x90] sm:$0xff]
    %v92 = vld [vmem:[#allocation2 + $0x98] sm:$0xff]
    %v93 = vld [vmem:[#allocation2 + $0xa0] sm:$0xff]
    %v94 = vld [vmem:[#allocation2 + $0xa8] sm:$0xff]
    %v95 = vld [vmem:[#allocation2 + $0xb0] sm:$0xff]
    %v96 = vld [vmem:[#allocation2 + $0xb8] sm:$0xff]
    %v97 = vld [vmem:[#allocation2 + $0xc0] sm:$0xff]
    %v98 = vld [vmem:[#allocation2 + $0xc8] sm:$0xff]
    %v99 = vld [vmem:[#allocation2 + $0xd0] sm:$0xff]
    %v100 = vld [vmem:[#allocation2 + $0xd8] sm:$0xff]
    %v101 = vld [vmem:[#allocation2 + $0xe0] sm:$0xff]
    %v102 = vld [vmem:[#allocation2 + $0xe8] sm:$0xff]
    %v103 = vld [vmem:[#allocation2 + $0xf0] sm:$0xff]
    %v104 = vld [vmem:[#allocation2 + $0xf8] sm:$0xff]
    %v105 = vld [vmem:[#allocation2 + $0x100] sm:$0xff]
    %v106 = vld [vmem:[#allocation2 + $0x108] sm:$0xff]
    %v107 = vld [vmem:[#allocation2 + $0x110] sm:$0xff]
    %v108 = vld [vmem:[#allocation2 + $0x118] sm:$0xff]
    %v109 = vld [vmem:[#allocation2 + $0x120] sm:$0xff]
    %v110 = vld [vmem:[#allocation2 + $0x128] sm:$0xff]
    %v111 = vld [vmem:[#allocation2 + $0x130] sm:$0xff]
    %v112 = vld [vmem:[#allocation2 + $0x138] sm:$0xff]
    %v113 = vld [vmem:[#allocation2 + $0x140] sm:$0xff]
    %v114 = vld [vmem:[#allocation2 + $0x148] sm:$0xff]
    %v115 = vld [vmem:[#allocation2 + $0x150] sm:$0xff]
    %v116 = vld [vmem:[#allocation2 + $0x158] sm:$0xff]
    %v117 = vld [vmem:[#allocation2 + $0x160] sm:$0xff]
    %v118 = vld [vmem:[#allocation2 + $0x168] sm:$0xff]
    %v119 = vld [vmem:[#allocation2 + $0x170] sm:$0xff]
    %v120 = vld [vmem:[#allocation2 + $0x178] sm:$0xff]
    %v121 = vld [vmem:[#allocation2 + $0x180] sm:$0xff]
    %v122 = vld [vmem:[#allocation2 + $0x188] sm:$0xff]
    %v123 = vld [vmem:[#allocation2 + $0x190] sm:$0xff]
    %v124 = vld [vmem:[#allocation2 + $0x198] sm:$0xff]
    %v125 = vld [vmem:[#allocation2 + $0x1a0] sm:$0xff]
    %v126 = vld [vmem:[#allocation2 + $0x1a8] sm:$0xff]
    %v127 = vld [vmem:[#allocation2 + $0x1b0] sm:$0xff]
    %v128 = vld [vmem:[#allocation2 + $0x1b8] sm:$0xff]
    %v129 = vpack.c.bf16 %v80, %v73
    %v130 = vpack.c.bf16 %v81, %v74
    %v131 = vpack.c.bf16 %v82, %v75
    %v132 = vpack.c.bf16 %v83, %v76
    %v133 = vpack.c.bf16 %v84, %v77
    %v134 = vpack.c.bf16 %v85, %v78
    %v135 = vpack.c.bf16 %v86, %v79
    %v136 = vpack.c.bf16 %v94, %v87
    %v137 = vpack.c.bf16 %v95, %v88
    %v138 = vpack.c.bf16 %v96, %v89
    %v139 = vpack.c.bf16 %v97, %v90
    %v140 = vpack.c.bf16 %v98, %v91
    %v141 = vpack.c.bf16 %v99, %v92
    %v142 = vpack.c.bf16 %v100, %v93
    %v143 = vpack.c.bf16 %v108, %v101
    %v144 = vpack.c.bf16 %v109, %v102
    %v145 = vpack.c.bf16 %v110, %v103
    %v146 = vpack.c.bf16 %v111, %v104
    %v147 = vpack.c.bf16 %v112, %v105
    %v148 = vpack.c.bf16 %v113, %v106
    %v149 = vpack.c.bf16 %v114, %v107
    %v150 = vpack.c.bf16 %v122, %v115
    %v151 = vpack.c.bf16 %v123, %v116
    %v152 = vpack.c.bf16 %v124, %v117
    %v153 = vpack.c.bf16 %v125, %v118
    %v154 = vpack.c.bf16 %v126, %v119
    %v155 = vpack.c.bf16 %v127, %v120
    %v156 = vpack.c.bf16 %v128, %v121
    %v157 = vld [vmem:[%s1] sm:$0xff]
    %v158 = vld [vmem:[%s1 + $0x8] sm:$0xff]
    %v159 = vld [vmem:[%s1 + $0x10] sm:$0xff]
    %v160 = vld [vmem:[%s1 + $0x18] sm:$0xff]
    %v161 = vld [vmem:[%s1 + $0x20] sm:$0xff]
    %v162 = vld [vmem:[%s1 + $0x28] sm:$0xff]
    %v163 = vld [vmem:[%s1 + $0x30] sm:$0xff]
    %v164 = vld [vmem:[%s1 + $0x38] sm:$0xff]
    %v165 = vld [vmem:[%s1 + $0x40] sm:$0xff]
    %v166 = vld [vmem:[%s1 + $0x48] sm:$0xff]
    %v167 = vld [vmem:[%s1 + $0x50] sm:$0xff]
    %v168 = vld [vmem:[%s1 + $0x58] sm:$0xff]
    %v169 = vld [vmem:[%s1 + $0x60] sm:$0xff]
    %v170 = vld [vmem:[%s1 + $0x68] sm:$0xff]
    %v171 = vld [vmem:[%s1 + $0x70] sm:$0xff]
    %v172 = vld [vmem:[%s1 + $0x78] sm:$0xff]
    %v173 = vld [vmem:[%s1 + $0x80] sm:$0xff]
    %v174 = vld [vmem:[%s1 + $0x88] sm:$0xff]
    %v175 = vld [vmem:[%s1 + $0x90] sm:$0xff]
    %v176 = vld [vmem:[%s1 + $0x98] sm:$0xff]
    %v177 = vld [vmem:[%s1 + $0xa0] sm:$0xff]
    %v178 = vld [vmem:[%s1 + $0xa8] sm:$0xff]
    %v179 = vld [vmem:[%s1 + $0xb0] sm:$0xff]
    %v180 = vld [vmem:[%s1 + $0xb8] sm:$0xff]
    %v181 = vld [vmem:[%s1 + $0xc0] sm:$0xff]
    %v182 = vld [vmem:[%s1 + $0xc8] sm:$0xff]
    %v183 = vld [vmem:[%s1 + $0xd0] sm:$0xff]
    %v184 = vld [vmem:[%s1 + $0xd8] sm:$0xff]
    %v185 = vld [vmem:[%s1 + $0xe0] sm:$0xff]
    %v186 = vld [vmem:[%s1 + $0xe8] sm:$0xff]
    %v187 = vld [vmem:[%s1 + $0xf0] sm:$0xff]
    %v188 = vld [vmem:[%s1 + $0xf8] sm:$0xff]
    %v189 = vld [vmem:[%s1 + $0x100] sm:$0xff]
    %v190 = vld [vmem:[%s1 + $0x108] sm:$0xff]
    %v191 = vld [vmem:[%s1 + $0x110] sm:$0xff]
    %v192 = vld [vmem:[%s1 + $0x118] sm:$0xff]
    %v193 = vld [vmem:[%s1 + $0x120] sm:$0xff]
    %v194 = vld [vmem:[%s1 + $0x128] sm:$0xff]
    %v195 = vld [vmem:[%s1 + $0x130] sm:$0xff]
    %v196 = vld [vmem:[%s1 + $0x138] sm:$0xff]
    %v197 = vld [vmem:[%s1 + $0x140] sm:$0xff]
    %v198 = vld [vmem:[%s1 + $0x148] sm:$0xff]
    %v199 = vld [vmem:[%s1 + $0x150] sm:$0xff]
    %v200 = vld [vmem:[%s1 + $0x158] sm:$0xff]
    %v201 = vld [vmem:[%s1 + $0x160] sm:$0xff]
    %v202 = vld [vmem:[%s1 + $0x168] sm:$0xff]
    %v203 = vld [vmem:[%s1 + $0x170] sm:$0xff]
    %v204 = vld [vmem:[%s1 + $0x178] sm:$0xff]
    %v205 = vld [vmem:[%s1 + $0x180] sm:$0xff]
    %v206 = vld [vmem:[%s1 + $0x188] sm:$0xff]
    %v207 = vld [vmem:[%s1 + $0x190] sm:$0xff]
    %v208 = vld [vmem:[%s1 + $0x198] sm:$0xff]
    %v209 = vld [vmem:[%s1 + $0x1a0] sm:$0xff]
    %v210 = vld [vmem:[%s1 + $0x1a8] sm:$0xff]
    %v211 = vld [vmem:[%s1 + $0x1b0] sm:$0xff]
    %v212 = vld [vmem:[%s1 + $0x1b8] sm:$0xff]
    %v213 = vld [vmem:[%s1 + $0x1c0] sm:$0xff]
    %v214 = vld [vmem:[%s1 + $0x1c8] sm:$0xff]
    %v215 = vld [vmem:[%s1 + $0x1d0] sm:$0xff]
    %v216 = vld [vmem:[%s1 + $0x1d8] sm:$0xff]
    %v217 = vld [vmem:[%s1 + $0x1e0] sm:$0xff]
    %v218 = vld [vmem:[%s1 + $0x1e8] sm:$0xff]
    %v219 = vld [vmem:[%s1 + $0x1f0] sm:$0xff]
    %v220 = vld [vmem:[%s1 + $0x1f8] sm:$0xff]
    %v221 = vld [vmem:[%s1 + $0x200] sm:$0xff]
    %v222 = vld [vmem:[%s1 + $0x208] sm:$0xff]
    %v223 = vld [vmem:[%s1 + $0x210] sm:$0xff]
    %v224 = vld [vmem:[%s1 + $0x218] sm:$0xff]
    %v225 = vld [vmem:[%s1 + $0x220] sm:$0xff]
    %v226 = vld [vmem:[%s1 + $0x228] sm:$0xff]
    %v227 = vld [vmem:[%s1 + $0x230] sm:$0xff]
    %v228 = vld [vmem:[%s1 + $0x238] sm:$0xff]
    %v229 = vld [vmem:[%s1 + $0x240] sm:$0xff]
    %v230 = vld [vmem:[%s1 + $0x248] sm:$0xff]
    %v231 = vld [vmem:[%s1 + $0x250] sm:$0xff]
    %v232 = vld [vmem:[%s1 + $0x258] sm:$0xff]
    %v233 = vld [vmem:[%s1 + $0x260] sm:$0xff]
    %v234 = vld [vmem:[%s1 + $0x268] sm:$0xff]
    %v235 = vld [vmem:[%s1 + $0x270] sm:$0xff]
    %v236 = vld [vmem:[%s1 + $0x278] sm:$0xff]
    %v237 = vld [vmem:[%s1 + $0x280] sm:$0xff]
    %v238 = vld [vmem:[%s1 + $0x288] sm:$0xff]
    %v239 = vld [vmem:[%s1 + $0x290] sm:$0xff]
    %v240 = vld [vmem:[%s1 + $0x298] sm:$0xff]
    %v241 = vld [vmem:[%s1 + $0x2a0] sm:$0xff]
    %v242 = vld [vmem:[%s1 + $0x2a8] sm:$0xff]
    %v243 = vld [vmem:[%s1 + $0x2b0] sm:$0xff]
    %v244 = vld [vmem:[%s1 + $0x2b8] sm:$0xff]
    %v245 = vld [vmem:[%s1 + $0x2c0] sm:$0xff]
    %v246 = vld [vmem:[%s1 + $0x2c8] sm:$0xff]
    %v247 = vld [vmem:[%s1 + $0x2d0] sm:$0xff]
    %v248 = vld [vmem:[%s1 + $0x2d8] sm:$0xff]
    %v249 = vld [vmem:[%s1 + $0x2e0] sm:$0xff]
    %v250 = vld [vmem:[%s1 + $0x2e8] sm:$0xff]
    %v251 = vld [vmem:[%s1 + $0x2f0] sm:$0xff]
    %v252 = vld [vmem:[%s1 + $0x2f8] sm:$0xff]
    %v253 = vld [vmem:[%s1 + $0x300] sm:$0xff]
    %v254 = vld [vmem:[%s1 + $0x308] sm:$0xff]
    %v255 = vld [vmem:[%s1 + $0x310] sm:$0xff]
    %v256 = vld [vmem:[%s1 + $0x318] sm:$0xff]
    %v257 = vld [vmem:[%s1 + $0x320] sm:$0xff]
    %v258 = vld [vmem:[%s1 + $0x328] sm:$0xff]
    %v259 = vld [vmem:[%s1 + $0x330] sm:$0xff]
    %v260 = vld [vmem:[%s1 + $0x338] sm:$0xff]
    %v261 = vld [vmem:[%s1 + $0x340] sm:$0xff]
    %v262 = vld [vmem:[%s1 + $0x348] sm:$0xff]
    %v263 = vld [vmem:[%s1 + $0x350] sm:$0xff]
    %v264 = vld [vmem:[%s1 + $0x358] sm:$0xff]
    %v265 = vld [vmem:[%s1 + $0x360] sm:$0xff]
    %v266 = vld [vmem:[%s1 + $0x368] sm:$0xff]
    %v267 = vld [vmem:[%s1 + $0x370] sm:$0xff]
    %v268 = vld [vmem:[%s1 + $0x378] sm:$0xff]
    %v269 = vld [vmem:[%s1 + $0x380] sm:$0xff]
    %v270 = vld [vmem:[%s1 + $0x388] sm:$0xff]
    %v271 = vld [vmem:[%s1 + $0x390] sm:$0xff]
    %v272 = vld [vmem:[%s1 + $0x398] sm:$0xff]
    %v273 = vld [vmem:[%s1 + $0x3a0] sm:$0xff]
    %v274 = vld [vmem:[%s1 + $0x3a8] sm:$0xff]
    %v275 = vld [vmem:[%s1 + $0x3b0] sm:$0xff]
    %v276 = vld [vmem:[%s1 + $0x3b8] sm:$0xff]
    %v277 = vld [vmem:[%s1 + $0x3c0] sm:$0xff]
    %v278 = vld [vmem:[%s1 + $0x3c8] sm:$0xff]
    %v279 = vld [vmem:[%s1 + $0x3d0] sm:$0xff]
    %v280 = vld [vmem:[%s1 + $0x3d8] sm:$0xff]
    %v281 = vld [vmem:[%s1 + $0x3e0] sm:$0xff]
    %v282 = vld [vmem:[%s1 + $0x3e8] sm:$0xff]
    %v283 = vld [vmem:[%s1 + $0x3f0] sm:$0xff]
    %v284 = vld [vmem:[%s1 + $0x3f8] sm:$0xff]
    %v285 = vld [vmem:[%s1 + $0x400] sm:$0xff]
    %v286 = vld [vmem:[%s1 + $0x408] sm:$0xff]
    %v287 = vld [vmem:[%s1 + $0x410] sm:$0xff]
    %v288 = vld [vmem:[%s1 + $0x418] sm:$0xff]
    %v289 = vld [vmem:[%s1 + $0x420] sm:$0xff]
    %v290 = vld [vmem:[%s1 + $0x428] sm:$0xff]
    %v291 = vld [vmem:[%s1 + $0x430] sm:$0xff]
    %v292 = vld [vmem:[%s1 + $0x438] sm:$0xff]
    %v293 = vld [vmem:[%s1 + $0x440] sm:$0xff]
    %v294 = vld [vmem:[%s1 + $0x448] sm:$0xff]
    %v295 = vld [vmem:[%s1 + $0x450] sm:$0xff]
    %v296 = vld [vmem:[%s1 + $0x458] sm:$0xff]
    %v297 = vld [vmem:[%s1 + $0x460] sm:$0xff]
    %v298 = vld [vmem:[%s1 + $0x468] sm:$0xff]
    %v299 = vld [vmem:[%s1 + $0x470] sm:$0xff]
    %v300 = vld [vmem:[%s1 + $0x478] sm:$0xff]
    %v301 = vld [vmem:[%s1 + $0x480] sm:$0xff]
    %v302 = vld [vmem:[%s1 + $0x488] sm:$0xff]
    %v303 = vld [vmem:[%s1 + $0x490] sm:$0xff]
    %v304 = vld [vmem:[%s1 + $0x498] sm:$0xff]
    %v305 = vld [vmem:[%s1 + $0x4a0] sm:$0xff]
    %v306 = vld [vmem:[%s1 + $0x4a8] sm:$0xff]
    %v307 = vld [vmem:[%s1 + $0x4b0] sm:$0xff]
    %v308 = vld [vmem:[%s1 + $0x4b8] sm:$0xff]
    %v309 = vld [vmem:[%s1 + $0x4c0] sm:$0xff]
    %v310 = vld [vmem:[%s1 + $0x4c8] sm:$0xff]
    %v311 = vld [vmem:[%s1 + $0x4d0] sm:$0xff]
    %v312 = vld [vmem:[%s1 + $0x4d8] sm:$0xff]
    %v313 = vld [vmem:[%s1 + $0x4e0] sm:$0xff]
    %v314 = vld [vmem:[%s1 + $0x4e8] sm:$0xff]
    %v315 = vld [vmem:[%s1 + $0x4f0] sm:$0xff]
    %v316 = vld [vmem:[%s1 + $0x4f8] sm:$0xff]
    %v317 = vld [vmem:[%s1 + $0x500] sm:$0xff]
    %v318 = vld [vmem:[%s1 + $0x508] sm:$0xff]
    %v319 = vld [vmem:[%s1 + $0x510] sm:$0xff]
    %v320 = vld [vmem:[%s1 + $0x518] sm:$0xff]
    %v321 = vld [vmem:[%s1 + $0x520] sm:$0xff]
    %v322 = vld [vmem:[%s1 + $0x528] sm:$0xff]
    %v323 = vld [vmem:[%s1 + $0x530] sm:$0xff]
    %v324 = vld [vmem:[%s1 + $0x538] sm:$0xff]
    %v325 = vld [vmem:[%s1 + $0x540] sm:$0xff]
    %v326 = vld [vmem:[%s1 + $0x548] sm:$0xff]
    %v327 = vld [vmem:[%s1 + $0x550] sm:$0xff]
    %v328 = vld [vmem:[%s1 + $0x558] sm:$0xff]
    %v329 = vld [vmem:[%s1 + $0x560] sm:$0xff]
    %v330 = vld [vmem:[%s1 + $0x568] sm:$0xff]
    %v331 = vld [vmem:[%s1 + $0x570] sm:$0xff]
    %v332 = vld [vmem:[%s1 + $0x578] sm:$0xff]
    %v333 = vld [vmem:[%s1 + $0x580] sm:$0xff]
    %v334 = vld [vmem:[%s1 + $0x588] sm:$0xff]
    %v335 = vld [vmem:[%s1 + $0x590] sm:$0xff]
    %v336 = vld [vmem:[%s1 + $0x598] sm:$0xff]
    %v337 = vld [vmem:[%s1 + $0x5a0] sm:$0xff]
    %v338 = vld [vmem:[%s1 + $0x5a8] sm:$0xff]
    %v339 = vld [vmem:[%s1 + $0x5b0] sm:$0xff]
    %v340 = vld [vmem:[%s1 + $0x5b8] sm:$0xff]
    %v341 = vld [vmem:[%s1 + $0x5c0] sm:$0xff]
    %v342 = vld [vmem:[%s1 + $0x5c8] sm:$0xff]
    %v343 = vld [vmem:[%s1 + $0x5d0] sm:$0xff]
    %v344 = vld [vmem:[%s1 + $0x5d8] sm:$0xff]
    %v345 = vld [vmem:[%s1 + $0x5e0] sm:$0xff]
    %v346 = vld [vmem:[%s1 + $0x5e8] sm:$0xff]
    %v347 = vld [vmem:[%s1 + $0x5f0] sm:$0xff]
    %v348 = vld [vmem:[%s1 + $0x5f8] sm:$0xff]
    %v349 = vld [vmem:[%s1 + $0x600] sm:$0xff]
    %v350 = vld [vmem:[%s1 + $0x608] sm:$0xff]
    %v351 = vld [vmem:[%s1 + $0x610] sm:$0xff]
    %v352 = vld [vmem:[%s1 + $0x618] sm:$0xff]
    %v353 = vld [vmem:[%s2] sm:$0xf]
    %v355 = vlaneseq
    %v356 = vshrl.u32 %v355, 7
    %v357 = vsub.s32 0, %v356
    %v358 = vrot.slane %v353, %v357
    %v359 = vlaneseq
    %v360 = vshrl.u32 %v359, 7
    %v361 = vsub.s32 1, %v360
    %v362 = vrot.slane %v353, %v361
    %v363 = vlaneseq
    %v364 = vshrl.u32 %v363, 7
    %v365 = vsub.s32 2, %v364
    %v366 = vrot.slane %v353, %v365
    %v367 = vlaneseq
    %v368 = vshrl.u32 %v367, 7
    %v369 = vsub.s32 3, %v368
    %v370 = vrot.slane %v353, %v369
    %v571 = vunpack.c.l.b16 %v157
    %v572 = vunpack.c.h.b16 %v157
    %v573 = vunpack.c.l.b16 %v158
    %v574 = vunpack.c.h.b16 %v158
    %v575 = vunpack.c.l.b16 %v159
    %v576 = vunpack.c.h.b16 %v159
    %v577 = vunpack.c.l.b16 %v160
    %v578 = vunpack.c.h.b16 %v160
    %v579 = vunpack.c.l.b16 %v161
    %v580 = vunpack.c.h.b16 %v161
    %v581 = vunpack.c.l.b16 %v162
    %v582 = vunpack.c.h.b16 %v162
    %v583 = vunpack.c.l.b16 %v163
    %v584 = vunpack.c.h.b16 %v163
    %v585 = vunpack.c.l.b16 %v164
    %v586 = vunpack.c.h.b16 %v164
    %v587 = vunpack.c.l.b16 %v165
    %v588 = vunpack.c.h.b16 %v165
    %v589 = vunpack.c.l.b16 %v166
    %v590 = vunpack.c.h.b16 %v166
    %v591 = vunpack.c.l.b16 %v167
    %v592 = vunpack.c.h.b16 %v167
    %v593 = vunpack.c.l.b16 %v168
    %v594 = vunpack.c.h.b16 %v168
    %v595 = vunpack.c.l.b16 %v169
    %v596 = vunpack.c.h.b16 %v169
    %v597 = vunpack.c.l.b16 %v170
    %v598 = vunpack.c.h.b16 %v170
    %v599 = vunpack.c.l.b16 %v171
    %v600 = vunpack.c.h.b16 %v171
    %v601 = vunpack.c.l.b16 %v172
    %v602 = vunpack.c.h.b16 %v172
    %v603 = vunpack.c.l.b16 %v173
    %v604 = vunpack.c.h.b16 %v173
    %v605 = vunpack.c.l.b16 %v174
    %v606 = vunpack.c.h.b16 %v174
    %v607 = vunpack.c.l.b16 %v175
    %v608 = vunpack.c.h.b16 %v175
    %v609 = vunpack.c.l.b16 %v176
    %v610 = vunpack.c.h.b16 %v176
    %v611 = vunpack.c.l.b16 %v177
    %v612 = vunpack.c.h.b16 %v177
    %v613 = vunpack.c.l.b16 %v178
    %v614 = vunpack.c.h.b16 %v178
    %v615 = vunpack.c.l.b16 %v179
    %v616 = vunpack.c.h.b16 %v179
    %v617 = vunpack.c.l.b16 %v180
    %v618 = vunpack.c.h.b16 %v180
    %v619 = vunpack.c.l.b16 %v181
    %v620 = vunpack.c.h.b16 %v181
    %v621 = vunpack.c.l.b16 %v182
    %v622 = vunpack.c.h.b16 %v182
    %v623 = vunpack.c.l.b16 %v183
    %v624 = vunpack.c.h.b16 %v183
    %v625 = vunpack.c.l.b16 %v184
    %v626 = vunpack.c.h.b16 %v184
    %v627 = vunpack.c.l.b16 %v185
    %v628 = vunpack.c.h.b16 %v185
    %v629 = vunpack.c.l.b16 %v186
    %v630 = vunpack.c.h.b16 %v186
    %v631 = vunpack.c.l.b16 %v187
    %v632 = vunpack.c.h.b16 %v187
    %v633 = vunpack.c.l.b16 %v188
    %v634 = vunpack.c.h.b16 %v188
    %v635 = vunpack.c.l.b16 %v189
    %v636 = vunpack.c.h.b16 %v189
    %v637 = vunpack.c.l.b16 %v190
    %v638 = vunpack.c.h.b16 %v190
    %v639 = vunpack.c.l.b16 %v191
    %v640 = vunpack.c.h.b16 %v191
    %v641 = vunpack.c.l.b16 %v192
    %v642 = vunpack.c.h.b16 %v192
    %v643 = vunpack.c.l.b16 %v193
    %v644 = vunpack.c.h.b16 %v193
    %v645 = vunpack.c.l.b16 %v194
    %v646 = vunpack.c.h.b16 %v194
    %v647 = vunpack.c.l.b16 %v195
    %v648 = vunpack.c.h.b16 %v195
    %v649 = vunpack.c.l.b16 %v196
    %v650 = vunpack.c.h.b16 %v196
    %v651 = vunpack.c.l.b16 %v197
    %v652 = vunpack.c.h.b16 %v197
    %v653 = vunpack.c.l.b16 %v198
    %v654 = vunpack.c.h.b16 %v198
    %v655 = vunpack.c.l.b16 %v199
    %v656 = vunpack.c.h.b16 %v199
    %v657 = vunpack.c.l.b16 %v200
    %v658 = vunpack.c.h.b16 %v200
    %v659 = vunpack.c.l.b16 %v201
    %v660 = vunpack.c.h.b16 %v201
    %v661 = vunpack.c.l.b16 %v202
    %v662 = vunpack.c.h.b16 %v202
    %v663 = vunpack.c.l.b16 %v203
    %v664 = vunpack.c.h.b16 %v203
    %v665 = vunpack.c.l.b16 %v204
    %v666 = vunpack.c.h.b16 %v204
    %v667 = vunpack.c.l.b16 %v205
    %v668 = vunpack.c.h.b16 %v205
    %v669 = vunpack.c.l.b16 %v206
    %v670 = vunpack.c.h.b16 %v206
    %v671 = vunpack.c.l.b16 %v207
    %v672 = vunpack.c.h.b16 %v207
    %v673 = vunpack.c.l.b16 %v208
    %v674 = vunpack.c.h.b16 %v208
    %v675 = vunpack.c.l.b16 %v209
    %v676 = vunpack.c.h.b16 %v209
    %v677 = vunpack.c.l.b16 %v210
    %v678 = vunpack.c.h.b16 %v210
    %v679 = vunpack.c.l.b16 %v211
    %v680 = vunpack.c.h.b16 %v211
    %v681 = vunpack.c.l.b16 %v212
    %v682 = vunpack.c.h.b16 %v212
    %v683 = vunpack.c.l.b16 %v213
    %v684 = vunpack.c.h.b16 %v213
    %v685 = vunpack.c.l.b16 %v214
    %v686 = vunpack.c.h.b16 %v214
    %v687 = vunpack.c.l.b16 %v215
    %v688 = vunpack.c.h.b16 %v215
    %v689 = vunpack.c.l.b16 %v216
    %v690 = vunpack.c.h.b16 %v216
    %v691 = vunpack.c.l.b16 %v217
    %v692 = vunpack.c.h.b16 %v217
    %v693 = vunpack.c.l.b16 %v218
    %v694 = vunpack.c.h.b16 %v218
    %v695 = vunpack.c.l.b16 %v219
    %v696 = vunpack.c.h.b16 %v219
    %v697 = vunpack.c.l.b16 %v220
    %v698 = vunpack.c.h.b16 %v220
    %v699 = vunpack.c.l.b16 %v221
    %v700 = vunpack.c.h.b16 %v221
    %v701 = vunpack.c.l.b16 %v222
    %v702 = vunpack.c.h.b16 %v222
    %v703 = vunpack.c.l.b16 %v223
    %v704 = vunpack.c.h.b16 %v223
    %v705 = vunpack.c.l.b16 %v224
    %v706 = vunpack.c.h.b16 %v224
    %v707 = vunpack.c.l.b16 %v225
    %v708 = vunpack.c.h.b16 %v225
    %v709 = vunpack.c.l.b16 %v226
    %v710 = vunpack.c.h.b16 %v226
    %v711 = vunpack.c.l.b16 %v227
    %v712 = vunpack.c.h.b16 %v227
    %v713 = vunpack.c.l.b16 %v228
    %v714 = vunpack.c.h.b16 %v228
    %v715 = vunpack.c.l.b16 %v229
    %v716 = vunpack.c.h.b16 %v229
    %v717 = vunpack.c.l.b16 %v230
    %v718 = vunpack.c.h.b16 %v230
    %v719 = vunpack.c.l.b16 %v231
    %v720 = vunpack.c.h.b16 %v231
    %v721 = vunpack.c.l.b16 %v232
    %v722 = vunpack.c.h.b16 %v232
    %v723 = vunpack.c.l.b16 %v233
    %v724 = vunpack.c.h.b16 %v233
    %v725 = vunpack.c.l.b16 %v234
    %v726 = vunpack.c.h.b16 %v234
    %v727 = vunpack.c.l.b16 %v235
    %v728 = vunpack.c.h.b16 %v235
    %v729 = vunpack.c.l.b16 %v236
    %v730 = vunpack.c.h.b16 %v236
    %v731 = vunpack.c.l.b16 %v237
    %v732 = vunpack.c.h.b16 %v237
    %v733 = vunpack.c.l.b16 %v238
    %v734 = vunpack.c.h.b16 %v238
    %v735 = vunpack.c.l.b16 %v239
    %v736 = vunpack.c.h.b16 %v239
    %v737 = vunpack.c.l.b16 %v240
    %v738 = vunpack.c.h.b16 %v240
    %v739 = vunpack.c.l.b16 %v241
    %v740 = vunpack.c.h.b16 %v241
    %v741 = vunpack.c.l.b16 %v242
    %v742 = vunpack.c.h.b16 %v242
    %v743 = vunpack.c.l.b16 %v243
    %v744 = vunpack.c.h.b16 %v243
    %v745 = vunpack.c.l.b16 %v244
    %v746 = vunpack.c.h.b16 %v244
    %v747 = vunpack.c.l.b16 %v245
    %v748 = vunpack.c.h.b16 %v245
    %v749 = vunpack.c.l.b16 %v246
    %v750 = vunpack.c.h.b16 %v246
    %v751 = vunpack.c.l.b16 %v247
    %v752 = vunpack.c.h.b16 %v247
    %v753 = vunpack.c.l.b16 %v248
    %v754 = vunpack.c.h.b16 %v248
    %v755 = vunpack.c.l.b16 %v249
    %v756 = vunpack.c.h.b16 %v249
    %v757 = vunpack.c.l.b16 %v250
    %v758 = vunpack.c.h.b16 %v250
    %v759 = vunpack.c.l.b16 %v251
    %v760 = vunpack.c.h.b16 %v251
    %v761 = vunpack.c.l.b16 %v252
    %v762 = vunpack.c.h.b16 %v252
    %v763 = vunpack.c.l.b16 %v253
    %v764 = vunpack.c.h.b16 %v253
    %v765 = vunpack.c.l.b16 %v254
    %v766 = vunpack.c.h.b16 %v254
    %v767 = vunpack.c.l.b16 %v255
    %v768 = vunpack.c.h.b16 %v255
    %v769 = vunpack.c.l.b16 %v256
    %v770 = vunpack.c.h.b16 %v256
    %v771 = vunpack.c.l.b16 %v257
    %v772 = vunpack.c.h.b16 %v257
    %v773 = vunpack.c.l.b16 %v258
    %v774 = vunpack.c.h.b16 %v258
    %v775 = vunpack.c.l.b16 %v259
    %v776 = vunpack.c.h.b16 %v259
    %v777 = vunpack.c.l.b16 %v260
    %v778 = vunpack.c.h.b16 %v260
    %v779 = vunpack.c.l.b16 %v261
    %v780 = vunpack.c.h.b16 %v261
    %v781 = vunpack.c.l.b16 %v262
    %v782 = vunpack.c.h.b16 %v262
    %v783 = vunpack.c.l.b16 %v263
    %v784 = vunpack.c.h.b16 %v263
    %v785 = vunpack.c.l.b16 %v264
    %v786 = vunpack.c.h.b16 %v264
    %v787 = vunpack.c.l.b16 %v265
    %v788 = vunpack.c.h.b16 %v265
    %v789 = vunpack.c.l.b16 %v266
    %v790 = vunpack.c.h.b16 %v266
    %v791 = vunpack.c.l.b16 %v267
    %v792 = vunpack.c.h.b16 %v267
    %v793 = vunpack.c.l.b16 %v268
    %v794 = vunpack.c.h.b16 %v268
    %v795 = vunpack.c.l.b16 %v269
    %v796 = vunpack.c.h.b16 %v269
    %v797 = vunpack.c.l.b16 %v270
    %v798 = vunpack.c.h.b16 %v270
    %v799 = vunpack.c.l.b16 %v271
    %v800 = vunpack.c.h.b16 %v271
    %v801 = vunpack.c.l.b16 %v272
    %v802 = vunpack.c.h.b16 %v272
    %v803 = vunpack.c.l.b16 %v273
    %v804 = vunpack.c.h.b16 %v273
    %v805 = vunpack.c.l.b16 %v274
    %v806 = vunpack.c.h.b16 %v274
    %v807 = vunpack.c.l.b16 %v275
    %v808 = vunpack.c.h.b16 %v275
    %v809 = vunpack.c.l.b16 %v276
    %v810 = vunpack.c.h.b16 %v276
    %v811 = vunpack.c.l.b16 %v277
    %v812 = vunpack.c.h.b16 %v277
    %v813 = vunpack.c.l.b16 %v278
    %v814 = vunpack.c.h.b16 %v278
    %v815 = vunpack.c.l.b16 %v279
    %v816 = vunpack.c.h.b16 %v279
    %v817 = vunpack.c.l.b16 %v280
    %v818 = vunpack.c.h.b16 %v280
    %v819 = vunpack.c.l.b16 %v281
    %v820 = vunpack.c.h.b16 %v281
    %v821 = vunpack.c.l.b16 %v282
    %v822 = vunpack.c.h.b16 %v282
    %v823 = vunpack.c.l.b16 %v283
    %v824 = vunpack.c.h.b16 %v283
    %v825 = vunpack.c.l.b16 %v284
    %v826 = vunpack.c.h.b16 %v284
    %v827 = vunpack.c.l.b16 %v285
    %v828 = vunpack.c.h.b16 %v285
    %v829 = vunpack.c.l.b16 %v286
    %v830 = vunpack.c.h.b16 %v286
    %v831 = vunpack.c.l.b16 %v287
    %v832 = vunpack.c.h.b16 %v287
    %v833 = vunpack.c.l.b16 %v288
    %v834 = vunpack.c.h.b16 %v288
    %v835 = vunpack.c.l.b16 %v289
    %v836 = vunpack.c.h.b16 %v289
    %v837 = vunpack.c.l.b16 %v290
    %v838 = vunpack.c.h.b16 %v290
    %v839 = vunpack.c.l.b16 %v291
    %v840 = vunpack.c.h.b16 %v291
    %v841 = vunpack.c.l.b16 %v292
    %v842 = vunpack.c.h.b16 %v292
    %v843 = vunpack.c.l.b16 %v293
    %v844 = vunpack.c.h.b16 %v293
    %v845 = vunpack.c.l.b16 %v294
    %v846 = vunpack.c.h.b16 %v294
    %v847 = vunpack.c.l.b16 %v295
    %v848 = vunpack.c.h.b16 %v295
    %v849 = vunpack.c.l.b16 %v296
    %v850 = vunpack.c.h.b16 %v296
    %v851 = vunpack.c.l.b16 %v297
    %v852 = vunpack.c.h.b16 %v297
    %v853 = vunpack.c.l.b16 %v298
    %v854 = vunpack.c.h.b16 %v298
    %v855 = vunpack.c.l.b16 %v299
    %v856 = vunpack.c.h.b16 %v299
    %v857 = vunpack.c.l.b16 %v300
    %v858 = vunpack.c.h.b16 %v300
    %v859 = vunpack.c.l.b16 %v301
    %v860 = vunpack.c.h.b16 %v301
    %v861 = vunpack.c.l.b16 %v302
    %v862 = vunpack.c.h.b16 %v302
    %v863 = vunpack.c.l.b16 %v303
    %v864 = vunpack.c.h.b16 %v303
    %v865 = vunpack.c.l.b16 %v304
    %v866 = vunpack.c.h.b16 %v304
    %v867 = vunpack.c.l.b16 %v305
    %v868 = vunpack.c.h.b16 %v305
    %v869 = vunpack.c.l.b16 %v306
    %v870 = vunpack.c.h.b16 %v306
    %v871 = vunpack.c.l.b16 %v307
    %v872 = vunpack.c.h.b16 %v307
    %v873 = vunpack.c.l.b16 %v308
    %v874 = vunpack.c.h.b16 %v308
    %v875 = vunpack.c.l.b16 %v309
    %v876 = vunpack.c.h.b16 %v309
    %v877 = vunpack.c.l.b16 %v310
    %v878 = vunpack.c.h.b16 %v310
    %v879 = vunpack.c.l.b16 %v311
    %v880 = vunpack.c.h.b16 %v311
    %v881 = vunpack.c.l.b16 %v312
    %v882 = vunpack.c.h.b16 %v312
    %v883 = vunpack.c.l.b16 %v313
    %v884 = vunpack.c.h.b16 %v313
    %v885 = vunpack.c.l.b16 %v314
    %v886 = vunpack.c.h.b16 %v314
    %v887 = vunpack.c.l.b16 %v315
    %v888 = vunpack.c.h.b16 %v315
    %v889 = vunpack.c.l.b16 %v316
    %v890 = vunpack.c.h.b16 %v316
    %v891 = vunpack.c.l.b16 %v317
    %v892 = vunpack.c.h.b16 %v317
    %v893 = vunpack.c.l.b16 %v318
    %v894 = vunpack.c.h.b16 %v318
    %v895 = vunpack.c.l.b16 %v319
    %v896 = vunpack.c.h.b16 %v319
    %v897 = vunpack.c.l.b16 %v320
    %v898 = vunpack.c.h.b16 %v320
    %v899 = vunpack.c.l.b16 %v321
    %v900 = vunpack.c.h.b16 %v321
    %v901 = vunpack.c.l.b16 %v322
    %v902 = vunpack.c.h.b16 %v322
    %v903 = vunpack.c.l.b16 %v323
    %v904 = vunpack.c.h.b16 %v323
    %v905 = vunpack.c.l.b16 %v324
    %v906 = vunpack.c.h.b16 %v324
    %v907 = vunpack.c.l.b16 %v325
    %v908 = vunpack.c.h.b16 %v325
    %v909 = vunpack.c.l.b16 %v326
    %v910 = vunpack.c.h.b16 %v326
    %v911 = vunpack.c.l.b16 %v327
    %v912 = vunpack.c.h.b16 %v327
    %v913 = vunpack.c.l.b16 %v328
    %v914 = vunpack.c.h.b16 %v328
    %v915 = vunpack.c.l.b16 %v329
    %v916 = vunpack.c.h.b16 %v329
    %v917 = vunpack.c.l.b16 %v330
    %v918 = vunpack.c.h.b16 %v330
    %v919 = vunpack.c.l.b16 %v331
    %v920 = vunpack.c.h.b16 %v331
    %v921 = vunpack.c.l.b16 %v332
    %v922 = vunpack.c.h.b16 %v332
    %v923 = vunpack.c.l.b16 %v333
    %v924 = vunpack.c.h.b16 %v333
    %v925 = vunpack.c.l.b16 %v334
    %v926 = vunpack.c.h.b16 %v334
    %v927 = vunpack.c.l.b16 %v335
    %v928 = vunpack.c.h.b16 %v335
    %v929 = vunpack.c.l.b16 %v336
    %v930 = vunpack.c.h.b16 %v336
    %v931 = vunpack.c.l.b16 %v337
    %v932 = vunpack.c.h.b16 %v337
    %v933 = vunpack.c.l.b16 %v338
    %v934 = vunpack.c.h.b16 %v338
    %v935 = vunpack.c.l.b16 %v339
    %v936 = vunpack.c.h.b16 %v339
    %v937 = vunpack.c.l.b16 %v340
    %v938 = vunpack.c.h.b16 %v340
    %v939 = vunpack.c.l.b16 %v341
    %v940 = vunpack.c.h.b16 %v341
    %v941 = vunpack.c.l.b16 %v342
    %v942 = vunpack.c.h.b16 %v342
    %v943 = vunpack.c.l.b16 %v343
    %v944 = vunpack.c.h.b16 %v343
    %v945 = vunpack.c.l.b16 %v344
    %v946 = vunpack.c.h.b16 %v344
    %v947 = vunpack.c.l.b16 %v345
    %v948 = vunpack.c.h.b16 %v345
    %v949 = vunpack.c.l.b16 %v346
    %v950 = vunpack.c.h.b16 %v346
    %v951 = vunpack.c.l.b16 %v347
    %v952 = vunpack.c.h.b16 %v347
    %v953 = vunpack.c.l.b16 %v348
    %v954 = vunpack.c.h.b16 %v348
    %v955 = vunpack.c.l.b16 %v349
    %v956 = vunpack.c.h.b16 %v349
    %v957 = vunpack.c.l.b16 %v350
    %v958 = vunpack.c.h.b16 %v350
    %v959 = vunpack.c.l.b16 %v351
    %v960 = vunpack.c.h.b16 %v351
    %v961 = vunpack.c.l.b16 %v352
    %v962 = vunpack.c.h.b16 %v352
    %v963 = vpack.c.b16 %v575, %v571
    %v964 = vpack.c.b16 %v576, %v572
    %v965 = vpack.c.b16 %v577, %v573
    %v966 = vpack.c.b16 %v578, %v574
    %v967 = vpack.c.b16 %v583, %v579
    %v968 = vpack.c.b16 %v584, %v580
    %v969 = vpack.c.b16 %v585, %v581
    %v970 = vpack.c.b16 %v586, %v582
    %v971 = vpack.c.b16 %v591, %v587
    %v972 = vpack.c.b16 %v592, %v588
    %v973 = vpack.c.b16 %v593, %v589
    %v974 = vpack.c.b16 %v594, %v590
    %v975 = vpack.c.b16 %v599, %v595
    %v976 = vpack.c.b16 %v600, %v596
    %v977 = vpack.c.b16 %v601, %v597
    %v978 = vpack.c.b16 %v602, %v598
    %v979 = vpack.c.b16 %v607, %v603
    %v980 = vpack.c.b16 %v608, %v604
    %v981 = vpack.c.b16 %v609, %v605
    %v982 = vpack.c.b16 %v610, %v606
    %v983 = vpack.c.b16 %v615, %v611
    %v984 = vpack.c.b16 %v616, %v612
    %v985 = vpack.c.b16 %v617, %v613
    %v986 = vpack.c.b16 %v618, %v614
    %v987 = vpack.c.b16 %v623, %v619
    %v988 = vpack.c.b16 %v624, %v620
    %v989 = vpack.c.b16 %v625, %v621
    %v990 = vpack.c.b16 %v626, %v622
    %v991 = vpack.c.b16 %v631, %v627
    %v992 = vpack.c.b16 %v632, %v628
    %v993 = vpack.c.b16 %v633, %v629
    %v994 = vpack.c.b16 %v634, %v630
    %v995 = vpack.c.b16 %v639, %v635
    %v996 = vpack.c.b16 %v640, %v636
    %v997 = vpack.c.b16 %v641, %v637
    %v998 = vpack.c.b16 %v642, %v638
    %v999 = vpack.c.b16 %v647, %v643
    %v1000 = vpack.c.b16 %v648, %v644
    %v1001 = vpack.c.b16 %v649, %v645
    %v1002 = vpack.c.b16 %v650, %v646
    %v1003 = vpack.c.b16 %v655, %v651
    %v1004 = vpack.c.b16 %v656, %v652
    %v1005 = vpack.c.b16 %v657, %v653
    %v1006 = vpack.c.b16 %v658, %v654
    %v1007 = vpack.c.b16 %v663, %v659
    %v1008 = vpack.c.b16 %v664, %v660
    %v1009 = vpack.c.b16 %v665, %v661
    %v1010 = vpack.c.b16 %v666, %v662
    %v1011 = vpack.c.b16 %v671, %v667
    %v1012 = vpack.c.b16 %v672, %v668
    %v1013 = vpack.c.b16 %v673, %v669
    %v1014 = vpack.c.b16 %v674, %v670
    %v1015 = vpack.c.b16 %v679, %v675
    %v1016 = vpack.c.b16 %v680, %v676
    %v1017 = vpack.c.b16 %v681, %v677
    %v1018 = vpack.c.b16 %v682, %v678
    %v1019 = vpack.c.b16 %v687, %v683
    %v1020 = vpack.c.b16 %v688, %v684
    %v1021 = vpack.c.b16 %v689, %v685
    %v1022 = vpack.c.b16 %v690, %v686
    %v1023 = vpack.c.b16 %v695, %v691
    %v1024 = vpack.c.b16 %v696, %v692
    %v1025 = vpack.c.b16 %v697, %v693
    %v1026 = vpack.c.b16 %v698, %v694
    %v1027 = vpack.c.b16 %v703, %v699
    %v1028 = vpack.c.b16 %v704, %v700
    %v1029 = vpack.c.b16 %v705, %v701
    %v1030 = vpack.c.b16 %v706, %v702
    %v1031 = vpack.c.b16 %v711, %v707
    %v1032 = vpack.c.b16 %v712, %v708
    %v1033 = vpack.c.b16 %v713, %v709
    %v1034 = vpack.c.b16 %v714, %v710
    %v1035 = vpack.c.b16 %v719, %v715
    %v1036 = vpack.c.b16 %v720, %v716
    %v1037 = vpack.c.b16 %v721, %v717
    %v1038 = vpack.c.b16 %v722, %v718
    %v1039 = vpack.c.b16 %v727, %v723
    %v1040 = vpack.c.b16 %v728, %v724
    %v1041 = vpack.c.b16 %v729, %v725
    %v1042 = vpack.c.b16 %v730, %v726
    %v1043 = vpack.c.b16 %v735, %v731
    %v1044 = vpack.c.b16 %v736, %v732
    %v1045 = vpack.c.b16 %v737, %v733
    %v1046 = vpack.c.b16 %v738, %v734
    %v1047 = vpack.c.b16 %v743, %v739
    %v1048 = vpack.c.b16 %v744, %v740
    %v1049 = vpack.c.b16 %v745, %v741
    %v1050 = vpack.c.b16 %v746, %v742
    %v1051 = vpack.c.b16 %v751, %v747
    %v1052 = vpack.c.b16 %v752, %v748
    %v1053 = vpack.c.b16 %v753, %v749
    %v1054 = vpack.c.b16 %v754, %v750
    %v1055 = vpack.c.b16 %v759, %v755
    %v1056 = vpack.c.b16 %v760, %v756
    %v1057 = vpack.c.b16 %v761, %v757
    %v1058 = vpack.c.b16 %v762, %v758
    %v1059 = vpack.c.b16 %v767, %v763
    %v1060 = vpack.c.b16 %v768, %v764
    %v1061 = vpack.c.b16 %v769, %v765
    %v1062 = vpack.c.b16 %v770, %v766
    %v1063 = vpack.c.b16 %v775, %v771
    %v1064 = vpack.c.b16 %v776, %v772
    %v1065 = vpack.c.b16 %v777, %v773
    %v1066 = vpack.c.b16 %v778, %v774
    %v1067 = vpack.c.b16 %v783, %v779
    %v1068 = vpack.c.b16 %v784, %v780
    %v1069 = vpack.c.b16 %v785, %v781
    %v1070 = vpack.c.b16 %v786, %v782
    %v1071 = vpack.c.b16 %v791, %v787
    %v1072 = vpack.c.b16 %v792, %v788
    %v1073 = vpack.c.b16 %v793, %v789
    %v1074 = vpack.c.b16 %v794, %v790
    %v1075 = vpack.c.b16 %v799, %v795
    %v1076 = vpack.c.b16 %v800, %v796
    %v1077 = vpack.c.b16 %v801, %v797
    %v1078 = vpack.c.b16 %v802, %v798
    %v1079 = vpack.c.b16 %v807, %v803
    %v1080 = vpack.c.b16 %v808, %v804
    %v1081 = vpack.c.b16 %v809, %v805
    %v1082 = vpack.c.b16 %v810, %v806
    %v1083 = vpack.c.b16 %v815, %v811
    %v1084 = vpack.c.b16 %v816, %v812
    %v1085 = vpack.c.b16 %v817, %v813
    %v1086 = vpack.c.b16 %v818, %v814
    %v1087 = vpack.c.b16 %v823, %v819
    %v1088 = vpack.c.b16 %v824, %v820
    %v1089 = vpack.c.b16 %v825, %v821
    %v1090 = vpack.c.b16 %v826, %v822
    %v1091 = vpack.c.b16 %v831, %v827
    %v1092 = vpack.c.b16 %v832, %v828
    %v1093 = vpack.c.b16 %v833, %v829
    %v1094 = vpack.c.b16 %v834, %v830
    %v1095 = vpack.c.b16 %v839, %v835
    %v1096 = vpack.c.b16 %v840, %v836
    %v1097 = vpack.c.b16 %v841, %v837
    %v1098 = vpack.c.b16 %v842, %v838
    %v1099 = vpack.c.b16 %v847, %v843
    %v1100 = vpack.c.b16 %v848, %v844
    %v1101 = vpack.c.b16 %v849, %v845
    %v1102 = vpack.c.b16 %v850, %v846
    %v1103 = vpack.c.b16 %v855, %v851
    %v1104 = vpack.c.b16 %v856, %v852
    %v1105 = vpack.c.b16 %v857, %v853
    %v1106 = vpack.c.b16 %v858, %v854
    %v1107 = vpack.c.b16 %v863, %v859
    %v1108 = vpack.c.b16 %v864, %v860
    %v1109 = vpack.c.b16 %v865, %v861
    %v1110 = vpack.c.b16 %v866, %v862
    %v1111 = vpack.c.b16 %v871, %v867
    %v1112 = vpack.c.b16 %v872, %v868
    %v1113 = vpack.c.b16 %v873, %v869
    %v1114 = vpack.c.b16 %v874, %v870
    %v1115 = vpack.c.b16 %v879, %v875
    %v1116 = vpack.c.b16 %v880, %v876
    %v1117 = vpack.c.b16 %v881, %v877
    %v1118 = vpack.c.b16 %v882, %v878
    %v1119 = vpack.c.b16 %v887, %v883
    %v1120 = vpack.c.b16 %v888, %v884
    %v1121 = vpack.c.b16 %v889, %v885
    %v1122 = vpack.c.b16 %v890, %v886
    %v1123 = vpack.c.b16 %v895, %v891
    %v1124 = vpack.c.b16 %v896, %v892
    %v1125 = vpack.c.b16 %v897, %v893
    %v1126 = vpack.c.b16 %v898, %v894
    %v1127 = vpack.c.b16 %v903, %v899
    %v1128 = vpack.c.b16 %v904, %v900
    %v1129 = vpack.c.b16 %v905, %v901
    %v1130 = vpack.c.b16 %v906, %v902
    %v1131 = vpack.c.b16 %v911, %v907
    %v1132 = vpack.c.b16 %v912, %v908
    %v1133 = vpack.c.b16 %v913, %v909
    %v1134 = vpack.c.b16 %v914, %v910
    %v1135 = vpack.c.b16 %v919, %v915
    %v1136 = vpack.c.b16 %v920, %v916
    %v1137 = vpack.c.b16 %v921, %v917
    %v1138 = vpack.c.b16 %v922, %v918
    %v1139 = vpack.c.b16 %v927, %v923
    %v1140 = vpack.c.b16 %v928, %v924
    %v1141 = vpack.c.b16 %v929, %v925
    %v1142 = vpack.c.b16 %v930, %v926
    %v1143 = vpack.c.b16 %v935, %v931
    %v1144 = vpack.c.b16 %v936, %v932
    %v1145 = vpack.c.b16 %v937, %v933
    %v1146 = vpack.c.b16 %v938, %v934
    %v1147 = vpack.c.b16 %v943, %v939
    %v1148 = vpack.c.b16 %v944, %v940
    %v1149 = vpack.c.b16 %v945, %v941
    %v1150 = vpack.c.b16 %v946, %v942
    %v1151 = vpack.c.b16 %v951, %v947
    %v1152 = vpack.c.b16 %v952, %v948
    %v1153 = vpack.c.b16 %v953, %v949
    %v1154 = vpack.c.b16 %v954, %v950
    %v1155 = vpack.c.b16 %v959, %v955
    %v1156 = vpack.c.b16 %v960, %v956
    %v1157 = vpack.c.b16 %v961, %v957
    %v1158 = vpack.c.b16 %v962, %v958
    %vm1355 = vcmask 130048
    %v1357 = vsel %vm1355, %v135, 0
    %v1360 = vsel %vm1355, %v142, 0
    %v1363 = vsel %vm1355, %v149, 0
    %v1366 = vsel %vm1355, %v156, 0
    %1368 = vmatprep.subr.bf16.mxu0 %v992
    %1369 = vmatpush1.bf16.msra.mxu0 %v991
    %1370 = vmatprep.subr.bf16.mxu0 %v988
    %1371 = vmatpush1.bf16.msra.mxu0 %v987
    %1372 = vmatprep.subr.bf16.mxu0 %v984
    %1373 = vmatpush1.bf16.msra.mxu0 %v983
    %1374 = vmatprep.subr.bf16.mxu0 %v980
    %1375 = vmatpush1.bf16.msra.mxu0 %v979
    %1376 = vmatprep.subr.bf16.mxu0 %v976
    %1377 = vmatpush1.bf16.msra.mxu0 %v975
    %1378 = vmatprep.subr.bf16.mxu0 %v972
    %1379 = vmatpush1.bf16.msra.mxu0 %v971
    %1380 = vmatprep.subr.bf16.mxu0 %v968
    %1381 = vmatpush1.bf16.msra.mxu0 %v967
    %1382 = vmatprep.subr.bf16.mxu0 %v964
    %1383 = vmatpush1.bf16.msra.mxu0 %v963
    %1384 = vmatprep.subr.bf16.mxu0 %v1024
    %1385 = vmatpush2.bf16.msra.mxu0 %v1023
    %1386 = vmatprep.subr.bf16.mxu0 %v1020
    %1387 = vmatpush2.bf16.msra.mxu0 %v1019
    %1388 = vmatprep.subr.bf16.mxu0 %v1016
    %1389 = vmatpush2.bf16.msra.mxu0 %v1015
    %1390 = vmatprep.subr.bf16.mxu0 %v1012
    %1391 = vmatpush2.bf16.msra.mxu0 %v1011
    %1392 = vmatprep.subr.bf16.mxu0 %v1008
    %1393 = vmatpush2.bf16.msra.mxu0 %v1007
    %1394 = vmatprep.subr.bf16.mxu0 %v1004
    %1395 = vmatpush2.bf16.msra.mxu0 %v1003
    %1396 = vmatprep.subr.bf16.mxu0 %v1000
    %1397 = vmatpush2.bf16.msra.mxu0 %v999
    %1398 = vmatprep.subr.bf16.mxu0 %v996
    %1399 = vmatpush2.bf16.msra.mxu0 %v995
    %1400 = vmatprep.mubr.bf16.mxu0 %v130
    %1401 = vmatmul.mubr.bf16.gmra.mxu0 %v129
    %v1402 = vpop.f32.mrf.mxu0
    %v1403 = vadd.f32 %v358, %v1402
    %v1404 = vpop.f32.mrf.mxu0
    %v1405 = vadd.f32 %v362, %v1404
    %v1406 = vpop.f32.mrf.mxu0
    %v1407 = vadd.f32 %v358, %v1406
    %v1408 = vpop.f32.mrf.mxu0
    %v1409 = vadd.f32 %v362, %v1408
    %1410 = vmatprep.mubr.bf16.mxu0 %v137
    %1411 = vmatmul.mubr.bf16.gmra.mxu0 %v136
    %v1412 = vpop.f32.mrf.mxu0
    %v1413 = vadd.f32 %v358, %v1412
    %v1414 = vpop.f32.mrf.mxu0
    %v1415 = vadd.f32 %v362, %v1414
    %v1416 = vpop.f32.mrf.mxu0
    %v1417 = vadd.f32 %v358, %v1416
    %v1418 = vpop.f32.mrf.mxu0
    %v1419 = vadd.f32 %v362, %v1418
    %1420 = vmatprep.mubr.bf16.mxu0 %v144
    %1421 = vmatmul.mubr.bf16.gmra.mxu0 %v143
    %v1422 = vpop.f32.mrf.mxu0
    %v1423 = vadd.f32 %v358, %v1422
    %v1424 = vpop.f32.mrf.mxu0
    %v1425 = vadd.f32 %v362, %v1424
    %v1426 = vpop.f32.mrf.mxu0
    %v1427 = vadd.f32 %v358, %v1426
    %v1428 = vpop.f32.mrf.mxu0
    %v1429 = vadd.f32 %v362, %v1428
    %1430 = vmatprep.mubr.bf16.mxu0 %v151
    %1431 = vmatmul.mubr.bf16.gmra.mxu0 %v150
    %v1432 = vpop.f32.mrf.mxu0
    %v1433 = vadd.f32 %v358, %v1432
    %v1434 = vpop.f32.mrf.mxu0
    %v1435 = vadd.f32 %v362, %v1434
    %v1436 = vpop.f32.mrf.mxu0
    %v1437 = vadd.f32 %v358, %v1436
    %v1438 = vpop.f32.mrf.mxu0
    %v1439 = vadd.f32 %v362, %v1438
    %1440 = vdwg.mxu0
    %1441 = vmatprep.subr.bf16.mxu0 %v1056
    %1442 = vmatpush1.bf16.msra.mxu0 %v1055
    %1443 = vmatprep.subr.bf16.mxu0 %v1052
    %1444 = vmatpush1.bf16.msra.mxu0 %v1051
    %1445 = vmatprep.subr.bf16.mxu0 %v1048
    %1446 = vmatpush1.bf16.msra.mxu0 %v1047
    %1447 = vmatprep.subr.bf16.mxu0 %v1044
    %1448 = vmatpush1.bf16.msra.mxu0 %v1043
    %1449 = vmatprep.subr.bf16.mxu0 %v1040
    %1450 = vmatpush1.bf16.msra.mxu0 %v1039
    %1451 = vmatprep.subr.bf16.mxu0 %v1036
    %1452 = vmatpush1.bf16.msra.mxu0 %v1035
    %1453 = vmatprep.subr.bf16.mxu0 %v1032
    %1454 = vmatpush1.bf16.msra.mxu0 %v1031
    %1455 = vmatprep.subr.bf16.mxu0 %v1028
    %1456 = vmatpush1.bf16.msra.mxu0 %v1027
    %1457 = vmatprep.subr.bf16.mxu0 %v1088
    %1458 = vmatpush2.bf16.msra.mxu0 %v1087
    %1459 = vmatprep.subr.bf16.mxu0 %v1084
    %1460 = vmatpush2.bf16.msra.mxu0 %v1083
    %1461 = vmatprep.subr.bf16.mxu0 %v1080
    %1462 = vmatpush2.bf16.msra.mxu0 %v1079
    %1463 = vmatprep.subr.bf16.mxu0 %v1076
    %1464 = vmatpush2.bf16.msra.mxu0 %v1075
    %1465 = vmatprep.subr.bf16.mxu0 %v1072
    %1466 = vmatpush2.bf16.msra.mxu0 %v1071
    %1467 = vmatprep.subr.bf16.mxu0 %v1068
    %1468 = vmatpush2.bf16.msra.mxu0 %v1067
    %1469 = vmatprep.subr.bf16.mxu0 %v1064
    %1470 = vmatpush2.bf16.msra.mxu0 %v1063
    %1471 = vmatprep.subr.bf16.mxu0 %v1060
    %1472 = vmatpush2.bf16.msra.mxu0 %v1059
    %1473 = vmatprep.mubr.bf16.mxu0 %v132
    %1474 = vmatmul.mubr.bf16.gmra.mxu0 %v131
    %v1475 = vpop.f32.mrf.mxu0
    %v1476 = vadd.f32 %v1403, %v1475
    %v1477 = vpop.f32.mrf.mxu0
    %v1478 = vadd.f32 %v1405, %v1477
    %v1479 = vpop.f32.mrf.mxu0
    %v1480 = vadd.f32 %v1407, %v1479
    %v1481 = vpop.f32.mrf.mxu0
    %v1482 = vadd.f32 %v1409, %v1481
    %1483 = vmatprep.mubr.bf16.mxu0 %v139
    %1484 = vmatmul.mubr.bf16.gmra.mxu0 %v138
    %v1485 = vpop.f32.mrf.mxu0
    %v1486 = vadd.f32 %v1413, %v1485
    %v1487 = vpop.f32.mrf.mxu0
    %v1488 = vadd.f32 %v1415, %v1487
    %v1489 = vpop.f32.mrf.mxu0
    %v1490 = vadd.f32 %v1417, %v1489
    %v1491 = vpop.f32.mrf.mxu0
    %v1492 = vadd.f32 %v1419, %v1491
    %1493 = vmatprep.mubr.bf16.mxu0 %v146
    %1494 = vmatmul.mubr.bf16.gmra.mxu0 %v145
    %v1495 = vpop.f32.mrf.mxu0
    %v1496 = vadd.f32 %v1423, %v1495
    %v1497 = vpop.f32.mrf.mxu0
    %v1498 = vadd.f32 %v1425, %v1497
    %v1499 = vpop.f32.mrf.mxu0
    %v1500 = vadd.f32 %v1427, %v1499
    %v1501 = vpop.f32.mrf.mxu0
    %v1502 = vadd.f32 %v1429, %v1501
    %1503 = vmatprep.mubr.bf16.mxu0 %v153
    %1504 = vmatmul.mubr.bf16.gmra.mxu0 %v152
    %v1505 = vpop.f32.mrf.mxu0
    %v1506 = vadd.f32 %v1433, %v1505
    %v1507 = vpop.f32.mrf.mxu0
    %v1508 = vadd.f32 %v1435, %v1507
    %v1509 = vpop.f32.mrf.mxu0
    %v1510 = vadd.f32 %v1437, %v1509
    %v1511 = vpop.f32.mrf.mxu0
    %v1512 = vadd.f32 %v1439, %v1511
    %1513 = vdwg.mxu0
    %1514 = vmatprep.subr.bf16.mxu0 %v1120
    %1515 = vmatpush1.bf16.msra.mxu0 %v1119
    %1516 = vmatprep.subr.bf16.mxu0 %v1116
    %1517 = vmatpush1.bf16.msra.mxu0 %v1115
    %1518 = vmatprep.subr.bf16.mxu0 %v1112
    %1519 = vmatpush1.bf16.msra.mxu0 %v1111
    %1520 = vmatprep.subr.bf16.mxu0 %v1108
    %1521 = vmatpush1.bf16.msra.mxu0 %v1107
    %1522 = vmatprep.subr.bf16.mxu0 %v1104
    %1523 = vmatpush1.bf16.msra.mxu0 %v1103
    %1524 = vmatprep.subr.bf16.mxu0 %v1100
    %1525 = vmatpush1.bf16.msra.mxu0 %v1099
    %1526 = vmatprep.subr.bf16.mxu0 %v1096
    %1527 = vmatpush1.bf16.msra.mxu0 %v1095
    %1528 = vmatprep.subr.bf16.mxu0 %v1092
    %1529 = vmatpush1.bf16.msra.mxu0 %v1091
    %1530 = vmatprep.subr.bf16.mxu0 %v1152
    %1531 = vmatpush2.bf16.msra.mxu0 %v1151
    %1532 = vmatprep.subr.bf16.mxu0 %v1148
    %1533 = vmatpush2.bf16.msra.mxu0 %v1147
    %1534 = vmatprep.subr.bf16.mxu0 %v1144
    %1535 = vmatpush2.bf16.msra.mxu0 %v1143
    %1536 = vmatprep.subr.bf16.mxu0 %v1140
    %1537 = vmatpush2.bf16.msra.mxu0 %v1139
    %1538 = vmatprep.subr.bf16.mxu0 %v1136
    %1539 = vmatpush2.bf16.msra.mxu0 %v1135
    %1540 = vmatprep.subr.bf16.mxu0 %v1132
    %1541 = vmatpush2.bf16.msra.mxu0 %v1131
    %1542 = vmatprep.subr.bf16.mxu0 %v1128
    %1543 = vmatpush2.bf16.msra.mxu0 %v1127
    %1544 = vmatprep.subr.bf16.mxu0 %v1124
    %1545 = vmatpush2.bf16.msra.mxu0 %v1123
    %1546 = vmatprep.mubr.bf16.mxu0 %v134
    %1547 = vmatmul.mubr.bf16.gmra.mxu0 %v133
    %v1548 = vpop.f32.mrf.mxu0
    %v1549 = vadd.f32 %v1476, %v1548
    %v1550 = vpop.f32.mrf.mxu0
    %v1551 = vadd.f32 %v1478, %v1550
    %v1552 = vpop.f32.mrf.mxu0
    %v1553 = vadd.f32 %v1480, %v1552
    %v1554 = vpop.f32.mrf.mxu0
    %v1555 = vadd.f32 %v1482, %v1554
    %1556 = vmatprep.mubr.bf16.mxu0 %v141
    %1557 = vmatmul.mubr.bf16.gmra.mxu0 %v140
    %v1558 = vpop.f32.mrf.mxu0
    %v1559 = vadd.f32 %v1486, %v1558
    %v1560 = vpop.f32.mrf.mxu0
    %v1561 = vadd.f32 %v1488, %v1560
    %v1562 = vpop.f32.mrf.mxu0
    %v1563 = vadd.f32 %v1490, %v1562
    %v1564 = vpop.f32.mrf.mxu0
    %v1565 = vadd.f32 %v1492, %v1564
    %1566 = vmatprep.mubr.bf16.mxu0 %v148
    %1567 = vmatmul.mubr.bf16.gmra.mxu0 %v147
    %v1568 = vpop.f32.mrf.mxu0
    %v1569 = vadd.f32 %v1496, %v1568
    %v1570 = vpop.f32.mrf.mxu0
    %v1571 = vadd.f32 %v1498, %v1570
    %v1572 = vpop.f32.mrf.mxu0
    %v1573 = vadd.f32 %v1500, %v1572
    %v1574 = vpop.f32.mrf.mxu0
    %v1575 = vadd.f32 %v1502, %v1574
    %1576 = vmatprep.mubr.bf16.mxu0 %v155
    %1577 = vmatmul.mubr.bf16.gmra.mxu0 %v154
    %v1578 = vpop.f32.mrf.mxu0
    %v1579 = vadd.f32 %v1506, %v1578
    %v1580 = vpop.f32.mrf.mxu0
    %v1581 = vadd.f32 %v1508, %v1580
    %v1582 = vpop.f32.mrf.mxu0
    %v1583 = vadd.f32 %v1510, %v1582
    %v1584 = vpop.f32.mrf.mxu0
    %v1585 = vadd.f32 %v1512, %v1584
    %1586 = vdwg.mxu0
    %1587 = vmatprep.subr.bf16.mxu0 0
    %1588 = vmatpush1.bf16.msra.mxu0 0
    %1589 = vmatprep.subr.bf16.mxu0 0
    %1590 = vmatpush1.bf16.msra.mxu0 0
    %1591 = vmatprep.subr.bf16.mxu0 0
    %1592 = vmatpush1.bf16.msra.mxu0 0
    %1593 = vmatprep.subr.bf16.mxu0 0
    %1594 = vmatpush1.bf16.msra.mxu0 0
    %1595 = vmatprep.subr.bf16.mxu0 0
    %1596 = vmatpush1.bf16.msra.mxu0 0
    %1597 = vmatprep.subr.bf16.mxu0 0
    %1598 = vmatpush1.bf16.msra.mxu0 0
    %1599 = vmatprep.subr.bf16.mxu0 0
    %1600 = vmatpush1.bf16.msra.mxu0 0
    %1601 = vmatprep.subr.bf16.mxu0 %v1156
    %1602 = vmatpush1.bf16.msra.mxu0 %v1155
    %1603 = vmatprep.subr.bf16.mxu0 0
    %1604 = vmatpush2.bf16.msra.mxu0 0
    %1605 = vmatprep.subr.bf16.mxu0 0
    %1606 = vmatpush2.bf16.msra.mxu0 0
    %1607 = vmatprep.subr.bf16.mxu0 0
    %1608 = vmatpush2.bf16.msra.mxu0 0
    %1609 = vmatprep.subr.bf16.mxu0 0
    %1610 = vmatpush2.bf16.msra.mxu0 0
    %1611 = vmatprep.subr.bf16.mxu0 0
    %1612 = vmatpush2.bf16.msra.mxu0 0
    %1613 = vmatprep.subr.bf16.mxu0 0
    %1614 = vmatpush2.bf16.msra.mxu0 0
    %1615 = vmatprep.subr.bf16.mxu0 0
    %1616 = vmatpush2.bf16.msra.mxu0 0
    %1617 = vmatprep.subr.bf16.mxu0 0
    %1618 = vmatpush2.bf16.msra.mxu0 0
    %1619 = vmatprep.mubr.bf16.mxu0 0
    %1620 = vmatmul.mubr.bf16.gmra.mxu0 %v1357
    %v1621 = vpop.f32.mrf.mxu0
    %v1622 = vadd.f32 %v1549, %v1621
    %v1623 = vpop.f32.mrf.mxu0
    %v1624 = vadd.f32 %v1551, %v1623
    %v1625 = vpop.f32.mrf.mxu0
    %v1626 = vadd.f32 %v1553, %v1625
    %v1627 = vpop.f32.mrf.mxu0
    %v1628 = vadd.f32 %v1555, %v1627
    %1629 = vmatprep.mubr.bf16.mxu0 0
    %1630 = vmatmul.mubr.bf16.gmra.mxu0 %v1360
    %v1631 = vpop.f32.mrf.mxu0
    %v1632 = vadd.f32 %v1559, %v1631
    %v1633 = vpop.f32.mrf.mxu0
    %v1634 = vadd.f32 %v1561, %v1633
    %v1635 = vpop.f32.mrf.mxu0
    %v1636 = vadd.f32 %v1563, %v1635
    %v1637 = vpop.f32.mrf.mxu0
    %v1638 = vadd.f32 %v1565, %v1637
    %1639 = vmatprep.mubr.bf16.mxu0 0
    %1640 = vmatmul.mubr.bf16.gmra.mxu0 %v1363
    %v1641 = vpop.f32.mrf.mxu0
    %v1642 = vadd.f32 %v1569, %v1641
    %v1643 = vpop.f32.mrf.mxu0
    %v1644 = vadd.f32 %v1571, %v1643
    %v1645 = vpop.f32.mrf.mxu0
    %v1646 = vadd.f32 %v1573, %v1645
    %v1647 = vpop.f32.mrf.mxu0
    %v1648 = vadd.f32 %v1575, %v1647
    %1649 = vmatprep.mubr.bf16.mxu0 0
    %1650 = vmatmul.mubr.bf16.gmra.mxu0 %v1366
    %v1651 = vpop.f32.mrf.mxu0
    %v1652 = vadd.f32 %v1579, %v1651
    %v1653 = vpop.f32.mrf.mxu0
    %v1654 = vadd.f32 %v1581, %v1653
    %v1655 = vpop.f32.mrf.mxu0
    %v1656 = vadd.f32 %v1583, %v1655
    %v1657 = vpop.f32.mrf.mxu0
    %v1658 = vadd.f32 %v1585, %v1657
    %1659 = vdwg.mxu0
    %1660 = vmatprep.subr.bf16.mxu0 %v994
    %1661 = vmatpush1.bf16.msra.mxu0 %v993
    %1662 = vmatprep.subr.bf16.mxu0 %v990
    %1663 = vmatpush1.bf16.msra.mxu0 %v989
    %1664 = vmatprep.subr.bf16.mxu0 %v986
    %1665 = vmatpush1.bf16.msra.mxu0 %v985
    %1666 = vmatprep.subr.bf16.mxu0 %v982
    %1667 = vmatpush1.bf16.msra.mxu0 %v981
    %1668 = vmatprep.subr.bf16.mxu0 %v978
    %1669 = vmatpush1.bf16.msra.mxu0 %v977
    %1670 = vmatprep.subr.bf16.mxu0 %v974
    %1671 = vmatpush1.bf16.msra.mxu0 %v973
    %1672 = vmatprep.subr.bf16.mxu0 %v970
    %1673 = vmatpush1.bf16.msra.mxu0 %v969
    %1674 = vmatprep.subr.bf16.mxu0 %v966
    %1675 = vmatpush1.bf16.msra.mxu0 %v965
    %1676 = vmatprep.subr.bf16.mxu0 %v1026
    %1677 = vmatpush2.bf16.msra.mxu0 %v1025
    %1678 = vmatprep.subr.bf16.mxu0 %v1022
    %1679 = vmatpush2.bf16.msra.mxu0 %v1021
    %1680 = vmatprep.subr.bf16.mxu0 %v1018
    %1681 = vmatpush2.bf16.msra.mxu0 %v1017
    %1682 = vmatprep.subr.bf16.mxu0 %v1014
    %1683 = vmatpush2.bf16.msra.mxu0 %v1013
    %1684 = vmatprep.subr.bf16.mxu0 %v1010
    %1685 = vmatpush2.bf16.msra.mxu0 %v1009
    %1686 = vmatprep.subr.bf16.mxu0 %v1006
    %1687 = vmatpush2.bf16.msra.mxu0 %v1005
    %1688 = vmatprep.subr.bf16.mxu0 %v1002
    %1689 = vmatpush2.bf16.msra.mxu0 %v1001
    %1690 = vmatprep.subr.bf16.mxu0 %v998
    %1691 = vmatpush2.bf16.msra.mxu0 %v997
    %1692 = vmatprep.mubr.bf16.mxu0 %v130
    %1693 = vmatmul.mubr.bf16.gmra.mxu0 %v129
    %v1694 = vpop.f32.mrf.mxu0
    %v1695 = vadd.f32 %v366, %v1694
    %v1696 = vpop.f32.mrf.mxu0
    %v1697 = vadd.f32 %v370, %v1696
    %v1698 = vpop.f32.mrf.mxu0
    %v1699 = vadd.f32 %v366, %v1698
    %v1700 = vpop.f32.mrf.mxu0
    %v1701 = vadd.f32 %v370, %v1700
    %1702 = vmatprep.mubr.bf16.mxu0 %v137
    %1703 = vmatmul.mubr.bf16.gmra.mxu0 %v136
    %v1704 = vpop.f32.mrf.mxu0
    %v1705 = vadd.f32 %v366, %v1704
    %v1706 = vpop.f32.mrf.mxu0
    %v1707 = vadd.f32 %v370, %v1706
    %v1708 = vpop.f32.mrf.mxu0
    %v1709 = vadd.f32 %v366, %v1708
    %v1710 = vpop.f32.mrf.mxu0
    %v1711 = vadd.f32 %v370, %v1710
    %1712 = vmatprep.mubr.bf16.mxu0 %v144
    %1713 = vmatmul.mubr.bf16.gmra.mxu0 %v143
    %v1714 = vpop.f32.mrf.mxu0
    %v1715 = vadd.f32 %v366, %v1714
    %v1716 = vpop.f32.mrf.mxu0
    %v1717 = vadd.f32 %v370, %v1716
    %v1718 = vpop.f32.mrf.mxu0
    %v1719 = vadd.f32 %v366, %v1718
    %v1720 = vpop.f32.mrf.mxu0
    %v1721 = vadd.f32 %v370, %v1720
    %1722 = vmatprep.mubr.bf16.mxu0 %v151
    %1723 = vmatmul.mubr.bf16.gmra.mxu0 %v150
    %v1724 = vpop.f32.mrf.mxu0
    %v1725 = vadd.f32 %v366, %v1724
    %v1726 = vpop.f32.mrf.mxu0
    %v1727 = vadd.f32 %v370, %v1726
    %v1728 = vpop.f32.mrf.mxu0
    %v1729 = vadd.f32 %v366, %v1728
    %v1730 = vpop.f32.mrf.mxu0
    %v1731 = vadd.f32 %v370, %v1730
    %1732 = vdwg.mxu0
    %1733 = vmatprep.subr.bf16.mxu0 %v1058
    %1734 = vmatpush1.bf16.msra.mxu0 %v1057
    %1735 = vmatprep.subr.bf16.mxu0 %v1054
    %1736 = vmatpush1.bf16.msra.mxu0 %v1053
    %1737 = vmatprep.subr.bf16.mxu0 %v1050
    %1738 = vmatpush1.bf16.msra.mxu0 %v1049
    %1739 = vmatprep.subr.bf16.mxu0 %v1046
    %1740 = vmatpush1.bf16.msra.mxu0 %v1045
    %1741 = vmatprep.subr.bf16.mxu0 %v1042
    %1742 = vmatpush1.bf16.msra.mxu0 %v1041
    %1743 = vmatprep.subr.bf16.mxu0 %v1038
    %1744 = vmatpush1.bf16.msra.mxu0 %v1037
    %1745 = vmatprep.subr.bf16.mxu0 %v1034
    %1746 = vmatpush1.bf16.msra.mxu0 %v1033
    %1747 = vmatprep.subr.bf16.mxu0 %v1030
    %1748 = vmatpush1.bf16.msra.mxu0 %v1029
    %1749 = vmatprep.subr.bf16.mxu0 %v1090
    %1750 = vmatpush2.bf16.msra.mxu0 %v1089
    %1751 = vmatprep.subr.bf16.mxu0 %v1086
    %1752 = vmatpush2.bf16.msra.mxu0 %v1085
    %1753 = vmatprep.subr.bf16.mxu0 %v1082
    %1754 = vmatpush2.bf16.msra.mxu0 %v1081
    %1755 = vmatprep.subr.bf16.mxu0 %v1078
    %1756 = vmatpush2.bf16.msra.mxu0 %v1077
    %1757 = vmatprep.subr.bf16.mxu0 %v1074
    %1758 = vmatpush2.bf16.msra.mxu0 %v1073
    %1759 = vmatprep.subr.bf16.mxu0 %v1070
    %1760 = vmatpush2.bf16.msra.mxu0 %v1069
    %1761 = vmatprep.subr.bf16.mxu0 %v1066
    %1762 = vmatpush2.bf16.msra.mxu0 %v1065
    %1763 = vmatprep.subr.bf16.mxu0 %v1062
    %1764 = vmatpush2.bf16.msra.mxu0 %v1061
    %1765 = vmatprep.mubr.bf16.mxu0 %v132
    %1766 = vmatmul.mubr.bf16.gmra.mxu0 %v131
    %v1767 = vpop.f32.mrf.mxu0
    %v1768 = vadd.f32 %v1695, %v1767
    %v1769 = vpop.f32.mrf.mxu0
    %v1770 = vadd.f32 %v1697, %v1769
    %v1771 = vpop.f32.mrf.mxu0
    %v1772 = vadd.f32 %v1699, %v1771
    %v1773 = vpop.f32.mrf.mxu0
    %v1774 = vadd.f32 %v1701, %v1773
    %1775 = vmatprep.mubr.bf16.mxu0 %v139
    %1776 = vmatmul.mubr.bf16.gmra.mxu0 %v138
    %v1777 = vpop.f32.mrf.mxu0
    %v1778 = vadd.f32 %v1705, %v1777
    %v1779 = vpop.f32.mrf.mxu0
    %v1780 = vadd.f32 %v1707, %v1779
    %v1781 = vpop.f32.mrf.mxu0
    %v1782 = vadd.f32 %v1709, %v1781
    %v1783 = vpop.f32.mrf.mxu0
    %v1784 = vadd.f32 %v1711, %v1783
    %1785 = vmatprep.mubr.bf16.mxu0 %v146
    %1786 = vmatmul.mubr.bf16.gmra.mxu0 %v145
    %v1787 = vpop.f32.mrf.mxu0
    %v1788 = vadd.f32 %v1715, %v1787
    %v1789 = vpop.f32.mrf.mxu0
    %v1790 = vadd.f32 %v1717, %v1789
    %v1791 = vpop.f32.mrf.mxu0
    %v1792 = vadd.f32 %v1719, %v1791
    %v1793 = vpop.f32.mrf.mxu0
    %v1794 = vadd.f32 %v1721, %v1793
    %1795 = vmatprep.mubr.bf16.mxu0 %v153
    %1796 = vmatmul.mubr.bf16.gmra.mxu0 %v152
    %v1797 = vpop.f32.mrf.mxu0
    %v1798 = vadd.f32 %v1725, %v1797
    %v1799 = vpop.f32.mrf.mxu0
    %v1800 = vadd.f32 %v1727, %v1799
    %v1801 = vpop.f32.mrf.mxu0
    %v1802 = vadd.f32 %v1729, %v1801
    %v1803 = vpop.f32.mrf.mxu0
    %v1804 = vadd.f32 %v1731, %v1803
    %1805 = vdwg.mxu0
    %1806 = vmatprep.subr.bf16.mxu0 %v1122
    %1807 = vmatpush1.bf16.msra.mxu0 %v1121
    %1808 = vmatprep.subr.bf16.mxu0 %v1118
    %1809 = vmatpush1.bf16.msra.mxu0 %v1117
    %1810 = vmatprep.subr.bf16.mxu0 %v1114
    %1811 = vmatpush1.bf16.msra.mxu0 %v1113
    %1812 = vmatprep.subr.bf16.mxu0 %v1110
    %1813 = vmatpush1.bf16.msra.mxu0 %v1109
    %1814 = vmatprep.subr.bf16.mxu0 %v1106
    %1815 = vmatpush1.bf16.msra.mxu0 %v1105
    %1816 = vmatprep.subr.bf16.mxu0 %v1102
    %1817 = vmatpush1.bf16.msra.mxu0 %v1101
    %1818 = vmatprep.subr.bf16.mxu0 %v1098
    %1819 = vmatpush1.bf16.msra.mxu0 %v1097
    %1820 = vmatprep.subr.bf16.mxu0 %v1094
    %1821 = vmatpush1.bf16.msra.mxu0 %v1093
    %1822 = vmatprep.subr.bf16.mxu0 %v1154
    %1823 = vmatpush2.bf16.msra.mxu0 %v1153
    %1824 = vmatprep.subr.bf16.mxu0 %v1150
    %1825 = vmatpush2.bf16.msra.mxu0 %v1149
    %1826 = vmatprep.subr.bf16.mxu0 %v1146
    %1827 = vmatpush2.bf16.msra.mxu0 %v1145
    %1828 = vmatprep.subr.bf16.mxu0 %v1142
    %1829 = vmatpush2.bf16.msra.mxu0 %v1141
    %1830 = vmatprep.subr.bf16.mxu0 %v1138
    %1831 = vmatpush2.bf16.msra.mxu0 %v1137
    %1832 = vmatprep.subr.bf16.mxu0 %v1134
    %1833 = vmatpush2.bf16.msra.mxu0 %v1133
    %1834 = vmatprep.subr.bf16.mxu0 %v1130
    %1835 = vmatpush2.bf16.msra.mxu0 %v1129
    %1836 = vmatprep.subr.bf16.mxu0 %v1126
    %1837 = vmatpush2.bf16.msra.mxu0 %v1125
    %1838 = vmatprep.mubr.bf16.mxu0 %v134
    %1839 = vmatmul.mubr.bf16.gmra.mxu0 %v133
    %v1840 = vpop.f32.mrf.mxu0
    %v1841 = vadd.f32 %v1768, %v1840
    %v1842 = vpop.f32.mrf.mxu0
    %v1843 = vadd.f32 %v1770, %v1842
    %v1844 = vpop.f32.mrf.mxu0
    %v1845 = vadd.f32 %v1772, %v1844
    %v1846 = vpop.f32.mrf.mxu0
    %v1847 = vadd.f32 %v1774, %v1846
    %1848 = vmatprep.mubr.bf16.mxu0 %v141
    %1849 = vmatmul.mubr.bf16.gmra.mxu0 %v140
    %v1850 = vpop.f32.mrf.mxu0
    %v1851 = vadd.f32 %v1778, %v1850
    %v1852 = vpop.f32.mrf.mxu0
    %v1853 = vadd.f32 %v1780, %v1852
    %v1854 = vpop.f32.mrf.mxu0
    %v1855 = vadd.f32 %v1782, %v1854
    %v1856 = vpop.f32.mrf.mxu0
    %v1857 = vadd.f32 %v1784, %v1856
    %1858 = vmatprep.mubr.bf16.mxu0 %v148
    %1859 = vmatmul.mubr.bf16.gmra.mxu0 %v147
    %v1860 = vpop.f32.mrf.mxu0
    %v1861 = vadd.f32 %v1788, %v1860
    %v1862 = vpop.f32.mrf.mxu0
    %v1863 = vadd.f32 %v1790, %v1862
    %v1864 = vpop.f32.mrf.mxu0
    %v1865 = vadd.f32 %v1792, %v1864
    %v1866 = vpop.f32.mrf.mxu0
    %v1867 = vadd.f32 %v1794, %v1866
    %1868 = vmatprep.mubr.bf16.mxu0 %v155
    %1869 = vmatmul.mubr.bf16.gmra.mxu0 %v154
    %v1870 = vpop.f32.mrf.mxu0
    %v1871 = vadd.f32 %v1798, %v1870
    %v1872 = vpop.f32.mrf.mxu0
    %v1873 = vadd.f32 %v1800, %v1872
    %v1874 = vpop.f32.mrf.mxu0
    %v1875 = vadd.f32 %v1802, %v1874
    %v1876 = vpop.f32.mrf.mxu0
    %v1877 = vadd.f32 %v1804, %v1876
    %1878 = vdwg.mxu0
    %1879 = vmatprep.subr.bf16.mxu0 0
    %1880 = vmatpush1.bf16.msra.mxu0 0
    %1881 = vmatprep.subr.bf16.mxu0 0
    %1882 = vmatpush1.bf16.msra.mxu0 0
    %1883 = vmatprep.subr.bf16.mxu0 0
    %1884 = vmatpush1.bf16.msra.mxu0 0
    %1885 = vmatprep.subr.bf16.mxu0 0
    %1886 = vmatpush1.bf16.msra.mxu0 0
    %1887 = vmatprep.subr.bf16.mxu0 0
    %1888 = vmatpush1.bf16.msra.mxu0 0
    %1889 = vmatprep.subr.bf16.mxu0 0
    %1890 = vmatpush1.bf16.msra.mxu0 0
    %1891 = vmatprep.subr.bf16.mxu0 0
    %1892 = vmatpush1.bf16.msra.mxu0 0
    %1893 = vmatprep.subr.bf16.mxu0 %v1158
    %1894 = vmatpush1.bf16.msra.mxu0 %v1157
    %1895 = vmatprep.subr.bf16.mxu0 0
    %1896 = vmatpush2.bf16.msra.mxu0 0
    %1897 = vmatprep.subr.bf16.mxu0 0
    %1898 = vmatpush2.bf16.msra.mxu0 0
    %1899 = vmatprep.subr.bf16.mxu0 0
    %1900 = vmatpush2.bf16.msra.mxu0 0
    %1901 = vmatprep.subr.bf16.mxu0 0
    %1902 = vmatpush2.bf16.msra.mxu0 0
    %1903 = vmatprep.subr.bf16.mxu0 0
    %1904 = vmatpush2.bf16.msra.mxu0 0
    %1905 = vmatprep.subr.bf16.mxu0 0
    %1906 = vmatpush2.bf16.msra.mxu0 0
    %1907 = vmatprep.subr.bf16.mxu0 0
    %1908 = vmatpush2.bf16.msra.mxu0 0
    %1909 = vmatprep.subr.bf16.mxu0 0
    %1910 = vmatpush2.bf16.msra.mxu0 0
    %1911 = vmatprep.mubr.bf16.mxu0 0
    %1912 = vmatmul.mubr.bf16.gmra.mxu0 %v1357
    %v1913 = vpop.f32.mrf.mxu0
    %v1914 = vadd.f32 %v1841, %v1913
    %v1915 = vpop.f32.mrf.mxu0
    %v1916 = vadd.f32 %v1843, %v1915
    %v1917 = vpop.f32.mrf.mxu0
    %v1918 = vadd.f32 %v1845, %v1917
    %v1919 = vpop.f32.mrf.mxu0
    %v1920 = vadd.f32 %v1847, %v1919
    %1921 = vmatprep.mubr.bf16.mxu0 0
    %1922 = vmatmul.mubr.bf16.gmra.mxu0 %v1360
    %v1923 = vpop.f32.mrf.mxu0
    %v1924 = vadd.f32 %v1851, %v1923
    %v1925 = vpop.f32.mrf.mxu0
    %v1926 = vadd.f32 %v1853, %v1925
    %v1927 = vpop.f32.mrf.mxu0
    %v1928 = vadd.f32 %v1855, %v1927
    %v1929 = vpop.f32.mrf.mxu0
    %v1930 = vadd.f32 %v1857, %v1929
    %1931 = vmatprep.mubr.bf16.mxu0 0
    %1932 = vmatmul.mubr.bf16.gmra.mxu0 %v1363
    %v1933 = vpop.f32.mrf.mxu0
    %v1934 = vadd.f32 %v1861, %v1933
    %v1935 = vpop.f32.mrf.mxu0
    %v1936 = vadd.f32 %v1863, %v1935
    %v1937 = vpop.f32.mrf.mxu0
    %v1938 = vadd.f32 %v1865, %v1937
    %v1939 = vpop.f32.mrf.mxu0
    %v1940 = vadd.f32 %v1867, %v1939
    %1941 = vmatprep.mubr.bf16.mxu0 0
    %1942 = vmatmul.mubr.bf16.gmra.mxu0 %v1366
    %v1943 = vpop.f32.mrf.mxu0
    %v1944 = vadd.f32 %v1871, %v1943
    %v1945 = vpop.f32.mrf.mxu0
    %v1946 = vadd.f32 %v1873, %v1945
    %v1947 = vpop.f32.mrf.mxu0
    %v1948 = vadd.f32 %v1875, %v1947
    %v1949 = vpop.f32.mrf.mxu0
    %v1950 = vadd.f32 %v1877, %v1949
    %1951 = vdwg.mxu0
    %v1952 = vmax.f32 %v1622, 0.0
    %v1953 = vmax.f32 %v1624, 0.0
    %v1954 = vmax.f32 %v1914, 0.0
    %v1955 = vmax.f32 %v1916, 0.0
    %v1956 = vmax.f32 %v1626, 0.0
    %v1957 = vmax.f32 %v1628, 0.0
    %v1958 = vmax.f32 %v1918, 0.0
    %v1959 = vmax.f32 %v1920, 0.0
    %v1960 = vmax.f32 %v1632, 0.0
    %v1961 = vmax.f32 %v1634, 0.0
    %v1962 = vmax.f32 %v1924, 0.0
    %v1963 = vmax.f32 %v1926, 0.0
    %v1964 = vmax.f32 %v1636, 0.0
    %v1965 = vmax.f32 %v1638, 0.0
    %v1966 = vmax.f32 %v1928, 0.0
    %v1967 = vmax.f32 %v1930, 0.0
    %v1968 = vmax.f32 %v1642, 0.0
    %v1969 = vmax.f32 %v1644, 0.0
    %v1970 = vmax.f32 %v1934, 0.0
    %v1971 = vmax.f32 %v1936, 0.0
    %v1972 = vmax.f32 %v1646, 0.0
    %v1973 = vmax.f32 %v1648, 0.0
    %v1974 = vmax.f32 %v1938, 0.0
    %v1975 = vmax.f32 %v1940, 0.0
    %v1976 = vmax.f32 %v1652, 0.0
    %v1977 = vmax.f32 %v1654, 0.0
    %v1978 = vmax.f32 %v1944, 0.0
    %v1979 = vmax.f32 %v1946, 0.0
    %v1980 = vmax.f32 %v1656, 0.0
    %v1981 = vmax.f32 %v1658, 0.0
    %v1982 = vmax.f32 %v1948, 0.0
    %v1983 = vmax.f32 %v1950, 0.0
    %v1984 = vand.u32 2147483647, %v1622
    %v1985 = vand.u32 2147483647, %v1624
    %v1986 = vand.u32 2147483647, %v1914
    %v1987 = vand.u32 2147483647, %v1916
    %v1988 = vand.u32 2147483647, %v1626
    %v1989 = vand.u32 2147483647, %v1628
    %v1990 = vand.u32 2147483647, %v1918
    %v1991 = vand.u32 2147483647, %v1920
    %v1992 = vand.u32 2147483647, %v1632
    %v1993 = vand.u32 2147483647, %v1634
    %v1994 = vand.u32 2147483647, %v1924
    %v1995 = vand.u32 2147483647, %v1926
    %v1996 = vand.u32 2147483647, %v1636
    %v1997 = vand.u32 2147483647, %v1638
    %v1998 = vand.u32 2147483647, %v1928
    %v1999 = vand.u32 2147483647, %v1930
    %v2000 = vand.u32 2147483647, %v1642
    %v2001 = vand.u32 2147483647, %v1644
    %v2002 = vand.u32 2147483647, %v1934
    %v2003 = vand.u32 2147483647, %v1936
    %v2004 = vand.u32 2147483647, %v1646
    %v2005 = vand.u32 2147483647, %v1648
    %v2006 = vand.u32 2147483647, %v1938
    %v2007 = vand.u32 2147483647, %v1940
    %v2008 = vand.u32 2147483647, %v1652
    %v2009 = vand.u32 2147483647, %v1654
    %v2010 = vand.u32 2147483647, %v1944
    %v2011 = vand.u32 2147483647, %v1946
    %v2012 = vand.u32 2147483647, %v1656
    %v2013 = vand.u32 2147483647, %v1658
    %v2014 = vand.u32 2147483647, %v1948
    %v2015 = vand.u32 2147483647, %v1950
    %v2016 = vsub.f32 0.0, %v1984
    %v2017 = vsub.f32 0.0, %v1985
    %v2018 = vsub.f32 0.0, %v1986
    %v2019 = vsub.f32 0.0, %v1987
    %v2020 = vsub.f32 0.0, %v1988
    %v2021 = vsub.f32 0.0, %v1989
    %v2022 = vsub.f32 0.0, %v1990
    %v2023 = vsub.f32 0.0, %v1991
    %v2024 = vsub.f32 0.0, %v1992
    %v2025 = vsub.f32 0.0, %v1993
    %v2026 = vsub.f32 0.0, %v1994
    %v2027 = vsub.f32 0.0, %v1995
    %v2028 = vsub.f32 0.0, %v1996
    %v2029 = vsub.f32 0.0, %v1997
    %v2030 = vsub.f32 0.0, %v1998
    %v2031 = vsub.f32 0.0, %v1999
    %v2032 = vsub.f32 0.0, %v2000
    %v2033 = vsub.f32 0.0, %v2001
    %v2034 = vsub.f32 0.0, %v2002
    %v2035 = vsub.f32 0.0, %v2003
    %v2036 = vsub.f32 0.0, %v2004
    %v2037 = vsub.f32 0.0, %v2005
    %v2038 = vsub.f32 0.0, %v2006
    %v2039 = vsub.f32 0.0, %v2007
    %v2040 = vsub.f32 0.0, %v2008
    %v2041 = vsub.f32 0.0, %v2009
    %v2042 = vsub.f32 0.0, %v2010
    %v2043 = vsub.f32 0.0, %v2011
    %v2044 = vsub.f32 0.0, %v2012
    %v2045 = vsub.f32 0.0, %v2013
    %v2046 = vsub.f32 0.0, %v2014
    %v2047 = vsub.f32 0.0, %v2015
    %v2048 = vmul.f32 %v2016, 1.442695
    %v2049 = vpow.pop %v2048
    %v2050 = vmul.f32 %v2017, 1.442695
    %v2051 = vpow.pop %v2050
    %v2052 = vmul.f32 %v2018, 1.442695
    %v2053 = vpow.pop %v2052
    %v2054 = vmul.f32 %v2019, 1.442695
    %v2055 = vpow.pop %v2054
    %v2056 = vmul.f32 %v2020, 1.442695
    %v2057 = vpow.pop %v2056
    %v2058 = vmul.f32 %v2021, 1.442695
    %v2059 = vpow.pop %v2058
    %v2060 = vmul.f32 %v2022, 1.442695
    %v2061 = vpow.pop %v2060
    %v2062 = vmul.f32 %v2023, 1.442695
    %v2063 = vpow.pop %v2062
    %v2064 = vmul.f32 %v2024, 1.442695
    %v2065 = vpow.pop %v2064
    %v2066 = vmul.f32 %v2025, 1.442695
    %v2067 = vpow.pop %v2066
    %v2068 = vmul.f32 %v2026, 1.442695
    %v2069 = vpow.pop %v2068
    %v2070 = vmul.f32 %v2027, 1.442695
    %v2071 = vpow.pop %v2070
    %v2072 = vmul.f32 %v2028, 1.442695
    %v2073 = vpow.pop %v2072
    %v2074 = vmul.f32 %v2029, 1.442695
    %v2075 = vpow.pop %v2074
    %v2076 = vmul.f32 %v2030, 1.442695
    %v2077 = vpow.pop %v2076
    %v2078 = vmul.f32 %v2031, 1.442695
    %v2079 = vpow.pop %v2078
    %v2080 = vmul.f32 %v2032, 1.442695
    %v2081 = vpow.pop %v2080
    %v2082 = vmul.f32 %v2033, 1.442695
    %v2083 = vpow.pop %v2082
    %v2084 = vmul.f32 %v2034, 1.442695
    %v2085 = vpow.pop %v2084
    %v2086 = vmul.f32 %v2035, 1.442695
    %v2087 = vpow.pop %v2086
    %v2088 = vmul.f32 %v2036, 1.442695
    %v2089 = vpow.pop %v2088
    %v2090 = vmul.f32 %v2037, 1.442695
    %v2091 = vpow.pop %v2090
    %v2092 = vmul.f32 %v2038, 1.442695
    %v2093 = vpow.pop %v2092
    %v2094 = vmul.f32 %v2039, 1.442695
    %v2095 = vpow.pop %v2094
    %v2096 = vmul.f32 %v2040, 1.442695
    %v2097 = vpow.pop %v2096
    %v2098 = vmul.f32 %v2041, 1.442695
    %v2099 = vpow.pop %v2098
    %v2100 = vmul.f32 %v2042, 1.442695
    %v2101 = vpow.pop %v2100
    %v2102 = vmul.f32 %v2043, 1.442695
    %v2103 = vpow.pop %v2102
    %v2104 = vmul.f32 %v2044, 1.442695
    %v2105 = vpow.pop %v2104
    %v2106 = vmul.f32 %v2045, 1.442695
    %v2107 = vpow.pop %v2106
    %v2108 = vmul.f32 %v2046, 1.442695
    %v2109 = vpow.pop %v2108
    %v2110 = vmul.f32 %v2047, 1.442695
    %v2111 = vpow.pop %v2110
    %v2112 = vadd.f32 %v2049, 1.0
    %v2113 = vadd.f32 %v2051, 1.0
    %v2114 = vadd.f32 %v2053, 1.0
    %v2115 = vadd.f32 %v2055, 1.0
    %v2116 = vadd.f32 %v2057, 1.0
    %v2117 = vadd.f32 %v2059, 1.0
    %v2118 = vadd.f32 %v2061, 1.0
    %v2119 = vadd.f32 %v2063, 1.0
    %v2120 = vadd.f32 %v2065, 1.0
    %v2121 = vadd.f32 %v2067, 1.0
    %v2122 = vadd.f32 %v2069, 1.0
    %v2123 = vadd.f32 %v2071, 1.0
    %v2124 = vadd.f32 %v2073, 1.0
    %v2125 = vadd.f32 %v2075, 1.0
    %v2126 = vadd.f32 %v2077, 1.0
    %v2127 = vadd.f32 %v2079, 1.0
    %v2128 = vadd.f32 %v2081, 1.0
    %v2129 = vadd.f32 %v2083, 1.0
    %v2130 = vadd.f32 %v2085, 1.0
    %v2131 = vadd.f32 %v2087, 1.0
    %v2132 = vadd.f32 %v2089, 1.0
    %v2133 = vadd.f32 %v2091, 1.0
    %v2134 = vadd.f32 %v2093, 1.0
    %v2135 = vadd.f32 %v2095, 1.0
    %v2136 = vadd.f32 %v2097, 1.0
    %v2137 = vadd.f32 %v2099, 1.0
    %v2138 = vadd.f32 %v2101, 1.0
    %v2139 = vadd.f32 %v2103, 1.0
    %v2140 = vadd.f32 %v2105, 1.0
    %v2141 = vadd.f32 %v2107, 1.0
    %v2142 = vadd.f32 %v2109, 1.0
    %v2143 = vadd.f32 %v2111, 1.0
    %v2144 = vlog2.pop %v2112
    %v2145 = vmul.f32 %v2144, 0.6931472
    %v2146 = vlog2.pop %v2113
    %v2147 = vmul.f32 %v2146, 0.6931472
    %v2148 = vlog2.pop %v2114
    %v2149 = vmul.f32 %v2148, 0.6931472
    %v2150 = vlog2.pop %v2115
    %v2151 = vmul.f32 %v2150, 0.6931472
    %v2152 = vlog2.pop %v2116
    %v2153 = vmul.f32 %v2152, 0.6931472
    %v2154 = vlog2.pop %v2117
    %v2155 = vmul.f32 %v2154, 0.6931472
    %v2156 = vlog2.pop %v2118
    %v2157 = vmul.f32 %v2156, 0.6931472
    %v2158 = vlog2.pop %v2119
    %v2159 = vmul.f32 %v2158, 0.6931472
    %v2160 = vlog2.pop %v2120
    %v2161 = vmul.f32 %v2160, 0.6931472
    %v2162 = vlog2.pop %v2121
    %v2163 = vmul.f32 %v2162, 0.6931472
    %v2164 = vlog2.pop %v2122
    %v2165 = vmul.f32 %v2164, 0.6931472
    %v2166 = vlog2.pop %v2123
    %v2167 = vmul.f32 %v2166, 0.6931472
    %v2168 = vlog2.pop %v2124
    %v2169 = vmul.f32 %v2168, 0.6931472
    %v2170 = vlog2.pop %v2125
    %v2171 = vmul.f32 %v2170, 0.6931472
    %v2172 = vlog2.pop %v2126
    %v2173 = vmul.f32 %v2172, 0.6931472
    %v2174 = vlog2.pop %v2127
    %v2175 = vmul.f32 %v2174, 0.6931472
    %v2176 = vlog2.pop %v2128
    %v2177 = vmul.f32 %v2176, 0.6931472
    %v2178 = vlog2.pop %v2129
    %v2179 = vmul.f32 %v2178, 0.6931472
    %v2180 = vlog2.pop %v2130
    %v2181 = vmul.f32 %v2180, 0.6931472
    %v2182 = vlog2.pop %v2131
    %v2183 = vmul.f32 %v2182, 0.6931472
    %v2184 = vlog2.pop %v2132
    %v2185 = vmul.f32 %v2184, 0.6931472
    %v2186 = vlog2.pop %v2133
    %v2187 = vmul.f32 %v2186, 0.6931472
    %v2188 = vlog2.pop %v2134
    %v2189 = vmul.f32 %v2188, 0.6931472
    %v2190 = vlog2.pop %v2135
    %v2191 = vmul.f32 %v2190, 0.6931472
    %v2192 = vlog2.pop %v2136
    %v2193 = vmul.f32 %v2192, 0.6931472
    %v2194 = vlog2.pop %v2137
    %v2195 = vmul.f32 %v2194, 0.6931472
    %v2196 = vlog2.pop %v2138
    %v2197 = vmul.f32 %v2196, 0.6931472
    %v2198 = vlog2.pop %v2139
    %v2199 = vmul.f32 %v2198, 0.6931472
    %v2200 = vlog2.pop %v2140
    %v2201 = vmul.f32 %v2200, 0.6931472
    %v2202 = vlog2.pop %v2141
    %v2203 = vmul.f32 %v2202, 0.6931472
    %v2204 = vlog2.pop %v2142
    %v2205 = vmul.f32 %v2204, 0.6931472
    %v2206 = vlog2.pop %v2143
    %v2207 = vmul.f32 %v2206, 0.6931472
    %v2208 = vadd.f32 %v1952, %v2145
    %v2209 = vadd.f32 %v1953, %v2147
    %v2210 = vadd.f32 %v1954, %v2149
    %v2211 = vadd.f32 %v1955, %v2151
    %v2212 = vadd.f32 %v1956, %v2153
    %v2213 = vadd.f32 %v1957, %v2155
    %v2214 = vadd.f32 %v1958, %v2157
    %v2215 = vadd.f32 %v1959, %v2159
    %v2216 = vadd.f32 %v1960, %v2161
    %v2217 = vadd.f32 %v1961, %v2163
    %v2218 = vadd.f32 %v1962, %v2165
    %v2219 = vadd.f32 %v1963, %v2167
    %v2220 = vadd.f32 %v1964, %v2169
    %v2221 = vadd.f32 %v1965, %v2171
    %v2222 = vadd.f32 %v1966, %v2173
    %v2223 = vadd.f32 %v1967, %v2175
    %v2224 = vadd.f32 %v1968, %v2177
    %v2225 = vadd.f32 %v1969, %v2179
    %v2226 = vadd.f32 %v1970, %v2181
    %v2227 = vadd.f32 %v1971, %v2183
    %v2228 = vadd.f32 %v1972, %v2185
    %v2229 = vadd.f32 %v1973, %v2187
    %v2230 = vadd.f32 %v1974, %v2189
    %v2231 = vadd.f32 %v1975, %v2191
    %v2232 = vadd.f32 %v1976, %v2193
    %v2233 = vadd.f32 %v1977, %v2195
    %v2234 = vadd.f32 %v1978, %v2197
    %v2235 = vadd.f32 %v1979, %v2199
    %v2236 = vadd.f32 %v1980, %v2201
    %v2237 = vadd.f32 %v1981, %v2203
    %v2238 = vadd.f32 %v1982, %v2205
    %v2239 = vadd.f32 %v1983, %v2207
    %v2240 = vpack.c.bf16 %v2212, %v2208
    %v2241 = vpack.c.bf16 %v2213, %v2209
    %v2242 = vpack.c.bf16 %v2214, %v2210
    %v2243 = vpack.c.bf16 %v2215, %v2211
    %v2244 = vpack.c.bf16 %v2220, %v2216
    %v2245 = vpack.c.bf16 %v2221, %v2217
    %v2246 = vpack.c.bf16 %v2222, %v2218
    %v2247 = vpack.c.bf16 %v2223, %v2219
    %v2248 = vpack.c.bf16 %v2228, %v2224
    %v2249 = vpack.c.bf16 %v2229, %v2225
    %v2250 = vpack.c.bf16 %v2230, %v2226
    %v2251 = vpack.c.bf16 %v2231, %v2227
    %v2252 = vpack.c.bf16 %v2236, %v2232
    %v2253 = vpack.c.bf16 %v2237, %v2233
    %v2254 = vpack.c.bf16 %v2238, %v2234
    %v2255 = vpack.c.bf16 %v2239, %v2235
    %v2256 = vld [vmem:[%s3] sm:$0xff]
    %v2257 = vld [vmem:[%s3 + $0x8] sm:$0xff]
    %v2258 = vld [vmem:[%s3 + $0x10] sm:$0xff]
    %v2259 = vld [vmem:[%s3 + $0x18] sm:$0xff]
    %v2260 = vld [vmem:[%s3 + $0x20] sm:$0xff]
    %v2261 = vld [vmem:[%s3 + $0x28] sm:$0xff]
    %v2262 = vld [vmem:[%s3 + $0x30] sm:$0xff]
    %v2263 = vld [vmem:[%s3 + $0x38] sm:$0xff]
    %v2264 = vld [vmem:[%s3 + $0x40] sm:$0xff]
    %v2265 = vld [vmem:[%s3 + $0x48] sm:$0xff]
    %v2266 = vld [vmem:[%s3 + $0x50] sm:$0xff]
    %v2267 = vld [vmem:[%s3 + $0x58] sm:$0xff]
    %v2268 = vld [vmem:[%s3 + $0x60] sm:$0xff]
    %v2269 = vld [vmem:[%s3 + $0x68] sm:$0xff]
    %v2270 = vld [vmem:[%s3 + $0x70] sm:$0xff]
    %v2271 = vld [vmem:[%s3 + $0x78] sm:$0xff]
    %v2272 = vld [vmem:[%s3 + $0x80] sm:$0xff]
    %v2273 = vld [vmem:[%s3 + $0x88] sm:$0xff]
    %v2274 = vld [vmem:[%s3 + $0x90] sm:$0xff]
    %v2275 = vld [vmem:[%s3 + $0x98] sm:$0xff]
    %v2276 = vld [vmem:[%s3 + $0xa0] sm:$0xff]
    %v2277 = vld [vmem:[%s3 + $0xa8] sm:$0xff]
    %v2278 = vld [vmem:[%s3 + $0xb0] sm:$0xff]
    %v2279 = vld [vmem:[%s3 + $0xb8] sm:$0xff]
    %v2280 = vld [vmem:[%s3 + $0xc0] sm:$0xff]
    %v2281 = vld [vmem:[%s3 + $0xc8] sm:$0xff]
    %v2282 = vld [vmem:[%s3 + $0xd0] sm:$0xff]
    %v2283 = vld [vmem:[%s3 + $0xd8] sm:$0xff]
    %v2284 = vld [vmem:[%s3 + $0xe0] sm:$0xff]
    %v2285 = vld [vmem:[%s3 + $0xe8] sm:$0xff]
    %v2286 = vld [vmem:[%s3 + $0xf0] sm:$0xff]
    %v2287 = vld [vmem:[%s3 + $0xf8] sm:$0xff]
    %v2288 = vld [vmem:[%s3 + $0x100] sm:$0xff]
    %v2289 = vld [vmem:[%s3 + $0x108] sm:$0xff]
    %v2290 = vld [vmem:[%s3 + $0x110] sm:$0xff]
    %v2291 = vld [vmem:[%s3 + $0x118] sm:$0xff]
    %v2292 = vld [vmem:[%s3 + $0x120] sm:$0xff]
    %v2293 = vld [vmem:[%s3 + $0x128] sm:$0xff]
    %v2294 = vld [vmem:[%s3 + $0x130] sm:$0xff]
    %v2295 = vld [vmem:[%s3 + $0x138] sm:$0xff]
    %v2296 = vld [vmem:[%s3 + $0x140] sm:$0xff]
    %v2297 = vld [vmem:[%s3 + $0x148] sm:$0xff]
    %v2298 = vld [vmem:[%s3 + $0x150] sm:$0xff]
    %v2299 = vld [vmem:[%s3 + $0x158] sm:$0xff]
    %v2300 = vld [vmem:[%s3 + $0x160] sm:$0xff]
    %v2301 = vld [vmem:[%s3 + $0x168] sm:$0xff]
    %v2302 = vld [vmem:[%s3 + $0x170] sm:$0xff]
    %v2303 = vld [vmem:[%s3 + $0x178] sm:$0xff]
    %v2304 = vld [vmem:[%s3 + $0x180] sm:$0xff]
    %v2305 = vld [vmem:[%s3 + $0x188] sm:$0xff]
    %v2306 = vld [vmem:[%s3 + $0x190] sm:$0xff]
    %v2307 = vld [vmem:[%s3 + $0x198] sm:$0xff]
    %v2308 = vld [vmem:[%s3 + $0x1a0] sm:$0xff]
    %v2309 = vld [vmem:[%s3 + $0x1a8] sm:$0xff]
    %v2310 = vld [vmem:[%s3 + $0x1b0] sm:$0xff]
    %v2311 = vld [vmem:[%s3 + $0x1b8] sm:$0xff]
    %v2312 = vld [vmem:[%s3 + $0x1c0] sm:$0xff]
    %v2313 = vld [vmem:[%s3 + $0x1c8] sm:$0xff]
    %v2314 = vld [vmem:[%s3 + $0x1d0] sm:$0xff]
    %v2315 = vld [vmem:[%s3 + $0x1d8] sm:$0xff]
    %v2316 = vld [vmem:[%s3 + $0x1e0] sm:$0xff]
    %v2317 = vld [vmem:[%s3 + $0x1e8] sm:$0xff]
    %v2318 = vld [vmem:[%s3 + $0x1f0] sm:$0xff]
    %v2319 = vld [vmem:[%s3 + $0x1f8] sm:$0xff]
    %v2320 = vld [vmem:[%s3 + $0x200] sm:$0xff]
    %v2321 = vld [vmem:[%s3 + $0x208] sm:$0xff]
    %v2322 = vld [vmem:[%s3 + $0x210] sm:$0xff]
    %v2323 = vld [vmem:[%s3 + $0x218] sm:$0xff]
    %v2324 = vld [vmem:[%s3 + $0x220] sm:$0xff]
    %v2325 = vld [vmem:[%s3 + $0x228] sm:$0xff]
    %v2326 = vld [vmem:[%s3 + $0x230] sm:$0xff]
    %v2327 = vld [vmem:[%s3 + $0x238] sm:$0xff]
    %v2328 = vld [vmem:[%s3 + $0x240] sm:$0xff]
    %v2329 = vld [vmem:[%s3 + $0x248] sm:$0xff]
    %v2330 = vld [vmem:[%s3 + $0x250] sm:$0xff]
    %v2331 = vld [vmem:[%s3 + $0x258] sm:$0xff]
    %v2332 = vld [vmem:[%s3 + $0x260] sm:$0xff]
    %v2333 = vld [vmem:[%s3 + $0x268] sm:$0xff]
    %v2334 = vld [vmem:[%s3 + $0x270] sm:$0xff]
    %v2335 = vld [vmem:[%s3 + $0x278] sm:$0xff]
    %v2336 = vld [vmem:[%s3 + $0x280] sm:$0xff]
    %v2337 = vld [vmem:[%s3 + $0x288] sm:$0xff]
    %v2338 = vld [vmem:[%s3 + $0x290] sm:$0xff]
    %v2339 = vld [vmem:[%s3 + $0x298] sm:$0xff]
    %v2340 = vld [vmem:[%s3 + $0x2a0] sm:$0xff]
    %v2341 = vld [vmem:[%s3 + $0x2a8] sm:$0xff]
    %v2342 = vld [vmem:[%s3 + $0x2b0] sm:$0xff]
    %v2343 = vld [vmem:[%s3 + $0x2b8] sm:$0xff]
    %v2344 = vld [vmem:[%s3 + $0x2c0] sm:$0xff]
    %v2345 = vld [vmem:[%s3 + $0x2c8] sm:$0xff]
    %v2346 = vld [vmem:[%s3 + $0x2d0] sm:$0xff]
    %v2347 = vld [vmem:[%s3 + $0x2d8] sm:$0xff]
    %v2348 = vld [vmem:[%s3 + $0x2e0] sm:$0xff]
    %v2349 = vld [vmem:[%s3 + $0x2e8] sm:$0xff]
    %v2350 = vld [vmem:[%s3 + $0x2f0] sm:$0xff]
    %v2351 = vld [vmem:[%s3 + $0x2f8] sm:$0xff]
    %v2352 = vld [vmem:[%s3 + $0x300] sm:$0xff]
    %v2353 = vld [vmem:[%s3 + $0x308] sm:$0xff]
    %v2354 = vld [vmem:[%s3 + $0x310] sm:$0xff]
    %v2355 = vld [vmem:[%s3 + $0x318] sm:$0xff]
    %v2356 = vld [vmem:[%s3 + $0x320] sm:$0xff]
    %v2357 = vld [vmem:[%s3 + $0x328] sm:$0xff]
    %v2358 = vld [vmem:[%s3 + $0x330] sm:$0xff]
    %v2359 = vld [vmem:[%s3 + $0x338] sm:$0xff]
    %v2360 = vld [vmem:[%s3 + $0x340] sm:$0xff]
    %v2361 = vld [vmem:[%s3 + $0x348] sm:$0xff]
    %v2362 = vld [vmem:[%s3 + $0x350] sm:$0xff]
    %v2363 = vld [vmem:[%s3 + $0x358] sm:$0xff]
    %v2364 = vld [vmem:[%s3 + $0x360] sm:$0xff]
    %v2365 = vld [vmem:[%s3 + $0x368] sm:$0xff]
    %v2366 = vld [vmem:[%s3 + $0x370] sm:$0xff]
    %v2367 = vld [vmem:[%s3 + $0x378] sm:$0xff]
    %v2368 = vld [vmem:[%s3 + $0x380] sm:$0xff]
    %v2369 = vld [vmem:[%s3 + $0x388] sm:$0xff]
    %v2370 = vld [vmem:[%s3 + $0x390] sm:$0xff]
    %v2371 = vld [vmem:[%s3 + $0x398] sm:$0xff]
    %v2372 = vld [vmem:[%s3 + $0x3a0] sm:$0xff]
    %v2373 = vld [vmem:[%s3 + $0x3a8] sm:$0xff]
    %v2374 = vld [vmem:[%s3 + $0x3b0] sm:$0xff]
    %v2375 = vld [vmem:[%s3 + $0x3b8] sm:$0xff]
    %v2376 = vld [vmem:[%s3 + $0x3c0] sm:$0xff]
    %v2377 = vld [vmem:[%s3 + $0x3c8] sm:$0xff]
    %v2378 = vld [vmem:[%s3 + $0x3d0] sm:$0xff]
    %v2379 = vld [vmem:[%s3 + $0x3d8] sm:$0xff]
    %v2380 = vld [vmem:[%s3 + $0x3e0] sm:$0xff]
    %v2381 = vld [vmem:[%s3 + $0x3e8] sm:$0xff]
    %v2382 = vld [vmem:[%s3 + $0x3f0] sm:$0xff]
    %v2383 = vld [vmem:[%s3 + $0x3f8] sm:$0xff]
    %v2384 = vld [vmem:[%s4] sm:$0xf]
    %v2386 = vlaneseq
    %v2387 = vshrl.u32 %v2386, 7
    %v2388 = vsub.s32 0, %v2387
    %v2389 = vrot.slane %v2384, %v2388
    %v2390 = vlaneseq
    %v2391 = vshrl.u32 %v2390, 7
    %v2392 = vsub.s32 1, %v2391
    %v2393 = vrot.slane %v2384, %v2392
    %v2394 = vlaneseq
    %v2395 = vshrl.u32 %v2394, 7
    %v2396 = vsub.s32 2, %v2395
    %v2397 = vrot.slane %v2384, %v2396
    %v2398 = vlaneseq
    %v2399 = vshrl.u32 %v2398, 7
    %v2400 = vsub.s32 3, %v2399
    %v2401 = vrot.slane %v2384, %v2400
    %v2534 = vunpack.c.l.b16 %v2256
    %v2535 = vunpack.c.h.b16 %v2256
    %v2536 = vunpack.c.l.b16 %v2257
    %v2537 = vunpack.c.h.b16 %v2257
    %v2538 = vunpack.c.l.b16 %v2258
    %v2539 = vunpack.c.h.b16 %v2258
    %v2540 = vunpack.c.l.b16 %v2259
    %v2541 = vunpack.c.h.b16 %v2259
    %v2542 = vunpack.c.l.b16 %v2260
    %v2543 = vunpack.c.h.b16 %v2260
    %v2544 = vunpack.c.l.b16 %v2261
    %v2545 = vunpack.c.h.b16 %v2261
    %v2546 = vunpack.c.l.b16 %v2262
    %v2547 = vunpack.c.h.b16 %v2262
    %v2548 = vunpack.c.l.b16 %v2263
    %v2549 = vunpack.c.h.b16 %v2263
    %v2550 = vunpack.c.l.b16 %v2264
    %v2551 = vunpack.c.h.b16 %v2264
    %v2552 = vunpack.c.l.b16 %v2265
    %v2553 = vunpack.c.h.b16 %v2265
    %v2554 = vunpack.c.l.b16 %v2266
    %v2555 = vunpack.c.h.b16 %v2266
    %v2556 = vunpack.c.l.b16 %v2267
    %v2557 = vunpack.c.h.b16 %v2267
    %v2558 = vunpack.c.l.b16 %v2268
    %v2559 = vunpack.c.h.b16 %v2268
    %v2560 = vunpack.c.l.b16 %v2269
    %v2561 = vunpack.c.h.b16 %v2269
    %v2562 = vunpack.c.l.b16 %v2270
    %v2563 = vunpack.c.h.b16 %v2270
    %v2564 = vunpack.c.l.b16 %v2271
    %v2565 = vunpack.c.h.b16 %v2271
    %v2566 = vunpack.c.l.b16 %v2272
    %v2567 = vunpack.c.h.b16 %v2272
    %v2568 = vunpack.c.l.b16 %v2273
    %v2569 = vunpack.c.h.b16 %v2273
    %v2570 = vunpack.c.l.b16 %v2274
    %v2571 = vunpack.c.h.b16 %v2274
    %v2572 = vunpack.c.l.b16 %v2275
    %v2573 = vunpack.c.h.b16 %v2275
    %v2574 = vunpack.c.l.b16 %v2276
    %v2575 = vunpack.c.h.b16 %v2276
    %v2576 = vunpack.c.l.b16 %v2277
    %v2577 = vunpack.c.h.b16 %v2277
    %v2578 = vunpack.c.l.b16 %v2278
    %v2579 = vunpack.c.h.b16 %v2278
    %v2580 = vunpack.c.l.b16 %v2279
    %v2581 = vunpack.c.h.b16 %v2279
    %v2582 = vunpack.c.l.b16 %v2280
    %v2583 = vunpack.c.h.b16 %v2280
    %v2584 = vunpack.c.l.b16 %v2281
    %v2585 = vunpack.c.h.b16 %v2281
    %v2586 = vunpack.c.l.b16 %v2282
    %v2587 = vunpack.c.h.b16 %v2282
    %v2588 = vunpack.c.l.b16 %v2283
    %v2589 = vunpack.c.h.b16 %v2283
    %v2590 = vunpack.c.l.b16 %v2284
    %v2591 = vunpack.c.h.b16 %v2284
    %v2592 = vunpack.c.l.b16 %v2285
    %v2593 = vunpack.c.h.b16 %v2285
    %v2594 = vunpack.c.l.b16 %v2286
    %v2595 = vunpack.c.h.b16 %v2286
    %v2596 = vunpack.c.l.b16 %v2287
    %v2597 = vunpack.c.h.b16 %v2287
    %v2598 = vunpack.c.l.b16 %v2288
    %v2599 = vunpack.c.h.b16 %v2288
    %v2600 = vunpack.c.l.b16 %v2289
    %v2601 = vunpack.c.h.b16 %v2289
    %v2602 = vunpack.c.l.b16 %v2290
    %v2603 = vunpack.c.h.b16 %v2290
    %v2604 = vunpack.c.l.b16 %v2291
    %v2605 = vunpack.c.h.b16 %v2291
    %v2606 = vunpack.c.l.b16 %v2292
    %v2607 = vunpack.c.h.b16 %v2292
    %v2608 = vunpack.c.l.b16 %v2293
    %v2609 = vunpack.c.h.b16 %v2293
    %v2610 = vunpack.c.l.b16 %v2294
    %v2611 = vunpack.c.h.b16 %v2294
    %v2612 = vunpack.c.l.b16 %v2295
    %v2613 = vunpack.c.h.b16 %v2295
    %v2614 = vunpack.c.l.b16 %v2296
    %v2615 = vunpack.c.h.b16 %v2296
    %v2616 = vunpack.c.l.b16 %v2297
    %v2617 = vunpack.c.h.b16 %v2297
    %v2618 = vunpack.c.l.b16 %v2298
    %v2619 = vunpack.c.h.b16 %v2298
    %v2620 = vunpack.c.l.b16 %v2299
    %v2621 = vunpack.c.h.b16 %v2299
    %v2622 = vunpack.c.l.b16 %v2300
    %v2623 = vunpack.c.h.b16 %v2300
    %v2624 = vunpack.c.l.b16 %v2301
    %v2625 = vunpack.c.h.b16 %v2301
    %v2626 = vunpack.c.l.b16 %v2302
    %v2627 = vunpack.c.h.b16 %v2302
    %v2628 = vunpack.c.l.b16 %v2303
    %v2629 = vunpack.c.h.b16 %v2303
    %v2630 = vunpack.c.l.b16 %v2304
    %v2631 = vunpack.c.h.b16 %v2304
    %v2632 = vunpack.c.l.b16 %v2305
    %v2633 = vunpack.c.h.b16 %v2305
    %v2634 = vunpack.c.l.b16 %v2306
    %v2635 = vunpack.c.h.b16 %v2306
    %v2636 = vunpack.c.l.b16 %v2307
    %v2637 = vunpack.c.h.b16 %v2307
    %v2638 = vunpack.c.l.b16 %v2308
    %v2639 = vunpack.c.h.b16 %v2308
    %v2640 = vunpack.c.l.b16 %v2309
    %v2641 = vunpack.c.h.b16 %v2309
    %v2642 = vunpack.c.l.b16 %v2310
    %v2643 = vunpack.c.h.b16 %v2310
    %v2644 = vunpack.c.l.b16 %v2311
    %v2645 = vunpack.c.h.b16 %v2311
    %v2646 = vunpack.c.l.b16 %v2312
    %v2647 = vunpack.c.h.b16 %v2312
    %v2648 = vunpack.c.l.b16 %v2313
    %v2649 = vunpack.c.h.b16 %v2313
    %v2650 = vunpack.c.l.b16 %v2314
    %v2651 = vunpack.c.h.b16 %v2314
    %v2652 = vunpack.c.l.b16 %v2315
    %v2653 = vunpack.c.h.b16 %v2315
    %v2654 = vunpack.c.l.b16 %v2316
    %v2655 = vunpack.c.h.b16 %v2316
    %v2656 = vunpack.c.l.b16 %v2317
    %v2657 = vunpack.c.h.b16 %v2317
    %v2658 = vunpack.c.l.b16 %v2318
    %v2659 = vunpack.c.h.b16 %v2318
    %v2660 = vunpack.c.l.b16 %v2319
    %v2661 = vunpack.c.h.b16 %v2319
    %v2662 = vunpack.c.l.b16 %v2320
    %v2663 = vunpack.c.h.b16 %v2320
    %v2664 = vunpack.c.l.b16 %v2321
    %v2665 = vunpack.c.h.b16 %v2321
    %v2666 = vunpack.c.l.b16 %v2322
    %v2667 = vunpack.c.h.b16 %v2322
    %v2668 = vunpack.c.l.b16 %v2323
    %v2669 = vunpack.c.h.b16 %v2323
    %v2670 = vunpack.c.l.b16 %v2324
    %v2671 = vunpack.c.h.b16 %v2324
    %v2672 = vunpack.c.l.b16 %v2325
    %v2673 = vunpack.c.h.b16 %v2325
    %v2674 = vunpack.c.l.b16 %v2326
    %v2675 = vunpack.c.h.b16 %v2326
    %v2676 = vunpack.c.l.b16 %v2327
    %v2677 = vunpack.c.h.b16 %v2327
    %v2678 = vunpack.c.l.b16 %v2328
    %v2679 = vunpack.c.h.b16 %v2328
    %v2680 = vunpack.c.l.b16 %v2329
    %v2681 = vunpack.c.h.b16 %v2329
    %v2682 = vunpack.c.l.b16 %v2330
    %v2683 = vunpack.c.h.b16 %v2330
    %v2684 = vunpack.c.l.b16 %v2331
    %v2685 = vunpack.c.h.b16 %v2331
    %v2686 = vunpack.c.l.b16 %v2332
    %v2687 = vunpack.c.h.b16 %v2332
    %v2688 = vunpack.c.l.b16 %v2333
    %v2689 = vunpack.c.h.b16 %v2333
    %v2690 = vunpack.c.l.b16 %v2334
    %v2691 = vunpack.c.h.b16 %v2334
    %v2692 = vunpack.c.l.b16 %v2335
    %v2693 = vunpack.c.h.b16 %v2335
    %v2694 = vunpack.c.l.b16 %v2336
    %v2695 = vunpack.c.h.b16 %v2336
    %v2696 = vunpack.c.l.b16 %v2337
    %v2697 = vunpack.c.h.b16 %v2337
    %v2698 = vunpack.c.l.b16 %v2338
    %v2699 = vunpack.c.h.b16 %v2338
    %v2700 = vunpack.c.l.b16 %v2339
    %v2701 = vunpack.c.h.b16 %v2339
    %v2702 = vunpack.c.l.b16 %v2340
    %v2703 = vunpack.c.h.b16 %v2340
    %v2704 = vunpack.c.l.b16 %v2341
    %v2705 = vunpack.c.h.b16 %v2341
    %v2706 = vunpack.c.l.b16 %v2342
    %v2707 = vunpack.c.h.b16 %v2342
    %v2708 = vunpack.c.l.b16 %v2343
    %v2709 = vunpack.c.h.b16 %v2343
    %v2710 = vunpack.c.l.b16 %v2344
    %v2711 = vunpack.c.h.b16 %v2344
    %v2712 = vunpack.c.l.b16 %v2345
    %v2713 = vunpack.c.h.b16 %v2345
    %v2714 = vunpack.c.l.b16 %v2346
    %v2715 = vunpack.c.h.b16 %v2346
    %v2716 = vunpack.c.l.b16 %v2347
    %v2717 = vunpack.c.h.b16 %v2347
    %v2718 = vunpack.c.l.b16 %v2348
    %v2719 = vunpack.c.h.b16 %v2348
    %v2720 = vunpack.c.l.b16 %v2349
    %v2721 = vunpack.c.h.b16 %v2349
    %v2722 = vunpack.c.l.b16 %v2350
    %v2723 = vunpack.c.h.b16 %v2350
    %v2724 = vunpack.c.l.b16 %v2351
    %v2725 = vunpack.c.h.b16 %v2351
    %v2726 = vunpack.c.l.b16 %v2352
    %v2727 = vunpack.c.h.b16 %v2352
    %v2728 = vunpack.c.l.b16 %v2353
    %v2729 = vunpack.c.h.b16 %v2353
    %v2730 = vunpack.c.l.b16 %v2354
    %v2731 = vunpack.c.h.b16 %v2354
    %v2732 = vunpack.c.l.b16 %v2355
    %v2733 = vunpack.c.h.b16 %v2355
    %v2734 = vunpack.c.l.b16 %v2356
    %v2735 = vunpack.c.h.b16 %v2356
    %v2736 = vunpack.c.l.b16 %v2357
    %v2737 = vunpack.c.h.b16 %v2357
    %v2738 = vunpack.c.l.b16 %v2358
    %v2739 = vunpack.c.h.b16 %v2358
    %v2740 = vunpack.c.l.b16 %v2359
    %v2741 = vunpack.c.h.b16 %v2359
    %v2742 = vunpack.c.l.b16 %v2360
    %v2743 = vunpack.c.h.b16 %v2360
    %v2744 = vunpack.c.l.b16 %v2361
    %v2745 = vunpack.c.h.b16 %v2361
    %v2746 = vunpack.c.l.b16 %v2362
    %v2747 = vunpack.c.h.b16 %v2362
    %v2748 = vunpack.c.l.b16 %v2363
    %v2749 = vunpack.c.h.b16 %v2363
    %v2750 = vunpack.c.l.b16 %v2364
    %v2751 = vunpack.c.h.b16 %v2364
    %v2752 = vunpack.c.l.b16 %v2365
    %v2753 = vunpack.c.h.b16 %v2365
    %v2754 = vunpack.c.l.b16 %v2366
    %v2755 = vunpack.c.h.b16 %v2366
    %v2756 = vunpack.c.l.b16 %v2367
    %v2757 = vunpack.c.h.b16 %v2367
    %v2758 = vunpack.c.l.b16 %v2368
    %v2759 = vunpack.c.h.b16 %v2368
    %v2760 = vunpack.c.l.b16 %v2369
    %v2761 = vunpack.c.h.b16 %v2369
    %v2762 = vunpack.c.l.b16 %v2370
    %v2763 = vunpack.c.h.b16 %v2370
    %v2764 = vunpack.c.l.b16 %v2371
    %v2765 = vunpack.c.h.b16 %v2371
    %v2766 = vunpack.c.l.b16 %v2372
    %v2767 = vunpack.c.h.b16 %v2372
    %v2768 = vunpack.c.l.b16 %v2373
    %v2769 = vunpack.c.h.b16 %v2373
    %v2770 = vunpack.c.l.b16 %v2374
    %v2771 = vunpack.c.h.b16 %v2374
    %v2772 = vunpack.c.l.b16 %v2375
    %v2773 = vunpack.c.h.b16 %v2375
    %v2774 = vunpack.c.l.b16 %v2376
    %v2775 = vunpack.c.h.b16 %v2376
    %v2776 = vunpack.c.l.b16 %v2377
    %v2777 = vunpack.c.h.b16 %v2377
    %v2778 = vunpack.c.l.b16 %v2378
    %v2779 = vunpack.c.h.b16 %v2378
    %v2780 = vunpack.c.l.b16 %v2379
    %v2781 = vunpack.c.h.b16 %v2379
    %v2782 = vunpack.c.l.b16 %v2380
    %v2783 = vunpack.c.h.b16 %v2380
    %v2784 = vunpack.c.l.b16 %v2381
    %v2785 = vunpack.c.h.b16 %v2381
    %v2786 = vunpack.c.l.b16 %v2382
    %v2787 = vunpack.c.h.b16 %v2382
    %v2788 = vunpack.c.l.b16 %v2383
    %v2789 = vunpack.c.h.b16 %v2383
    %v2790 = vpack.c.b16 %v2538, %v2534
    %v2791 = vpack.c.b16 %v2539, %v2535
    %v2792 = vpack.c.b16 %v2540, %v2536
    %v2793 = vpack.c.b16 %v2541, %v2537
    %v2794 = vpack.c.b16 %v2546, %v2542
    %v2795 = vpack.c.b16 %v2547, %v2543
    %v2796 = vpack.c.b16 %v2548, %v2544
    %v2797 = vpack.c.b16 %v2549, %v2545
    %v2798 = vpack.c.b16 %v2554, %v2550
    %v2799 = vpack.c.b16 %v2555, %v2551
    %v2800 = vpack.c.b16 %v2556, %v2552
    %v2801 = vpack.c.b16 %v2557, %v2553
    %v2802 = vpack.c.b16 %v2562, %v2558
    %v2803 = vpack.c.b16 %v2563, %v2559
    %v2804 = vpack.c.b16 %v2564, %v2560
    %v2805 = vpack.c.b16 %v2565, %v2561
    %v2806 = vpack.c.b16 %v2570, %v2566
    %v2807 = vpack.c.b16 %v2571, %v2567
    %v2808 = vpack.c.b16 %v2572, %v2568
    %v2809 = vpack.c.b16 %v2573, %v2569
    %v2810 = vpack.c.b16 %v2578, %v2574
    %v2811 = vpack.c.b16 %v2579, %v2575
    %v2812 = vpack.c.b16 %v2580, %v2576
    %v2813 = vpack.c.b16 %v2581, %v2577
    %v2814 = vpack.c.b16 %v2586, %v2582
    %v2815 = vpack.c.b16 %v2587, %v2583
    %v2816 = vpack.c.b16 %v2588, %v2584
    %v2817 = vpack.c.b16 %v2589, %v2585
    %v2818 = vpack.c.b16 %v2594, %v2590
    %v2819 = vpack.c.b16 %v2595, %v2591
    %v2820 = vpack.c.b16 %v2596, %v2592
    %v2821 = vpack.c.b16 %v2597, %v2593
    %v2822 = vpack.c.b16 %v2602, %v2598
    %v2823 = vpack.c.b16 %v2603, %v2599
    %v2824 = vpack.c.b16 %v2604, %v2600
    %v2825 = vpack.c.b16 %v2605, %v2601
    %v2826 = vpack.c.b16 %v2610, %v2606
    %v2827 = vpack.c.b16 %v2611, %v2607
    %v2828 = vpack.c.b16 %v2612, %v2608
    %v2829 = vpack.c.b16 %v2613, %v2609
    %v2830 = vpack.c.b16 %v2618, %v2614
    %v2831 = vpack.c.b16 %v2619, %v2615
    %v2832 = vpack.c.b16 %v2620, %v2616
    %v2833 = vpack.c.b16 %v2621, %v2617
    %v2834 = vpack.c.b16 %v2626, %v2622
    %v2835 = vpack.c.b16 %v2627, %v2623
    %v2836 = vpack.c.b16 %v2628, %v2624
    %v2837 = vpack.c.b16 %v2629, %v2625
    %v2838 = vpack.c.b16 %v2634, %v2630
    %v2839 = vpack.c.b16 %v2635, %v2631
    %v2840 = vpack.c.b16 %v2636, %v2632
    %v2841 = vpack.c.b16 %v2637, %v2633
    %v2842 = vpack.c.b16 %v2642, %v2638
    %v2843 = vpack.c.b16 %v2643, %v2639
    %v2844 = vpack.c.b16 %v2644, %v2640
    %v2845 = vpack.c.b16 %v2645, %v2641
    %v2846 = vpack.c.b16 %v2650, %v2646
    %v2847 = vpack.c.b16 %v2651, %v2647
    %v2848 = vpack.c.b16 %v2652, %v2648
    %v2849 = vpack.c.b16 %v2653, %v2649
    %v2850 = vpack.c.b16 %v2658, %v2654
    %v2851 = vpack.c.b16 %v2659, %v2655
    %v2852 = vpack.c.b16 %v2660, %v2656
    %v2853 = vpack.c.b16 %v2661, %v2657
    %v2854 = vpack.c.b16 %v2666, %v2662
    %v2855 = vpack.c.b16 %v2667, %v2663
    %v2856 = vpack.c.b16 %v2668, %v2664
    %v2857 = vpack.c.b16 %v2669, %v2665
    %v2858 = vpack.c.b16 %v2674, %v2670
    %v2859 = vpack.c.b16 %v2675, %v2671
    %v2860 = vpack.c.b16 %v2676, %v2672
    %v2861 = vpack.c.b16 %v2677, %v2673
    %v2862 = vpack.c.b16 %v2682, %v2678
    %v2863 = vpack.c.b16 %v2683, %v2679
    %v2864 = vpack.c.b16 %v2684, %v2680
    %v2865 = vpack.c.b16 %v2685, %v2681
    %v2866 = vpack.c.b16 %v2690, %v2686
    %v2867 = vpack.c.b16 %v2691, %v2687
    %v2868 = vpack.c.b16 %v2692, %v2688
    %v2869 = vpack.c.b16 %v2693, %v2689
    %v2870 = vpack.c.b16 %v2698, %v2694
    %v2871 = vpack.c.b16 %v2699, %v2695
    %v2872 = vpack.c.b16 %v2700, %v2696
    %v2873 = vpack.c.b16 %v2701, %v2697
    %v2874 = vpack.c.b16 %v2706, %v2702
    %v2875 = vpack.c.b16 %v2707, %v2703
    %v2876 = vpack.c.b16 %v2708, %v2704
    %v2877 = vpack.c.b16 %v2709, %v2705
    %v2878 = vpack.c.b16 %v2714, %v2710
    %v2879 = vpack.c.b16 %v2715, %v2711
    %v2880 = vpack.c.b16 %v2716, %v2712
    %v2881 = vpack.c.b16 %v2717, %v2713
    %v2882 = vpack.c.b16 %v2722, %v2718
    %v2883 = vpack.c.b16 %v2723, %v2719
    %v2884 = vpack.c.b16 %v2724, %v2720
    %v2885 = vpack.c.b16 %v2725, %v2721
    %v2886 = vpack.c.b16 %v2730, %v2726
    %v2887 = vpack.c.b16 %v2731, %v2727
    %v2888 = vpack.c.b16 %v2732, %v2728
    %v2889 = vpack.c.b16 %v2733, %v2729
    %v2890 = vpack.c.b16 %v2738, %v2734
    %v2891 = vpack.c.b16 %v2739, %v2735
    %v2892 = vpack.c.b16 %v2740, %v2736
    %v2893 = vpack.c.b16 %v2741, %v2737
    %v2894 = vpack.c.b16 %v2746, %v2742
    %v2895 = vpack.c.b16 %v2747, %v2743
    %v2896 = vpack.c.b16 %v2748, %v2744
    %v2897 = vpack.c.b16 %v2749, %v2745
    %v2898 = vpack.c.b16 %v2754, %v2750
    %v2899 = vpack.c.b16 %v2755, %v2751
    %v2900 = vpack.c.b16 %v2756, %v2752
    %v2901 = vpack.c.b16 %v2757, %v2753
    %v2902 = vpack.c.b16 %v2762, %v2758
    %v2903 = vpack.c.b16 %v2763, %v2759
    %v2904 = vpack.c.b16 %v2764, %v2760
    %v2905 = vpack.c.b16 %v2765, %v2761
    %v2906 = vpack.c.b16 %v2770, %v2766
    %v2907 = vpack.c.b16 %v2771, %v2767
    %v2908 = vpack.c.b16 %v2772, %v2768
    %v2909 = vpack.c.b16 %v2773, %v2769
    %v2910 = vpack.c.b16 %v2778, %v2774
    %v2911 = vpack.c.b16 %v2779, %v2775
    %v2912 = vpack.c.b16 %v2780, %v2776
    %v2913 = vpack.c.b16 %v2781, %v2777
    %v2914 = vpack.c.b16 %v2786, %v2782
    %v2915 = vpack.c.b16 %v2787, %v2783
    %v2916 = vpack.c.b16 %v2788, %v2784
    %v2917 = vpack.c.b16 %v2789, %v2785
    %3046 = vmatprep.subr.bf16.mxu0 %v2819
    %3047 = vmatpush1.bf16.msra.mxu0 %v2818
    %3048 = vmatprep.subr.bf16.mxu0 %v2815
    %3049 = vmatpush1.bf16.msra.mxu0 %v2814
    %3050 = vmatprep.subr.bf16.mxu0 %v2811
    %3051 = vmatpush1.bf16.msra.mxu0 %v2810
    %3052 = vmatprep.subr.bf16.mxu0 %v2807
    %3053 = vmatpush1.bf16.msra.mxu0 %v2806
    %3054 = vmatprep.subr.bf16.mxu0 %v2803
    %3055 = vmatpush1.bf16.msra.mxu0 %v2802
    %3056 = vmatprep.subr.bf16.mxu0 %v2799
    %3057 = vmatpush1.bf16.msra.mxu0 %v2798
    %3058 = vmatprep.subr.bf16.mxu0 %v2795
    %3059 = vmatpush1.bf16.msra.mxu0 %v2794
    %3060 = vmatprep.subr.bf16.mxu0 %v2791
    %3061 = vmatpush1.bf16.msra.mxu0 %v2790
    %3062 = vmatprep.subr.bf16.mxu0 %v2851
    %3063 = vmatpush2.bf16.msra.mxu0 %v2850
    %3064 = vmatprep.subr.bf16.mxu0 %v2847
    %3065 = vmatpush2.bf16.msra.mxu0 %v2846
    %3066 = vmatprep.subr.bf16.mxu0 %v2843
    %3067 = vmatpush2.bf16.msra.mxu0 %v2842
    %3068 = vmatprep.subr.bf16.mxu0 %v2839
    %3069 = vmatpush2.bf16.msra.mxu0 %v2838
    %3070 = vmatprep.subr.bf16.mxu0 %v2835
    %3071 = vmatpush2.bf16.msra.mxu0 %v2834
    %3072 = vmatprep.subr.bf16.mxu0 %v2831
    %3073 = vmatpush2.bf16.msra.mxu0 %v2830
    %3074 = vmatprep.subr.bf16.mxu0 %v2827
    %3075 = vmatpush2.bf16.msra.mxu0 %v2826
    %3076 = vmatprep.subr.bf16.mxu0 %v2823
    %3077 = vmatpush2.bf16.msra.mxu0 %v2822
    %3078 = vmatprep.mubr.bf16.mxu0 %v2241
    %3079 = vmatmul.mubr.bf16.gmra.mxu0 %v2240
    %v3080 = vpop.f32.mrf.mxu0
    %v3081 = vadd.f32 %v2389, %v3080
    %v3082 = vpop.f32.mrf.mxu0
    %v3083 = vadd.f32 %v2393, %v3082
    %v3084 = vpop.f32.mrf.mxu0
    %v3085 = vadd.f32 %v2389, %v3084
    %v3086 = vpop.f32.mrf.mxu0
    %v3087 = vadd.f32 %v2393, %v3086
    %3088 = vmatprep.mubr.bf16.mxu0 %v2245
    %3089 = vmatmul.mubr.bf16.gmra.mxu0 %v2244
    %v3090 = vpop.f32.mrf.mxu0
    %v3091 = vadd.f32 %v2389, %v3090
    %v3092 = vpop.f32.mrf.mxu0
    %v3093 = vadd.f32 %v2393, %v3092
    %v3094 = vpop.f32.mrf.mxu0
    %v3095 = vadd.f32 %v2389, %v3094
    %v3096 = vpop.f32.mrf.mxu0
    %v3097 = vadd.f32 %v2393, %v3096
    %3098 = vmatprep.mubr.bf16.mxu0 %v2249
    %3099 = vmatmul.mubr.bf16.gmra.mxu0 %v2248
    %v3100 = vpop.f32.mrf.mxu0
    %v3101 = vadd.f32 %v2389, %v3100
    %v3102 = vpop.f32.mrf.mxu0
    %v3103 = vadd.f32 %v2393, %v3102
    %v3104 = vpop.f32.mrf.mxu0
    %v3105 = vadd.f32 %v2389, %v3104
    %v3106 = vpop.f32.mrf.mxu0
    %v3107 = vadd.f32 %v2393, %v3106
    %3108 = vmatprep.mubr.bf16.mxu0 %v2253
    %3109 = vmatmul.mubr.bf16.gmra.mxu0 %v2252
    %v3110 = vpop.f32.mrf.mxu0
    %v3111 = vadd.f32 %v2389, %v3110
    %v3112 = vpop.f32.mrf.mxu0
    %v3113 = vadd.f32 %v2393, %v3112
    %v3114 = vpop.f32.mrf.mxu0
    %v3115 = vadd.f32 %v2389, %v3114
    %v3116 = vpop.f32.mrf.mxu0
    %v3117 = vadd.f32 %v2393, %v3116
    %3118 = vdwg.mxu0
    %3119 = vmatprep.subr.bf16.mxu0 %v2883
    %3120 = vmatpush1.bf16.msra.mxu0 %v2882
    %3121 = vmatprep.subr.bf16.mxu0 %v2879
    %3122 = vmatpush1.bf16.msra.mxu0 %v2878
    %3123 = vmatprep.subr.bf16.mxu0 %v2875
    %3124 = vmatpush1.bf16.msra.mxu0 %v2874
    %3125 = vmatprep.subr.bf16.mxu0 %v2871
    %3126 = vmatpush1.bf16.msra.mxu0 %v2870
    %3127 = vmatprep.subr.bf16.mxu0 %v2867
    %3128 = vmatpush1.bf16.msra.mxu0 %v2866
    %3129 = vmatprep.subr.bf16.mxu0 %v2863
    %3130 = vmatpush1.bf16.msra.mxu0 %v2862
    %3131 = vmatprep.subr.bf16.mxu0 %v2859
    %3132 = vmatpush1.bf16.msra.mxu0 %v2858
    %3133 = vmatprep.subr.bf16.mxu0 %v2855
    %3134 = vmatpush1.bf16.msra.mxu0 %v2854
    %3135 = vmatprep.subr.bf16.mxu0 %v2915
    %3136 = vmatpush2.bf16.msra.mxu0 %v2914
    %3137 = vmatprep.subr.bf16.mxu0 %v2911
    %3138 = vmatpush2.bf16.msra.mxu0 %v2910
    %3139 = vmatprep.subr.bf16.mxu0 %v2907
    %3140 = vmatpush2.bf16.msra.mxu0 %v2906
    %3141 = vmatprep.subr.bf16.mxu0 %v2903
    %3142 = vmatpush2.bf16.msra.mxu0 %v2902
    %3143 = vmatprep.subr.bf16.mxu0 %v2899
    %3144 = vmatpush2.bf16.msra.mxu0 %v2898
    %3145 = vmatprep.subr.bf16.mxu0 %v2895
    %3146 = vmatpush2.bf16.msra.mxu0 %v2894
    %3147 = vmatprep.subr.bf16.mxu0 %v2891
    %3148 = vmatpush2.bf16.msra.mxu0 %v2890
    %3149 = vmatprep.subr.bf16.mxu0 %v2887
    %3150 = vmatpush2.bf16.msra.mxu0 %v2886
    %3151 = vmatprep.mubr.bf16.mxu0 %v2243
    %3152 = vmatmul.mubr.bf16.gmra.mxu0 %v2242
    %v3153 = vpop.f32.mrf.mxu0
    %v3154 = vadd.f32 %v3081, %v3153
    %v3155 = vpop.f32.mrf.mxu0
    %v3156 = vadd.f32 %v3083, %v3155
    %v3157 = vpop.f32.mrf.mxu0
    %v3158 = vadd.f32 %v3085, %v3157
    %v3159 = vpop.f32.mrf.mxu0
    %v3160 = vadd.f32 %v3087, %v3159
    %3161 = vmatprep.mubr.bf16.mxu0 %v2247
    %3162 = vmatmul.mubr.bf16.gmra.mxu0 %v2246
    %v3163 = vpop.f32.mrf.mxu0
    %v3164 = vadd.f32 %v3091, %v3163
    %v3165 = vpop.f32.mrf.mxu0
    %v3166 = vadd.f32 %v3093, %v3165
    %v3167 = vpop.f32.mrf.mxu0
    %v3168 = vadd.f32 %v3095, %v3167
    %v3169 = vpop.f32.mrf.mxu0
    %v3170 = vadd.f32 %v3097, %v3169
    %3171 = vmatprep.mubr.bf16.mxu0 %v2251
    %3172 = vmatmul.mubr.bf16.gmra.mxu0 %v2250
    %v3173 = vpop.f32.mrf.mxu0
    %v3174 = vadd.f32 %v3101, %v3173
    %v3175 = vpop.f32.mrf.mxu0
    %v3176 = vadd.f32 %v3103, %v3175
    %v3177 = vpop.f32.mrf.mxu0
    %v3178 = vadd.f32 %v3105, %v3177
    %v3179 = vpop.f32.mrf.mxu0
    %v3180 = vadd.f32 %v3107, %v3179
    %3181 = vmatprep.mubr.bf16.mxu0 %v2255
    %3182 = vmatmul.mubr.bf16.gmra.mxu0 %v2254
    %v3183 = vpop.f32.mrf.mxu0
    %v3184 = vadd.f32 %v3111, %v3183
    %v3185 = vpop.f32.mrf.mxu0
    %v3186 = vadd.f32 %v3113, %v3185
    %v3187 = vpop.f32.mrf.mxu0
    %v3188 = vadd.f32 %v3115, %v3187
    %v3189 = vpop.f32.mrf.mxu0
    %v3190 = vadd.f32 %v3117, %v3189
    %3191 = vdwg.mxu0
    %3192 = vmatprep.subr.bf16.mxu0 %v2821
    %3193 = vmatpush1.bf16.msra.mxu0 %v2820
    %3194 = vmatprep.subr.bf16.mxu0 %v2817
    %3195 = vmatpush1.bf16.msra.mxu0 %v2816
    %3196 = vmatprep.subr.bf16.mxu0 %v2813
    %3197 = vmatpush1.bf16.msra.mxu0 %v2812
    %3198 = vmatprep.subr.bf16.mxu0 %v2809
    %3199 = vmatpush1.bf16.msra.mxu0 %v2808
    %3200 = vmatprep.subr.bf16.mxu0 %v2805
    %3201 = vmatpush1.bf16.msra.mxu0 %v2804
    %3202 = vmatprep.subr.bf16.mxu0 %v2801
    %3203 = vmatpush1.bf16.msra.mxu0 %v2800
    %3204 = vmatprep.subr.bf16.mxu0 %v2797
    %3205 = vmatpush1.bf16.msra.mxu0 %v2796
    %3206 = vmatprep.subr.bf16.mxu0 %v2793
    %3207 = vmatpush1.bf16.msra.mxu0 %v2792
    %3208 = vmatprep.subr.bf16.mxu0 %v2853
    %3209 = vmatpush2.bf16.msra.mxu0 %v2852
    %3210 = vmatprep.subr.bf16.mxu0 %v2849
    %3211 = vmatpush2.bf16.msra.mxu0 %v2848
    %3212 = vmatprep.subr.bf16.mxu0 %v2845
    %3213 = vmatpush2.bf16.msra.mxu0 %v2844
    %3214 = vmatprep.subr.bf16.mxu0 %v2841
    %3215 = vmatpush2.bf16.msra.mxu0 %v2840
    %3216 = vmatprep.subr.bf16.mxu0 %v2837
    %3217 = vmatpush2.bf16.msra.mxu0 %v2836
    %3218 = vmatprep.subr.bf16.mxu0 %v2833
    %3219 = vmatpush2.bf16.msra.mxu0 %v2832
    %3220 = vmatprep.subr.bf16.mxu0 %v2829
    %3221 = vmatpush2.bf16.msra.mxu0 %v2828
    %3222 = vmatprep.subr.bf16.mxu0 %v2825
    %3223 = vmatpush2.bf16.msra.mxu0 %v2824
    %3224 = vmatprep.mubr.bf16.mxu0 %v2241
    %3225 = vmatmul.mubr.bf16.gmra.mxu0 %v2240
    %v3226 = vpop.f32.mrf.mxu0
    %v3227 = vadd.f32 %v2397, %v3226
    %v3228 = vpop.f32.mrf.mxu0
    %v3229 = vadd.f32 %v2401, %v3228
    %v3230 = vpop.f32.mrf.mxu0
    %v3231 = vadd.f32 %v2397, %v3230
    %v3232 = vpop.f32.mrf.mxu0
    %v3233 = vadd.f32 %v2401, %v3232
    %3234 = vmatprep.mubr.bf16.mxu0 %v2245
    %3235 = vmatmul.mubr.bf16.gmra.mxu0 %v2244
    %v3236 = vpop.f32.mrf.mxu0
    %v3237 = vadd.f32 %v2397, %v3236
    %v3238 = vpop.f32.mrf.mxu0
    %v3239 = vadd.f32 %v2401, %v3238
    %v3240 = vpop.f32.mrf.mxu0
    %v3241 = vadd.f32 %v2397, %v3240
    %v3242 = vpop.f32.mrf.mxu0
    %v3243 = vadd.f32 %v2401, %v3242
    %3244 = vmatprep.mubr.bf16.mxu0 %v2249
    %3245 = vmatmul.mubr.bf16.gmra.mxu0 %v2248
    %v3246 = vpop.f32.mrf.mxu0
    %v3247 = vadd.f32 %v2397, %v3246
    %v3248 = vpop.f32.mrf.mxu0
    %v3249 = vadd.f32 %v2401, %v3248
    %v3250 = vpop.f32.mrf.mxu0
    %v3251 = vadd.f32 %v2397, %v3250
    %v3252 = vpop.f32.mrf.mxu0
    %v3253 = vadd.f32 %v2401, %v3252
    %3254 = vmatprep.mubr.bf16.mxu0 %v2253
    %3255 = vmatmul.mubr.bf16.gmra.mxu0 %v2252
    %v3256 = vpop.f32.mrf.mxu0
    %v3257 = vadd.f32 %v2397, %v3256
    %v3258 = vpop.f32.mrf.mxu0
    %v3259 = vadd.f32 %v2401, %v3258
    %v3260 = vpop.f32.mrf.mxu0
    %v3261 = vadd.f32 %v2397, %v3260
    %v3262 = vpop.f32.mrf.mxu0
    %v3263 = vadd.f32 %v2401, %v3262
    %3264 = vdwg.mxu0
    %3265 = vmatprep.subr.bf16.mxu0 %v2885
    %3266 = vmatpush1.bf16.msra.mxu0 %v2884
    %3267 = vmatprep.subr.bf16.mxu0 %v2881
    %3268 = vmatpush1.bf16.msra.mxu0 %v2880
    %3269 = vmatprep.subr.bf16.mxu0 %v2877
    %3270 = vmatpush1.bf16.msra.mxu0 %v2876
    %3271 = vmatprep.subr.bf16.mxu0 %v2873
    %3272 = vmatpush1.bf16.msra.mxu0 %v2872
    %3273 = vmatprep.subr.bf16.mxu0 %v2869
    %3274 = vmatpush1.bf16.msra.mxu0 %v2868
    %3275 = vmatprep.subr.bf16.mxu0 %v2865
    %3276 = vmatpush1.bf16.msra.mxu0 %v2864
    %3277 = vmatprep.subr.bf16.mxu0 %v2861
    %3278 = vmatpush1.bf16.msra.mxu0 %v2860
    %3279 = vmatprep.subr.bf16.mxu0 %v2857
    %3280 = vmatpush1.bf16.msra.mxu0 %v2856
    %3281 = vmatprep.subr.bf16.mxu0 %v2917
    %3282 = vmatpush2.bf16.msra.mxu0 %v2916
    %3283 = vmatprep.subr.bf16.mxu0 %v2913
    %3284 = vmatpush2.bf16.msra.mxu0 %v2912
    %3285 = vmatprep.subr.bf16.mxu0 %v2909
    %3286 = vmatpush2.bf16.msra.mxu0 %v2908
    %3287 = vmatprep.subr.bf16.mxu0 %v2905
    %3288 = vmatpush2.bf16.msra.mxu0 %v2904
    %3289 = vmatprep.subr.bf16.mxu0 %v2901
    %3290 = vmatpush2.bf16.msra.mxu0 %v2900
    %3291 = vmatprep.subr.bf16.mxu0 %v2897
    %3292 = vmatpush2.bf16.msra.mxu0 %v2896
    %3293 = vmatprep.subr.bf16.mxu0 %v2893
    %3294 = vmatpush2.bf16.msra.mxu0 %v2892
    %3295 = vmatprep.subr.bf16.mxu0 %v2889
    %3296 = vmatpush2.bf16.msra.mxu0 %v2888
    %3297 = vmatprep.mubr.bf16.mxu0 %v2243
    %3298 = vmatmul.mubr.bf16.gmra.mxu0 %v2242
    %v3299 = vpop.f32.mrf.mxu0
    %v3300 = vadd.f32 %v3227, %v3299
    %v3301 = vpop.f32.mrf.mxu0
    %v3302 = vadd.f32 %v3229, %v3301
    %v3303 = vpop.f32.mrf.mxu0
    %v3304 = vadd.f32 %v3231, %v3303
    %v3305 = vpop.f32.mrf.mxu0
    %v3306 = vadd.f32 %v3233, %v3305
    %3307 = vmatprep.mubr.bf16.mxu0 %v2247
    %3308 = vmatmul.mubr.bf16.gmra.mxu0 %v2246
    %v3309 = vpop.f32.mrf.mxu0
    %v3310 = vadd.f32 %v3237, %v3309
    %v3311 = vpop.f32.mrf.mxu0
    %v3312 = vadd.f32 %v3239, %v3311
    %v3313 = vpop.f32.mrf.mxu0
    %v3314 = vadd.f32 %v3241, %v3313
    %v3315 = vpop.f32.mrf.mxu0
    %v3316 = vadd.f32 %v3243, %v3315
    %3317 = vmatprep.mubr.bf16.mxu0 %v2251
    %3318 = vmatmul.mubr.bf16.gmra.mxu0 %v2250
    %v3319 = vpop.f32.mrf.mxu0
    %v3320 = vadd.f32 %v3247, %v3319
    %v3321 = vpop.f32.mrf.mxu0
    %v3322 = vadd.f32 %v3249, %v3321
    %v3323 = vpop.f32.mrf.mxu0
    %v3324 = vadd.f32 %v3251, %v3323
    %v3325 = vpop.f32.mrf.mxu0
    %v3326 = vadd.f32 %v3253, %v3325
    %3327 = vmatprep.mubr.bf16.mxu0 %v2255
    %3328 = vmatmul.mubr.bf16.gmra.mxu0 %v2254
    %v3329 = vpop.f32.mrf.mxu0
    %v3330 = vadd.f32 %v3257, %v3329
    %v3331 = vpop.f32.mrf.mxu0
    %v3332 = vadd.f32 %v3259, %v3331
    %v3333 = vpop.f32.mrf.mxu0
    %v3334 = vadd.f32 %v3261, %v3333
    %v3335 = vpop.f32.mrf.mxu0
    %v3336 = vadd.f32 %v3263, %v3335
    %3337 = vdwg.mxu0
    %v3338 = vmax.f32 %v3154, 0.0
    %v3339 = vmax.f32 %v3156, 0.0
    %v3340 = vmax.f32 %v3300, 0.0
    %v3341 = vmax.f32 %v3302, 0.0
    %v3342 = vmax.f32 %v3158, 0.0
    %v3343 = vmax.f32 %v3160, 0.0
    %v3344 = vmax.f32 %v3304, 0.0
    %v3345 = vmax.f32 %v3306, 0.0
    %v3346 = vmax.f32 %v3164, 0.0
    %v3347 = vmax.f32 %v3166, 0.0
    %v3348 = vmax.f32 %v3310, 0.0
    %v3349 = vmax.f32 %v3312, 0.0
    %v3350 = vmax.f32 %v3168, 0.0
    %v3351 = vmax.f32 %v3170, 0.0
    %v3352 = vmax.f32 %v3314, 0.0
    %v3353 = vmax.f32 %v3316, 0.0
    %v3354 = vmax.f32 %v3174, 0.0
    %v3355 = vmax.f32 %v3176, 0.0
    %v3356 = vmax.f32 %v3320, 0.0
    %v3357 = vmax.f32 %v3322, 0.0
    %v3358 = vmax.f32 %v3178, 0.0
    %v3359 = vmax.f32 %v3180, 0.0
    %v3360 = vmax.f32 %v3324, 0.0
    %v3361 = vmax.f32 %v3326, 0.0
    %v3362 = vmax.f32 %v3184, 0.0
    %v3363 = vmax.f32 %v3186, 0.0
    %v3364 = vmax.f32 %v3330, 0.0
    %v3365 = vmax.f32 %v3332, 0.0
    %v3366 = vmax.f32 %v3188, 0.0
    %v3367 = vmax.f32 %v3190, 0.0
    %v3368 = vmax.f32 %v3334, 0.0
    %v3369 = vmax.f32 %v3336, 0.0
    %v3370 = vand.u32 2147483647, %v3154
    %v3371 = vand.u32 2147483647, %v3156
    %v3372 = vand.u32 2147483647, %v3300
    %v3373 = vand.u32 2147483647, %v3302
    %v3374 = vand.u32 2147483647, %v3158
    %v3375 = vand.u32 2147483647, %v3160
    %v3376 = vand.u32 2147483647, %v3304
    %v3377 = vand.u32 2147483647, %v3306
    %v3378 = vand.u32 2147483647, %v3164
    %v3379 = vand.u32 2147483647, %v3166
    %v3380 = vand.u32 2147483647, %v3310
    %v3381 = vand.u32 2147483647, %v3312
    %v3382 = vand.u32 2147483647, %v3168
    %v3383 = vand.u32 2147483647, %v3170
    %v3384 = vand.u32 2147483647, %v3314
    %v3385 = vand.u32 2147483647, %v3316
    %v3386 = vand.u32 2147483647, %v3174
    %v3387 = vand.u32 2147483647, %v3176
    %v3388 = vand.u32 2147483647, %v3320
    %v3389 = vand.u32 2147483647, %v3322
    %v3390 = vand.u32 2147483647, %v3178
    %v3391 = vand.u32 2147483647, %v3180
    %v3392 = vand.u32 2147483647, %v3324
    %v3393 = vand.u32 2147483647, %v3326
    %v3394 = vand.u32 2147483647, %v3184
    %v3395 = vand.u32 2147483647, %v3186
    %v3396 = vand.u32 2147483647, %v3330
    %v3397 = vand.u32 2147483647, %v3332
    %v3398 = vand.u32 2147483647, %v3188
    %v3399 = vand.u32 2147483647, %v3190
    %v3400 = vand.u32 2147483647, %v3334
    %v3401 = vand.u32 2147483647, %v3336
    %v3402 = vsub.f32 0.0, %v3370
    %v3403 = vsub.f32 0.0, %v3371
    %v3404 = vsub.f32 0.0, %v3372
    %v3405 = vsub.f32 0.0, %v3373
    %v3406 = vsub.f32 0.0, %v3374
    %v3407 = vsub.f32 0.0, %v3375
    %v3408 = vsub.f32 0.0, %v3376
    %v3409 = vsub.f32 0.0, %v3377
    %v3410 = vsub.f32 0.0, %v3378
    %v3411 = vsub.f32 0.0, %v3379
    %v3412 = vsub.f32 0.0, %v3380
    %v3413 = vsub.f32 0.0, %v3381
    %v3414 = vsub.f32 0.0, %v3382
    %v3415 = vsub.f32 0.0, %v3383
    %v3416 = vsub.f32 0.0, %v3384
    %v3417 = vsub.f32 0.0, %v3385
    %v3418 = vsub.f32 0.0, %v3386
    %v3419 = vsub.f32 0.0, %v3387
    %v3420 = vsub.f32 0.0, %v3388
    %v3421 = vsub.f32 0.0, %v3389
    %v3422 = vsub.f32 0.0, %v3390
    %v3423 = vsub.f32 0.0, %v3391
    %v3424 = vsub.f32 0.0, %v3392
    %v3425 = vsub.f32 0.0, %v3393
    %v3426 = vsub.f32 0.0, %v3394
    %v3427 = vsub.f32 0.0, %v3395
    %v3428 = vsub.f32 0.0, %v3396
    %v3429 = vsub.f32 0.0, %v3397
    %v3430 = vsub.f32 0.0, %v3398
    %v3431 = vsub.f32 0.0, %v3399
    %v3432 = vsub.f32 0.0, %v3400
    %v3433 = vsub.f32 0.0, %v3401
    %v3434 = vmul.f32 %v3402, 1.442695
    %v3435 = vpow.pop %v3434
    %v3436 = vmul.f32 %v3403, 1.442695
    %v3437 = vpow.pop %v3436
    %v3438 = vmul.f32 %v3404, 1.442695
    %v3439 = vpow.pop %v3438
    %v3440 = vmul.f32 %v3405, 1.442695
    %v3441 = vpow.pop %v3440
    %v3442 = vmul.f32 %v3406, 1.442695
    %v3443 = vpow.pop %v3442
    %v3444 = vmul.f32 %v3407, 1.442695
    %v3445 = vpow.pop %v3444
    %v3446 = vmul.f32 %v3408, 1.442695
    %v3447 = vpow.pop %v3446
    %v3448 = vmul.f32 %v3409, 1.442695
    %v3449 = vpow.pop %v3448
    %v3450 = vmul.f32 %v3410, 1.442695
    %v3451 = vpow.pop %v3450
    %v3452 = vmul.f32 %v3411, 1.442695
    %v3453 = vpow.pop %v3452
    %v3454 = vmul.f32 %v3412, 1.442695
    %v3455 = vpow.pop %v3454
    %v3456 = vmul.f32 %v3413, 1.442695
    %v3457 = vpow.pop %v3456
    %v3458 = vmul.f32 %v3414, 1.442695
    %v3459 = vpow.pop %v3458
    %v3460 = vmul.f32 %v3415, 1.442695
    %v3461 = vpow.pop %v3460
    %v3462 = vmul.f32 %v3416, 1.442695
    %v3463 = vpow.pop %v3462
    %v3464 = vmul.f32 %v3417, 1.442695
    %v3465 = vpow.pop %v3464
    %v3466 = vmul.f32 %v3418, 1.442695
    %v3467 = vpow.pop %v3466
    %v3468 = vmul.f32 %v3419, 1.442695
    %v3469 = vpow.pop %v3468
    %v3470 = vmul.f32 %v3420, 1.442695
    %v3471 = vpow.pop %v3470
    %v3472 = vmul.f32 %v3421, 1.442695
    %v3473 = vpow.pop %v3472
    %v3474 = vmul.f32 %v3422, 1.442695
    %v3475 = vpow.pop %v3474
    %v3476 = vmul.f32 %v3423, 1.442695
    %v3477 = vpow.pop %v3476
    %v3478 = vmul.f32 %v3424, 1.442695
    %v3479 = vpow.pop %v3478
    %v3480 = vmul.f32 %v3425, 1.442695
    %v3481 = vpow.pop %v3480
    %v3482 = vmul.f32 %v3426, 1.442695
    %v3483 = vpow.pop %v3482
    %v3484 = vmul.f32 %v3427, 1.442695
    %v3485 = vpow.pop %v3484
    %v3486 = vmul.f32 %v3428, 1.442695
    %v3487 = vpow.pop %v3486
    %v3488 = vmul.f32 %v3429, 1.442695
    %v3489 = vpow.pop %v3488
    %v3490 = vmul.f32 %v3430, 1.442695
    %v3491 = vpow.pop %v3490
    %v3492 = vmul.f32 %v3431, 1.442695
    %v3493 = vpow.pop %v3492
    %v3494 = vmul.f32 %v3432, 1.442695
    %v3495 = vpow.pop %v3494
    %v3496 = vmul.f32 %v3433, 1.442695
    %v3497 = vpow.pop %v3496
    %v3498 = vadd.f32 %v3435, 1.0
    %v3499 = vadd.f32 %v3437, 1.0
    %v3500 = vadd.f32 %v3439, 1.0
    %v3501 = vadd.f32 %v3441, 1.0
    %v3502 = vadd.f32 %v3443, 1.0
    %v3503 = vadd.f32 %v3445, 1.0
    %v3504 = vadd.f32 %v3447, 1.0
    %v3505 = vadd.f32 %v3449, 1.0
    %v3506 = vadd.f32 %v3451, 1.0
    %v3507 = vadd.f32 %v3453, 1.0
    %v3508 = vadd.f32 %v3455, 1.0
    %v3509 = vadd.f32 %v3457, 1.0
    %v3510 = vadd.f32 %v3459, 1.0
    %v3511 = vadd.f32 %v3461, 1.0
    %v3512 = vadd.f32 %v3463, 1.0
    %v3513 = vadd.f32 %v3465, 1.0
    %v3514 = vadd.f32 %v3467, 1.0
    %v3515 = vadd.f32 %v3469, 1.0
    %v3516 = vadd.f32 %v3471, 1.0
    %v3517 = vadd.f32 %v3473, 1.0
    %v3518 = vadd.f32 %v3475, 1.0
    %v3519 = vadd.f32 %v3477, 1.0
    %v3520 = vadd.f32 %v3479, 1.0
    %v3521 = vadd.f32 %v3481, 1.0
    %v3522 = vadd.f32 %v3483, 1.0
    %v3523 = vadd.f32 %v3485, 1.0
    %v3524 = vadd.f32 %v3487, 1.0
    %v3525 = vadd.f32 %v3489, 1.0
    %v3526 = vadd.f32 %v3491, 1.0
    %v3527 = vadd.f32 %v3493, 1.0
    %v3528 = vadd.f32 %v3495, 1.0
    %v3529 = vadd.f32 %v3497, 1.0
    %v3530 = vlog2.pop %v3498
    %v3531 = vmul.f32 %v3530, 0.6931472
    %v3532 = vlog2.pop %v3499
    %v3533 = vmul.f32 %v3532, 0.6931472
    %v3534 = vlog2.pop %v3500
    %v3535 = vmul.f32 %v3534, 0.6931472
    %v3536 = vlog2.pop %v3501
    %v3537 = vmul.f32 %v3536, 0.6931472
    %v3538 = vlog2.pop %v3502
    %v3539 = vmul.f32 %v3538, 0.6931472
    %v3540 = vlog2.pop %v3503
    %v3541 = vmul.f32 %v3540, 0.6931472
    %v3542 = vlog2.pop %v3504
    %v3543 = vmul.f32 %v3542, 0.6931472
    %v3544 = vlog2.pop %v3505
    %v3545 = vmul.f32 %v3544, 0.6931472
    %v3546 = vlog2.pop %v3506
    %v3547 = vmul.f32 %v3546, 0.6931472
    %v3548 = vlog2.pop %v3507
    %v3549 = vmul.f32 %v3548, 0.6931472
    %v3550 = vlog2.pop %v3508
    %v3551 = vmul.f32 %v3550, 0.6931472
    %v3552 = vlog2.pop %v3509
    %v3553 = vmul.f32 %v3552, 0.6931472
    %v3554 = vlog2.pop %v3510
    %v3555 = vmul.f32 %v3554, 0.6931472
    %v3556 = vlog2.pop %v3511
    %v3557 = vmul.f32 %v3556, 0.6931472
    %v3558 = vlog2.pop %v3512
    %v3559 = vmul.f32 %v3558, 0.6931472
    %v3560 = vlog2.pop %v3513
    %v3561 = vmul.f32 %v3560, 0.6931472
    %v3562 = vlog2.pop %v3514
    %v3563 = vmul.f32 %v3562, 0.6931472
    %v3564 = vlog2.pop %v3515
    %v3565 = vmul.f32 %v3564, 0.6931472
    %v3566 = vlog2.pop %v3516
    %v3567 = vmul.f32 %v3566, 0.6931472
    %v3568 = vlog2.pop %v3517
    %v3569 = vmul.f32 %v3568, 0.6931472
    %v3570 = vlog2.pop %v3518
    %v3571 = vmul.f32 %v3570, 0.6931472
    %v3572 = vlog2.pop %v3519
    %v3573 = vmul.f32 %v3572, 0.6931472
    %v3574 = vlog2.pop %v3520
    %v3575 = vmul.f32 %v3574, 0.6931472
    %v3576 = vlog2.pop %v3521
    %v3577 = vmul.f32 %v3576, 0.6931472
    %v3578 = vlog2.pop %v3522
    %v3579 = vmul.f32 %v3578, 0.6931472
    %v3580 = vlog2.pop %v3523
    %v3581 = vmul.f32 %v3580, 0.6931472
    %v3582 = vlog2.pop %v3524
    %v3583 = vmul.f32 %v3582, 0.6931472
    %v3584 = vlog2.pop %v3525
    %v3585 = vmul.f32 %v3584, 0.6931472
    %v3586 = vlog2.pop %v3526
    %v3587 = vmul.f32 %v3586, 0.6931472
    %v3588 = vlog2.pop %v3527
    %v3589 = vmul.f32 %v3588, 0.6931472
    %v3590 = vlog2.pop %v3528
    %v3591 = vmul.f32 %v3590, 0.6931472
    %v3592 = vlog2.pop %v3529
    %v3593 = vmul.f32 %v3592, 0.6931472
    %v3594 = vadd.f32 %v3338, %v3531
    %v3595 = vadd.f32 %v3339, %v3533
    %v3596 = vadd.f32 %v3340, %v3535
    %v3597 = vadd.f32 %v3341, %v3537
    %v3598 = vadd.f32 %v3342, %v3539
    %v3599 = vadd.f32 %v3343, %v3541
    %v3600 = vadd.f32 %v3344, %v3543
    %v3601 = vadd.f32 %v3345, %v3545
    %v3602 = vadd.f32 %v3346, %v3547
    %v3603 = vadd.f32 %v3347, %v3549
    %v3604 = vadd.f32 %v3348, %v3551
    %v3605 = vadd.f32 %v3349, %v3553
    %v3606 = vadd.f32 %v3350, %v3555
    %v3607 = vadd.f32 %v3351, %v3557
    %v3608 = vadd.f32 %v3352, %v3559
    %v3609 = vadd.f32 %v3353, %v3561
    %v3610 = vadd.f32 %v3354, %v3563
    %v3611 = vadd.f32 %v3355, %v3565
    %v3612 = vadd.f32 %v3356, %v3567
    %v3613 = vadd.f32 %v3357, %v3569
    %v3614 = vadd.f32 %v3358, %v3571
    %v3615 = vadd.f32 %v3359, %v3573
    %v3616 = vadd.f32 %v3360, %v3575
    %v3617 = vadd.f32 %v3361, %v3577
    %v3618 = vadd.f32 %v3362, %v3579
    %v3619 = vadd.f32 %v3363, %v3581
    %v3620 = vadd.f32 %v3364, %v3583
    %v3621 = vadd.f32 %v3365, %v3585
    %v3622 = vadd.f32 %v3366, %v3587
    %v3623 = vadd.f32 %v3367, %v3589
    %v3624 = vadd.f32 %v3368, %v3591
    %v3625 = vadd.f32 %v3369, %v3593
    %v3626 = vpack.c.bf16 %v3598, %v3594
    %v3627 = vpack.c.bf16 %v3599, %v3595
    %v3628 = vpack.c.bf16 %v3600, %v3596
    %v3629 = vpack.c.bf16 %v3601, %v3597
    %v3630 = vpack.c.bf16 %v3606, %v3602
    %v3631 = vpack.c.bf16 %v3607, %v3603
    %v3632 = vpack.c.bf16 %v3608, %v3604
    %v3633 = vpack.c.bf16 %v3609, %v3605
    %v3634 = vpack.c.bf16 %v3614, %v3610
    %v3635 = vpack.c.bf16 %v3615, %v3611
    %v3636 = vpack.c.bf16 %v3616, %v3612
    %v3637 = vpack.c.bf16 %v3617, %v3613
    %v3638 = vpack.c.bf16 %v3622, %v3618
    %v3639 = vpack.c.bf16 %v3623, %v3619
    %v3640 = vpack.c.bf16 %v3624, %v3620
    %v3641 = vpack.c.bf16 %v3625, %v3621
    %v3642 = vld [vmem:[%s5] sm:$0xf]
    %v3643 = vld [vmem:[%s5 + $0x4] sm:$0xf]
    %v3644 = vld [vmem:[%s5 + $0x8] sm:$0xf]
    %v3645 = vld [vmem:[%s5 + $0xc] sm:$0xf]
    %v3646 = vld [vmem:[%s5 + $0x10] sm:$0xf]
    %v3647 = vld [vmem:[%s5 + $0x14] sm:$0xf]
    %v3648 = vld [vmem:[%s5 + $0x18] sm:$0xf]
    %v3649 = vld [vmem:[%s5 + $0x1c] sm:$0xf]
    %v3650 = vld [vmem:[%s5 + $0x20] sm:$0xf]
    %v3651 = vld [vmem:[%s5 + $0x24] sm:$0xf]
    %v3652 = vld [vmem:[%s5 + $0x28] sm:$0xf]
    %v3653 = vld [vmem:[%s5 + $0x2c] sm:$0xf]
    %v3654 = vld [vmem:[%s5 + $0x30] sm:$0xf]
    %v3655 = vld [vmem:[%s5 + $0x34] sm:$0xf]
    %v3656 = vld [vmem:[%s5 + $0x38] sm:$0xf]
    %v3657 = vld [vmem:[%s5 + $0x3c] sm:$0xf]
    %v3658 = vld [vmem:[%s5 + $0x40] sm:$0xf]
    %v3659 = vld [vmem:[%s5 + $0x44] sm:$0xf]
    %v3660 = vld [vmem:[%s5 + $0x48] sm:$0xf]
    %v3661 = vld [vmem:[%s5 + $0x4c] sm:$0xf]
    %v3662 = vld [vmem:[%s5 + $0x50] sm:$0xf]
    %v3663 = vld [vmem:[%s5 + $0x54] sm:$0xf]
    %v3664 = vld [vmem:[%s5 + $0x58] sm:$0xf]
    %v3665 = vld [vmem:[%s5 + $0x5c] sm:$0xf]
    %v3666 = vld [vmem:[%s5 + $0x60] sm:$0xf]
    %v3667 = vld [vmem:[%s5 + $0x64] sm:$0xf]
    %v3668 = vld [vmem:[%s5 + $0x68] sm:$0xf]
    %v3669 = vld [vmem:[%s5 + $0x6c] sm:$0xf]
    %v3670 = vld [vmem:[%s5 + $0x70] sm:$0xf]
    %v3671 = vld [vmem:[%s5 + $0x74] sm:$0xf]
    %v3672 = vld [vmem:[%s5 + $0x78] sm:$0xf]
    %v3673 = vld [vmem:[%s5 + $0x7c] sm:$0xf]
    %v3674 = vld [vmem:[%s5 + $0x80] sm:$0xf]
    %v3675 = vld [vmem:[%s5 + $0x84] sm:$0xf]
    %v3676 = vld [vmem:[%s5 + $0x88] sm:$0xf]
    %v3677 = vld [vmem:[%s5 + $0x8c] sm:$0xf]
    %v3678 = vld [vmem:[%s5 + $0x90] sm:$0xf]
    %v3679 = vld [vmem:[%s5 + $0x94] sm:$0xf]
    %v3680 = vld [vmem:[%s5 + $0x98] sm:$0xf]
    %v3681 = vld [vmem:[%s5 + $0x9c] sm:$0xf]
    %v3682 = vld [vmem:[%s5 + $0xa0] sm:$0xf]
    %v3683 = vld [vmem:[%s5 + $0xa4] sm:$0xf]
    %v3684 = vld [vmem:[%s5 + $0xa8] sm:$0xf]
    %v3685 = vld [vmem:[%s5 + $0xac] sm:$0xf]
    %v3686 = vld [vmem:[%s5 + $0xb0] sm:$0xf]
    %v3687 = vld [vmem:[%s5 + $0xb4] sm:$0xf]
    %v3688 = vld [vmem:[%s5 + $0xb8] sm:$0xf]
    %v3689 = vld [vmem:[%s5 + $0xbc] sm:$0xf]
    %v3690 = vld [vmem:[%s5 + $0xc0] sm:$0xf]
    %v3691 = vld [vmem:[%s5 + $0xc4] sm:$0xf]
    %v3692 = vld [vmem:[%s5 + $0xc8] sm:$0xf]
    %v3693 = vld [vmem:[%s5 + $0xcc] sm:$0xf]
    %v3694 = vld [vmem:[%s5 + $0xd0] sm:$0xf]
    %v3695 = vld [vmem:[%s5 + $0xd4] sm:$0xf]
    %v3696 = vld [vmem:[%s5 + $0xd8] sm:$0xf]
    %v3697 = vld [vmem:[%s5 + $0xdc] sm:$0xf]
    %v3698 = vld [vmem:[%s5 + $0xe0] sm:$0xf]
    %v3699 = vld [vmem:[%s5 + $0xe4] sm:$0xf]
    %v3700 = vld [vmem:[%s5 + $0xe8] sm:$0xf]
    %v3701 = vld [vmem:[%s5 + $0xec] sm:$0xf]
    %v3702 = vld [vmem:[%s5 + $0xf0] sm:$0xf]
    %v3703 = vld [vmem:[%s5 + $0xf4] sm:$0xf]
    %v3704 = vld [vmem:[%s5 + $0xf8] sm:$0xf]
    %v3705 = vld [vmem:[%s5 + $0xfc] sm:$0xf]
    %v3706 = vld [vmem:[%s6] sm:$0x1]
    %v3708 = vlaneseq
    %v3709 = vshrl.u32 %v3708, 7
    %v3710 = vsub.s32 0, %v3709
    %v3711 = vrot.slane %v3706, %v3710
    %v3777 = vunpack.c.l.b16 %v3642
    %v3778 = vunpack.c.l.b16 %v3643
    %v3779 = vunpack.c.l.b16 %v3644
    %v3780 = vunpack.c.l.b16 %v3645
    %v3781 = vunpack.c.l.b16 %v3646
    %v3782 = vunpack.c.l.b16 %v3647
    %v3783 = vunpack.c.l.b16 %v3648
    %v3784 = vunpack.c.l.b16 %v3649
    %v3785 = vunpack.c.l.b16 %v3650
    %v3786 = vunpack.c.l.b16 %v3651
    %v3787 = vunpack.c.l.b16 %v3652
    %v3788 = vunpack.c.l.b16 %v3653
    %v3789 = vunpack.c.l.b16 %v3654
    %v3790 = vunpack.c.l.b16 %v3655
    %v3791 = vunpack.c.l.b16 %v3656
    %v3792 = vunpack.c.l.b16 %v3657
    %v3793 = vunpack.c.l.b16 %v3658
    %v3794 = vunpack.c.l.b16 %v3659
    %v3795 = vunpack.c.l.b16 %v3660
    %v3796 = vunpack.c.l.b16 %v3661
    %v3797 = vunpack.c.l.b16 %v3662
    %v3798 = vunpack.c.l.b16 %v3663
    %v3799 = vunpack.c.l.b16 %v3664
    %v3800 = vunpack.c.l.b16 %v3665
    %v3801 = vunpack.c.l.b16 %v3666
    %v3802 = vunpack.c.l.b16 %v3667
    %v3803 = vunpack.c.l.b16 %v3668
    %v3804 = vunpack.c.l.b16 %v3669
    %v3805 = vunpack.c.l.b16 %v3670
    %v3806 = vunpack.c.l.b16 %v3671
    %v3807 = vunpack.c.l.b16 %v3672
    %v3808 = vunpack.c.l.b16 %v3673
    %v3809 = vunpack.c.l.b16 %v3674
    %v3810 = vunpack.c.l.b16 %v3675
    %v3811 = vunpack.c.l.b16 %v3676
    %v3812 = vunpack.c.l.b16 %v3677
    %v3813 = vunpack.c.l.b16 %v3678
    %v3814 = vunpack.c.l.b16 %v3679
    %v3815 = vunpack.c.l.b16 %v3680
    %v3816 = vunpack.c.l.b16 %v3681
    %v3817 = vunpack.c.l.b16 %v3682
    %v3818 = vunpack.c.l.b16 %v3683
    %v3819 = vunpack.c.l.b16 %v3684
    %v3820 = vunpack.c.l.b16 %v3685
    %v3821 = vunpack.c.l.b16 %v3686
    %v3822 = vunpack.c.l.b16 %v3687
    %v3823 = vunpack.c.l.b16 %v3688
    %v3824 = vunpack.c.l.b16 %v3689
    %v3825 = vunpack.c.l.b16 %v3690
    %v3826 = vunpack.c.l.b16 %v3691
    %v3827 = vunpack.c.l.b16 %v3692
    %v3828 = vunpack.c.l.b16 %v3693
    %v3829 = vunpack.c.l.b16 %v3694
    %v3830 = vunpack.c.l.b16 %v3695
    %v3831 = vunpack.c.l.b16 %v3696
    %v3832 = vunpack.c.l.b16 %v3697
    %v3833 = vunpack.c.l.b16 %v3698
    %v3834 = vunpack.c.l.b16 %v3699
    %v3835 = vunpack.c.l.b16 %v3700
    %v3836 = vunpack.c.l.b16 %v3701
    %v3837 = vunpack.c.l.b16 %v3702
    %v3838 = vunpack.c.l.b16 %v3703
    %v3839 = vunpack.c.l.b16 %v3704
    %v3840 = vunpack.c.l.b16 %v3705
    %v3841 = vpack.c.b16 %v3778, %v3777
    %v3842 = vpack.c.b16 %v3780, %v3779
    %v3843 = vpack.c.b16 %v3782, %v3781
    %v3844 = vpack.c.b16 %v3784, %v3783
    %v3845 = vpack.c.b16 %v3786, %v3785
    %v3846 = vpack.c.b16 %v3788, %v3787
    %v3847 = vpack.c.b16 %v3790, %v3789
    %v3848 = vpack.c.b16 %v3792, %v3791
    %v3849 = vpack.c.b16 %v3794, %v3793
    %v3850 = vpack.c.b16 %v3796, %v3795
    %v3851 = vpack.c.b16 %v3798, %v3797
    %v3852 = vpack.c.b16 %v3800, %v3799
    %v3853 = vpack.c.b16 %v3802, %v3801
    %v3854 = vpack.c.b16 %v3804, %v3803
    %v3855 = vpack.c.b16 %v3806, %v3805
    %v3856 = vpack.c.b16 %v3808, %v3807
    %v3857 = vpack.c.b16 %v3810, %v3809
    %v3858 = vpack.c.b16 %v3812, %v3811
    %v3859 = vpack.c.b16 %v3814, %v3813
    %v3860 = vpack.c.b16 %v3816, %v3815
    %v3861 = vpack.c.b16 %v3818, %v3817
    %v3862 = vpack.c.b16 %v3820, %v3819
    %v3863 = vpack.c.b16 %v3822, %v3821
    %v3864 = vpack.c.b16 %v3824, %v3823
    %v3865 = vpack.c.b16 %v3826, %v3825
    %v3866 = vpack.c.b16 %v3828, %v3827
    %v3867 = vpack.c.b16 %v3830, %v3829
    %v3868 = vpack.c.b16 %v3832, %v3831
    %v3869 = vpack.c.b16 %v3834, %v3833
    %v3870 = vpack.c.b16 %v3836, %v3835
    %v3871 = vpack.c.b16 %v3838, %v3837
    %v3872 = vpack.c.b16 %v3840, %v3839
    %3905 = vmatprep.subr.bf16.mxu0 0
    %3906 = vmatpush1.bf16.msra.mxu0 %v3848
    %3907 = vmatprep.subr.bf16.mxu0 0
    %3908 = vmatpush1.bf16.msra.mxu0 %v3847
    %3909 = vmatprep.subr.bf16.mxu0 0
    %3910 = vmatpush1.bf16.msra.mxu0 %v3846
    %3911 = vmatprep.subr.bf16.mxu0 0
    %3912 = vmatpush1.bf16.msra.mxu0 %v3845
    %3913 = vmatprep.subr.bf16.mxu0 0
    %3914 = vmatpush1.bf16.msra.mxu0 %v3844
    %3915 = vmatprep.subr.bf16.mxu0 0
    %3916 = vmatpush1.bf16.msra.mxu0 %v3843
    %3917 = vmatprep.subr.bf16.mxu0 0
    %3918 = vmatpush1.bf16.msra.mxu0 %v3842
    %3919 = vmatprep.subr.bf16.mxu0 0
    %3920 = vmatpush1.bf16.msra.mxu0 %v3841
    %3921 = vmatprep.subr.bf16.mxu0 0
    %3922 = vmatpush2.bf16.msra.mxu0 %v3856
    %3923 = vmatprep.subr.bf16.mxu0 0
    %3924 = vmatpush2.bf16.msra.mxu0 %v3855
    %3925 = vmatprep.subr.bf16.mxu0 0
    %3926 = vmatpush2.bf16.msra.mxu0 %v3854
    %3927 = vmatprep.subr.bf16.mxu0 0
    %3928 = vmatpush2.bf16.msra.mxu0 %v3853
    %3929 = vmatprep.subr.bf16.mxu0 0
    %3930 = vmatpush2.bf16.msra.mxu0 %v3852
    %3931 = vmatprep.subr.bf16.mxu0 0
    %3932 = vmatpush2.bf16.msra.mxu0 %v3851
    %3933 = vmatprep.subr.bf16.mxu0 0
    %3934 = vmatpush2.bf16.msra.mxu0 %v3850
    %3935 = vmatprep.subr.bf16.mxu0 0
    %3936 = vmatpush2.bf16.msra.mxu0 %v3849
    %3937 = vmatprep.mubr.bf16.mxu0 %v3627
    %3938 = vmatmul.mubr.bf16.gmra.mxu0 %v3626
    %v3939 = vpop.f32.mrf.mxu0
    %v3940 = vadd.f32 %v3711, %v3939
    %v3941 = vpop.f32.mrf.mxu0
    %v3942 = vpop.f32.mrf.mxu0
    %v3943 = vadd.f32 %v3711, %v3942
    %v3944 = vpop.f32.mrf.mxu0
    %3945 = vmatprep.mubr.bf16.mxu0 %v3631
    %3946 = vmatmul.mubr.bf16.gmra.mxu0 %v3630
    %v3947 = vpop.f32.mrf.mxu0
    %v3948 = vadd.f32 %v3711, %v3947
    %v3949 = vpop.f32.mrf.mxu0
    %v3950 = vpop.f32.mrf.mxu0
    %v3951 = vadd.f32 %v3711, %v3950
    %v3952 = vpop.f32.mrf.mxu0
    %3953 = vmatprep.mubr.bf16.mxu0 %v3635
    %3954 = vmatmul.mubr.bf16.gmra.mxu0 %v3634
    %v3955 = vpop.f32.mrf.mxu0
    %v3956 = vadd.f32 %v3711, %v3955
    %v3957 = vpop.f32.mrf.mxu0
    %v3958 = vpop.f32.mrf.mxu0
    %v3959 = vadd.f32 %v3711, %v3958
    %v3960 = vpop.f32.mrf.mxu0
    %3961 = vmatprep.mubr.bf16.mxu0 %v3639
    %3962 = vmatmul.mubr.bf16.gmra.mxu0 %v3638
    %v3963 = vpop.f32.mrf.mxu0
    %v3964 = vadd.f32 %v3711, %v3963
    %v3965 = vpop.f32.mrf.mxu0
    %v3966 = vpop.f32.mrf.mxu0
    %v3967 = vadd.f32 %v3711, %v3966
    %v3968 = vpop.f32.mrf.mxu0
    %3969 = vdwg.mxu0
    %3970 = vmatprep.subr.bf16.mxu0 0
    %3971 = vmatpush1.bf16.msra.mxu0 %v3864
    %3972 = vmatprep.subr.bf16.mxu0 0
    %3973 = vmatpush1.bf16.msra.mxu0 %v3863
    %3974 = vmatprep.subr.bf16.mxu0 0
    %3975 = vmatpush1.bf16.msra.mxu0 %v3862
    %3976 = vmatprep.subr.bf16.mxu0 0
    %3977 = vmatpush1.bf16.msra.mxu0 %v3861
    %3978 = vmatprep.subr.bf16.mxu0 0
    %3979 = vmatpush1.bf16.msra.mxu0 %v3860
    %3980 = vmatprep.subr.bf16.mxu0 0
    %3981 = vmatpush1.bf16.msra.mxu0 %v3859
    %3982 = vmatprep.subr.bf16.mxu0 0
    %3983 = vmatpush1.bf16.msra.mxu0 %v3858
    %3984 = vmatprep.subr.bf16.mxu0 0
    %3985 = vmatpush1.bf16.msra.mxu0 %v3857
    %3986 = vmatprep.subr.bf16.mxu0 0
    %3987 = vmatpush2.bf16.msra.mxu0 %v3872
    %3988 = vmatprep.subr.bf16.mxu0 0
    %3989 = vmatpush2.bf16.msra.mxu0 %v3871
    %3990 = vmatprep.subr.bf16.mxu0 0
    %3991 = vmatpush2.bf16.msra.mxu0 %v3870
    %3992 = vmatprep.subr.bf16.mxu0 0
    %3993 = vmatpush2.bf16.msra.mxu0 %v3869
    %3994 = vmatprep.subr.bf16.mxu0 0
    %3995 = vmatpush2.bf16.msra.mxu0 %v3868
    %3996 = vmatprep.subr.bf16.mxu0 0
    %3997 = vmatpush2.bf16.msra.mxu0 %v3867
    %3998 = vmatprep.subr.bf16.mxu0 0
    %3999 = vmatpush2.bf16.msra.mxu0 %v3866
    %4000 = vmatprep.subr.bf16.mxu0 0
    %4001 = vmatpush2.bf16.msra.mxu0 %v3865
    %4002 = vmatprep.mubr.bf16.mxu0 %v3629
    %4003 = vmatmul.mubr.bf16.gmra.mxu0 %v3628
    %v4004 = vpop.f32.mrf.mxu0
    %v4005 = vadd.f32 %v3940, %v4004
    %v4006 = vpop.f32.mrf.mxu0
    %v4007 = vpop.f32.mrf.mxu0
    %v4008 = vadd.f32 %v3943, %v4007
    %v4009 = vpop.f32.mrf.mxu0
    %4010 = vmatprep.mubr.bf16.mxu0 %v3633
    %4011 = vmatmul.mubr.bf16.gmra.mxu0 %v3632
    %v4012 = vpop.f32.mrf.mxu0
    %v4013 = vadd.f32 %v3948, %v4012
    %v4014 = vpop.f32.mrf.mxu0
    %v4015 = vpop.f32.mrf.mxu0
    %v4016 = vadd.f32 %v3951, %v4015
    %v4017 = vpop.f32.mrf.mxu0
    %4018 = vmatprep.mubr.bf16.mxu0 %v3637
    %4019 = vmatmul.mubr.bf16.gmra.mxu0 %v3636
    %v4020 = vpop.f32.mrf.mxu0
    %v4021 = vadd.f32 %v3956, %v4020
    %v4022 = vpop.f32.mrf.mxu0
    %v4023 = vpop.f32.mrf.mxu0
    %v4024 = vadd.f32 %v3959, %v4023
    %v4025 = vpop.f32.mrf.mxu0
    %4026 = vmatprep.mubr.bf16.mxu0 %v3641
    %4027 = vmatmul.mubr.bf16.gmra.mxu0 %v3640
    %v4028 = vpop.f32.mrf.mxu0
    %v4029 = vadd.f32 %v3964, %v4028
    %v4030 = vpop.f32.mrf.mxu0
    %v4031 = vpop.f32.mrf.mxu0
    %v4032 = vadd.f32 %v3967, %v4031
    %v4033 = vpop.f32.mrf.mxu0
    %4034 = vdwg.mxu0
    %vm4035 = vcmask 261120
    %4036 = vst.msk [vmem:[%s16] sm:$0xff] %vm4035, %v4005
    %4037 = vst.msk [vmem:[%s16 + $0x8] sm:$0xff] %vm4035, %v4008
    %4038 = vst.msk [vmem:[%s16 + $0x10] sm:$0xff] %vm4035, %v4013
    %4039 = vst.msk [vmem:[%s16 + $0x18] sm:$0xff] %vm4035, %v4016
    %4040 = vst.msk [vmem:[%s16 + $0x20] sm:$0xff] %vm4035, %v4021
    %4041 = vst.msk [vmem:[%s16 + $0x28] sm:$0xff] %vm4035, %v4024
    %4042 = vst.msk [vmem:[%s16 + $0x30] sm:$0xff] %vm4035, %v4029
    %4043 = vst.msk [vmem:[%s16 + $0x38] sm:$0xff] %vm4035, %v4032
    %v4044 = vld [vmem:[%s7] sm:$0x1]
    %v4045 = vld [vmem:[%s8] sm:$0x1]
    %v4047 = vlaneseq
    %v4048 = vshrl.u32 %v4047, 7
    %v4049 = vsub.s32 0, %v4048
    %v4050 = vrot.slane %v4045, %v4049
    %v4052 = vadd.f32 %v4005, %v4050
    %v4053 = vadd.f32 %v4008, %v4050
    %v4054 = vadd.f32 %v4013, %v4050
    %v4055 = vadd.f32 %v4016, %v4050
    %v4056 = vadd.f32 %v4021, %v4050
    %v4057 = vadd.f32 %v4024, %v4050
    %v4058 = vadd.f32 %v4029, %v4050
    %v4059 = vadd.f32 %v4032, %v4050
    %v4061 = vlaneseq
    %v4062 = vshrl.u32 %v4061, 7
    %v4063 = vsub.s32 0, %v4062
    %v4064 = vrot.slane %v4044, %v4063
    %v4066 = vmul.f32 %v4064, %v4052
    %v4067 = vmul.f32 %v4064, %v4053
    %v4068 = vmul.f32 %v4064, %v4054
    %v4069 = vmul.f32 %v4064, %v4055
    %v4070 = vmul.f32 %v4064, %v4056
    %v4071 = vmul.f32 %v4064, %v4057
    %v4072 = vmul.f32 %v4064, %v4058
    %v4073 = vmul.f32 %v4064, %v4059
    %4074 = vst.msk [vmem:[%s17] sm:$0xff] %vm4035, %v4066
    %4075 = vst.msk [vmem:[%s17 + $0x8] sm:$0xff] %vm4035, %v4067
    %4076 = vst.msk [vmem:[%s17 + $0x10] sm:$0xff] %vm4035, %v4068
    %4077 = vst.msk [vmem:[%s17 + $0x18] sm:$0xff] %vm4035, %v4069
    %4078 = vst.msk [vmem:[%s17 + $0x20] sm:$0xff] %vm4035, %v4070
    %4079 = vst.msk [vmem:[%s17 + $0x28] sm:$0xff] %vm4035, %v4071
    %4080 = vst.msk [vmem:[%s17 + $0x30] sm:$0xff] %vm4035, %v4072
    %4081 = vst.msk [vmem:[%s17 + $0x38] sm:$0xff] %vm4035, %v4073
    %v4082 = vsel %vm4035, %v4005, 0.0
    %4083 = vadd.xlane.f32.xlu0 %v4082
    %v4084 = vpop.xlane.xlu0 %4083
    %v4085 = vsel %vm4035, %v4008, 0.0
    %4086 = vadd.xlane.f32.xlu0 %v4085
    %v4087 = vpop.xlane.xlu0 %4086
    %v4088 = vsel %vm4035, %v4013, 0.0
    %4089 = vadd.xlane.f32.xlu0 %v4088
    %v4090 = vpop.xlane.xlu0 %4089
    %v4091 = vsel %vm4035, %v4016, 0.0
    %4092 = vadd.xlane.f32.xlu0 %v4091
    %v4093 = vpop.xlane.xlu0 %4092
    %v4094 = vsel %vm4035, %v4021, 0.0
    %4095 = vadd.xlane.f32.xlu0 %v4094
    %v4096 = vpop.xlane.xlu0 %4095
    %v4097 = vsel %vm4035, %v4024, 0.0
    %4098 = vadd.xlane.f32.xlu0 %v4097
    %v4099 = vpop.xlane.xlu0 %4098
    %v4100 = vsel %vm4035, %v4029, 0.0
    %4101 = vadd.xlane.f32.xlu0 %v4100
    %v4102 = vpop.xlane.xlu0 %4101
    %v4103 = vsel %vm4035, %v4032, 0.0
    %4104 = vadd.xlane.f32.xlu0 %v4103
    %v4105 = vpop.xlane.xlu0 %4104
    %v4106 = vmul.f32 %v4084, 0.03125
    %v4107 = vmul.f32 %v4087, 0.03125
    %v4108 = vmul.f32 %v4090, 0.03125
    %v4109 = vmul.f32 %v4093, 0.03125
    %v4110 = vmul.f32 %v4096, 0.03125
    %v4111 = vmul.f32 %v4099, 0.03125
    %v4112 = vmul.f32 %v4102, 0.03125
    %v4113 = vmul.f32 %v4105, 0.03125
    %v4114 = vsub.f32 %v4005, %v4106
    %v4115 = vsub.f32 %v4008, %v4107
    %v4116 = vsub.f32 %v4013, %v4108
    %v4117 = vsub.f32 %v4016, %v4109
    %v4118 = vsub.f32 %v4021, %v4110
    %v4119 = vsub.f32 %v4024, %v4111
    %v4120 = vsub.f32 %v4029, %v4112
    %v4121 = vsub.f32 %v4032, %v4113
    %v4122 = vmul.f32 %v4114, %v4114
    %v4123 = vmul.f32 %v4115, %v4115
    %v4124 = vmul.f32 %v4116, %v4116
    %v4125 = vmul.f32 %v4117, %v4117
    %v4126 = vmul.f32 %v4118, %v4118
    %v4127 = vmul.f32 %v4119, %v4119
    %v4128 = vmul.f32 %v4120, %v4120
    %v4129 = vmul.f32 %v4121, %v4121
    %v4130 = vsel %vm4035, %v4122, 0.0
    %4131 = vadd.xlane.f32.xlu0 %v4130
    %v4132 = vpop.xlane.xlu0 %4131
    %v4133 = vsel %vm4035, %v4123, 0.0
    %4134 = vadd.xlane.f32.xlu0 %v4133
    %v4135 = vpop.xlane.xlu0 %4134
    %v4136 = vsel %vm4035, %v4124, 0.0
    %4137 = vadd.xlane.f32.xlu0 %v4136
    %v4138 = vpop.xlane.xlu0 %4137
    %v4139 = vsel %vm4035, %v4125, 0.0
    %4140 = vadd.xlane.f32.xlu0 %v4139
    %v4141 = vpop.xlane.xlu0 %4140
    %v4142 = vsel %vm4035, %v4126, 0.0
    %4143 = vadd.xlane.f32.xlu0 %v4142
    %v4144 = vpop.xlane.xlu0 %4143
    %v4145 = vsel %vm4035, %v4127, 0.0
    %4146 = vadd.xlane.f32.xlu0 %v4145
    %v4147 = vpop.xlane.xlu0 %4146
    %v4148 = vsel %vm4035, %v4128, 0.0
    %4149 = vadd.xlane.f32.xlu0 %v4148
    %v4150 = vpop.xlane.xlu0 %4149
    %v4151 = vsel %vm4035, %v4129, 0.0
    %4152 = vadd.xlane.f32.xlu0 %v4151
    %v4153 = vpop.xlane.xlu0 %4152
    %v4154 = vmul.f32 %v4132, 0.032258064
    %v4155 = vmul.f32 %v4135, 0.032258064
    %v4156 = vmul.f32 %v4138, 0.032258064
    %v4157 = vmul.f32 %v4141, 0.032258064
    %v4158 = vmul.f32 %v4144, 0.032258064
    %v4159 = vmul.f32 %v4147, 0.032258064
    %v4160 = vmul.f32 %v4150, 0.032258064
    %v4161 = vmul.f32 %v4153, 0.032258064
    %v4162 = vrsqrt.pop %v4154
    %v4163 = vrsqrt.pop %v4155
    %v4164 = vrsqrt.pop %v4156
    %v4165 = vrsqrt.pop %v4157
    %v4166 = vrsqrt.pop %v4158
    %v4167 = vrsqrt.pop %v4159
    %v4168 = vrsqrt.pop %v4160
    %v4169 = vrsqrt.pop %v4161
    %v4170 = vmul.f32 %v4114, %v4162
    %v4171 = vmul.f32 %v4115, %v4163
    %v4172 = vmul.f32 %v4116, %v4164
    %v4173 = vmul.f32 %v4117, %v4165
    %v4174 = vmul.f32 %v4118, %v4166
    %v4175 = vmul.f32 %v4119, %v4167
    %v4176 = vmul.f32 %v4120, %v4168
    %v4177 = vmul.f32 %v4121, %v4169
    %4178 = vst.msk [vmem:[%s18] sm:$0xff] %vm4035, %v4170
    %4179 = vst.msk [vmem:[%s18 + $0x8] sm:$0xff] %vm4035, %v4171
    %4180 = vst.msk [vmem:[%s18 + $0x10] sm:$0xff] %vm4035, %v4172
    %4181 = vst.msk [vmem:[%s18 + $0x18] sm:$0xff] %vm4035, %v4173
    %4182 = vst.msk [vmem:[%s18 + $0x20] sm:$0xff] %vm4035, %v4174
    %4183 = vst.msk [vmem:[%s18 + $0x28] sm:$0xff] %vm4035, %v4175
    %4184 = vst.msk [vmem:[%s18 + $0x30] sm:$0xff] %vm4035, %v4176
    %4185 = vst.msk [vmem:[%s18 + $0x38] sm:$0xff] %vm4035, %v4177
    %v4186 = vld [vmem:[%s9] sm:$0xff]
    %v4187 = vld [vmem:[%s9 + $0x8] sm:$0xff]
    %v4188 = vld [vmem:[%s9 + $0x10] sm:$0xff]
    %v4189 = vld [vmem:[%s9 + $0x18] sm:$0xff]
    %v4190 = vld [vmem:[%s9 + $0x20] sm:$0xff]
    %v4191 = vld [vmem:[%s9 + $0x28] sm:$0xff]
    %v4192 = vld [vmem:[%s9 + $0x30] sm:$0xff]
    %v4193 = vld [vmem:[%s9 + $0x38] sm:$0xff]
    %v4194 = vadd.f32 %v4066, %v4186
    %v4195 = vadd.f32 %v4067, %v4187
    %v4196 = vadd.f32 %v4068, %v4188
    %v4197 = vadd.f32 %v4069, %v4189
    %v4198 = vadd.f32 %v4070, %v4190
    %v4199 = vadd.f32 %v4071, %v4191
    %v4200 = vadd.f32 %v4072, %v4192
    %v4201 = vadd.f32 %v4073, %v4193
    %v4202 = vpack.c.bf16 %v4195, %v4194
    %v4203 = vpack.c.bf16 %v4197, %v4196
    %v4204 = vpack.c.bf16 %v4199, %v4198
    %v4205 = vpack.c.bf16 %v4201, %v4200
    %v4206 = vld [vmem:[%s10] sm:$0xff]
    %v4207 = vld [vmem:[%s10 + $0x8] sm:$0xff]
    %v4208 = vld [vmem:[%s10 + $0x10] sm:$0xff]
    %v4209 = vld [vmem:[%s10 + $0x18] sm:$0xff]
    %v4210 = vld [vmem:[%s10 + $0x20] sm:$0xff]
    %v4211 = vld [vmem:[%s10 + $0x28] sm:$0xff]
    %v4212 = vld [vmem:[%s10 + $0x30] sm:$0xff]
    %v4213 = vld [vmem:[%s10 + $0x38] sm:$0xff]
    %v4214 = vld [vmem:[%s11] sm:$0xf]
    %v4216 = vlaneseq
    %v4217 = vshrl.u32 %v4216, 7
    %v4218 = vsub.s32 0, %v4217
    %v4219 = vrot.slane %v4214, %v4218
    %v4220 = vlaneseq
    %v4221 = vshrl.u32 %v4220, 7
    %v4222 = vsub.s32 1, %v4221
    %v4223 = vrot.slane %v4214, %v4222
    %v4224 = vlaneseq
    %v4225 = vshrl.u32 %v4224, 7
    %v4226 = vsub.s32 2, %v4225
    %v4227 = vrot.slane %v4214, %v4226
    %v4228 = vlaneseq
    %v4229 = vshrl.u32 %v4228, 7
    %v4230 = vsub.s32 3, %v4229
    %v4231 = vrot.slane %v4214, %v4230
    %v4244 = vunpack.c.l.b16 %v4206
    %v4245 = vunpack.c.h.b16 %v4206
    %v4246 = vunpack.c.l.b16 %v4207
    %v4247 = vunpack.c.h.b16 %v4207
    %v4248 = vunpack.c.l.b16 %v4208
    %v4249 = vunpack.c.h.b16 %v4208
    %v4250 = vunpack.c.l.b16 %v4209
    %v4251 = vunpack.c.h.b16 %v4209
    %v4252 = vunpack.c.l.b16 %v4210
    %v4253 = vunpack.c.h.b16 %v4210
    %v4254 = vunpack.c.l.b16 %v4211
    %v4255 = vunpack.c.h.b16 %v4211
    %v4256 = vunpack.c.l.b16 %v4212
    %v4257 = vunpack.c.h.b16 %v4212
    %v4258 = vunpack.c.l.b16 %v4213
    %v4259 = vunpack.c.h.b16 %v4213
    %v4260 = vpack.c.b16 %v4248, %v4244
    %v4261 = vpack.c.b16 %v4249, %v4245
    %v4262 = vpack.c.b16 %v4250, %v4246
    %v4263 = vpack.c.b16 %v4251, %v4247
    %v4264 = vpack.c.b16 %v4256, %v4252
    %v4265 = vpack.c.b16 %v4257, %v4253
    %v4266 = vpack.c.b16 %v4258, %v4254
    %v4267 = vpack.c.b16 %v4259, %v4255
    %v4277 = vsel %vm4035, %v4202, 0
    %v4280 = vsel %vm4035, %v4203, 0
    %v4283 = vsel %vm4035, %v4204, 0
    %v4286 = vsel %vm4035, %v4205, 0
    %4288 = vmatprep.subr.bf16.mxu0 0
    %4289 = vmatpush1.bf16.msra.mxu0 0
    %4290 = vmatprep.subr.bf16.mxu0 0
    %4291 = vmatpush1.bf16.msra.mxu0 0
    %4292 = vmatprep.subr.bf16.mxu0 0
    %4293 = vmatpush1.bf16.msra.mxu0 0
    %4294 = vmatprep.subr.bf16.mxu0 0
    %4295 = vmatpush1.bf16.msra.mxu0 0
    %4296 = vmatprep.subr.bf16.mxu0 0
    %4297 = vmatpush1.bf16.msra.mxu0 0
    %4298 = vmatprep.subr.bf16.mxu0 0
    %4299 = vmatpush1.bf16.msra.mxu0 0
    %4300 = vmatprep.subr.bf16.mxu0 %v4265
    %4301 = vmatpush1.bf16.msra.mxu0 %v4264
    %4302 = vmatprep.subr.bf16.mxu0 %v4261
    %4303 = vmatpush1.bf16.msra.mxu0 %v4260
    %4304 = vmatprep.subr.bf16.mxu0 0
    %4305 = vmatpush2.bf16.msra.mxu0 0
    %4306 = vmatprep.subr.bf16.mxu0 0
    %4307 = vmatpush2.bf16.msra.mxu0 0
    %4308 = vmatprep.subr.bf16.mxu0 0
    %4309 = vmatpush2.bf16.msra.mxu0 0
    %4310 = vmatprep.subr.bf16.mxu0 0
    %4311 = vmatpush2.bf16.msra.mxu0 0
    %4312 = vmatprep.subr.bf16.mxu0 0
    %4313 = vmatpush2.bf16.msra.mxu0 0
    %4314 = vmatprep.subr.bf16.mxu0 0
    %4315 = vmatpush2.bf16.msra.mxu0 0
    %4316 = vmatprep.subr.bf16.mxu0 0
    %4317 = vmatpush2.bf16.msra.mxu0 0
    %4318 = vmatprep.subr.bf16.mxu0 0
    %4319 = vmatpush2.bf16.msra.mxu0 0
    %4320 = vmatprep.mubr.bf16.mxu0 0
    %4321 = vmatmul.mubr.bf16.gmra.mxu0 %v4277
    %v4322 = vpop.f32.mrf.mxu0
    %v4323 = vadd.f32 %v4219, %v4322
    %v4324 = vpop.f32.mrf.mxu0
    %v4325 = vadd.f32 %v4223, %v4324
    %v4326 = vpop.f32.mrf.mxu0
    %v4327 = vadd.f32 %v4219, %v4326
    %v4328 = vpop.f32.mrf.mxu0
    %v4329 = vadd.f32 %v4223, %v4328
    %4330 = vmatprep.mubr.bf16.mxu0 0
    %4331 = vmatmul.mubr.bf16.gmra.mxu0 %v4280
    %v4332 = vpop.f32.mrf.mxu0
    %v4333 = vadd.f32 %v4219, %v4332
    %v4334 = vpop.f32.mrf.mxu0
    %v4335 = vadd.f32 %v4223, %v4334
    %v4336 = vpop.f32.mrf.mxu0
    %v4337 = vadd.f32 %v4219, %v4336
    %v4338 = vpop.f32.mrf.mxu0
    %v4339 = vadd.f32 %v4223, %v4338
    %4340 = vmatprep.mubr.bf16.mxu0 0
    %4341 = vmatmul.mubr.bf16.gmra.mxu0 %v4283
    %v4342 = vpop.f32.mrf.mxu0
    %v4343 = vadd.f32 %v4219, %v4342
    %v4344 = vpop.f32.mrf.mxu0
    %v4345 = vadd.f32 %v4223, %v4344
    %v4346 = vpop.f32.mrf.mxu0
    %v4347 = vadd.f32 %v4219, %v4346
    %v4348 = vpop.f32.mrf.mxu0
    %v4349 = vadd.f32 %v4223, %v4348
    %4350 = vmatprep.mubr.bf16.mxu0 0
    %4351 = vmatmul.mubr.bf16.gmra.mxu0 %v4286
    %v4352 = vpop.f32.mrf.mxu0
    %v4353 = vadd.f32 %v4219, %v4352
    %v4354 = vpop.f32.mrf.mxu0
    %v4355 = vadd.f32 %v4223, %v4354
    %v4356 = vpop.f32.mrf.mxu0
    %v4357 = vadd.f32 %v4219, %v4356
    %v4358 = vpop.f32.mrf.mxu0
    %v4359 = vadd.f32 %v4223, %v4358
    %4360 = vdwg.mxu0
    %4361 = vmatprep.subr.bf16.mxu0 0
    %4362 = vmatpush1.bf16.msra.mxu0 0
    %4363 = vmatprep.subr.bf16.mxu0 0
    %4364 = vmatpush1.bf16.msra.mxu0 0
    %4365 = vmatprep.subr.bf16.mxu0 0
    %4366 = vmatpush1.bf16.msra.mxu0 0
    %4367 = vmatprep.subr.bf16.mxu0 0
    %4368 = vmatpush1.bf16.msra.mxu0 0
    %4369 = vmatprep.subr.bf16.mxu0 0
    %4370 = vmatpush1.bf16.msra.mxu0 0
    %4371 = vmatprep.subr.bf16.mxu0 0
    %4372 = vmatpush1.bf16.msra.mxu0 0
    %4373 = vmatprep.subr.bf16.mxu0 %v4267
    %4374 = vmatpush1.bf16.msra.mxu0 %v4266
    %4375 = vmatprep.subr.bf16.mxu0 %v4263
    %4376 = vmatpush1.bf16.msra.mxu0 %v4262
    %4377 = vmatprep.subr.bf16.mxu0 0
    %4378 = vmatpush2.bf16.msra.mxu0 0
    %4379 = vmatprep.subr.bf16.mxu0 0
    %4380 = vmatpush2.bf16.msra.mxu0 0
    %4381 = vmatprep.subr.bf16.mxu0 0
    %4382 = vmatpush2.bf16.msra.mxu0 0
    %4383 = vmatprep.subr.bf16.mxu0 0
    %4384 = vmatpush2.bf16.msra.mxu0 0
    %4385 = vmatprep.subr.bf16.mxu0 0
    %4386 = vmatpush2.bf16.msra.mxu0 0
    %4387 = vmatprep.subr.bf16.mxu0 0
    %4388 = vmatpush2.bf16.msra.mxu0 0
    %4389 = vmatprep.subr.bf16.mxu0 0
    %4390 = vmatpush2.bf16.msra.mxu0 0
    %4391 = vmatprep.subr.bf16.mxu0 0
    %4392 = vmatpush2.bf16.msra.mxu0 0
    %4393 = vmatprep.mubr.bf16.mxu0 0
    %4394 = vmatmul.mubr.bf16.gmra.mxu0 %v4277
    %v4395 = vpop.f32.mrf.mxu0
    %v4396 = vadd.f32 %v4227, %v4395
    %v4397 = vpop.f32.mrf.mxu0
    %v4398 = vadd.f32 %v4231, %v4397
    %v4399 = vpop.f32.mrf.mxu0
    %v4400 = vadd.f32 %v4227, %v4399
    %v4401 = vpop.f32.mrf.mxu0
    %v4402 = vadd.f32 %v4231, %v4401
    %4403 = vmatprep.mubr.bf16.mxu0 0
    %4404 = vmatmul.mubr.bf16.gmra.mxu0 %v4280
    %v4405 = vpop.f32.mrf.mxu0
    %v4406 = vadd.f32 %v4227, %v4405
    %v4407 = vpop.f32.mrf.mxu0
    %v4408 = vadd.f32 %v4231, %v4407
    %v4409 = vpop.f32.mrf.mxu0
    %v4410 = vadd.f32 %v4227, %v4409
    %v4411 = vpop.f32.mrf.mxu0
    %v4412 = vadd.f32 %v4231, %v4411
    %4413 = vmatprep.mubr.bf16.mxu0 0
    %4414 = vmatmul.mubr.bf16.gmra.mxu0 %v4283
    %v4415 = vpop.f32.mrf.mxu0
    %v4416 = vadd.f32 %v4227, %v4415
    %v4417 = vpop.f32.mrf.mxu0
    %v4418 = vadd.f32 %v4231, %v4417
    %v4419 = vpop.f32.mrf.mxu0
    %v4420 = vadd.f32 %v4227, %v4419
    %v4421 = vpop.f32.mrf.mxu0
    %v4422 = vadd.f32 %v4231, %v4421
    %4423 = vmatprep.mubr.bf16.mxu0 0
    %4424 = vmatmul.mubr.bf16.gmra.mxu0 %v4286
    %v4425 = vpop.f32.mrf.mxu0
    %v4426 = vadd.f32 %v4227, %v4425
    %v4427 = vpop.f32.mrf.mxu0
    %v4428 = vadd.f32 %v4231, %v4427
    %v4429 = vpop.f32.mrf.mxu0
    %v4430 = vadd.f32 %v4227, %v4429
    %v4431 = vpop.f32.mrf.mxu0
    %v4432 = vadd.f32 %v4231, %v4431
    %4433 = vdwg.mxu0
    %v4434 = vmax.f32 %v4323, 0.0
    %v4435 = vmax.f32 %v4325, 0.0
    %v4436 = vmax.f32 %v4396, 0.0
    %v4437 = vmax.f32 %v4398, 0.0
    %v4438 = vmax.f32 %v4327, 0.0
    %v4439 = vmax.f32 %v4329, 0.0
    %v4440 = vmax.f32 %v4400, 0.0
    %v4441 = vmax.f32 %v4402, 0.0
    %v4442 = vmax.f32 %v4333, 0.0
    %v4443 = vmax.f32 %v4335, 0.0
    %v4444 = vmax.f32 %v4406, 0.0
    %v4445 = vmax.f32 %v4408, 0.0
    %v4446 = vmax.f32 %v4337, 0.0
    %v4447 = vmax.f32 %v4339, 0.0
    %v4448 = vmax.f32 %v4410, 0.0
    %v4449 = vmax.f32 %v4412, 0.0
    %v4450 = vmax.f32 %v4343, 0.0
    %v4451 = vmax.f32 %v4345, 0.0
    %v4452 = vmax.f32 %v4416, 0.0
    %v4453 = vmax.f32 %v4418, 0.0
    %v4454 = vmax.f32 %v4347, 0.0
    %v4455 = vmax.f32 %v4349, 0.0
    %v4456 = vmax.f32 %v4420, 0.0
    %v4457 = vmax.f32 %v4422, 0.0
    %v4458 = vmax.f32 %v4353, 0.0
    %v4459 = vmax.f32 %v4355, 0.0
    %v4460 = vmax.f32 %v4426, 0.0
    %v4461 = vmax.f32 %v4428, 0.0
    %v4462 = vmax.f32 %v4357, 0.0
    %v4463 = vmax.f32 %v4359, 0.0
    %v4464 = vmax.f32 %v4430, 0.0
    %v4465 = vmax.f32 %v4432, 0.0
    %v4466 = vand.u32 2147483647, %v4323
    %v4467 = vand.u32 2147483647, %v4325
    %v4468 = vand.u32 2147483647, %v4396
    %v4469 = vand.u32 2147483647, %v4398
    %v4470 = vand.u32 2147483647, %v4327
    %v4471 = vand.u32 2147483647, %v4329
    %v4472 = vand.u32 2147483647, %v4400
    %v4473 = vand.u32 2147483647, %v4402
    %v4474 = vand.u32 2147483647, %v4333
    %v4475 = vand.u32 2147483647, %v4335
    %v4476 = vand.u32 2147483647, %v4406
    %v4477 = vand.u32 2147483647, %v4408
    %v4478 = vand.u32 2147483647, %v4337
    %v4479 = vand.u32 2147483647, %v4339
    %v4480 = vand.u32 2147483647, %v4410
    %v4481 = vand.u32 2147483647, %v4412
    %v4482 = vand.u32 2147483647, %v4343
    %v4483 = vand.u32 2147483647, %v4345
    %v4484 = vand.u32 2147483647, %v4416
    %v4485 = vand.u32 2147483647, %v4418
    %v4486 = vand.u32 2147483647, %v4347
    %v4487 = vand.u32 2147483647, %v4349
    %v4488 = vand.u32 2147483647, %v4420
    %v4489 = vand.u32 2147483647, %v4422
    %v4490 = vand.u32 2147483647, %v4353
    %v4491 = vand.u32 2147483647, %v4355
    %v4492 = vand.u32 2147483647, %v4426
    %v4493 = vand.u32 2147483647, %v4428
    %v4494 = vand.u32 2147483647, %v4357
    %v4495 = vand.u32 2147483647, %v4359
    %v4496 = vand.u32 2147483647, %v4430
    %v4497 = vand.u32 2147483647, %v4432
    %v4498 = vsub.f32 0.0, %v4466
    %v4499 = vsub.f32 0.0, %v4467
    %v4500 = vsub.f32 0.0, %v4468
    %v4501 = vsub.f32 0.0, %v4469
    %v4502 = vsub.f32 0.0, %v4470
    %v4503 = vsub.f32 0.0, %v4471
    %v4504 = vsub.f32 0.0, %v4472
    %v4505 = vsub.f32 0.0, %v4473
    %v4506 = vsub.f32 0.0, %v4474
    %v4507 = vsub.f32 0.0, %v4475
    %v4508 = vsub.f32 0.0, %v4476
    %v4509 = vsub.f32 0.0, %v4477
    %v4510 = vsub.f32 0.0, %v4478
    %v4511 = vsub.f32 0.0, %v4479
    %v4512 = vsub.f32 0.0, %v4480
    %v4513 = vsub.f32 0.0, %v4481
    %v4514 = vsub.f32 0.0, %v4482
    %v4515 = vsub.f32 0.0, %v4483
    %v4516 = vsub.f32 0.0, %v4484
    %v4517 = vsub.f32 0.0, %v4485
    %v4518 = vsub.f32 0.0, %v4486
    %v4519 = vsub.f32 0.0, %v4487
    %v4520 = vsub.f32 0.0, %v4488
    %v4521 = vsub.f32 0.0, %v4489
    %v4522 = vsub.f32 0.0, %v4490
    %v4523 = vsub.f32 0.0, %v4491
    %v4524 = vsub.f32 0.0, %v4492
    %v4525 = vsub.f32 0.0, %v4493
    %v4526 = vsub.f32 0.0, %v4494
    %v4527 = vsub.f32 0.0, %v4495
    %v4528 = vsub.f32 0.0, %v4496
    %v4529 = vsub.f32 0.0, %v4497
    %v4530 = vmul.f32 %v4498, 1.442695
    %v4531 = vpow.pop %v4530
    %v4532 = vmul.f32 %v4499, 1.442695
    %v4533 = vpow.pop %v4532
    %v4534 = vmul.f32 %v4500, 1.442695
    %v4535 = vpow.pop %v4534
    %v4536 = vmul.f32 %v4501, 1.442695
    %v4537 = vpow.pop %v4536
    %v4538 = vmul.f32 %v4502, 1.442695
    %v4539 = vpow.pop %v4538
    %v4540 = vmul.f32 %v4503, 1.442695
    %v4541 = vpow.pop %v4540
    %v4542 = vmul.f32 %v4504, 1.442695
    %v4543 = vpow.pop %v4542
    %v4544 = vmul.f32 %v4505, 1.442695
    %v4545 = vpow.pop %v4544
    %v4546 = vmul.f32 %v4506, 1.442695
    %v4547 = vpow.pop %v4546
    %v4548 = vmul.f32 %v4507, 1.442695
    %v4549 = vpow.pop %v4548
    %v4550 = vmul.f32 %v4508, 1.442695
    %v4551 = vpow.pop %v4550
    %v4552 = vmul.f32 %v4509, 1.442695
    %v4553 = vpow.pop %v4552
    %v4554 = vmul.f32 %v4510, 1.442695
    %v4555 = vpow.pop %v4554
    %v4556 = vmul.f32 %v4511, 1.442695
    %v4557 = vpow.pop %v4556
    %v4558 = vmul.f32 %v4512, 1.442695
    %v4559 = vpow.pop %v4558
    %v4560 = vmul.f32 %v4513, 1.442695
    %v4561 = vpow.pop %v4560
    %v4562 = vmul.f32 %v4514, 1.442695
    %v4563 = vpow.pop %v4562
    %v4564 = vmul.f32 %v4515, 1.442695
    %v4565 = vpow.pop %v4564
    %v4566 = vmul.f32 %v4516, 1.442695
    %v4567 = vpow.pop %v4566
    %v4568 = vmul.f32 %v4517, 1.442695
    %v4569 = vpow.pop %v4568
    %v4570 = vmul.f32 %v4518, 1.442695
    %v4571 = vpow.pop %v4570
    %v4572 = vmul.f32 %v4519, 1.442695
    %v4573 = vpow.pop %v4572
    %v4574 = vmul.f32 %v4520, 1.442695
    %v4575 = vpow.pop %v4574
    %v4576 = vmul.f32 %v4521, 1.442695
    %v4577 = vpow.pop %v4576
    %v4578 = vmul.f32 %v4522, 1.442695
    %v4579 = vpow.pop %v4578
    %v4580 = vmul.f32 %v4523, 1.442695
    %v4581 = vpow.pop %v4580
    %v4582 = vmul.f32 %v4524, 1.442695
    %v4583 = vpow.pop %v4582
    %v4584 = vmul.f32 %v4525, 1.442695
    %v4585 = vpow.pop %v4584
    %v4586 = vmul.f32 %v4526, 1.442695
    %v4587 = vpow.pop %v4586
    %v4588 = vmul.f32 %v4527, 1.442695
    %v4589 = vpow.pop %v4588
    %v4590 = vmul.f32 %v4528, 1.442695
    %v4591 = vpow.pop %v4590
    %v4592 = vmul.f32 %v4529, 1.442695
    %v4593 = vpow.pop %v4592
    %v4594 = vadd.f32 %v4531, 1.0
    %v4595 = vadd.f32 %v4533, 1.0
    %v4596 = vadd.f32 %v4535, 1.0
    %v4597 = vadd.f32 %v4537, 1.0
    %v4598 = vadd.f32 %v4539, 1.0
    %v4599 = vadd.f32 %v4541, 1.0
    %v4600 = vadd.f32 %v4543, 1.0
    %v4601 = vadd.f32 %v4545, 1.0
    %v4602 = vadd.f32 %v4547, 1.0
    %v4603 = vadd.f32 %v4549, 1.0
    %v4604 = vadd.f32 %v4551, 1.0
    %v4605 = vadd.f32 %v4553, 1.0
    %v4606 = vadd.f32 %v4555, 1.0
    %v4607 = vadd.f32 %v4557, 1.0
    %v4608 = vadd.f32 %v4559, 1.0
    %v4609 = vadd.f32 %v4561, 1.0
    %v4610 = vadd.f32 %v4563, 1.0
    %v4611 = vadd.f32 %v4565, 1.0
    %v4612 = vadd.f32 %v4567, 1.0
    %v4613 = vadd.f32 %v4569, 1.0
    %v4614 = vadd.f32 %v4571, 1.0
    %v4615 = vadd.f32 %v4573, 1.0
    %v4616 = vadd.f32 %v4575, 1.0
    %v4617 = vadd.f32 %v4577, 1.0
    %v4618 = vadd.f32 %v4579, 1.0
    %v4619 = vadd.f32 %v4581, 1.0
    %v4620 = vadd.f32 %v4583, 1.0
    %v4621 = vadd.f32 %v4585, 1.0
    %v4622 = vadd.f32 %v4587, 1.0
    %v4623 = vadd.f32 %v4589, 1.0
    %v4624 = vadd.f32 %v4591, 1.0
    %v4625 = vadd.f32 %v4593, 1.0
    %v4626 = vlog2.pop %v4594
    %v4627 = vmul.f32 %v4626, 0.6931472
    %v4628 = vlog2.pop %v4595
    %v4629 = vmul.f32 %v4628, 0.6931472
    %v4630 = vlog2.pop %v4596
    %v4631 = vmul.f32 %v4630, 0.6931472
    %v4632 = vlog2.pop %v4597
    %v4633 = vmul.f32 %v4632, 0.6931472
    %v4634 = vlog2.pop %v4598
    %v4635 = vmul.f32 %v4634, 0.6931472
    %v4636 = vlog2.pop %v4599
    %v4637 = vmul.f32 %v4636, 0.6931472
    %v4638 = vlog2.pop %v4600
    %v4639 = vmul.f32 %v4638, 0.6931472
    %v4640 = vlog2.pop %v4601
    %v4641 = vmul.f32 %v4640, 0.6931472
    %v4642 = vlog2.pop %v4602
    %v4643 = vmul.f32 %v4642, 0.6931472
    %v4644 = vlog2.pop %v4603
    %v4645 = vmul.f32 %v4644, 0.6931472
    %v4646 = vlog2.pop %v4604
    %v4647 = vmul.f32 %v4646, 0.6931472
    %v4648 = vlog2.pop %v4605
    %v4649 = vmul.f32 %v4648, 0.6931472
    %v4650 = vlog2.pop %v4606
    %v4651 = vmul.f32 %v4650, 0.6931472
    %v4652 = vlog2.pop %v4607
    %v4653 = vmul.f32 %v4652, 0.6931472
    %v4654 = vlog2.pop %v4608
    %v4655 = vmul.f32 %v4654, 0.6931472
    %v4656 = vlog2.pop %v4609
    %v4657 = vmul.f32 %v4656, 0.6931472
    %v4658 = vlog2.pop %v4610
    %v4659 = vmul.f32 %v4658, 0.6931472
    %v4660 = vlog2.pop %v4611
    %v4661 = vmul.f32 %v4660, 0.6931472
    %v4662 = vlog2.pop %v4612
    %v4663 = vmul.f32 %v4662, 0.6931472
    %v4664 = vlog2.pop %v4613
    %v4665 = vmul.f32 %v4664, 0.6931472
    %v4666 = vlog2.pop %v4614
    %v4667 = vmul.f32 %v4666, 0.6931472
    %v4668 = vlog2.pop %v4615
    %v4669 = vmul.f32 %v4668, 0.6931472
    %v4670 = vlog2.pop %v4616
    %v4671 = vmul.f32 %v4670, 0.6931472
    %v4672 = vlog2.pop %v4617
    %v4673 = vmul.f32 %v4672, 0.6931472
    %v4674 = vlog2.pop %v4618
    %v4675 = vmul.f32 %v4674, 0.6931472
    %v4676 = vlog2.pop %v4619
    %v4677 = vmul.f32 %v4676, 0.6931472
    %v4678 = vlog2.pop %v4620
    %v4679 = vmul.f32 %v4678, 0.6931472
    %v4680 = vlog2.pop %v4621
    %v4681 = vmul.f32 %v4680, 0.6931472
    %v4682 = vlog2.pop %v4622
    %v4683 = vmul.f32 %v4682, 0.6931472
    %v4684 = vlog2.pop %v4623
    %v4685 = vmul.f32 %v4684, 0.6931472
    %v4686 = vlog2.pop %v4624
    %v4687 = vmul.f32 %v4686, 0.6931472
    %v4688 = vlog2.pop %v4625
    %v4689 = vmul.f32 %v4688, 0.6931472
    %v4690 = vadd.f32 %v4434, %v4627
    %v4691 = vadd.f32 %v4435, %v4629
    %v4692 = vadd.f32 %v4436, %v4631
    %v4693 = vadd.f32 %v4437, %v4633
    %v4694 = vadd.f32 %v4438, %v4635
    %v4695 = vadd.f32 %v4439, %v4637
    %v4696 = vadd.f32 %v4440, %v4639
    %v4697 = vadd.f32 %v4441, %v4641
    %v4698 = vadd.f32 %v4442, %v4643
    %v4699 = vadd.f32 %v4443, %v4645
    %v4700 = vadd.f32 %v4444, %v4647
    %v4701 = vadd.f32 %v4445, %v4649
    %v4702 = vadd.f32 %v4446, %v4651
    %v4703 = vadd.f32 %v4447, %v4653
    %v4704 = vadd.f32 %v4448, %v4655
    %v4705 = vadd.f32 %v4449, %v4657
    %v4706 = vadd.f32 %v4450, %v4659
    %v4707 = vadd.f32 %v4451, %v4661
    %v4708 = vadd.f32 %v4452, %v4663
    %v4709 = vadd.f32 %v4453, %v4665
    %v4710 = vadd.f32 %v4454, %v4667
    %v4711 = vadd.f32 %v4455, %v4669
    %v4712 = vadd.f32 %v4456, %v4671
    %v4713 = vadd.f32 %v4457, %v4673
    %v4714 = vadd.f32 %v4458, %v4675
    %v4715 = vadd.f32 %v4459, %v4677
    %v4716 = vadd.f32 %v4460, %v4679
    %v4717 = vadd.f32 %v4461, %v4681
    %v4718 = vadd.f32 %v4462, %v4683
    %v4719 = vadd.f32 %v4463, %v4685
    %v4720 = vadd.f32 %v4464, %v4687
    %v4721 = vadd.f32 %v4465, %v4689
    %v4722 = vpack.c.bf16 %v4694, %v4690
    %v4723 = vpack.c.bf16 %v4695, %v4691
    %v4724 = vpack.c.bf16 %v4696, %v4692
    %v4725 = vpack.c.bf16 %v4697, %v4693
    %v4726 = vpack.c.bf16 %v4702, %v4698
    %v4727 = vpack.c.bf16 %v4703, %v4699
    %v4728 = vpack.c.bf16 %v4704, %v4700
    %v4729 = vpack.c.bf16 %v4705, %v4701
    %v4730 = vpack.c.bf16 %v4710, %v4706
    %v4731 = vpack.c.bf16 %v4711, %v4707
    %v4732 = vpack.c.bf16 %v4712, %v4708
    %v4733 = vpack.c.bf16 %v4713, %v4709
    %v4734 = vpack.c.bf16 %v4718, %v4714
    %v4735 = vpack.c.bf16 %v4719, %v4715
    %v4736 = vpack.c.bf16 %v4720, %v4716
    %v4737 = vpack.c.bf16 %v4721, %v4717
    %v4738 = vld [vmem:[%s12] sm:$0xff]
    %v4739 = vld [vmem:[%s12 + $0x8] sm:$0xff]
    %v4740 = vld [vmem:[%s12 + $0x10] sm:$0xff]
    %v4741 = vld [vmem:[%s12 + $0x18] sm:$0xff]
    %v4742 = vld [vmem:[%s12 + $0x20] sm:$0xff]
    %v4743 = vld [vmem:[%s12 + $0x28] sm:$0xff]
    %v4744 = vld [vmem:[%s12 + $0x30] sm:$0xff]
    %v4745 = vld [vmem:[%s12 + $0x38] sm:$0xff]
    %v4746 = vld [vmem:[%s12 + $0x40] sm:$0xff]
    %v4747 = vld [vmem:[%s12 + $0x48] sm:$0xff]
    %v4748 = vld [vmem:[%s12 + $0x50] sm:$0xff]
    %v4749 = vld [vmem:[%s12 + $0x58] sm:$0xff]
    %v4750 = vld [vmem:[%s12 + $0x60] sm:$0xff]
    %v4751 = vld [vmem:[%s12 + $0x68] sm:$0xff]
    %v4752 = vld [vmem:[%s12 + $0x70] sm:$0xff]
    %v4753 = vld [vmem:[%s12 + $0x78] sm:$0xff]
    %v4754 = vld [vmem:[%s12 + $0x80] sm:$0xff]
    %v4755 = vld [vmem:[%s12 + $0x88] sm:$0xff]
    %v4756 = vld [vmem:[%s12 + $0x90] sm:$0xff]
    %v4757 = vld [vmem:[%s12 + $0x98] sm:$0xff]
    %v4758 = vld [vmem:[%s12 + $0xa0] sm:$0xff]
    %v4759 = vld [vmem:[%s12 + $0xa8] sm:$0xff]
    %v4760 = vld [vmem:[%s12 + $0xb0] sm:$0xff]
    %v4761 = vld [vmem:[%s12 + $0xb8] sm:$0xff]
    %v4762 = vld [vmem:[%s12 + $0xc0] sm:$0xff]
    %v4763 = vld [vmem:[%s12 + $0xc8] sm:$0xff]
    %v4764 = vld [vmem:[%s12 + $0xd0] sm:$0xff]
    %v4765 = vld [vmem:[%s12 + $0xd8] sm:$0xff]
    %v4766 = vld [vmem:[%s12 + $0xe0] sm:$0xff]
    %v4767 = vld [vmem:[%s12 + $0xe8] sm:$0xff]
    %v4768 = vld [vmem:[%s12 + $0xf0] sm:$0xff]
    %v4769 = vld [vmem:[%s12 + $0xf8] sm:$0xff]
    %v4770 = vld [vmem:[%s12 + $0x100] sm:$0xff]
    %v4771 = vld [vmem:[%s12 + $0x108] sm:$0xff]
    %v4772 = vld [vmem:[%s12 + $0x110] sm:$0xff]
    %v4773 = vld [vmem:[%s12 + $0x118] sm:$0xff]
    %v4774 = vld [vmem:[%s12 + $0x120] sm:$0xff]
    %v4775 = vld [vmem:[%s12 + $0x128] sm:$0xff]
    %v4776 = vld [vmem:[%s12 + $0x130] sm:$0xff]
    %v4777 = vld [vmem:[%s12 + $0x138] sm:$0xff]
    %v4778 = vld [vmem:[%s12 + $0x140] sm:$0xff]
    %v4779 = vld [vmem:[%s12 + $0x148] sm:$0xff]
    %v4780 = vld [vmem:[%s12 + $0x150] sm:$0xff]
    %v4781 = vld [vmem:[%s12 + $0x158] sm:$0xff]
    %v4782 = vld [vmem:[%s12 + $0x160] sm:$0xff]
    %v4783 = vld [vmem:[%s12 + $0x168] sm:$0xff]
    %v4784 = vld [vmem:[%s12 + $0x170] sm:$0xff]
    %v4785 = vld [vmem:[%s12 + $0x178] sm:$0xff]
    %v4786 = vld [vmem:[%s12 + $0x180] sm:$0xff]
    %v4787 = vld [vmem:[%s12 + $0x188] sm:$0xff]
    %v4788 = vld [vmem:[%s12 + $0x190] sm:$0xff]
    %v4789 = vld [vmem:[%s12 + $0x198] sm:$0xff]
    %v4790 = vld [vmem:[%s12 + $0x1a0] sm:$0xff]
    %v4791 = vld [vmem:[%s12 + $0x1a8] sm:$0xff]
    %v4792 = vld [vmem:[%s12 + $0x1b0] sm:$0xff]
    %v4793 = vld [vmem:[%s12 + $0x1b8] sm:$0xff]
    %v4794 = vld [vmem:[%s12 + $0x1c0] sm:$0xff]
    %v4795 = vld [vmem:[%s12 + $0x1c8] sm:$0xff]
    %v4796 = vld [vmem:[%s12 + $0x1d0] sm:$0xff]
    %v4797 = vld [vmem:[%s12 + $0x1d8] sm:$0xff]
    %v4798 = vld [vmem:[%s12 + $0x1e0] sm:$0xff]
    %v4799 = vld [vmem:[%s12 + $0x1e8] sm:$0xff]
    %v4800 = vld [vmem:[%s12 + $0x1f0] sm:$0xff]
    %v4801 = vld [vmem:[%s12 + $0x1f8] sm:$0xff]
    %v4802 = vld [vmem:[%s12 + $0x200] sm:$0xff]
    %v4803 = vld [vmem:[%s12 + $0x208] sm:$0xff]
    %v4804 = vld [vmem:[%s12 + $0x210] sm:$0xff]
    %v4805 = vld [vmem:[%s12 + $0x218] sm:$0xff]
    %v4806 = vld [vmem:[%s12 + $0x220] sm:$0xff]
    %v4807 = vld [vmem:[%s12 + $0x228] sm:$0xff]
    %v4808 = vld [vmem:[%s12 + $0x230] sm:$0xff]
    %v4809 = vld [vmem:[%s12 + $0x238] sm:$0xff]
    %v4810 = vld [vmem:[%s12 + $0x240] sm:$0xff]
    %v4811 = vld [vmem:[%s12 + $0x248] sm:$0xff]
    %v4812 = vld [vmem:[%s12 + $0x250] sm:$0xff]
    %v4813 = vld [vmem:[%s12 + $0x258] sm:$0xff]
    %v4814 = vld [vmem:[%s12 + $0x260] sm:$0xff]
    %v4815 = vld [vmem:[%s12 + $0x268] sm:$0xff]
    %v4816 = vld [vmem:[%s12 + $0x270] sm:$0xff]
    %v4817 = vld [vmem:[%s12 + $0x278] sm:$0xff]
    %v4818 = vld [vmem:[%s12 + $0x280] sm:$0xff]
    %v4819 = vld [vmem:[%s12 + $0x288] sm:$0xff]
    %v4820 = vld [vmem:[%s12 + $0x290] sm:$0xff]
    %v4821 = vld [vmem:[%s12 + $0x298] sm:$0xff]
    %v4822 = vld [vmem:[%s12 + $0x2a0] sm:$0xff]
    %v4823 = vld [vmem:[%s12 + $0x2a8] sm:$0xff]
    %v4824 = vld [vmem:[%s12 + $0x2b0] sm:$0xff]
    %v4825 = vld [vmem:[%s12 + $0x2b8] sm:$0xff]
    %v4826 = vld [vmem:[%s12 + $0x2c0] sm:$0xff]
    %v4827 = vld [vmem:[%s12 + $0x2c8] sm:$0xff]
    %v4828 = vld [vmem:[%s12 + $0x2d0] sm:$0xff]
    %v4829 = vld [vmem:[%s12 + $0x2d8] sm:$0xff]
    %v4830 = vld [vmem:[%s12 + $0x2e0] sm:$0xff]
    %v4831 = vld [vmem:[%s12 + $0x2e8] sm:$0xff]
    %v4832 = vld [vmem:[%s12 + $0x2f0] sm:$0xff]
    %v4833 = vld [vmem:[%s12 + $0x2f8] sm:$0xff]
    %v4834 = vld [vmem:[%s12 + $0x300] sm:$0xff]
    %v4835 = vld [vmem:[%s12 + $0x308] sm:$0xff]
    %v4836 = vld [vmem:[%s12 + $0x310] sm:$0xff]
    %v4837 = vld [vmem:[%s12 + $0x318] sm:$0xff]
    %v4838 = vld [vmem:[%s12 + $0x320] sm:$0xff]
    %v4839 = vld [vmem:[%s12 + $0x328] sm:$0xff]
    %v4840 = vld [vmem:[%s12 + $0x330] sm:$0xff]
    %v4841 = vld [vmem:[%s12 + $0x338] sm:$0xff]
    %v4842 = vld [vmem:[%s12 + $0x340] sm:$0xff]
    %v4843 = vld [vmem:[%s12 + $0x348] sm:$0xff]
    %v4844 = vld [vmem:[%s12 + $0x350] sm:$0xff]
    %v4845 = vld [vmem:[%s12 + $0x358] sm:$0xff]
    %v4846 = vld [vmem:[%s12 + $0x360] sm:$0xff]
    %v4847 = vld [vmem:[%s12 + $0x368] sm:$0xff]
    %v4848 = vld [vmem:[%s12 + $0x370] sm:$0xff]
    %v4849 = vld [vmem:[%s12 + $0x378] sm:$0xff]
    %v4850 = vld [vmem:[%s12 + $0x380] sm:$0xff]
    %v4851 = vld [vmem:[%s12 + $0x388] sm:$0xff]
    %v4852 = vld [vmem:[%s12 + $0x390] sm:$0xff]
    %v4853 = vld [vmem:[%s12 + $0x398] sm:$0xff]
    %v4854 = vld [vmem:[%s12 + $0x3a0] sm:$0xff]
    %v4855 = vld [vmem:[%s12 + $0x3a8] sm:$0xff]
    %v4856 = vld [vmem:[%s12 + $0x3b0] sm:$0xff]
    %v4857 = vld [vmem:[%s12 + $0x3b8] sm:$0xff]
    %v4858 = vld [vmem:[%s12 + $0x3c0] sm:$0xff]
    %v4859 = vld [vmem:[%s12 + $0x3c8] sm:$0xff]
    %v4860 = vld [vmem:[%s12 + $0x3d0] sm:$0xff]
    %v4861 = vld [vmem:[%s12 + $0x3d8] sm:$0xff]
    %v4862 = vld [vmem:[%s12 + $0x3e0] sm:$0xff]
    %v4863 = vld [vmem:[%s12 + $0x3e8] sm:$0xff]
    %v4864 = vld [vmem:[%s12 + $0x3f0] sm:$0xff]
    %v4865 = vld [vmem:[%s12 + $0x3f8] sm:$0xff]
    %v4866 = vld [vmem:[%s13] sm:$0xf]
    %v4868 = vlaneseq
    %v4869 = vshrl.u32 %v4868, 7
    %v4870 = vsub.s32 0, %v4869
    %v4871 = vrot.slane %v4866, %v4870
    %v4872 = vlaneseq
    %v4873 = vshrl.u32 %v4872, 7
    %v4874 = vsub.s32 1, %v4873
    %v4875 = vrot.slane %v4866, %v4874
    %v4876 = vlaneseq
    %v4877 = vshrl.u32 %v4876, 7
    %v4878 = vsub.s32 2, %v4877
    %v4879 = vrot.slane %v4866, %v4878
    %v4880 = vlaneseq
    %v4881 = vshrl.u32 %v4880, 7
    %v4882 = vsub.s32 3, %v4881
    %v4883 = vrot.slane %v4866, %v4882
    %v5016 = vunpack.c.l.b16 %v4738
    %v5017 = vunpack.c.h.b16 %v4738
    %v5018 = vunpack.c.l.b16 %v4739
    %v5019 = vunpack.c.h.b16 %v4739
    %v5020 = vunpack.c.l.b16 %v4740
    %v5021 = vunpack.c.h.b16 %v4740
    %v5022 = vunpack.c.l.b16 %v4741
    %v5023 = vunpack.c.h.b16 %v4741
    %v5024 = vunpack.c.l.b16 %v4742
    %v5025 = vunpack.c.h.b16 %v4742
    %v5026 = vunpack.c.l.b16 %v4743
    %v5027 = vunpack.c.h.b16 %v4743
    %v5028 = vunpack.c.l.b16 %v4744
    %v5029 = vunpack.c.h.b16 %v4744
    %v5030 = vunpack.c.l.b16 %v4745
    %v5031 = vunpack.c.h.b16 %v4745
    %v5032 = vunpack.c.l.b16 %v4746
    %v5033 = vunpack.c.h.b16 %v4746
    %v5034 = vunpack.c.l.b16 %v4747
    %v5035 = vunpack.c.h.b16 %v4747
    %v5036 = vunpack.c.l.b16 %v4748
    %v5037 = vunpack.c.h.b16 %v4748
    %v5038 = vunpack.c.l.b16 %v4749
    %v5039 = vunpack.c.h.b16 %v4749
    %v5040 = vunpack.c.l.b16 %v4750
    %v5041 = vunpack.c.h.b16 %v4750
    %v5042 = vunpack.c.l.b16 %v4751
    %v5043 = vunpack.c.h.b16 %v4751
    %v5044 = vunpack.c.l.b16 %v4752
    %v5045 = vunpack.c.h.b16 %v4752
    %v5046 = vunpack.c.l.b16 %v4753
    %v5047 = vunpack.c.h.b16 %v4753
    %v5048 = vunpack.c.l.b16 %v4754
    %v5049 = vunpack.c.h.b16 %v4754
    %v5050 = vunpack.c.l.b16 %v4755
    %v5051 = vunpack.c.h.b16 %v4755
    %v5052 = vunpack.c.l.b16 %v4756
    %v5053 = vunpack.c.h.b16 %v4756
    %v5054 = vunpack.c.l.b16 %v4757
    %v5055 = vunpack.c.h.b16 %v4757
    %v5056 = vunpack.c.l.b16 %v4758
    %v5057 = vunpack.c.h.b16 %v4758
    %v5058 = vunpack.c.l.b16 %v4759
    %v5059 = vunpack.c.h.b16 %v4759
    %v5060 = vunpack.c.l.b16 %v4760
    %v5061 = vunpack.c.h.b16 %v4760
    %v5062 = vunpack.c.l.b16 %v4761
    %v5063 = vunpack.c.h.b16 %v4761
    %v5064 = vunpack.c.l.b16 %v4762
    %v5065 = vunpack.c.h.b16 %v4762
    %v5066 = vunpack.c.l.b16 %v4763
    %v5067 = vunpack.c.h.b16 %v4763
    %v5068 = vunpack.c.l.b16 %v4764
    %v5069 = vunpack.c.h.b16 %v4764
    %v5070 = vunpack.c.l.b16 %v4765
    %v5071 = vunpack.c.h.b16 %v4765
    %v5072 = vunpack.c.l.b16 %v4766
    %v5073 = vunpack.c.h.b16 %v4766
    %v5074 = vunpack.c.l.b16 %v4767
    %v5075 = vunpack.c.h.b16 %v4767
    %v5076 = vunpack.c.l.b16 %v4768
    %v5077 = vunpack.c.h.b16 %v4768
    %v5078 = vunpack.c.l.b16 %v4769
    %v5079 = vunpack.c.h.b16 %v4769
    %v5080 = vunpack.c.l.b16 %v4770
    %v5081 = vunpack.c.h.b16 %v4770
    %v5082 = vunpack.c.l.b16 %v4771
    %v5083 = vunpack.c.h.b16 %v4771
    %v5084 = vunpack.c.l.b16 %v4772
    %v5085 = vunpack.c.h.b16 %v4772
    %v5086 = vunpack.c.l.b16 %v4773
    %v5087 = vunpack.c.h.b16 %v4773
    %v5088 = vunpack.c.l.b16 %v4774
    %v5089 = vunpack.c.h.b16 %v4774
    %v5090 = vunpack.c.l.b16 %v4775
    %v5091 = vunpack.c.h.b16 %v4775
    %v5092 = vunpack.c.l.b16 %v4776
    %v5093 = vunpack.c.h.b16 %v4776
    %v5094 = vunpack.c.l.b16 %v4777
    %v5095 = vunpack.c.h.b16 %v4777
    %v5096 = vunpack.c.l.b16 %v4778
    %v5097 = vunpack.c.h.b16 %v4778
    %v5098 = vunpack.c.l.b16 %v4779
    %v5099 = vunpack.c.h.b16 %v4779
    %v5100 = vunpack.c.l.b16 %v4780
    %v5101 = vunpack.c.h.b16 %v4780
    %v5102 = vunpack.c.l.b16 %v4781
    %v5103 = vunpack.c.h.b16 %v4781
    %v5104 = vunpack.c.l.b16 %v4782
    %v5105 = vunpack.c.h.b16 %v4782
    %v5106 = vunpack.c.l.b16 %v4783
    %v5107 = vunpack.c.h.b16 %v4783
    %v5108 = vunpack.c.l.b16 %v4784
    %v5109 = vunpack.c.h.b16 %v4784
    %v5110 = vunpack.c.l.b16 %v4785
    %v5111 = vunpack.c.h.b16 %v4785
    %v5112 = vunpack.c.l.b16 %v4786
    %v5113 = vunpack.c.h.b16 %v4786
    %v5114 = vunpack.c.l.b16 %v4787
    %v5115 = vunpack.c.h.b16 %v4787
    %v5116 = vunpack.c.l.b16 %v4788
    %v5117 = vunpack.c.h.b16 %v4788
    %v5118 = vunpack.c.l.b16 %v4789
    %v5119 = vunpack.c.h.b16 %v4789
    %v5120 = vunpack.c.l.b16 %v4790
    %v5121 = vunpack.c.h.b16 %v4790
    %v5122 = vunpack.c.l.b16 %v4791
    %v5123 = vunpack.c.h.b16 %v4791
    %v5124 = vunpack.c.l.b16 %v4792
    %v5125 = vunpack.c.h.b16 %v4792
    %v5126 = vunpack.c.l.b16 %v4793
    %v5127 = vunpack.c.h.b16 %v4793
    %v5128 = vunpack.c.l.b16 %v4794
    %v5129 = vunpack.c.h.b16 %v4794
    %v5130 = vunpack.c.l.b16 %v4795
    %v5131 = vunpack.c.h.b16 %v4795
    %v5132 = vunpack.c.l.b16 %v4796
    %v5133 = vunpack.c.h.b16 %v4796
    %v5134 = vunpack.c.l.b16 %v4797
    %v5135 = vunpack.c.h.b16 %v4797
    %v5136 = vunpack.c.l.b16 %v4798
    %v5137 = vunpack.c.h.b16 %v4798
    %v5138 = vunpack.c.l.b16 %v4799
    %v5139 = vunpack.c.h.b16 %v4799
    %v5140 = vunpack.c.l.b16 %v4800
    %v5141 = vunpack.c.h.b16 %v4800
    %v5142 = vunpack.c.l.b16 %v4801
    %v5143 = vunpack.c.h.b16 %v4801
    %v5144 = vunpack.c.l.b16 %v4802
    %v5145 = vunpack.c.h.b16 %v4802
    %v5146 = vunpack.c.l.b16 %v4803
    %v5147 = vunpack.c.h.b16 %v4803
    %v5148 = vunpack.c.l.b16 %v4804
    %v5149 = vunpack.c.h.b16 %v4804
    %v5150 = vunpack.c.l.b16 %v4805
    %v5151 = vunpack.c.h.b16 %v4805
    %v5152 = vunpack.c.l.b16 %v4806
    %v5153 = vunpack.c.h.b16 %v4806
    %v5154 = vunpack.c.l.b16 %v4807
    %v5155 = vunpack.c.h.b16 %v4807
    %v5156 = vunpack.c.l.b16 %v4808
    %v5157 = vunpack.c.h.b16 %v4808
    %v5158 = vunpack.c.l.b16 %v4809
    %v5159 = vunpack.c.h.b16 %v4809
    %v5160 = vunpack.c.l.b16 %v4810
    %v5161 = vunpack.c.h.b16 %v4810
    %v5162 = vunpack.c.l.b16 %v4811
    %v5163 = vunpack.c.h.b16 %v4811
    %v5164 = vunpack.c.l.b16 %v4812
    %v5165 = vunpack.c.h.b16 %v4812
    %v5166 = vunpack.c.l.b16 %v4813
    %v5167 = vunpack.c.h.b16 %v4813
    %v5168 = vunpack.c.l.b16 %v4814
    %v5169 = vunpack.c.h.b16 %v4814
    %v5170 = vunpack.c.l.b16 %v4815
    %v5171 = vunpack.c.h.b16 %v4815
    %v5172 = vunpack.c.l.b16 %v4816
    %v5173 = vunpack.c.h.b16 %v4816
    %v5174 = vunpack.c.l.b16 %v4817
    %v5175 = vunpack.c.h.b16 %v4817
    %v5176 = vunpack.c.l.b16 %v4818
    %v5177 = vunpack.c.h.b16 %v4818
    %v5178 = vunpack.c.l.b16 %v4819
    %v5179 = vunpack.c.h.b16 %v4819
    %v5180 = vunpack.c.l.b16 %v4820
    %v5181 = vunpack.c.h.b16 %v4820
    %v5182 = vunpack.c.l.b16 %v4821
    %v5183 = vunpack.c.h.b16 %v4821
    %v5184 = vunpack.c.l.b16 %v4822
    %v5185 = vunpack.c.h.b16 %v4822
    %v5186 = vunpack.c.l.b16 %v4823
    %v5187 = vunpack.c.h.b16 %v4823
    %v5188 = vunpack.c.l.b16 %v4824
    %v5189 = vunpack.c.h.b16 %v4824
    %v5190 = vunpack.c.l.b16 %v4825
    %v5191 = vunpack.c.h.b16 %v4825
    %v5192 = vunpack.c.l.b16 %v4826
    %v5193 = vunpack.c.h.b16 %v4826
    %v5194 = vunpack.c.l.b16 %v4827
    %v5195 = vunpack.c.h.b16 %v4827
    %v5196 = vunpack.c.l.b16 %v4828
    %v5197 = vunpack.c.h.b16 %v4828
    %v5198 = vunpack.c.l.b16 %v4829
    %v5199 = vunpack.c.h.b16 %v4829
    %v5200 = vunpack.c.l.b16 %v4830
    %v5201 = vunpack.c.h.b16 %v4830
    %v5202 = vunpack.c.l.b16 %v4831
    %v5203 = vunpack.c.h.b16 %v4831
    %v5204 = vunpack.c.l.b16 %v4832
    %v5205 = vunpack.c.h.b16 %v4832
    %v5206 = vunpack.c.l.b16 %v4833
    %v5207 = vunpack.c.h.b16 %v4833
    %v5208 = vunpack.c.l.b16 %v4834
    %v5209 = vunpack.c.h.b16 %v4834
    %v5210 = vunpack.c.l.b16 %v4835
    %v5211 = vunpack.c.h.b16 %v4835
    %v5212 = vunpack.c.l.b16 %v4836
    %v5213 = vunpack.c.h.b16 %v4836
    %v5214 = vunpack.c.l.b16 %v4837
    %v5215 = vunpack.c.h.b16 %v4837
    %v5216 = vunpack.c.l.b16 %v4838
    %v5217 = vunpack.c.h.b16 %v4838
    %v5218 = vunpack.c.l.b16 %v4839
    %v5219 = vunpack.c.h.b16 %v4839
    %v5220 = vunpack.c.l.b16 %v4840
    %v5221 = vunpack.c.h.b16 %v4840
    %v5222 = vunpack.c.l.b16 %v4841
    %v5223 = vunpack.c.h.b16 %v4841
    %v5224 = vunpack.c.l.b16 %v4842
    %v5225 = vunpack.c.h.b16 %v4842
    %v5226 = vunpack.c.l.b16 %v4843
    %v5227 = vunpack.c.h.b16 %v4843
    %v5228 = vunpack.c.l.b16 %v4844
    %v5229 = vunpack.c.h.b16 %v4844
    %v5230 = vunpack.c.l.b16 %v4845
    %v5231 = vunpack.c.h.b16 %v4845
    %v5232 = vunpack.c.l.b16 %v4846
    %v5233 = vunpack.c.h.b16 %v4846
    %v5234 = vunpack.c.l.b16 %v4847
    %v5235 = vunpack.c.h.b16 %v4847
    %v5236 = vunpack.c.l.b16 %v4848
    %v5237 = vunpack.c.h.b16 %v4848
    %v5238 = vunpack.c.l.b16 %v4849
    %v5239 = vunpack.c.h.b16 %v4849
    %v5240 = vunpack.c.l.b16 %v4850
    %v5241 = vunpack.c.h.b16 %v4850
    %v5242 = vunpack.c.l.b16 %v4851
    %v5243 = vunpack.c.h.b16 %v4851
    %v5244 = vunpack.c.l.b16 %v4852
    %v5245 = vunpack.c.h.b16 %v4852
    %v5246 = vunpack.c.l.b16 %v4853
    %v5247 = vunpack.c.h.b16 %v4853
    %v5248 = vunpack.c.l.b16 %v4854
    %v5249 = vunpack.c.h.b16 %v4854
    %v5250 = vunpack.c.l.b16 %v4855
    %v5251 = vunpack.c.h.b16 %v4855
    %v5252 = vunpack.c.l.b16 %v4856
    %v5253 = vunpack.c.h.b16 %v4856
    %v5254 = vunpack.c.l.b16 %v4857
    %v5255 = vunpack.c.h.b16 %v4857
    %v5256 = vunpack.c.l.b16 %v4858
    %v5257 = vunpack.c.h.b16 %v4858
    %v5258 = vunpack.c.l.b16 %v4859
    %v5259 = vunpack.c.h.b16 %v4859
    %v5260 = vunpack.c.l.b16 %v4860
    %v5261 = vunpack.c.h.b16 %v4860
    %v5262 = vunpack.c.l.b16 %v4861
    %v5263 = vunpack.c.h.b16 %v4861
    %v5264 = vunpack.c.l.b16 %v4862
    %v5265 = vunpack.c.h.b16 %v4862
    %v5266 = vunpack.c.l.b16 %v4863
    %v5267 = vunpack.c.h.b16 %v4863
    %v5268 = vunpack.c.l.b16 %v4864
    %v5269 = vunpack.c.h.b16 %v4864
    %v5270 = vunpack.c.l.b16 %v4865
    %v5271 = vunpack.c.h.b16 %v4865
    %v5272 = vpack.c.b16 %v5020, %v5016
    %v5273 = vpack.c.b16 %v5021, %v5017
    %v5274 = vpack.c.b16 %v5022, %v5018
    %v5275 = vpack.c.b16 %v5023, %v5019
    %v5276 = vpack.c.b16 %v5028, %v5024
    %v5277 = vpack.c.b16 %v5029, %v5025
    %v5278 = vpack.c.b16 %v5030, %v5026
    %v5279 = vpack.c.b16 %v5031, %v5027
    %v5280 = vpack.c.b16 %v5036, %v5032
    %v5281 = vpack.c.b16 %v5037, %v5033
    %v5282 = vpack.c.b16 %v5038, %v5034
    %v5283 = vpack.c.b16 %v5039, %v5035
    %v5284 = vpack.c.b16 %v5044, %v5040
    %v5285 = vpack.c.b16 %v5045, %v5041
    %v5286 = vpack.c.b16 %v5046, %v5042
    %v5287 = vpack.c.b16 %v5047, %v5043
    %v5288 = vpack.c.b16 %v5052, %v5048
    %v5289 = vpack.c.b16 %v5053, %v5049
    %v5290 = vpack.c.b16 %v5054, %v5050
    %v5291 = vpack.c.b16 %v5055, %v5051
    %v5292 = vpack.c.b16 %v5060, %v5056
    %v5293 = vpack.c.b16 %v5061, %v5057
    %v5294 = vpack.c.b16 %v5062, %v5058
    %v5295 = vpack.c.b16 %v5063, %v5059
    %v5296 = vpack.c.b16 %v5068, %v5064
    %v5297 = vpack.c.b16 %v5069, %v5065
    %v5298 = vpack.c.b16 %v5070, %v5066
    %v5299 = vpack.c.b16 %v5071, %v5067
    %v5300 = vpack.c.b16 %v5076, %v5072
    %v5301 = vpack.c.b16 %v5077, %v5073
    %v5302 = vpack.c.b16 %v5078, %v5074
    %v5303 = vpack.c.b16 %v5079, %v5075
    %v5304 = vpack.c.b16 %v5084, %v5080
    %v5305 = vpack.c.b16 %v5085, %v5081
    %v5306 = vpack.c.b16 %v5086, %v5082
    %v5307 = vpack.c.b16 %v5087, %v5083
    %v5308 = vpack.c.b16 %v5092, %v5088
    %v5309 = vpack.c.b16 %v5093, %v5089
    %v5310 = vpack.c.b16 %v5094, %v5090
    %v5311 = vpack.c.b16 %v5095, %v5091
    %v5312 = vpack.c.b16 %v5100, %v5096
    %v5313 = vpack.c.b16 %v5101, %v5097
    %v5314 = vpack.c.b16 %v5102, %v5098
    %v5315 = vpack.c.b16 %v5103, %v5099
    %v5316 = vpack.c.b16 %v5108, %v5104
    %v5317 = vpack.c.b16 %v5109, %v5105
    %v5318 = vpack.c.b16 %v5110, %v5106
    %v5319 = vpack.c.b16 %v5111, %v5107
    %v5320 = vpack.c.b16 %v5116, %v5112
    %v5321 = vpack.c.b16 %v5117, %v5113
    %v5322 = vpack.c.b16 %v5118, %v5114
    %v5323 = vpack.c.b16 %v5119, %v5115
    %v5324 = vpack.c.b16 %v5124, %v5120
    %v5325 = vpack.c.b16 %v5125, %v5121
    %v5326 = vpack.c.b16 %v5126, %v5122
    %v5327 = vpack.c.b16 %v5127, %v5123
    %v5328 = vpack.c.b16 %v5132, %v5128
    %v5329 = vpack.c.b16 %v5133, %v5129
    %v5330 = vpack.c.b16 %v5134, %v5130
    %v5331 = vpack.c.b16 %v5135, %v5131
    %v5332 = vpack.c.b16 %v5140, %v5136
    %v5333 = vpack.c.b16 %v5141, %v5137
    %v5334 = vpack.c.b16 %v5142, %v5138
    %v5335 = vpack.c.b16 %v5143, %v5139
    %v5336 = vpack.c.b16 %v5148, %v5144
    %v5337 = vpack.c.b16 %v5149, %v5145
    %v5338 = vpack.c.b16 %v5150, %v5146
    %v5339 = vpack.c.b16 %v5151, %v5147
    %v5340 = vpack.c.b16 %v5156, %v5152
    %v5341 = vpack.c.b16 %v5157, %v5153
    %v5342 = vpack.c.b16 %v5158, %v5154
    %v5343 = vpack.c.b16 %v5159, %v5155
    %v5344 = vpack.c.b16 %v5164, %v5160
    %v5345 = vpack.c.b16 %v5165, %v5161
    %v5346 = vpack.c.b16 %v5166, %v5162
    %v5347 = vpack.c.b16 %v5167, %v5163
    %v5348 = vpack.c.b16 %v5172, %v5168
    %v5349 = vpack.c.b16 %v5173, %v5169
    %v5350 = vpack.c.b16 %v5174, %v5170
    %v5351 = vpack.c.b16 %v5175, %v5171
    %v5352 = vpack.c.b16 %v5180, %v5176
    %v5353 = vpack.c.b16 %v5181, %v5177
    %v5354 = vpack.c.b16 %v5182, %v5178
    %v5355 = vpack.c.b16 %v5183, %v5179
    %v5356 = vpack.c.b16 %v5188, %v5184
    %v5357 = vpack.c.b16 %v5189, %v5185
    %v5358 = vpack.c.b16 %v5190, %v5186
    %v5359 = vpack.c.b16 %v5191, %v5187
    %v5360 = vpack.c.b16 %v5196, %v5192
    %v5361 = vpack.c.b16 %v5197, %v5193
    %v5362 = vpack.c.b16 %v5198, %v5194
    %v5363 = vpack.c.b16 %v5199, %v5195
    %v5364 = vpack.c.b16 %v5204, %v5200
    %v5365 = vpack.c.b16 %v5205, %v5201
    %v5366 = vpack.c.b16 %v5206, %v5202
    %v5367 = vpack.c.b16 %v5207, %v5203
    %v5368 = vpack.c.b16 %v5212, %v5208
    %v5369 = vpack.c.b16 %v5213, %v5209
    %v5370 = vpack.c.b16 %v5214, %v5210
    %v5371 = vpack.c.b16 %v5215, %v5211
    %v5372 = vpack.c.b16 %v5220, %v5216
    %v5373 = vpack.c.b16 %v5221, %v5217
    %v5374 = vpack.c.b16 %v5222, %v5218
    %v5375 = vpack.c.b16 %v5223, %v5219
    %v5376 = vpack.c.b16 %v5228, %v5224
    %v5377 = vpack.c.b16 %v5229, %v5225
    %v5378 = vpack.c.b16 %v5230, %v5226
    %v5379 = vpack.c.b16 %v5231, %v5227
    %v5380 = vpack.c.b16 %v5236, %v5232
    %v5381 = vpack.c.b16 %v5237, %v5233
    %v5382 = vpack.c.b16 %v5238, %v5234
    %v5383 = vpack.c.b16 %v5239, %v5235
    %v5384 = vpack.c.b16 %v5244, %v5240
    %v5385 = vpack.c.b16 %v5245, %v5241
    %v5386 = vpack.c.b16 %v5246, %v5242
    %v5387 = vpack.c.b16 %v5247, %v5243
    %v5388 = vpack.c.b16 %v5252, %v5248
    %v5389 = vpack.c.b16 %v5253, %v5249
    %v5390 = vpack.c.b16 %v5254, %v5250
    %v5391 = vpack.c.b16 %v5255, %v5251
    %v5392 = vpack.c.b16 %v5260, %v5256
    %v5393 = vpack.c.b16 %v5261, %v5257
    %v5394 = vpack.c.b16 %v5262, %v5258
    %v5395 = vpack.c.b16 %v5263, %v5259
    %v5396 = vpack.c.b16 %v5268, %v5264
    %v5397 = vpack.c.b16 %v5269, %v5265
    %v5398 = vpack.c.b16 %v5270, %v5266
    %v5399 = vpack.c.b16 %v5271, %v5267
    %5528 = vmatprep.subr.bf16.mxu0 %v5301
    %5529 = vmatpush1.bf16.msra.mxu0 %v5300
    %5530 = vmatprep.subr.bf16.mxu0 %v5297
    %5531 = vmatpush1.bf16.msra.mxu0 %v5296
    %5532 = vmatprep.subr.bf16.mxu0 %v5293
    %5533 = vmatpush1.bf16.msra.mxu0 %v5292
    %5534 = vmatprep.subr.bf16.mxu0 %v5289
    %5535 = vmatpush1.bf16.msra.mxu0 %v5288
    %5536 = vmatprep.subr.bf16.mxu0 %v5285
    %5537 = vmatpush1.bf16.msra.mxu0 %v5284
    %5538 = vmatprep.subr.bf16.mxu0 %v5281
    %5539 = vmatpush1.bf16.msra.mxu0 %v5280
    %5540 = vmatprep.subr.bf16.mxu0 %v5277
    %5541 = vmatpush1.bf16.msra.mxu0 %v5276
    %5542 = vmatprep.subr.bf16.mxu0 %v5273
    %5543 = vmatpush1.bf16.msra.mxu0 %v5272
    %5544 = vmatprep.subr.bf16.mxu0 %v5333
    %5545 = vmatpush2.bf16.msra.mxu0 %v5332
    %5546 = vmatprep.subr.bf16.mxu0 %v5329
    %5547 = vmatpush2.bf16.msra.mxu0 %v5328
    %5548 = vmatprep.subr.bf16.mxu0 %v5325
    %5549 = vmatpush2.bf16.msra.mxu0 %v5324
    %5550 = vmatprep.subr.bf16.mxu0 %v5321
    %5551 = vmatpush2.bf16.msra.mxu0 %v5320
    %5552 = vmatprep.subr.bf16.mxu0 %v5317
    %5553 = vmatpush2.bf16.msra.mxu0 %v5316
    %5554 = vmatprep.subr.bf16.mxu0 %v5313
    %5555 = vmatpush2.bf16.msra.mxu0 %v5312
    %5556 = vmatprep.subr.bf16.mxu0 %v5309
    %5557 = vmatpush2.bf16.msra.mxu0 %v5308
    %5558 = vmatprep.subr.bf16.mxu0 %v5305
    %5559 = vmatpush2.bf16.msra.mxu0 %v5304
    %5560 = vmatprep.mubr.bf16.mxu0 %v4723
    %5561 = vmatmul.mubr.bf16.gmra.mxu0 %v4722
    %v5562 = vpop.f32.mrf.mxu0
    %v5563 = vadd.f32 %v4871, %v5562
    %v5564 = vpop.f32.mrf.mxu0
    %v5565 = vadd.f32 %v4875, %v5564
    %v5566 = vpop.f32.mrf.mxu0
    %v5567 = vadd.f32 %v4871, %v5566
    %v5568 = vpop.f32.mrf.mxu0
    %v5569 = vadd.f32 %v4875, %v5568
    %5570 = vmatprep.mubr.bf16.mxu0 %v4727
    %5571 = vmatmul.mubr.bf16.gmra.mxu0 %v4726
    %v5572 = vpop.f32.mrf.mxu0
    %v5573 = vadd.f32 %v4871, %v5572
    %v5574 = vpop.f32.mrf.mxu0
    %v5575 = vadd.f32 %v4875, %v5574
    %v5576 = vpop.f32.mrf.mxu0
    %v5577 = vadd.f32 %v4871, %v5576
    %v5578 = vpop.f32.mrf.mxu0
    %v5579 = vadd.f32 %v4875, %v5578
    %5580 = vmatprep.mubr.bf16.mxu0 %v4731
    %5581 = vmatmul.mubr.bf16.gmra.mxu0 %v4730
    %v5582 = vpop.f32.mrf.mxu0
    %v5583 = vadd.f32 %v4871, %v5582
    %v5584 = vpop.f32.mrf.mxu0
    %v5585 = vadd.f32 %v4875, %v5584
    %v5586 = vpop.f32.mrf.mxu0
    %v5587 = vadd.f32 %v4871, %v5586
    %v5588 = vpop.f32.mrf.mxu0
    %v5589 = vadd.f32 %v4875, %v5588
    %5590 = vmatprep.mubr.bf16.mxu0 %v4735
    %5591 = vmatmul.mubr.bf16.gmra.mxu0 %v4734
    %v5592 = vpop.f32.mrf.mxu0
    %v5593 = vadd.f32 %v4871, %v5592
    %v5594 = vpop.f32.mrf.mxu0
    %v5595 = vadd.f32 %v4875, %v5594
    %v5596 = vpop.f32.mrf.mxu0
    %v5597 = vadd.f32 %v4871, %v5596
    %v5598 = vpop.f32.mrf.mxu0
    %v5599 = vadd.f32 %v4875, %v5598
    %5600 = vdwg.mxu0
    %5601 = vmatprep.subr.bf16.mxu0 %v5365
    %5602 = vmatpush1.bf16.msra.mxu0 %v5364
    %5603 = vmatprep.subr.bf16.mxu0 %v5361
    %5604 = vmatpush1.bf16.msra.mxu0 %v5360
    %5605 = vmatprep.subr.bf16.mxu0 %v5357
    %5606 = vmatpush1.bf16.msra.mxu0 %v5356
    %5607 = vmatprep.subr.bf16.mxu0 %v5353
    %5608 = vmatpush1.bf16.msra.mxu0 %v5352
    %5609 = vmatprep.subr.bf16.mxu0 %v5349
    %5610 = vmatpush1.bf16.msra.mxu0 %v5348
    %5611 = vmatprep.subr.bf16.mxu0 %v5345
    %5612 = vmatpush1.bf16.msra.mxu0 %v5344
    %5613 = vmatprep.subr.bf16.mxu0 %v5341
    %5614 = vmatpush1.bf16.msra.mxu0 %v5340
    %5615 = vmatprep.subr.bf16.mxu0 %v5337
    %5616 = vmatpush1.bf16.msra.mxu0 %v5336
    %5617 = vmatprep.subr.bf16.mxu0 %v5397
    %5618 = vmatpush2.bf16.msra.mxu0 %v5396
    %5619 = vmatprep.subr.bf16.mxu0 %v5393
    %5620 = vmatpush2.bf16.msra.mxu0 %v5392
    %5621 = vmatprep.subr.bf16.mxu0 %v5389
    %5622 = vmatpush2.bf16.msra.mxu0 %v5388
    %5623 = vmatprep.subr.bf16.mxu0 %v5385
    %5624 = vmatpush2.bf16.msra.mxu0 %v5384
    %5625 = vmatprep.subr.bf16.mxu0 %v5381
    %5626 = vmatpush2.bf16.msra.mxu0 %v5380
    %5627 = vmatprep.subr.bf16.mxu0 %v5377
    %5628 = vmatpush2.bf16.msra.mxu0 %v5376
    %5629 = vmatprep.subr.bf16.mxu0 %v5373
    %5630 = vmatpush2.bf16.msra.mxu0 %v5372
    %5631 = vmatprep.subr.bf16.mxu0 %v5369
    %5632 = vmatpush2.bf16.msra.mxu0 %v5368
    %5633 = vmatprep.mubr.bf16.mxu0 %v4725
    %5634 = vmatmul.mubr.bf16.gmra.mxu0 %v4724
    %v5635 = vpop.f32.mrf.mxu0
    %v5636 = vadd.f32 %v5563, %v5635
    %v5637 = vpop.f32.mrf.mxu0
    %v5638 = vadd.f32 %v5565, %v5637
    %v5639 = vpop.f32.mrf.mxu0
    %v5640 = vadd.f32 %v5567, %v5639
    %v5641 = vpop.f32.mrf.mxu0
    %v5642 = vadd.f32 %v5569, %v5641
    %5643 = vmatprep.mubr.bf16.mxu0 %v4729
    %5644 = vmatmul.mubr.bf16.gmra.mxu0 %v4728
    %v5645 = vpop.f32.mrf.mxu0
    %v5646 = vadd.f32 %v5573, %v5645
    %v5647 = vpop.f32.mrf.mxu0
    %v5648 = vadd.f32 %v5575, %v5647
    %v5649 = vpop.f32.mrf.mxu0
    %v5650 = vadd.f32 %v5577, %v5649
    %v5651 = vpop.f32.mrf.mxu0
    %v5652 = vadd.f32 %v5579, %v5651
    %5653 = vmatprep.mubr.bf16.mxu0 %v4733
    %5654 = vmatmul.mubr.bf16.gmra.mxu0 %v4732
    %v5655 = vpop.f32.mrf.mxu0
    %v5656 = vadd.f32 %v5583, %v5655
    %v5657 = vpop.f32.mrf.mxu0
    %v5658 = vadd.f32 %v5585, %v5657
    %v5659 = vpop.f32.mrf.mxu0
    %v5660 = vadd.f32 %v5587, %v5659
    %v5661 = vpop.f32.mrf.mxu0
    %v5662 = vadd.f32 %v5589, %v5661
    %5663 = vmatprep.mubr.bf16.mxu0 %v4737
    %5664 = vmatmul.mubr.bf16.gmra.mxu0 %v4736
    %v5665 = vpop.f32.mrf.mxu0
    %v5666 = vadd.f32 %v5593, %v5665
    %v5667 = vpop.f32.mrf.mxu0
    %v5668 = vadd.f32 %v5595, %v5667
    %v5669 = vpop.f32.mrf.mxu0
    %v5670 = vadd.f32 %v5597, %v5669
    %v5671 = vpop.f32.mrf.mxu0
    %v5672 = vadd.f32 %v5599, %v5671
    %5673 = vdwg.mxu0
    %5674 = vmatprep.subr.bf16.mxu0 %v5303
    %5675 = vmatpush1.bf16.msra.mxu0 %v5302
    %5676 = vmatprep.subr.bf16.mxu0 %v5299
    %5677 = vmatpush1.bf16.msra.mxu0 %v5298
    %5678 = vmatprep.subr.bf16.mxu0 %v5295
    %5679 = vmatpush1.bf16.msra.mxu0 %v5294
    %5680 = vmatprep.subr.bf16.mxu0 %v5291
    %5681 = vmatpush1.bf16.msra.mxu0 %v5290
    %5682 = vmatprep.subr.bf16.mxu0 %v5287
    %5683 = vmatpush1.bf16.msra.mxu0 %v5286
    %5684 = vmatprep.subr.bf16.mxu0 %v5283
    %5685 = vmatpush1.bf16.msra.mxu0 %v5282
    %5686 = vmatprep.subr.bf16.mxu0 %v5279
    %5687 = vmatpush1.bf16.msra.mxu0 %v5278
    %5688 = vmatprep.subr.bf16.mxu0 %v5275
    %5689 = vmatpush1.bf16.msra.mxu0 %v5274
    %5690 = vmatprep.subr.bf16.mxu0 %v5335
    %5691 = vmatpush2.bf16.msra.mxu0 %v5334
    %5692 = vmatprep.subr.bf16.mxu0 %v5331
    %5693 = vmatpush2.bf16.msra.mxu0 %v5330
    %5694 = vmatprep.subr.bf16.mxu0 %v5327
    %5695 = vmatpush2.bf16.msra.mxu0 %v5326
    %5696 = vmatprep.subr.bf16.mxu0 %v5323
    %5697 = vmatpush2.bf16.msra.mxu0 %v5322
    %5698 = vmatprep.subr.bf16.mxu0 %v5319
    %5699 = vmatpush2.bf16.msra.mxu0 %v5318
    %5700 = vmatprep.subr.bf16.mxu0 %v5315
    %5701 = vmatpush2.bf16.msra.mxu0 %v5314
    %5702 = vmatprep.subr.bf16.mxu0 %v5311
    %5703 = vmatpush2.bf16.msra.mxu0 %v5310
    %5704 = vmatprep.subr.bf16.mxu0 %v5307
    %5705 = vmatpush2.bf16.msra.mxu0 %v5306
    %5706 = vmatprep.mubr.bf16.mxu0 %v4723
    %5707 = vmatmul.mubr.bf16.gmra.mxu0 %v4722
    %v5708 = vpop.f32.mrf.mxu0
    %v5709 = vadd.f32 %v4879, %v5708
    %v5710 = vpop.f32.mrf.mxu0
    %v5711 = vadd.f32 %v4883, %v5710
    %v5712 = vpop.f32.mrf.mxu0
    %v5713 = vadd.f32 %v4879, %v5712
    %v5714 = vpop.f32.mrf.mxu0
    %v5715 = vadd.f32 %v4883, %v5714
    %5716 = vmatprep.mubr.bf16.mxu0 %v4727
    %5717 = vmatmul.mubr.bf16.gmra.mxu0 %v4726
    %v5718 = vpop.f32.mrf.mxu0
    %v5719 = vadd.f32 %v4879, %v5718
    %v5720 = vpop.f32.mrf.mxu0
    %v5721 = vadd.f32 %v4883, %v5720
    %v5722 = vpop.f32.mrf.mxu0
    %v5723 = vadd.f32 %v4879, %v5722
    %v5724 = vpop.f32.mrf.mxu0
    %v5725 = vadd.f32 %v4883, %v5724
    %5726 = vmatprep.mubr.bf16.mxu0 %v4731
    %5727 = vmatmul.mubr.bf16.gmra.mxu0 %v4730
    %v5728 = vpop.f32.mrf.mxu0
    %v5729 = vadd.f32 %v4879, %v5728
    %v5730 = vpop.f32.mrf.mxu0
    %v5731 = vadd.f32 %v4883, %v5730
    %v5732 = vpop.f32.mrf.mxu0
    %v5733 = vadd.f32 %v4879, %v5732
    %v5734 = vpop.f32.mrf.mxu0
    %v5735 = vadd.f32 %v4883, %v5734
    %5736 = vmatprep.mubr.bf16.mxu0 %v4735
    %5737 = vmatmul.mubr.bf16.gmra.mxu0 %v4734
    %v5738 = vpop.f32.mrf.mxu0
    %v5739 = vadd.f32 %v4879, %v5738
    %v5740 = vpop.f32.mrf.mxu0
    %v5741 = vadd.f32 %v4883, %v5740
    %v5742 = vpop.f32.mrf.mxu0
    %v5743 = vadd.f32 %v4879, %v5742
    %v5744 = vpop.f32.mrf.mxu0
    %v5745 = vadd.f32 %v4883, %v5744
    %5746 = vdwg.mxu0
    %5747 = vmatprep.subr.bf16.mxu0 %v5367
    %5748 = vmatpush1.bf16.msra.mxu0 %v5366
    %5749 = vmatprep.subr.bf16.mxu0 %v5363
    %5750 = vmatpush1.bf16.msra.mxu0 %v5362
    %5751 = vmatprep.subr.bf16.mxu0 %v5359
    %5752 = vmatpush1.bf16.msra.mxu0 %v5358
    %5753 = vmatprep.subr.bf16.mxu0 %v5355
    %5754 = vmatpush1.bf16.msra.mxu0 %v5354
    %5755 = vmatprep.subr.bf16.mxu0 %v5351
    %5756 = vmatpush1.bf16.msra.mxu0 %v5350
    %5757 = vmatprep.subr.bf16.mxu0 %v5347
    %5758 = vmatpush1.bf16.msra.mxu0 %v5346
    %5759 = vmatprep.subr.bf16.mxu0 %v5343
    %5760 = vmatpush1.bf16.msra.mxu0 %v5342
    %5761 = vmatprep.subr.bf16.mxu0 %v5339
    %5762 = vmatpush1.bf16.msra.mxu0 %v5338
    %5763 = vmatprep.subr.bf16.mxu0 %v5399
    %5764 = vmatpush2.bf16.msra.mxu0 %v5398
    %5765 = vmatprep.subr.bf16.mxu0 %v5395
    %5766 = vmatpush2.bf16.msra.mxu0 %v5394
    %5767 = vmatprep.subr.bf16.mxu0 %v5391
    %5768 = vmatpush2.bf16.msra.mxu0 %v5390
    %5769 = vmatprep.subr.bf16.mxu0 %v5387
    %5770 = vmatpush2.bf16.msra.mxu0 %v5386
    %5771 = vmatprep.subr.bf16.mxu0 %v5383
    %5772 = vmatpush2.bf16.msra.mxu0 %v5382
    %5773 = vmatprep.subr.bf16.mxu0 %v5379
    %5774 = vmatpush2.bf16.msra.mxu0 %v5378
    %5775 = vmatprep.subr.bf16.mxu0 %v5375
    %5776 = vmatpush2.bf16.msra.mxu0 %v5374
    %5777 = vmatprep.subr.bf16.mxu0 %v5371
    %5778 = vmatpush2.bf16.msra.mxu0 %v5370
    %5779 = vmatprep.mubr.bf16.mxu0 %v4725
    %5780 = vmatmul.mubr.bf16.gmra.mxu0 %v4724
    %v5781 = vpop.f32.mrf.mxu0
    %v5782 = vadd.f32 %v5709, %v5781
    %v5783 = vpop.f32.mrf.mxu0
    %v5784 = vadd.f32 %v5711, %v5783
    %v5785 = vpop.f32.mrf.mxu0
    %v5786 = vadd.f32 %v5713, %v5785
    %v5787 = vpop.f32.mrf.mxu0
    %v5788 = vadd.f32 %v5715, %v5787
    %5789 = vmatprep.mubr.bf16.mxu0 %v4729
    %5790 = vmatmul.mubr.bf16.gmra.mxu0 %v4728
    %v5791 = vpop.f32.mrf.mxu0
    %v5792 = vadd.f32 %v5719, %v5791
    %v5793 = vpop.f32.mrf.mxu0
    %v5794 = vadd.f32 %v5721, %v5793
    %v5795 = vpop.f32.mrf.mxu0
    %v5796 = vadd.f32 %v5723, %v5795
    %v5797 = vpop.f32.mrf.mxu0
    %v5798 = vadd.f32 %v5725, %v5797
    %5799 = vmatprep.mubr.bf16.mxu0 %v4733
    %5800 = vmatmul.mubr.bf16.gmra.mxu0 %v4732
    %v5801 = vpop.f32.mrf.mxu0
    %v5802 = vadd.f32 %v5729, %v5801
    %v5803 = vpop.f32.mrf.mxu0
    %v5804 = vadd.f32 %v5731, %v5803
    %v5805 = vpop.f32.mrf.mxu0
    %v5806 = vadd.f32 %v5733, %v5805
    %v5807 = vpop.f32.mrf.mxu0
    %v5808 = vadd.f32 %v5735, %v5807
    %5809 = vmatprep.mubr.bf16.mxu0 %v4737
    %5810 = vmatmul.mubr.bf16.gmra.mxu0 %v4736
    %v5811 = vpop.f32.mrf.mxu0
    %v5812 = vadd.f32 %v5739, %v5811
    %v5813 = vpop.f32.mrf.mxu0
    %v5814 = vadd.f32 %v5741, %v5813
    %v5815 = vpop.f32.mrf.mxu0
    %v5816 = vadd.f32 %v5743, %v5815
    %v5817 = vpop.f32.mrf.mxu0
    %v5818 = vadd.f32 %v5745, %v5817
    %5819 = vdwg.mxu0
    %v5820 = vmax.f32 %v5636, 0.0
    %v5821 = vmax.f32 %v5638, 0.0
    %v5822 = vmax.f32 %v5782, 0.0
    %v5823 = vmax.f32 %v5784, 0.0
    %v5824 = vmax.f32 %v5640, 0.0
    %v5825 = vmax.f32 %v5642, 0.0
    %v5826 = vmax.f32 %v5786, 0.0
    %v5827 = vmax.f32 %v5788, 0.0
    %v5828 = vmax.f32 %v5646, 0.0
    %v5829 = vmax.f32 %v5648, 0.0
    %v5830 = vmax.f32 %v5792, 0.0
    %v5831 = vmax.f32 %v5794, 0.0
    %v5832 = vmax.f32 %v5650, 0.0
    %v5833 = vmax.f32 %v5652, 0.0
    %v5834 = vmax.f32 %v5796, 0.0
    %v5835 = vmax.f32 %v5798, 0.0
    %v5836 = vmax.f32 %v5656, 0.0
    %v5837 = vmax.f32 %v5658, 0.0
    %v5838 = vmax.f32 %v5802, 0.0
    %v5839 = vmax.f32 %v5804, 0.0
    %v5840 = vmax.f32 %v5660, 0.0
    %v5841 = vmax.f32 %v5662, 0.0
    %v5842 = vmax.f32 %v5806, 0.0
    %v5843 = vmax.f32 %v5808, 0.0
    %v5844 = vmax.f32 %v5666, 0.0
    %v5845 = vmax.f32 %v5668, 0.0
    %v5846 = vmax.f32 %v5812, 0.0
    %v5847 = vmax.f32 %v5814, 0.0
    %v5848 = vmax.f32 %v5670, 0.0
    %v5849 = vmax.f32 %v5672, 0.0
    %v5850 = vmax.f32 %v5816, 0.0
    %v5851 = vmax.f32 %v5818, 0.0
    %v5852 = vand.u32 2147483647, %v5636
    %v5853 = vand.u32 2147483647, %v5638
    %v5854 = vand.u32 2147483647, %v5782
    %v5855 = vand.u32 2147483647, %v5784
    %v5856 = vand.u32 2147483647, %v5640
    %v5857 = vand.u32 2147483647, %v5642
    %v5858 = vand.u32 2147483647, %v5786
    %v5859 = vand.u32 2147483647, %v5788
    %v5860 = vand.u32 2147483647, %v5646
    %v5861 = vand.u32 2147483647, %v5648
    %v5862 = vand.u32 2147483647, %v5792
    %v5863 = vand.u32 2147483647, %v5794
    %v5864 = vand.u32 2147483647, %v5650
    %v5865 = vand.u32 2147483647, %v5652
    %v5866 = vand.u32 2147483647, %v5796
    %v5867 = vand.u32 2147483647, %v5798
    %v5868 = vand.u32 2147483647, %v5656
    %v5869 = vand.u32 2147483647, %v5658
    %v5870 = vand.u32 2147483647, %v5802
    %v5871 = vand.u32 2147483647, %v5804
    %v5872 = vand.u32 2147483647, %v5660
    %v5873 = vand.u32 2147483647, %v5662
    %v5874 = vand.u32 2147483647, %v5806
    %v5875 = vand.u32 2147483647, %v5808
    %v5876 = vand.u32 2147483647, %v5666
    %v5877 = vand.u32 2147483647, %v5668
    %v5878 = vand.u32 2147483647, %v5812
    %v5879 = vand.u32 2147483647, %v5814
    %v5880 = vand.u32 2147483647, %v5670
    %v5881 = vand.u32 2147483647, %v5672
    %v5882 = vand.u32 2147483647, %v5816
    %v5883 = vand.u32 2147483647, %v5818
    %v5884 = vsub.f32 0.0, %v5852
    %v5885 = vsub.f32 0.0, %v5853
    %v5886 = vsub.f32 0.0, %v5854
    %v5887 = vsub.f32 0.0, %v5855
    %v5888 = vsub.f32 0.0, %v5856
    %v5889 = vsub.f32 0.0, %v5857
    %v5890 = vsub.f32 0.0, %v5858
    %v5891 = vsub.f32 0.0, %v5859
    %v5892 = vsub.f32 0.0, %v5860
    %v5893 = vsub.f32 0.0, %v5861
    %v5894 = vsub.f32 0.0, %v5862
    %v5895 = vsub.f32 0.0, %v5863
    %v5896 = vsub.f32 0.0, %v5864
    %v5897 = vsub.f32 0.0, %v5865
    %v5898 = vsub.f32 0.0, %v5866
    %v5899 = vsub.f32 0.0, %v5867
    %v5900 = vsub.f32 0.0, %v5868
    %v5901 = vsub.f32 0.0, %v5869
    %v5902 = vsub.f32 0.0, %v5870
    %v5903 = vsub.f32 0.0, %v5871
    %v5904 = vsub.f32 0.0, %v5872
    %v5905 = vsub.f32 0.0, %v5873
    %v5906 = vsub.f32 0.0, %v5874
    %v5907 = vsub.f32 0.0, %v5875
    %v5908 = vsub.f32 0.0, %v5876
    %v5909 = vsub.f32 0.0, %v5877
    %v5910 = vsub.f32 0.0, %v5878
    %v5911 = vsub.f32 0.0, %v5879
    %v5912 = vsub.f32 0.0, %v5880
    %v5913 = vsub.f32 0.0, %v5881
    %v5914 = vsub.f32 0.0, %v5882
    %v5915 = vsub.f32 0.0, %v5883
    %v5916 = vmul.f32 %v5884, 1.442695
    %v5917 = vpow.pop %v5916
    %v5918 = vmul.f32 %v5885, 1.442695
    %v5919 = vpow.pop %v5918
    %v5920 = vmul.f32 %v5886, 1.442695
    %v5921 = vpow.pop %v5920
    %v5922 = vmul.f32 %v5887, 1.442695
    %v5923 = vpow.pop %v5922
    %v5924 = vmul.f32 %v5888, 1.442695
    %v5925 = vpow.pop %v5924
    %v5926 = vmul.f32 %v5889, 1.442695
    %v5927 = vpow.pop %v5926
    %v5928 = vmul.f32 %v5890, 1.442695
    %v5929 = vpow.pop %v5928
    %v5930 = vmul.f32 %v5891, 1.442695
    %v5931 = vpow.pop %v5930
    %v5932 = vmul.f32 %v5892, 1.442695
    %v5933 = vpow.pop %v5932
    %v5934 = vmul.f32 %v5893, 1.442695
    %v5935 = vpow.pop %v5934
    %v5936 = vmul.f32 %v5894, 1.442695
    %v5937 = vpow.pop %v5936
    %v5938 = vmul.f32 %v5895, 1.442695
    %v5939 = vpow.pop %v5938
    %v5940 = vmul.f32 %v5896, 1.442695
    %v5941 = vpow.pop %v5940
    %v5942 = vmul.f32 %v5897, 1.442695
    %v5943 = vpow.pop %v5942
    %v5944 = vmul.f32 %v5898, 1.442695
    %v5945 = vpow.pop %v5944
    %v5946 = vmul.f32 %v5899, 1.442695
    %v5947 = vpow.pop %v5946
    %v5948 = vmul.f32 %v5900, 1.442695
    %v5949 = vpow.pop %v5948
    %v5950 = vmul.f32 %v5901, 1.442695
    %v5951 = vpow.pop %v5950
    %v5952 = vmul.f32 %v5902, 1.442695
    %v5953 = vpow.pop %v5952
    %v5954 = vmul.f32 %v5903, 1.442695
    %v5955 = vpow.pop %v5954
    %v5956 = vmul.f32 %v5904, 1.442695
    %v5957 = vpow.pop %v5956
    %v5958 = vmul.f32 %v5905, 1.442695
    %v5959 = vpow.pop %v5958
    %v5960 = vmul.f32 %v5906, 1.442695
    %v5961 = vpow.pop %v5960
    %v5962 = vmul.f32 %v5907, 1.442695
    %v5963 = vpow.pop %v5962
    %v5964 = vmul.f32 %v5908, 1.442695
    %v5965 = vpow.pop %v5964
    %v5966 = vmul.f32 %v5909, 1.442695
    %v5967 = vpow.pop %v5966
    %v5968 = vmul.f32 %v5910, 1.442695
    %v5969 = vpow.pop %v5968
    %v5970 = vmul.f32 %v5911, 1.442695
    %v5971 = vpow.pop %v5970
    %v5972 = vmul.f32 %v5912, 1.442695
    %v5973 = vpow.pop %v5972
    %v5974 = vmul.f32 %v5913, 1.442695
    %v5975 = vpow.pop %v5974
    %v5976 = vmul.f32 %v5914, 1.442695
    %v5977 = vpow.pop %v5976
    %v5978 = vmul.f32 %v5915, 1.442695
    %v5979 = vpow.pop %v5978
    %v5980 = vadd.f32 %v5917, 1.0
    %v5981 = vadd.f32 %v5919, 1.0
    %v5982 = vadd.f32 %v5921, 1.0
    %v5983 = vadd.f32 %v5923, 1.0
    %v5984 = vadd.f32 %v5925, 1.0
    %v5985 = vadd.f32 %v5927, 1.0
    %v5986 = vadd.f32 %v5929, 1.0
    %v5987 = vadd.f32 %v5931, 1.0
    %v5988 = vadd.f32 %v5933, 1.0
    %v5989 = vadd.f32 %v5935, 1.0
    %v5990 = vadd.f32 %v5937, 1.0
    %v5991 = vadd.f32 %v5939, 1.0
    %v5992 = vadd.f32 %v5941, 1.0
    %v5993 = vadd.f32 %v5943, 1.0
    %v5994 = vadd.f32 %v5945, 1.0
    %v5995 = vadd.f32 %v5947, 1.0
    %v5996 = vadd.f32 %v5949, 1.0
    %v5997 = vadd.f32 %v5951, 1.0
    %v5998 = vadd.f32 %v5953, 1.0
    %v5999 = vadd.f32 %v5955, 1.0
    %v6000 = vadd.f32 %v5957, 1.0
    %v6001 = vadd.f32 %v5959, 1.0
    %v6002 = vadd.f32 %v5961, 1.0
    %v6003 = vadd.f32 %v5963, 1.0
    %v6004 = vadd.f32 %v5965, 1.0
    %v6005 = vadd.f32 %v5967, 1.0
    %v6006 = vadd.f32 %v5969, 1.0
    %v6007 = vadd.f32 %v5971, 1.0
    %v6008 = vadd.f32 %v5973, 1.0
    %v6009 = vadd.f32 %v5975, 1.0
    %v6010 = vadd.f32 %v5977, 1.0
    %v6011 = vadd.f32 %v5979, 1.0
    %v6012 = vlog2.pop %v5980
    %v6013 = vmul.f32 %v6012, 0.6931472
    %v6014 = vlog2.pop %v5981
    %v6015 = vmul.f32 %v6014, 0.6931472
    %v6016 = vlog2.pop %v5982
    %v6017 = vmul.f32 %v6016, 0.6931472
    %v6018 = vlog2.pop %v5983
    %v6019 = vmul.f32 %v6018, 0.6931472
    %v6020 = vlog2.pop %v5984
    %v6021 = vmul.f32 %v6020, 0.6931472
    %v6022 = vlog2.pop %v5985
    %v6023 = vmul.f32 %v6022, 0.6931472
    %v6024 = vlog2.pop %v5986
    %v6025 = vmul.f32 %v6024, 0.6931472
    %v6026 = vlog2.pop %v5987
    %v6027 = vmul.f32 %v6026, 0.6931472
    %v6028 = vlog2.pop %v5988
    %v6029 = vmul.f32 %v6028, 0.6931472
    %v6030 = vlog2.pop %v5989
    %v6031 = vmul.f32 %v6030, 0.6931472
    %v6032 = vlog2.pop %v5990
    %v6033 = vmul.f32 %v6032, 0.6931472
    %v6034 = vlog2.pop %v5991
    %v6035 = vmul.f32 %v6034, 0.6931472
    %v6036 = vlog2.pop %v5992
    %v6037 = vmul.f32 %v6036, 0.6931472
    %v6038 = vlog2.pop %v5993
    %v6039 = vmul.f32 %v6038, 0.6931472
    %v6040 = vlog2.pop %v5994
    %v6041 = vmul.f32 %v6040, 0.6931472
    %v6042 = vlog2.pop %v5995
    %v6043 = vmul.f32 %v6042, 0.6931472
    %v6044 = vlog2.pop %v5996
    %v6045 = vmul.f32 %v6044, 0.6931472
    %v6046 = vlog2.pop %v5997
    %v6047 = vmul.f32 %v6046, 0.6931472
    %v6048 = vlog2.pop %v5998
    %v6049 = vmul.f32 %v6048, 0.6931472
    %v6050 = vlog2.pop %v5999
    %v6051 = vmul.f32 %v6050, 0.6931472
    %v6052 = vlog2.pop %v6000
    %v6053 = vmul.f32 %v6052, 0.6931472
    %v6054 = vlog2.pop %v6001
    %v6055 = vmul.f32 %v6054, 0.6931472
    %v6056 = vlog2.pop %v6002
    %v6057 = vmul.f32 %v6056, 0.6931472
    %v6058 = vlog2.pop %v6003
    %v6059 = vmul.f32 %v6058, 0.6931472
    %v6060 = vlog2.pop %v6004
    %v6061 = vmul.f32 %v6060, 0.6931472
    %v6062 = vlog2.pop %v6005
    %v6063 = vmul.f32 %v6062, 0.6931472
    %v6064 = vlog2.pop %v6006
    %v6065 = vmul.f32 %v6064, 0.6931472
    %v6066 = vlog2.pop %v6007
    %v6067 = vmul.f32 %v6066, 0.6931472
    %v6068 = vlog2.pop %v6008
    %v6069 = vmul.f32 %v6068, 0.6931472
    %v6070 = vlog2.pop %v6009
    %v6071 = vmul.f32 %v6070, 0.6931472
    %v6072 = vlog2.pop %v6010
    %v6073 = vmul.f32 %v6072, 0.6931472
    %v6074 = vlog2.pop %v6011
    %v6075 = vmul.f32 %v6074, 0.6931472
    %v6076 = vadd.f32 %v5820, %v6013
    %v6077 = vadd.f32 %v5821, %v6015
    %v6078 = vadd.f32 %v5822, %v6017
    %v6079 = vadd.f32 %v5823, %v6019
    %v6080 = vadd.f32 %v5824, %v6021
    %v6081 = vadd.f32 %v5825, %v6023
    %v6082 = vadd.f32 %v5826, %v6025
    %v6083 = vadd.f32 %v5827, %v6027
    %v6084 = vadd.f32 %v5828, %v6029
    %v6085 = vadd.f32 %v5829, %v6031
    %v6086 = vadd.f32 %v5830, %v6033
    %v6087 = vadd.f32 %v5831, %v6035
    %v6088 = vadd.f32 %v5832, %v6037
    %v6089 = vadd.f32 %v5833, %v6039
    %v6090 = vadd.f32 %v5834, %v6041
    %v6091 = vadd.f32 %v5835, %v6043
    %v6092 = vadd.f32 %v5836, %v6045
    %v6093 = vadd.f32 %v5837, %v6047
    %v6094 = vadd.f32 %v5838, %v6049
    %v6095 = vadd.f32 %v5839, %v6051
    %v6096 = vadd.f32 %v5840, %v6053
    %v6097 = vadd.f32 %v5841, %v6055
    %v6098 = vadd.f32 %v5842, %v6057
    %v6099 = vadd.f32 %v5843, %v6059
    %v6100 = vadd.f32 %v5844, %v6061
    %v6101 = vadd.f32 %v5845, %v6063
    %v6102 = vadd.f32 %v5846, %v6065
    %v6103 = vadd.f32 %v5847, %v6067
    %v6104 = vadd.f32 %v5848, %v6069
    %v6105 = vadd.f32 %v5849, %v6071
    %v6106 = vadd.f32 %v5850, %v6073
    %v6107 = vadd.f32 %v5851, %v6075
    %v6108 = vpack.c.bf16 %v6080, %v6076
    %v6109 = vpack.c.bf16 %v6081, %v6077
    %v6110 = vpack.c.bf16 %v6082, %v6078
    %v6111 = vpack.c.bf16 %v6083, %v6079
    %v6112 = vpack.c.bf16 %v6088, %v6084
    %v6113 = vpack.c.bf16 %v6089, %v6085
    %v6114 = vpack.c.bf16 %v6090, %v6086
    %v6115 = vpack.c.bf16 %v6091, %v6087
    %v6116 = vpack.c.bf16 %v6096, %v6092
    %v6117 = vpack.c.bf16 %v6097, %v6093
    %v6118 = vpack.c.bf16 %v6098, %v6094
    %v6119 = vpack.c.bf16 %v6099, %v6095
    %v6120 = vpack.c.bf16 %v6104, %v6100
    %v6121 = vpack.c.bf16 %v6105, %v6101
    %v6122 = vpack.c.bf16 %v6106, %v6102
    %v6123 = vpack.c.bf16 %v6107, %v6103
    %v6124 = vld [vmem:[%s14] sm:$0xff]
    %v6125 = vld [vmem:[%s14 + $0x8] sm:$0xff]
    %v6126 = vld [vmem:[%s14 + $0x10] sm:$0xff]
    %v6127 = vld [vmem:[%s14 + $0x18] sm:$0xf]
    %v6128 = vld [vmem:[%s14 + $0x1c] sm:$0xff]
    %v6129 = vld [vmem:[%s14 + $0x24] sm:$0xff]
    %v6130 = vld [vmem:[%s14 + $0x2c] sm:$0xff]
    %v6131 = vld [vmem:[%s14 + $0x34] sm:$0xf]
    %v6132 = vld [vmem:[%s14 + $0x38] sm:$0xff]
    %v6133 = vld [vmem:[%s14 + $0x40] sm:$0xff]
    %v6134 = vld [vmem:[%s14 + $0x48] sm:$0xff]
    %v6135 = vld [vmem:[%s14 + $0x50] sm:$0xf]
    %v6136 = vld [vmem:[%s14 + $0x54] sm:$0xff]
    %v6137 = vld [vmem:[%s14 + $0x5c] sm:$0xff]
    %v6138 = vld [vmem:[%s14 + $0x64] sm:$0xff]
    %v6139 = vld [vmem:[%s14 + $0x6c] sm:$0xf]
    %v6140 = vld [vmem:[%s14 + $0x70] sm:$0xff]
    %v6141 = vld [vmem:[%s14 + $0x78] sm:$0xff]
    %v6142 = vld [vmem:[%s14 + $0x80] sm:$0xff]
    %v6143 = vld [vmem:[%s14 + $0x88] sm:$0xf]
    %v6144 = vld [vmem:[%s14 + $0x8c] sm:$0xff]
    %v6145 = vld [vmem:[%s14 + $0x94] sm:$0xff]
    %v6146 = vld [vmem:[%s14 + $0x9c] sm:$0xff]
    %v6147 = vld [vmem:[%s14 + $0xa4] sm:$0xf]
    %v6148 = vld [vmem:[%s14 + $0xa8] sm:$0xff]
    %v6149 = vld [vmem:[%s14 + $0xb0] sm:$0xff]
    %v6150 = vld [vmem:[%s14 + $0xb8] sm:$0xff]
    %v6151 = vld [vmem:[%s14 + $0xc0] sm:$0xf]
    %v6152 = vld [vmem:[%s14 + $0xc4] sm:$0xff]
    %v6153 = vld [vmem:[%s14 + $0xcc] sm:$0xff]
    %v6154 = vld [vmem:[%s14 + $0xd4] sm:$0xff]
    %v6155 = vld [vmem:[%s14 + $0xdc] sm:$0xf]
    %v6156 = vld [vmem:[%s14 + $0xe0] sm:$0xff]
    %v6157 = vld [vmem:[%s14 + $0xe8] sm:$0xff]
    %v6158 = vld [vmem:[%s14 + $0xf0] sm:$0xff]
    %v6159 = vld [vmem:[%s14 + $0xf8] sm:$0xf]
    %v6160 = vld [vmem:[%s14 + $0xfc] sm:$0xff]
    %v6161 = vld [vmem:[%s14 + $0x104] sm:$0xff]
    %v6162 = vld [vmem:[%s14 + $0x10c] sm:$0xff]
    %v6163 = vld [vmem:[%s14 + $0x114] sm:$0xf]
    %v6164 = vld [vmem:[%s14 + $0x118] sm:$0xff]
    %v6165 = vld [vmem:[%s14 + $0x120] sm:$0xff]
    %v6166 = vld [vmem:[%s14 + $0x128] sm:$0xff]
    %v6167 = vld [vmem:[%s14 + $0x130] sm:$0xf]
    %v6168 = vld [vmem:[%s14 + $0x134] sm:$0xff]
    %v6169 = vld [vmem:[%s14 + $0x13c] sm:$0xff]
    %v6170 = vld [vmem:[%s14 + $0x144] sm:$0xff]
    %v6171 = vld [vmem:[%s14 + $0x14c] sm:$0xf]
    %v6172 = vld [vmem:[%s14 + $0x150] sm:$0xff]
    %v6173 = vld [vmem:[%s14 + $0x158] sm:$0xff]
    %v6174 = vld [vmem:[%s14 + $0x160] sm:$0xff]
    %v6175 = vld [vmem:[%s14 + $0x168] sm:$0xf]
    %v6176 = vld [vmem:[%s14 + $0x16c] sm:$0xff]
    %v6177 = vld [vmem:[%s14 + $0x174] sm:$0xff]
    %v6178 = vld [vmem:[%s14 + $0x17c] sm:$0xff]
    %v6179 = vld [vmem:[%s14 + $0x184] sm:$0xf]
    %v6180 = vld [vmem:[%s14 + $0x188] sm:$0xff]
    %v6181 = vld [vmem:[%s14 + $0x190] sm:$0xff]
    %v6182 = vld [vmem:[%s14 + $0x198] sm:$0xff]
    %v6183 = vld [vmem:[%s14 + $0x1a0] sm:$0xf]
    %v6184 = vld [vmem:[%s14 + $0x1a4] sm:$0xff]
    %v6185 = vld [vmem:[%s14 + $0x1ac] sm:$0xff]
    %v6186 = vld [vmem:[%s14 + $0x1b4] sm:$0xff]
    %v6187 = vld [vmem:[%s14 + $0x1bc] sm:$0xf]
    %v6188 = vld [vmem:[%s14 + $0x1c0] sm:$0xff]
    %v6189 = vld [vmem:[%s14 + $0x1c8] sm:$0xff]
    %v6190 = vld [vmem:[%s14 + $0x1d0] sm:$0xff]
    %v6191 = vld [vmem:[%s14 + $0x1d8] sm:$0xf]
    %v6192 = vld [vmem:[%s14 + $0x1dc] sm:$0xff]
    %v6193 = vld [vmem:[%s14 + $0x1e4] sm:$0xff]
    %v6194 = vld [vmem:[%s14 + $0x1ec] sm:$0xff]
    %v6195 = vld [vmem:[%s14 + $0x1f4] sm:$0xf]
    %v6196 = vld [vmem:[%s14 + $0x1f8] sm:$0xff]
    %v6197 = vld [vmem:[%s14 + $0x200] sm:$0xff]
    %v6198 = vld [vmem:[%s14 + $0x208] sm:$0xff]
    %v6199 = vld [vmem:[%s14 + $0x210] sm:$0xf]
    %v6200 = vld [vmem:[%s14 + $0x214] sm:$0xff]
    %v6201 = vld [vmem:[%s14 + $0x21c] sm:$0xff]
    %v6202 = vld [vmem:[%s14 + $0x224] sm:$0xff]
    %v6203 = vld [vmem:[%s14 + $0x22c] sm:$0xf]
    %v6204 = vld [vmem:[%s14 + $0x230] sm:$0xff]
    %v6205 = vld [vmem:[%s14 + $0x238] sm:$0xff]
    %v6206 = vld [vmem:[%s14 + $0x240] sm:$0xff]
    %v6207 = vld [vmem:[%s14 + $0x248] sm:$0xf]
    %v6208 = vld [vmem:[%s14 + $0x24c] sm:$0xff]
    %v6209 = vld [vmem:[%s14 + $0x254] sm:$0xff]
    %v6210 = vld [vmem:[%s14 + $0x25c] sm:$0xff]
    %v6211 = vld [vmem:[%s14 + $0x264] sm:$0xf]
    %v6212 = vld [vmem:[%s14 + $0x268] sm:$0xff]
    %v6213 = vld [vmem:[%s14 + $0x270] sm:$0xff]
    %v6214 = vld [vmem:[%s14 + $0x278] sm:$0xff]
    %v6215 = vld [vmem:[%s14 + $0x280] sm:$0xf]
    %v6216 = vld [vmem:[%s14 + $0x284] sm:$0xff]
    %v6217 = vld [vmem:[%s14 + $0x28c] sm:$0xff]
    %v6218 = vld [vmem:[%s14 + $0x294] sm:$0xff]
    %v6219 = vld [vmem:[%s14 + $0x29c] sm:$0xf]
    %v6220 = vld [vmem:[%s14 + $0x2a0] sm:$0xff]
    %v6221 = vld [vmem:[%s14 + $0x2a8] sm:$0xff]
    %v6222 = vld [vmem:[%s14 + $0x2b0] sm:$0xff]
    %v6223 = vld [vmem:[%s14 + $0x2b8] sm:$0xf]
    %v6224 = vld [vmem:[%s14 + $0x2bc] sm:$0xff]
    %v6225 = vld [vmem:[%s14 + $0x2c4] sm:$0xff]
    %v6226 = vld [vmem:[%s14 + $0x2cc] sm:$0xff]
    %v6227 = vld [vmem:[%s14 + $0x2d4] sm:$0xf]
    %v6228 = vld [vmem:[%s14 + $0x2d8] sm:$0xff]
    %v6229 = vld [vmem:[%s14 + $0x2e0] sm:$0xff]
    %v6230 = vld [vmem:[%s14 + $0x2e8] sm:$0xff]
    %v6231 = vld [vmem:[%s14 + $0x2f0] sm:$0xf]
    %v6232 = vld [vmem:[%s14 + $0x2f4] sm:$0xff]
    %v6233 = vld [vmem:[%s14 + $0x2fc] sm:$0xff]
    %v6234 = vld [vmem:[%s14 + $0x304] sm:$0xff]
    %v6235 = vld [vmem:[%s14 + $0x30c] sm:$0xf]
    %v6236 = vld [vmem:[%s14 + $0x310] sm:$0xff]
    %v6237 = vld [vmem:[%s14 + $0x318] sm:$0xff]
    %v6238 = vld [vmem:[%s14 + $0x320] sm:$0xff]
    %v6239 = vld [vmem:[%s14 + $0x328] sm:$0xf]
    %v6240 = vld [vmem:[%s14 + $0x32c] sm:$0xff]
    %v6241 = vld [vmem:[%s14 + $0x334] sm:$0xff]
    %v6242 = vld [vmem:[%s14 + $0x33c] sm:$0xff]
    %v6243 = vld [vmem:[%s14 + $0x344] sm:$0xf]
    %v6244 = vld [vmem:[%s14 + $0x348] sm:$0xff]
    %v6245 = vld [vmem:[%s14 + $0x350] sm:$0xff]
    %v6246 = vld [vmem:[%s14 + $0x358] sm:$0xff]
    %v6247 = vld [vmem:[%s14 + $0x360] sm:$0xf]
    %v6248 = vld [vmem:[%s14 + $0x364] sm:$0xff]
    %v6249 = vld [vmem:[%s14 + $0x36c] sm:$0xff]
    %v6250 = vld [vmem:[%s14 + $0x374] sm:$0xff]
    %v6251 = vld [vmem:[%s14 + $0x37c] sm:$0xf]
    %v6252 = vld [vmem:[%s14 + $0x380] sm:$0xff]
    %v6253 = vld [vmem:[%s14 + $0x388] sm:$0xff]
    %v6254 = vld [vmem:[%s14 + $0x390] sm:$0xff]
    %v6255 = vld [vmem:[%s14 + $0x398] sm:$0xf]
    %v6256 = vld [vmem:[%s14 + $0x39c] sm:$0xff]
    %v6257 = vld [vmem:[%s14 + $0x3a4] sm:$0xff]
    %v6258 = vld [vmem:[%s14 + $0x3ac] sm:$0xff]
    %v6259 = vld [vmem:[%s14 + $0x3b4] sm:$0xf]
    %v6260 = vld [vmem:[%s14 + $0x3b8] sm:$0xff]
    %v6261 = vld [vmem:[%s14 + $0x3c0] sm:$0xff]
    %v6262 = vld [vmem:[%s14 + $0x3c8] sm:$0xff]
    %v6263 = vld [vmem:[%s14 + $0x3d0] sm:$0xf]
    %v6264 = vld [vmem:[%s14 + $0x3d4] sm:$0xff]
    %v6265 = vld [vmem:[%s14 + $0x3dc] sm:$0xff]
    %v6266 = vld [vmem:[%s14 + $0x3e4] sm:$0xff]
    %v6267 = vld [vmem:[%s14 + $0x3ec] sm:$0xf]
    %v6268 = vld [vmem:[%s14 + $0x3f0] sm:$0xff]
    %v6269 = vld [vmem:[%s14 + $0x3f8] sm:$0xff]
    %v6270 = vld [vmem:[%s14 + $0x400] sm:$0xff]
    %v6271 = vld [vmem:[%s14 + $0x408] sm:$0xf]
    %v6272 = vld [vmem:[%s14 + $0x40c] sm:$0xff]
    %v6273 = vld [vmem:[%s14 + $0x414] sm:$0xff]
    %v6274 = vld [vmem:[%s14 + $0x41c] sm:$0xff]
    %v6275 = vld [vmem:[%s14 + $0x424] sm:$0xf]
    %v6276 = vld [vmem:[%s14 + $0x428] sm:$0xff]
    %v6277 = vld [vmem:[%s14 + $0x430] sm:$0xff]
    %v6278 = vld [vmem:[%s14 + $0x438] sm:$0xff]
    %v6279 = vld [vmem:[%s14 + $0x440] sm:$0xf]
    %v6280 = vld [vmem:[%s14 + $0x444] sm:$0xff]
    %v6281 = vld [vmem:[%s14 + $0x44c] sm:$0xff]
    %v6282 = vld [vmem:[%s14 + $0x454] sm:$0xff]
    %v6283 = vld [vmem:[%s14 + $0x45c] sm:$0xf]
    %v6284 = vld [vmem:[%s14 + $0x460] sm:$0xff]
    %v6285 = vld [vmem:[%s14 + $0x468] sm:$0xff]
    %v6286 = vld [vmem:[%s14 + $0x470] sm:$0xff]
    %v6287 = vld [vmem:[%s14 + $0x478] sm:$0xf]
    %v6288 = vld [vmem:[%s14 + $0x47c] sm:$0xff]
    %v6289 = vld [vmem:[%s14 + $0x484] sm:$0xff]
    %v6290 = vld [vmem:[%s14 + $0x48c] sm:$0xff]
    %v6291 = vld [vmem:[%s14 + $0x494] sm:$0xf]
    %v6292 = vld [vmem:[%s14 + $0x498] sm:$0xff]
    %v6293 = vld [vmem:[%s14 + $0x4a0] sm:$0xff]
    %v6294 = vld [vmem:[%s14 + $0x4a8] sm:$0xff]
    %v6295 = vld [vmem:[%s14 + $0x4b0] sm:$0xf]
    %v6296 = vld [vmem:[%s14 + $0x4b4] sm:$0xff]
    %v6297 = vld [vmem:[%s14 + $0x4bc] sm:$0xff]
    %v6298 = vld [vmem:[%s14 + $0x4c4] sm:$0xff]
    %v6299 = vld [vmem:[%s14 + $0x4cc] sm:$0xf]
    %v6300 = vld [vmem:[%s14 + $0x4d0] sm:$0xff]
    %v6301 = vld [vmem:[%s14 + $0x4d8] sm:$0xff]
    %v6302 = vld [vmem:[%s14 + $0x4e0] sm:$0xff]
    %v6303 = vld [vmem:[%s14 + $0x4e8] sm:$0xf]
    %v6304 = vld [vmem:[%s14 + $0x4ec] sm:$0xff]
    %v6305 = vld [vmem:[%s14 + $0x4f4] sm:$0xff]
    %v6306 = vld [vmem:[%s14 + $0x4fc] sm:$0xff]
    %v6307 = vld [vmem:[%s14 + $0x504] sm:$0xf]
    %v6308 = vld [vmem:[%s14 + $0x508] sm:$0xff]
    %v6309 = vld [vmem:[%s14 + $0x510] sm:$0xff]
    %v6310 = vld [vmem:[%s14 + $0x518] sm:$0xff]
    %v6311 = vld [vmem:[%s14 + $0x520] sm:$0xf]
    %v6312 = vld [vmem:[%s14 + $0x524] sm:$0xff]
    %v6313 = vld [vmem:[%s14 + $0x52c] sm:$0xff]
    %v6314 = vld [vmem:[%s14 + $0x534] sm:$0xff]
    %v6315 = vld [vmem:[%s14 + $0x53c] sm:$0xf]
    %v6316 = vld [vmem:[%s14 + $0x540] sm:$0xff]
    %v6317 = vld [vmem:[%s14 + $0x548] sm:$0xff]
    %v6318 = vld [vmem:[%s14 + $0x550] sm:$0xff]
    %v6319 = vld [vmem:[%s14 + $0x558] sm:$0xf]
    %v6320 = vld [vmem:[%s14 + $0x55c] sm:$0xff]
    %v6321 = vld [vmem:[%s14 + $0x564] sm:$0xff]
    %v6322 = vld [vmem:[%s14 + $0x56c] sm:$0xff]
    %v6323 = vld [vmem:[%s14 + $0x574] sm:$0xf]
    %v6324 = vld [vmem:[%s14 + $0x578] sm:$0xff]
    %v6325 = vld [vmem:[%s14 + $0x580] sm:$0xff]
    %v6326 = vld [vmem:[%s14 + $0x588] sm:$0xff]
    %v6327 = vld [vmem:[%s14 + $0x590] sm:$0xf]
    %v6328 = vld [vmem:[%s14 + $0x594] sm:$0xff]
    %v6329 = vld [vmem:[%s14 + $0x59c] sm:$0xff]
    %v6330 = vld [vmem:[%s14 + $0x5a4] sm:$0xff]
    %v6331 = vld [vmem:[%s14 + $0x5ac] sm:$0xf]
    %v6332 = vld [vmem:[%s14 + $0x5b0] sm:$0xff]
    %v6333 = vld [vmem:[%s14 + $0x5b8] sm:$0xff]
    %v6334 = vld [vmem:[%s14 + $0x5c0] sm:$0xff]
    %v6335 = vld [vmem:[%s14 + $0x5c8] sm:$0xf]
    %v6336 = vld [vmem:[%s14 + $0x5cc] sm:$0xff]
    %v6337 = vld [vmem:[%s14 + $0x5d4] sm:$0xff]
    %v6338 = vld [vmem:[%s14 + $0x5dc] sm:$0xff]
    %v6339 = vld [vmem:[%s14 + $0x5e4] sm:$0xf]
    %v6340 = vld [vmem:[%s14 + $0x5e8] sm:$0xff]
    %v6341 = vld [vmem:[%s14 + $0x5f0] sm:$0xff]
    %v6342 = vld [vmem:[%s14 + $0x5f8] sm:$0xff]
    %v6343 = vld [vmem:[%s14 + $0x600] sm:$0xf]
    %v6344 = vld [vmem:[%s14 + $0x604] sm:$0xff]
    %v6345 = vld [vmem:[%s14 + $0x60c] sm:$0xff]
    %v6346 = vld [vmem:[%s14 + $0x614] sm:$0xff]
    %v6347 = vld [vmem:[%s14 + $0x61c] sm:$0xf]
    %v6348 = vld [vmem:[%s14 + $0x620] sm:$0xff]
    %v6349 = vld [vmem:[%s14 + $0x628] sm:$0xff]
    %v6350 = vld [vmem:[%s14 + $0x630] sm:$0xff]
    %v6351 = vld [vmem:[%s14 + $0x638] sm:$0xf]
    %v6352 = vld [vmem:[%s14 + $0x63c] sm:$0xff]
    %v6353 = vld [vmem:[%s14 + $0x644] sm:$0xff]
    %v6354 = vld [vmem:[%s14 + $0x64c] sm:$0xff]
    %v6355 = vld [vmem:[%s14 + $0x654] sm:$0xf]
    %v6356 = vld [vmem:[%s14 + $0x658] sm:$0xff]
    %v6357 = vld [vmem:[%s14 + $0x660] sm:$0xff]
    %v6358 = vld [vmem:[%s14 + $0x668] sm:$0xff]
    %v6359 = vld [vmem:[%s14 + $0x670] sm:$0xf]
    %v6360 = vld [vmem:[%s14 + $0x674] sm:$0xff]
    %v6361 = vld [vmem:[%s14 + $0x67c] sm:$0xff]
    %v6362 = vld [vmem:[%s14 + $0x684] sm:$0xff]
    %v6363 = vld [vmem:[%s14 + $0x68c] sm:$0xf]
    %v6364 = vld [vmem:[%s14 + $0x690] sm:$0xff]
    %v6365 = vld [vmem:[%s14 + $0x698] sm:$0xff]
    %v6366 = vld [vmem:[%s14 + $0x6a0] sm:$0xff]
    %v6367 = vld [vmem:[%s14 + $0x6a8] sm:$0xf]
    %v6368 = vld [vmem:[%s14 + $0x6ac] sm:$0xff]
    %v6369 = vld [vmem:[%s14 + $0x6b4] sm:$0xff]
    %v6370 = vld [vmem:[%s14 + $0x6bc] sm:$0xff]
    %v6371 = vld [vmem:[%s14 + $0x6c4] sm:$0xf]
    %v6372 = vld [vmem:[%s14 + $0x6c8] sm:$0xff]
    %v6373 = vld [vmem:[%s14 + $0x6d0] sm:$0xff]
    %v6374 = vld [vmem:[%s14 + $0x6d8] sm:$0xff]
    %v6375 = vld [vmem:[%s14 + $0x6e0] sm:$0xf]
    %v6376 = vld [vmem:[%s14 + $0x6e4] sm:$0xff]
    %v6377 = vld [vmem:[%s14 + $0x6ec] sm:$0xff]
    %v6378 = vld [vmem:[%s14 + $0x6f4] sm:$0xff]
    %v6379 = vld [vmem:[%s14 + $0x6fc] sm:$0xf]
    %v6380 = vld [vmem:[%s15] sm:$0x7f]
    %v6382 = vlaneseq
    %v6383 = vshrl.u32 %v6382, 7
    %v6384 = vsub.s32 0, %v6383
    %v6385 = vrot.slane %v6380, %v6384
    %v6386 = vlaneseq
    %v6387 = vshrl.u32 %v6386, 7
    %v6388 = vsub.s32 1, %v6387
    %v6389 = vrot.slane %v6380, %v6388
    %v6390 = vlaneseq
    %v6391 = vshrl.u32 %v6390, 7
    %v6392 = vsub.s32 2, %v6391
    %v6393 = vrot.slane %v6380, %v6392
    %v6394 = vlaneseq
    %v6395 = vshrl.u32 %v6394, 7
    %v6396 = vsub.s32 3, %v6395
    %v6397 = vrot.slane %v6380, %v6396
    %v6398 = vlaneseq
    %v6399 = vshrl.u32 %v6398, 7
    %v6400 = vsub.s32 4, %v6399
    %v6401 = vrot.slane %v6380, %v6400
    %v6402 = vlaneseq
    %v6403 = vshrl.u32 %v6402, 7
    %v6404 = vsub.s32 5, %v6403
    %v6405 = vrot.slane %v6380, %v6404
    %v6406 = vlaneseq
    %v6407 = vshrl.u32 %v6406, 7
    %v6408 = vsub.s32 6, %v6407
    %v6409 = vrot.slane %v6380, %v6408
    %v6673 = vunpack.c.l.b16 %v6124
    %v6674 = vunpack.c.h.b16 %v6124
    %v6675 = vunpack.c.l.b16 %v6125
    %v6676 = vunpack.c.h.b16 %v6125
    %v6677 = vunpack.c.l.b16 %v6126
    %v6678 = vunpack.c.h.b16 %v6126
    %v6679 = vunpack.c.l.b16 %v6127
    %v6680 = vunpack.c.l.b16 %v6128
    %v6681 = vunpack.c.h.b16 %v6128
    %v6682 = vunpack.c.l.b16 %v6129
    %v6683 = vunpack.c.h.b16 %v6129
    %v6684 = vunpack.c.l.b16 %v6130
    %v6685 = vunpack.c.h.b16 %v6130
    %v6686 = vunpack.c.l.b16 %v6131
    %v6687 = vunpack.c.l.b16 %v6132
    %v6688 = vunpack.c.h.b16 %v6132
    %v6689 = vunpack.c.l.b16 %v6133
    %v6690 = vunpack.c.h.b16 %v6133
    %v6691 = vunpack.c.l.b16 %v6134
    %v6692 = vunpack.c.h.b16 %v6134
    %v6693 = vunpack.c.l.b16 %v6135
    %v6694 = vunpack.c.l.b16 %v6136
    %v6695 = vunpack.c.h.b16 %v6136
    %v6696 = vunpack.c.l.b16 %v6137
    %v6697 = vunpack.c.h.b16 %v6137
    %v6698 = vunpack.c.l.b16 %v6138
    %v6699 = vunpack.c.h.b16 %v6138
    %v6700 = vunpack.c.l.b16 %v6139
    %v6701 = vunpack.c.l.b16 %v6140
    %v6702 = vunpack.c.h.b16 %v6140
    %v6703 = vunpack.c.l.b16 %v6141
    %v6704 = vunpack.c.h.b16 %v6141
    %v6705 = vunpack.c.l.b16 %v6142
    %v6706 = vunpack.c.h.b16 %v6142
    %v6707 = vunpack.c.l.b16 %v6143
    %v6708 = vunpack.c.l.b16 %v6144
    %v6709 = vunpack.c.h.b16 %v6144
    %v6710 = vunpack.c.l.b16 %v6145
    %v6711 = vunpack.c.h.b16 %v6145
    %v6712 = vunpack.c.l.b16 %v6146
    %v6713 = vunpack.c.h.b16 %v6146
    %v6714 = vunpack.c.l.b16 %v6147
    %v6715 = vunpack.c.l.b16 %v6148
    %v6716 = vunpack.c.h.b16 %v6148
    %v6717 = vunpack.c.l.b16 %v6149
    %v6718 = vunpack.c.h.b16 %v6149
    %v6719 = vunpack.c.l.b16 %v6150
    %v6720 = vunpack.c.h.b16 %v6150
    %v6721 = vunpack.c.l.b16 %v6151
    %v6722 = vunpack.c.l.b16 %v6152
    %v6723 = vunpack.c.h.b16 %v6152
    %v6724 = vunpack.c.l.b16 %v6153
    %v6725 = vunpack.c.h.b16 %v6153
    %v6726 = vunpack.c.l.b16 %v6154
    %v6727 = vunpack.c.h.b16 %v6154
    %v6728 = vunpack.c.l.b16 %v6155
    %v6729 = vunpack.c.l.b16 %v6156
    %v6730 = vunpack.c.h.b16 %v6156
    %v6731 = vunpack.c.l.b16 %v6157
    %v6732 = vunpack.c.h.b16 %v6157
    %v6733 = vunpack.c.l.b16 %v6158
    %v6734 = vunpack.c.h.b16 %v6158
    %v6735 = vunpack.c.l.b16 %v6159
    %v6736 = vunpack.c.l.b16 %v6160
    %v6737 = vunpack.c.h.b16 %v6160
    %v6738 = vunpack.c.l.b16 %v6161
    %v6739 = vunpack.c.h.b16 %v6161
    %v6740 = vunpack.c.l.b16 %v6162
    %v6741 = vunpack.c.h.b16 %v6162
    %v6742 = vunpack.c.l.b16 %v6163
    %v6743 = vunpack.c.l.b16 %v6164
    %v6744 = vunpack.c.h.b16 %v6164
    %v6745 = vunpack.c.l.b16 %v6165
    %v6746 = vunpack.c.h.b16 %v6165
    %v6747 = vunpack.c.l.b16 %v6166
    %v6748 = vunpack.c.h.b16 %v6166
    %v6749 = vunpack.c.l.b16 %v6167
    %v6750 = vunpack.c.l.b16 %v6168
    %v6751 = vunpack.c.h.b16 %v6168
    %v6752 = vunpack.c.l.b16 %v6169
    %v6753 = vunpack.c.h.b16 %v6169
    %v6754 = vunpack.c.l.b16 %v6170
    %v6755 = vunpack.c.h.b16 %v6170
    %v6756 = vunpack.c.l.b16 %v6171
    %v6757 = vunpack.c.l.b16 %v6172
    %v6758 = vunpack.c.h.b16 %v6172
    %v6759 = vunpack.c.l.b16 %v6173
    %v6760 = vunpack.c.h.b16 %v6173
    %v6761 = vunpack.c.l.b16 %v6174
    %v6762 = vunpack.c.h.b16 %v6174
    %v6763 = vunpack.c.l.b16 %v6175
    %v6764 = vunpack.c.l.b16 %v6176
    %v6765 = vunpack.c.h.b16 %v6176
    %v6766 = vunpack.c.l.b16 %v6177
    %v6767 = vunpack.c.h.b16 %v6177
    %v6768 = vunpack.c.l.b16 %v6178
    %v6769 = vunpack.c.h.b16 %v6178
    %v6770 = vunpack.c.l.b16 %v6179
    %v6771 = vunpack.c.l.b16 %v6180
    %v6772 = vunpack.c.h.b16 %v6180
    %v6773 = vunpack.c.l.b16 %v6181
    %v6774 = vunpack.c.h.b16 %v6181
    %v6775 = vunpack.c.l.b16 %v6182
    %v6776 = vunpack.c.h.b16 %v6182
    %v6777 = vunpack.c.l.b16 %v6183
    %v6778 = vunpack.c.l.b16 %v6184
    %v6779 = vunpack.c.h.b16 %v6184
    %v6780 = vunpack.c.l.b16 %v6185
    %v6781 = vunpack.c.h.b16 %v6185
    %v6782 = vunpack.c.l.b16 %v6186
    %v6783 = vunpack.c.h.b16 %v6186
    %v6784 = vunpack.c.l.b16 %v6187
    %v6785 = vunpack.c.l.b16 %v6188
    %v6786 = vunpack.c.h.b16 %v6188
    %v6787 = vunpack.c.l.b16 %v6189
    %v6788 = vunpack.c.h.b16 %v6189
    %v6789 = vunpack.c.l.b16 %v6190
    %v6790 = vunpack.c.h.b16 %v6190
    %v6791 = vunpack.c.l.b16 %v6191
    %v6792 = vunpack.c.l.b16 %v6192
    %v6793 = vunpack.c.h.b16 %v6192
    %v6794 = vunpack.c.l.b16 %v6193
    %v6795 = vunpack.c.h.b16 %v6193
    %v6796 = vunpack.c.l.b16 %v6194
    %v6797 = vunpack.c.h.b16 %v6194
    %v6798 = vunpack.c.l.b16 %v6195
    %v6799 = vunpack.c.l.b16 %v6196
    %v6800 = vunpack.c.h.b16 %v6196
    %v6801 = vunpack.c.l.b16 %v6197
    %v6802 = vunpack.c.h.b16 %v6197
    %v6803 = vunpack.c.l.b16 %v6198
    %v6804 = vunpack.c.h.b16 %v6198
    %v6805 = vunpack.c.l.b16 %v6199
    %v6806 = vunpack.c.l.b16 %v6200
    %v6807 = vunpack.c.h.b16 %v6200
    %v6808 = vunpack.c.l.b16 %v6201
    %v6809 = vunpack.c.h.b16 %v6201
    %v6810 = vunpack.c.l.b16 %v6202
    %v6811 = vunpack.c.h.b16 %v6202
    %v6812 = vunpack.c.l.b16 %v6203
    %v6813 = vunpack.c.l.b16 %v6204
    %v6814 = vunpack.c.h.b16 %v6204
    %v6815 = vunpack.c.l.b16 %v6205
    %v6816 = vunpack.c.h.b16 %v6205
    %v6817 = vunpack.c.l.b16 %v6206
    %v6818 = vunpack.c.h.b16 %v6206
    %v6819 = vunpack.c.l.b16 %v6207
    %v6820 = vunpack.c.l.b16 %v6208
    %v6821 = vunpack.c.h.b16 %v6208
    %v6822 = vunpack.c.l.b16 %v6209
    %v6823 = vunpack.c.h.b16 %v6209
    %v6824 = vunpack.c.l.b16 %v6210
    %v6825 = vunpack.c.h.b16 %v6210
    %v6826 = vunpack.c.l.b16 %v6211
    %v6827 = vunpack.c.l.b16 %v6212
    %v6828 = vunpack.c.h.b16 %v6212
    %v6829 = vunpack.c.l.b16 %v6213
    %v6830 = vunpack.c.h.b16 %v6213
    %v6831 = vunpack.c.l.b16 %v6214
    %v6832 = vunpack.c.h.b16 %v6214
    %v6833 = vunpack.c.l.b16 %v6215
    %v6834 = vunpack.c.l.b16 %v6216
    %v6835 = vunpack.c.h.b16 %v6216
    %v6836 = vunpack.c.l.b16 %v6217
    %v6837 = vunpack.c.h.b16 %v6217
    %v6838 = vunpack.c.l.b16 %v6218
    %v6839 = vunpack.c.h.b16 %v6218
    %v6840 = vunpack.c.l.b16 %v6219
    %v6841 = vunpack.c.l.b16 %v6220
    %v6842 = vunpack.c.h.b16 %v6220
    %v6843 = vunpack.c.l.b16 %v6221
    %v6844 = vunpack.c.h.b16 %v6221
    %v6845 = vunpack.c.l.b16 %v6222
    %v6846 = vunpack.c.h.b16 %v6222
    %v6847 = vunpack.c.l.b16 %v6223
    %v6848 = vunpack.c.l.b16 %v6224
    %v6849 = vunpack.c.h.b16 %v6224
    %v6850 = vunpack.c.l.b16 %v6225
    %v6851 = vunpack.c.h.b16 %v6225
    %v6852 = vunpack.c.l.b16 %v6226
    %v6853 = vunpack.c.h.b16 %v6226
    %v6854 = vunpack.c.l.b16 %v6227
    %v6855 = vunpack.c.l.b16 %v6228
    %v6856 = vunpack.c.h.b16 %v6228
    %v6857 = vunpack.c.l.b16 %v6229
    %v6858 = vunpack.c.h.b16 %v6229
    %v6859 = vunpack.c.l.b16 %v6230
    %v6860 = vunpack.c.h.b16 %v6230
    %v6861 = vunpack.c.l.b16 %v6231
    %v6862 = vunpack.c.l.b16 %v6232
    %v6863 = vunpack.c.h.b16 %v6232
    %v6864 = vunpack.c.l.b16 %v6233
    %v6865 = vunpack.c.h.b16 %v6233
    %v6866 = vunpack.c.l.b16 %v6234
    %v6867 = vunpack.c.h.b16 %v6234
    %v6868 = vunpack.c.l.b16 %v6235
    %v6869 = vunpack.c.l.b16 %v6236
    %v6870 = vunpack.c.h.b16 %v6236
    %v6871 = vunpack.c.l.b16 %v6237
    %v6872 = vunpack.c.h.b16 %v6237
    %v6873 = vunpack.c.l.b16 %v6238
    %v6874 = vunpack.c.h.b16 %v6238
    %v6875 = vunpack.c.l.b16 %v6239
    %v6876 = vunpack.c.l.b16 %v6240
    %v6877 = vunpack.c.h.b16 %v6240
    %v6878 = vunpack.c.l.b16 %v6241
    %v6879 = vunpack.c.h.b16 %v6241
    %v6880 = vunpack.c.l.b16 %v6242
    %v6881 = vunpack.c.h.b16 %v6242
    %v6882 = vunpack.c.l.b16 %v6243
    %v6883 = vunpack.c.l.b16 %v6244
    %v6884 = vunpack.c.h.b16 %v6244
    %v6885 = vunpack.c.l.b16 %v6245
    %v6886 = vunpack.c.h.b16 %v6245
    %v6887 = vunpack.c.l.b16 %v6246
    %v6888 = vunpack.c.h.b16 %v6246
    %v6889 = vunpack.c.l.b16 %v6247
    %v6890 = vunpack.c.l.b16 %v6248
    %v6891 = vunpack.c.h.b16 %v6248
    %v6892 = vunpack.c.l.b16 %v6249
    %v6893 = vunpack.c.h.b16 %v6249
    %v6894 = vunpack.c.l.b16 %v6250
    %v6895 = vunpack.c.h.b16 %v6250
    %v6896 = vunpack.c.l.b16 %v6251
    %v6897 = vunpack.c.l.b16 %v6252
    %v6898 = vunpack.c.h.b16 %v6252
    %v6899 = vunpack.c.l.b16 %v6253
    %v6900 = vunpack.c.h.b16 %v6253
    %v6901 = vunpack.c.l.b16 %v6254
    %v6902 = vunpack.c.h.b16 %v6254
    %v6903 = vunpack.c.l.b16 %v6255
    %v6904 = vunpack.c.l.b16 %v6256
    %v6905 = vunpack.c.h.b16 %v6256
    %v6906 = vunpack.c.l.b16 %v6257
    %v6907 = vunpack.c.h.b16 %v6257
    %v6908 = vunpack.c.l.b16 %v6258
    %v6909 = vunpack.c.h.b16 %v6258
    %v6910 = vunpack.c.l.b16 %v6259
    %v6911 = vunpack.c.l.b16 %v6260
    %v6912 = vunpack.c.h.b16 %v6260
    %v6913 = vunpack.c.l.b16 %v6261
    %v6914 = vunpack.c.h.b16 %v6261
    %v6915 = vunpack.c.l.b16 %v6262
    %v6916 = vunpack.c.h.b16 %v6262
    %v6917 = vunpack.c.l.b16 %v6263
    %v6918 = vunpack.c.l.b16 %v6264
    %v6919 = vunpack.c.h.b16 %v6264
    %v6920 = vunpack.c.l.b16 %v6265
    %v6921 = vunpack.c.h.b16 %v6265
    %v6922 = vunpack.c.l.b16 %v6266
    %v6923 = vunpack.c.h.b16 %v6266
    %v6924 = vunpack.c.l.b16 %v6267
    %v6925 = vunpack.c.l.b16 %v6268
    %v6926 = vunpack.c.h.b16 %v6268
    %v6927 = vunpack.c.l.b16 %v6269
    %v6928 = vunpack.c.h.b16 %v6269
    %v6929 = vunpack.c.l.b16 %v6270
    %v6930 = vunpack.c.h.b16 %v6270
    %v6931 = vunpack.c.l.b16 %v6271
    %v6932 = vunpack.c.l.b16 %v6272
    %v6933 = vunpack.c.h.b16 %v6272
    %v6934 = vunpack.c.l.b16 %v6273
    %v6935 = vunpack.c.h.b16 %v6273
    %v6936 = vunpack.c.l.b16 %v6274
    %v6937 = vunpack.c.h.b16 %v6274
    %v6938 = vunpack.c.l.b16 %v6275
    %v6939 = vunpack.c.l.b16 %v6276
    %v6940 = vunpack.c.h.b16 %v6276
    %v6941 = vunpack.c.l.b16 %v6277
    %v6942 = vunpack.c.h.b16 %v6277
    %v6943 = vunpack.c.l.b16 %v6278
    %v6944 = vunpack.c.h.b16 %v6278
    %v6945 = vunpack.c.l.b16 %v6279
    %v6946 = vunpack.c.l.b16 %v6280
    %v6947 = vunpack.c.h.b16 %v6280
    %v6948 = vunpack.c.l.b16 %v6281
    %v6949 = vunpack.c.h.b16 %v6281
    %v6950 = vunpack.c.l.b16 %v6282
    %v6951 = vunpack.c.h.b16 %v6282
    %v6952 = vunpack.c.l.b16 %v6283
    %v6953 = vunpack.c.l.b16 %v6284
    %v6954 = vunpack.c.h.b16 %v6284
    %v6955 = vunpack.c.l.b16 %v6285
    %v6956 = vunpack.c.h.b16 %v6285
    %v6957 = vunpack.c.l.b16 %v6286
    %v6958 = vunpack.c.h.b16 %v6286
    %v6959 = vunpack.c.l.b16 %v6287
    %v6960 = vunpack.c.l.b16 %v6288
    %v6961 = vunpack.c.h.b16 %v6288
    %v6962 = vunpack.c.l.b16 %v6289
    %v6963 = vunpack.c.h.b16 %v6289
    %v6964 = vunpack.c.l.b16 %v6290
    %v6965 = vunpack.c.h.b16 %v6290
    %v6966 = vunpack.c.l.b16 %v6291
    %v6967 = vunpack.c.l.b16 %v6292
    %v6968 = vunpack.c.h.b16 %v6292
    %v6969 = vunpack.c.l.b16 %v6293
    %v6970 = vunpack.c.h.b16 %v6293
    %v6971 = vunpack.c.l.b16 %v6294
    %v6972 = vunpack.c.h.b16 %v6294
    %v6973 = vunpack.c.l.b16 %v6295
    %v6974 = vunpack.c.l.b16 %v6296
    %v6975 = vunpack.c.h.b16 %v6296
    %v6976 = vunpack.c.l.b16 %v6297
    %v6977 = vunpack.c.h.b16 %v6297
    %v6978 = vunpack.c.l.b16 %v6298
    %v6979 = vunpack.c.h.b16 %v6298
    %v6980 = vunpack.c.l.b16 %v6299
    %v6981 = vunpack.c.l.b16 %v6300
    %v6982 = vunpack.c.h.b16 %v6300
    %v6983 = vunpack.c.l.b16 %v6301
    %v6984 = vunpack.c.h.b16 %v6301
    %v6985 = vunpack.c.l.b16 %v6302
    %v6986 = vunpack.c.h.b16 %v6302
    %v6987 = vunpack.c.l.b16 %v6303
    %v6988 = vunpack.c.l.b16 %v6304
    %v6989 = vunpack.c.h.b16 %v6304
    %v6990 = vunpack.c.l.b16 %v6305
    %v6991 = vunpack.c.h.b16 %v6305
    %v6992 = vunpack.c.l.b16 %v6306
    %v6993 = vunpack.c.h.b16 %v6306
    %v6994 = vunpack.c.l.b16 %v6307
    %v6995 = vunpack.c.l.b16 %v6308
    %v6996 = vunpack.c.h.b16 %v6308
    %v6997 = vunpack.c.l.b16 %v6309
    %v6998 = vunpack.c.h.b16 %v6309
    %v6999 = vunpack.c.l.b16 %v6310
    %v7000 = vunpack.c.h.b16 %v6310
    %v7001 = vunpack.c.l.b16 %v6311
    %v7002 = vunpack.c.l.b16 %v6312
    %v7003 = vunpack.c.h.b16 %v6312
    %v7004 = vunpack.c.l.b16 %v6313
    %v7005 = vunpack.c.h.b16 %v6313
    %v7006 = vunpack.c.l.b16 %v6314
    %v7007 = vunpack.c.h.b16 %v6314
    %v7008 = vunpack.c.l.b16 %v6315
    %v7009 = vunpack.c.l.b16 %v6316
    %v7010 = vunpack.c.h.b16 %v6316
    %v7011 = vunpack.c.l.b16 %v6317
    %v7012 = vunpack.c.h.b16 %v6317
    %v7013 = vunpack.c.l.b16 %v6318
    %v7014 = vunpack.c.h.b16 %v6318
    %v7015 = vunpack.c.l.b16 %v6319
    %v7016 = vunpack.c.l.b16 %v6320
    %v7017 = vunpack.c.h.b16 %v6320
    %v7018 = vunpack.c.l.b16 %v6321
    %v7019 = vunpack.c.h.b16 %v6321
    %v7020 = vunpack.c.l.b16 %v6322
    %v7021 = vunpack.c.h.b16 %v6322
    %v7022 = vunpack.c.l.b16 %v6323
    %v7023 = vunpack.c.l.b16 %v6324
    %v7024 = vunpack.c.h.b16 %v6324
    %v7025 = vunpack.c.l.b16 %v6325
    %v7026 = vunpack.c.h.b16 %v6325
    %v7027 = vunpack.c.l.b16 %v6326
    %v7028 = vunpack.c.h.b16 %v6326
    %v7029 = vunpack.c.l.b16 %v6327
    %v7030 = vunpack.c.l.b16 %v6328
    %v7031 = vunpack.c.h.b16 %v6328
    %v7032 = vunpack.c.l.b16 %v6329
    %v7033 = vunpack.c.h.b16 %v6329
    %v7034 = vunpack.c.l.b16 %v6330
    %v7035 = vunpack.c.h.b16 %v6330
    %v7036 = vunpack.c.l.b16 %v6331
    %v7037 = vunpack.c.l.b16 %v6332
    %v7038 = vunpack.c.h.b16 %v6332
    %v7039 = vunpack.c.l.b16 %v6333
    %v7040 = vunpack.c.h.b16 %v6333
    %v7041 = vunpack.c.l.b16 %v6334
    %v7042 = vunpack.c.h.b16 %v6334
    %v7043 = vunpack.c.l.b16 %v6335
    %v7044 = vunpack.c.l.b16 %v6336
    %v7045 = vunpack.c.h.b16 %v6336
    %v7046 = vunpack.c.l.b16 %v6337
    %v7047 = vunpack.c.h.b16 %v6337
    %v7048 = vunpack.c.l.b16 %v6338
    %v7049 = vunpack.c.h.b16 %v6338
    %v7050 = vunpack.c.l.b16 %v6339
    %v7051 = vunpack.c.l.b16 %v6340
    %v7052 = vunpack.c.h.b16 %v6340
    %v7053 = vunpack.c.l.b16 %v6341
    %v7054 = vunpack.c.h.b16 %v6341
    %v7055 = vunpack.c.l.b16 %v6342
    %v7056 = vunpack.c.h.b16 %v6342
    %v7057 = vunpack.c.l.b16 %v6343
    %v7058 = vunpack.c.l.b16 %v6344
    %v7059 = vunpack.c.h.b16 %v6344
    %v7060 = vunpack.c.l.b16 %v6345
    %v7061 = vunpack.c.h.b16 %v6345
    %v7062 = vunpack.c.l.b16 %v6346
    %v7063 = vunpack.c.h.b16 %v6346
    %v7064 = vunpack.c.l.b16 %v6347
    %v7065 = vunpack.c.l.b16 %v6348
    %v7066 = vunpack.c.h.b16 %v6348
    %v7067 = vunpack.c.l.b16 %v6349
    %v7068 = vunpack.c.h.b16 %v6349
    %v7069 = vunpack.c.l.b16 %v6350
    %v7070 = vunpack.c.h.b16 %v6350
    %v7071 = vunpack.c.l.b16 %v6351
    %v7072 = vunpack.c.l.b16 %v6352
    %v7073 = vunpack.c.h.b16 %v6352
    %v7074 = vunpack.c.l.b16 %v6353
    %v7075 = vunpack.c.h.b16 %v6353
    %v7076 = vunpack.c.l.b16 %v6354
    %v7077 = vunpack.c.h.b16 %v6354
    %v7078 = vunpack.c.l.b16 %v6355
    %v7079 = vunpack.c.l.b16 %v6356
    %v7080 = vunpack.c.h.b16 %v6356
    %v7081 = vunpack.c.l.b16 %v6357
    %v7082 = vunpack.c.h.b16 %v6357
    %v7083 = vunpack.c.l.b16 %v6358
    %v7084 = vunpack.c.h.b16 %v6358
    %v7085 = vunpack.c.l.b16 %v6359
    %v7086 = vunpack.c.l.b16 %v6360
    %v7087 = vunpack.c.h.b16 %v6360
    %v7088 = vunpack.c.l.b16 %v6361
    %v7089 = vunpack.c.h.b16 %v6361
    %v7090 = vunpack.c.l.b16 %v6362
    %v7091 = vunpack.c.h.b16 %v6362
    %v7092 = vunpack.c.l.b16 %v6363
    %v7093 = vunpack.c.l.b16 %v6364
    %v7094 = vunpack.c.h.b16 %v6364
    %v7095 = vunpack.c.l.b16 %v6365
    %v7096 = vunpack.c.h.b16 %v6365
    %v7097 = vunpack.c.l.b16 %v6366
    %v7098 = vunpack.c.h.b16 %v6366
    %v7099 = vunpack.c.l.b16 %v6367
    %v7100 = vunpack.c.l.b16 %v6368
    %v7101 = vunpack.c.h.b16 %v6368
    %v7102 = vunpack.c.l.b16 %v6369
    %v7103 = vunpack.c.h.b16 %v6369
    %v7104 = vunpack.c.l.b16 %v6370
    %v7105 = vunpack.c.h.b16 %v6370
    %v7106 = vunpack.c.l.b16 %v6371
    %v7107 = vunpack.c.l.b16 %v6372
    %v7108 = vunpack.c.h.b16 %v6372
    %v7109 = vunpack.c.l.b16 %v6373
    %v7110 = vunpack.c.h.b16 %v6373
    %v7111 = vunpack.c.l.b16 %v6374
    %v7112 = vunpack.c.h.b16 %v6374
    %v7113 = vunpack.c.l.b16 %v6375
    %v7114 = vunpack.c.l.b16 %v6376
    %v7115 = vunpack.c.h.b16 %v6376
    %v7116 = vunpack.c.l.b16 %v6377
    %v7117 = vunpack.c.h.b16 %v6377
    %v7118 = vunpack.c.l.b16 %v6378
    %v7119 = vunpack.c.h.b16 %v6378
    %v7120 = vunpack.c.l.b16 %v6379
    %v7121 = vpack.c.b16 %v6680, %v6673
    %v7122 = vpack.c.b16 %v6681, %v6674
    %v7123 = vpack.c.b16 %v6682, %v6675
    %v7124 = vpack.c.b16 %v6683, %v6676
    %v7125 = vpack.c.b16 %v6684, %v6677
    %v7126 = vpack.c.b16 %v6685, %v6678
    %v7127 = vpack.c.b16 %v6686, %v6679
    %v7128 = vpack.c.b16 %v6694, %v6687
    %v7129 = vpack.c.b16 %v6695, %v6688
    %v7130 = vpack.c.b16 %v6696, %v6689
    %v7131 = vpack.c.b16 %v6697, %v6690
    %v7132 = vpack.c.b16 %v6698, %v6691
    %v7133 = vpack.c.b16 %v6699, %v6692
    %v7134 = vpack.c.b16 %v6700, %v6693
    %v7135 = vpack.c.b16 %v6708, %v6701
    %v7136 = vpack.c.b16 %v6709, %v6702
    %v7137 = vpack.c.b16 %v6710, %v6703
    %v7138 = vpack.c.b16 %v6711, %v6704
    %v7139 = vpack.c.b16 %v6712, %v6705
    %v7140 = vpack.c.b16 %v6713, %v6706
    %v7141 = vpack.c.b16 %v6714, %v6707
    %v7142 = vpack.c.b16 %v6722, %v6715
    %v7143 = vpack.c.b16 %v6723, %v6716
    %v7144 = vpack.c.b16 %v6724, %v6717
    %v7145 = vpack.c.b16 %v6725, %v6718
    %v7146 = vpack.c.b16 %v6726, %v6719
    %v7147 = vpack.c.b16 %v6727, %v6720
    %v7148 = vpack.c.b16 %v6728, %v6721
    %v7149 = vpack.c.b16 %v6736, %v6729
    %v7150 = vpack.c.b16 %v6737, %v6730
    %v7151 = vpack.c.b16 %v6738, %v6731
    %v7152 = vpack.c.b16 %v6739, %v6732
    %v7153 = vpack.c.b16 %v6740, %v6733
    %v7154 = vpack.c.b16 %v6741, %v6734
    %v7155 = vpack.c.b16 %v6742, %v6735
    %v7156 = vpack.c.b16 %v6750, %v6743
    %v7157 = vpack.c.b16 %v6751, %v6744
    %v7158 = vpack.c.b16 %v6752, %v6745
    %v7159 = vpack.c.b16 %v6753, %v6746
    %v7160 = vpack.c.b16 %v6754, %v6747
    %v7161 = vpack.c.b16 %v6755, %v6748
    %v7162 = vpack.c.b16 %v6756, %v6749
    %v7163 = vpack.c.b16 %v6764, %v6757
    %v7164 = vpack.c.b16 %v6765, %v6758
    %v7165 = vpack.c.b16 %v6766, %v6759
    %v7166 = vpack.c.b16 %v6767, %v6760
    %v7167 = vpack.c.b16 %v6768, %v6761
    %v7168 = vpack.c.b16 %v6769, %v6762
    %v7169 = vpack.c.b16 %v6770, %v6763
    %v7170 = vpack.c.b16 %v6778, %v6771
    %v7171 = vpack.c.b16 %v6779, %v6772
    %v7172 = vpack.c.b16 %v6780, %v6773
    %v7173 = vpack.c.b16 %v6781, %v6774
    %v7174 = vpack.c.b16 %v6782, %v6775
    %v7175 = vpack.c.b16 %v6783, %v6776
    %v7176 = vpack.c.b16 %v6784, %v6777
    %v7177 = vpack.c.b16 %v6792, %v6785
    %v7178 = vpack.c.b16 %v6793, %v6786
    %v7179 = vpack.c.b16 %v6794, %v6787
    %v7180 = vpack.c.b16 %v6795, %v6788
    %v7181 = vpack.c.b16 %v6796, %v6789
    %v7182 = vpack.c.b16 %v6797, %v6790
    %v7183 = vpack.c.b16 %v6798, %v6791
    %v7184 = vpack.c.b16 %v6806, %v6799
    %v7185 = vpack.c.b16 %v6807, %v6800
    %v7186 = vpack.c.b16 %v6808, %v6801
    %v7187 = vpack.c.b16 %v6809, %v6802
    %v7188 = vpack.c.b16 %v6810, %v6803
    %v7189 = vpack.c.b16 %v6811, %v6804
    %v7190 = vpack.c.b16 %v6812, %v6805
    %v7191 = vpack.c.b16 %v6820, %v6813
    %v7192 = vpack.c.b16 %v6821, %v6814
    %v7193 = vpack.c.b16 %v6822, %v6815
    %v7194 = vpack.c.b16 %v6823, %v6816
    %v7195 = vpack.c.b16 %v6824, %v6817
    %v7196 = vpack.c.b16 %v6825, %v6818
    %v7197 = vpack.c.b16 %v6826, %v6819
    %v7198 = vpack.c.b16 %v6834, %v6827
    %v7199 = vpack.c.b16 %v6835, %v6828
    %v7200 = vpack.c.b16 %v6836, %v6829
    %v7201 = vpack.c.b16 %v6837, %v6830
    %v7202 = vpack.c.b16 %v6838, %v6831
    %v7203 = vpack.c.b16 %v6839, %v6832
    %v7204 = vpack.c.b16 %v6840, %v6833
    %v7205 = vpack.c.b16 %v6848, %v6841
    %v7206 = vpack.c.b16 %v6849, %v6842
    %v7207 = vpack.c.b16 %v6850, %v6843
    %v7208 = vpack.c.b16 %v6851, %v6844
    %v7209 = vpack.c.b16 %v6852, %v6845
    %v7210 = vpack.c.b16 %v6853, %v6846
    %v7211 = vpack.c.b16 %v6854, %v6847
    %v7212 = vpack.c.b16 %v6862, %v6855
    %v7213 = vpack.c.b16 %v6863, %v6856
    %v7214 = vpack.c.b16 %v6864, %v6857
    %v7215 = vpack.c.b16 %v6865, %v6858
    %v7216 = vpack.c.b16 %v6866, %v6859
    %v7217 = vpack.c.b16 %v6867, %v6860
    %v7218 = vpack.c.b16 %v6868, %v6861
    %v7219 = vpack.c.b16 %v6876, %v6869
    %v7220 = vpack.c.b16 %v6877, %v6870
    %v7221 = vpack.c.b16 %v6878, %v6871
    %v7222 = vpack.c.b16 %v6879, %v6872
    %v7223 = vpack.c.b16 %v6880, %v6873
    %v7224 = vpack.c.b16 %v6881, %v6874
    %v7225 = vpack.c.b16 %v6882, %v6875
    %v7226 = vpack.c.b16 %v6890, %v6883
    %v7227 = vpack.c.b16 %v6891, %v6884
    %v7228 = vpack.c.b16 %v6892, %v6885
    %v7229 = vpack.c.b16 %v6893, %v6886
    %v7230 = vpack.c.b16 %v6894, %v6887
    %v7231 = vpack.c.b16 %v6895, %v6888
    %v7232 = vpack.c.b16 %v6896, %v6889
    %v7233 = vpack.c.b16 %v6904, %v6897
    %v7234 = vpack.c.b16 %v6905, %v6898
    %v7235 = vpack.c.b16 %v6906, %v6899
    %v7236 = vpack.c.b16 %v6907, %v6900
    %v7237 = vpack.c.b16 %v6908, %v6901
    %v7238 = vpack.c.b16 %v6909, %v6902
    %v7239 = vpack.c.b16 %v6910, %v6903
    %v7240 = vpack.c.b16 %v6918, %v6911
    %v7241 = vpack.c.b16 %v6919, %v6912
    %v7242 = vpack.c.b16 %v6920, %v6913
    %v7243 = vpack.c.b16 %v6921, %v6914
    %v7244 = vpack.c.b16 %v6922, %v6915
    %v7245 = vpack.c.b16 %v6923, %v6916
    %v7246 = vpack.c.b16 %v6924, %v6917
    %v7247 = vpack.c.b16 %v6932, %v6925
    %v7248 = vpack.c.b16 %v6933, %v6926
    %v7249 = vpack.c.b16 %v6934, %v6927
    %v7250 = vpack.c.b16 %v6935, %v6928
    %v7251 = vpack.c.b16 %v6936, %v6929
    %v7252 = vpack.c.b16 %v6937, %v6930
    %v7253 = vpack.c.b16 %v6938, %v6931
    %v7254 = vpack.c.b16 %v6946, %v6939
    %v7255 = vpack.c.b16 %v6947, %v6940
    %v7256 = vpack.c.b16 %v6948, %v6941
    %v7257 = vpack.c.b16 %v6949, %v6942
    %v7258 = vpack.c.b16 %v6950, %v6943
    %v7259 = vpack.c.b16 %v6951, %v6944
    %v7260 = vpack.c.b16 %v6952, %v6945
    %v7261 = vpack.c.b16 %v6960, %v6953
    %v7262 = vpack.c.b16 %v6961, %v6954
    %v7263 = vpack.c.b16 %v6962, %v6955
    %v7264 = vpack.c.b16 %v6963, %v6956
    %v7265 = vpack.c.b16 %v6964, %v6957
    %v7266 = vpack.c.b16 %v6965, %v6958
    %v7267 = vpack.c.b16 %v6966, %v6959
    %v7268 = vpack.c.b16 %v6974, %v6967
    %v7269 = vpack.c.b16 %v6975, %v6968
    %v7270 = vpack.c.b16 %v6976, %v6969
    %v7271 = vpack.c.b16 %v6977, %v6970
    %v7272 = vpack.c.b16 %v6978, %v6971
    %v7273 = vpack.c.b16 %v6979, %v6972
    %v7274 = vpack.c.b16 %v6980, %v6973
    %v7275 = vpack.c.b16 %v6988, %v6981
    %v7276 = vpack.c.b16 %v6989, %v6982
    %v7277 = vpack.c.b16 %v6990, %v6983
    %v7278 = vpack.c.b16 %v6991, %v6984
    %v7279 = vpack.c.b16 %v6992, %v6985
    %v7280 = vpack.c.b16 %v6993, %v6986
    %v7281 = vpack.c.b16 %v6994, %v6987
    %v7282 = vpack.c.b16 %v7002, %v6995
    %v7283 = vpack.c.b16 %v7003, %v6996
    %v7284 = vpack.c.b16 %v7004, %v6997
    %v7285 = vpack.c.b16 %v7005, %v6998
    %v7286 = vpack.c.b16 %v7006, %v6999
    %v7287 = vpack.c.b16 %v7007, %v7000
    %v7288 = vpack.c.b16 %v7008, %v7001
    %v7289 = vpack.c.b16 %v7016, %v7009
    %v7290 = vpack.c.b16 %v7017, %v7010
    %v7291 = vpack.c.b16 %v7018, %v7011
    %v7292 = vpack.c.b16 %v7019, %v7012
    %v7293 = vpack.c.b16 %v7020, %v7013
    %v7294 = vpack.c.b16 %v7021, %v7014
    %v7295 = vpack.c.b16 %v7022, %v7015
    %v7296 = vpack.c.b16 %v7030, %v7023
    %v7297 = vpack.c.b16 %v7031, %v7024
    %v7298 = vpack.c.b16 %v7032, %v7025
    %v7299 = vpack.c.b16 %v7033, %v7026
    %v7300 = vpack.c.b16 %v7034, %v7027
    %v7301 = vpack.c.b16 %v7035, %v7028
    %v7302 = vpack.c.b16 %v7036, %v7029
    %v7303 = vpack.c.b16 %v7044, %v7037
    %v7304 = vpack.c.b16 %v7045, %v7038
    %v7305 = vpack.c.b16 %v7046, %v7039
    %v7306 = vpack.c.b16 %v7047, %v7040
    %v7307 = vpack.c.b16 %v7048, %v7041
    %v7308 = vpack.c.b16 %v7049, %v7042
    %v7309 = vpack.c.b16 %v7050, %v7043
    %v7310 = vpack.c.b16 %v7058, %v7051
    %v7311 = vpack.c.b16 %v7059, %v7052
    %v7312 = vpack.c.b16 %v7060, %v7053
    %v7313 = vpack.c.b16 %v7061, %v7054
    %v7314 = vpack.c.b16 %v7062, %v7055
    %v7315 = vpack.c.b16 %v7063, %v7056
    %v7316 = vpack.c.b16 %v7064, %v7057
    %v7317 = vpack.c.b16 %v7072, %v7065
    %v7318 = vpack.c.b16 %v7073, %v7066
    %v7319 = vpack.c.b16 %v7074, %v7067
    %v7320 = vpack.c.b16 %v7075, %v7068
    %v7321 = vpack.c.b16 %v7076, %v7069
    %v7322 = vpack.c.b16 %v7077, %v7070
    %v7323 = vpack.c.b16 %v7078, %v7071
    %v7324 = vpack.c.b16 %v7086, %v7079
    %v7325 = vpack.c.b16 %v7087, %v7080
    %v7326 = vpack.c.b16 %v7088, %v7081
    %v7327 = vpack.c.b16 %v7089, %v7082
    %v7328 = vpack.c.b16 %v7090, %v7083
    %v7329 = vpack.c.b16 %v7091, %v7084
    %v7330 = vpack.c.b16 %v7092, %v7085
    %v7331 = vpack.c.b16 %v7100, %v7093
    %v7332 = vpack.c.b16 %v7101, %v7094
    %v7333 = vpack.c.b16 %v7102, %v7095
    %v7334 = vpack.c.b16 %v7103, %v7096
    %v7335 = vpack.c.b16 %v7104, %v7097
    %v7336 = vpack.c.b16 %v7105, %v7098
    %v7337 = vpack.c.b16 %v7106, %v7099
    %v7338 = vpack.c.b16 %v7114, %v7107
    %v7339 = vpack.c.b16 %v7115, %v7108
    %v7340 = vpack.c.b16 %v7116, %v7109
    %v7341 = vpack.c.b16 %v7117, %v7110
    %v7342 = vpack.c.b16 %v7118, %v7111
    %v7343 = vpack.c.b16 %v7119, %v7112
    %v7344 = vpack.c.b16 %v7120, %v7113
    %7569 = vmatprep.subr.bf16.mxu0 %v7171
    %7570 = vmatpush1.bf16.msra.mxu0 %v7170
    %7571 = vmatprep.subr.bf16.mxu0 %v7164
    %7572 = vmatpush1.bf16.msra.mxu0 %v7163
    %7573 = vmatprep.subr.bf16.mxu0 %v7157
    %7574 = vmatpush1.bf16.msra.mxu0 %v7156
    %7575 = vmatprep.subr.bf16.mxu0 %v7150
    %7576 = vmatpush1.bf16.msra.mxu0 %v7149
    %7577 = vmatprep.subr.bf16.mxu0 %v7143
    %7578 = vmatpush1.bf16.msra.mxu0 %v7142
    %7579 = vmatprep.subr.bf16.mxu0 %v7136
    %7580 = vmatpush1.bf16.msra.mxu0 %v7135
    %7581 = vmatprep.subr.bf16.mxu0 %v7129
    %7582 = vmatpush1.bf16.msra.mxu0 %v7128
    %7583 = vmatprep.subr.bf16.mxu0 %v7122
    %7584 = vmatpush1.bf16.msra.mxu0 %v7121
    %7585 = vmatprep.subr.bf16.mxu0 %v7227
    %7586 = vmatpush2.bf16.msra.mxu0 %v7226
    %7587 = vmatprep.subr.bf16.mxu0 %v7220
    %7588 = vmatpush2.bf16.msra.mxu0 %v7219
    %7589 = vmatprep.subr.bf16.mxu0 %v7213
    %7590 = vmatpush2.bf16.msra.mxu0 %v7212
    %7591 = vmatprep.subr.bf16.mxu0 %v7206
    %7592 = vmatpush2.bf16.msra.mxu0 %v7205
    %7593 = vmatprep.subr.bf16.mxu0 %v7199
    %7594 = vmatpush2.bf16.msra.mxu0 %v7198
    %7595 = vmatprep.subr.bf16.mxu0 %v7192
    %7596 = vmatpush2.bf16.msra.mxu0 %v7191
    %7597 = vmatprep.subr.bf16.mxu0 %v7185
    %7598 = vmatpush2.bf16.msra.mxu0 %v7184
    %7599 = vmatprep.subr.bf16.mxu0 %v7178
    %7600 = vmatpush2.bf16.msra.mxu0 %v7177
    %7601 = vmatprep.mubr.bf16.mxu0 %v6109
    %7602 = vmatmul.mubr.bf16.gmra.mxu0 %v6108
    %v7603 = vpop.f32.mrf.mxu0
    %v7604 = vadd.f32 %v6385, %v7603
    %v7605 = vpop.f32.mrf.mxu0
    %v7606 = vadd.f32 %v6389, %v7605
    %v7607 = vpop.f32.mrf.mxu0
    %v7608 = vadd.f32 %v6385, %v7607
    %v7609 = vpop.f32.mrf.mxu0
    %v7610 = vadd.f32 %v6389, %v7609
    %7611 = vmatprep.mubr.bf16.mxu0 %v6113
    %7612 = vmatmul.mubr.bf16.gmra.mxu0 %v6112
    %v7613 = vpop.f32.mrf.mxu0
    %v7614 = vadd.f32 %v6385, %v7613
    %v7615 = vpop.f32.mrf.mxu0
    %v7616 = vadd.f32 %v6389, %v7615
    %v7617 = vpop.f32.mrf.mxu0
    %v7618 = vadd.f32 %v6385, %v7617
    %v7619 = vpop.f32.mrf.mxu0
    %v7620 = vadd.f32 %v6389, %v7619
    %7621 = vmatprep.mubr.bf16.mxu0 %v6117
    %7622 = vmatmul.mubr.bf16.gmra.mxu0 %v6116
    %v7623 = vpop.f32.mrf.mxu0
    %v7624 = vadd.f32 %v6385, %v7623
    %v7625 = vpop.f32.mrf.mxu0
    %v7626 = vadd.f32 %v6389, %v7625
    %v7627 = vpop.f32.mrf.mxu0
    %v7628 = vadd.f32 %v6385, %v7627
    %v7629 = vpop.f32.mrf.mxu0
    %v7630 = vadd.f32 %v6389, %v7629
    %7631 = vmatprep.mubr.bf16.mxu0 %v6121
    %7632 = vmatmul.mubr.bf16.gmra.mxu0 %v6120
    %v7633 = vpop.f32.mrf.mxu0
    %v7634 = vadd.f32 %v6385, %v7633
    %v7635 = vpop.f32.mrf.mxu0
    %v7636 = vadd.f32 %v6389, %v7635
    %v7637 = vpop.f32.mrf.mxu0
    %v7638 = vadd.f32 %v6385, %v7637
    %v7639 = vpop.f32.mrf.mxu0
    %v7640 = vadd.f32 %v6389, %v7639
    %7641 = vdwg.mxu0
    %7642 = vmatprep.subr.bf16.mxu0 %v7283
    %7643 = vmatpush1.bf16.msra.mxu0 %v7282
    %7644 = vmatprep.subr.bf16.mxu0 %v7276
    %7645 = vmatpush1.bf16.msra.mxu0 %v7275
    %7646 = vmatprep.subr.bf16.mxu0 %v7269
    %7647 = vmatpush1.bf16.msra.mxu0 %v7268
    %7648 = vmatprep.subr.bf16.mxu0 %v7262
    %7649 = vmatpush1.bf16.msra.mxu0 %v7261
    %7650 = vmatprep.subr.bf16.mxu0 %v7255
    %7651 = vmatpush1.bf16.msra.mxu0 %v7254
    %7652 = vmatprep.subr.bf16.mxu0 %v7248
    %7653 = vmatpush1.bf16.msra.mxu0 %v7247
    %7654 = vmatprep.subr.bf16.mxu0 %v7241
    %7655 = vmatpush1.bf16.msra.mxu0 %v7240
    %7656 = vmatprep.subr.bf16.mxu0 %v7234
    %7657 = vmatpush1.bf16.msra.mxu0 %v7233
    %7658 = vmatprep.subr.bf16.mxu0 %v7339
    %7659 = vmatpush2.bf16.msra.mxu0 %v7338
    %7660 = vmatprep.subr.bf16.mxu0 %v7332
    %7661 = vmatpush2.bf16.msra.mxu0 %v7331
    %7662 = vmatprep.subr.bf16.mxu0 %v7325
    %7663 = vmatpush2.bf16.msra.mxu0 %v7324
    %7664 = vmatprep.subr.bf16.mxu0 %v7318
    %7665 = vmatpush2.bf16.msra.mxu0 %v7317
    %7666 = vmatprep.subr.bf16.mxu0 %v7311
    %7667 = vmatpush2.bf16.msra.mxu0 %v7310
    %7668 = vmatprep.subr.bf16.mxu0 %v7304
    %7669 = vmatpush2.bf16.msra.mxu0 %v7303
    %7670 = vmatprep.subr.bf16.mxu0 %v7297
    %7671 = vmatpush2.bf16.msra.mxu0 %v7296
    %7672 = vmatprep.subr.bf16.mxu0 %v7290
    %7673 = vmatpush2.bf16.msra.mxu0 %v7289
    %7674 = vmatprep.mubr.bf16.mxu0 %v6111
    %7675 = vmatmul.mubr.bf16.gmra.mxu0 %v6110
    %v7676 = vpop.f32.mrf.mxu0
    %v7677 = vadd.f32 %v7604, %v7676
    %v7678 = vpop.f32.mrf.mxu0
    %v7679 = vadd.f32 %v7606, %v7678
    %v7680 = vpop.f32.mrf.mxu0
    %v7681 = vadd.f32 %v7608, %v7680
    %v7682 = vpop.f32.mrf.mxu0
    %v7683 = vadd.f32 %v7610, %v7682
    %7684 = vmatprep.mubr.bf16.mxu0 %v6115
    %7685 = vmatmul.mubr.bf16.gmra.mxu0 %v6114
    %v7686 = vpop.f32.mrf.mxu0
    %v7687 = vadd.f32 %v7614, %v7686
    %v7688 = vpop.f32.mrf.mxu0
    %v7689 = vadd.f32 %v7616, %v7688
    %v7690 = vpop.f32.mrf.mxu0
    %v7691 = vadd.f32 %v7618, %v7690
    %v7692 = vpop.f32.mrf.mxu0
    %v7693 = vadd.f32 %v7620, %v7692
    %7694 = vmatprep.mubr.bf16.mxu0 %v6119
    %7695 = vmatmul.mubr.bf16.gmra.mxu0 %v6118
    %v7696 = vpop.f32.mrf.mxu0
    %v7697 = vadd.f32 %v7624, %v7696
    %v7698 = vpop.f32.mrf.mxu0
    %v7699 = vadd.f32 %v7626, %v7698
    %v7700 = vpop.f32.mrf.mxu0
    %v7701 = vadd.f32 %v7628, %v7700
    %v7702 = vpop.f32.mrf.mxu0
    %v7703 = vadd.f32 %v7630, %v7702
    %7704 = vmatprep.mubr.bf16.mxu0 %v6123
    %7705 = vmatmul.mubr.bf16.gmra.mxu0 %v6122
    %v7706 = vpop.f32.mrf.mxu0
    %v7707 = vadd.f32 %v7634, %v7706
    %v7708 = vpop.f32.mrf.mxu0
    %v7709 = vadd.f32 %v7636, %v7708
    %v7710 = vpop.f32.mrf.mxu0
    %v7711 = vadd.f32 %v7638, %v7710
    %v7712 = vpop.f32.mrf.mxu0
    %v7713 = vadd.f32 %v7640, %v7712
    %7714 = vdwg.mxu0
    %7715 = vmatprep.subr.bf16.mxu0 %v7173
    %7716 = vmatpush1.bf16.msra.mxu0 %v7172
    %7717 = vmatprep.subr.bf16.mxu0 %v7166
    %7718 = vmatpush1.bf16.msra.mxu0 %v7165
    %7719 = vmatprep.subr.bf16.mxu0 %v7159
    %7720 = vmatpush1.bf16.msra.mxu0 %v7158
    %7721 = vmatprep.subr.bf16.mxu0 %v7152
    %7722 = vmatpush1.bf16.msra.mxu0 %v7151
    %7723 = vmatprep.subr.bf16.mxu0 %v7145
    %7724 = vmatpush1.bf16.msra.mxu0 %v7144
    %7725 = vmatprep.subr.bf16.mxu0 %v7138
    %7726 = vmatpush1.bf16.msra.mxu0 %v7137
    %7727 = vmatprep.subr.bf16.mxu0 %v7131
    %7728 = vmatpush1.bf16.msra.mxu0 %v7130
    %7729 = vmatprep.subr.bf16.mxu0 %v7124
    %7730 = vmatpush1.bf16.msra.mxu0 %v7123
    %7731 = vmatprep.subr.bf16.mxu0 %v7229
    %7732 = vmatpush2.bf16.msra.mxu0 %v7228
    %7733 = vmatprep.subr.bf16.mxu0 %v7222
    %7734 = vmatpush2.bf16.msra.mxu0 %v7221
    %7735 = vmatprep.subr.bf16.mxu0 %v7215
    %7736 = vmatpush2.bf16.msra.mxu0 %v7214
    %7737 = vmatprep.subr.bf16.mxu0 %v7208
    %7738 = vmatpush2.bf16.msra.mxu0 %v7207
    %7739 = vmatprep.subr.bf16.mxu0 %v7201
    %7740 = vmatpush2.bf16.msra.mxu0 %v7200
    %7741 = vmatprep.subr.bf16.mxu0 %v7194
    %7742 = vmatpush2.bf16.msra.mxu0 %v7193
    %7743 = vmatprep.subr.bf16.mxu0 %v7187
    %7744 = vmatpush2.bf16.msra.mxu0 %v7186
    %7745 = vmatprep.subr.bf16.mxu0 %v7180
    %7746 = vmatpush2.bf16.msra.mxu0 %v7179
    %7747 = vmatprep.mubr.bf16.mxu0 %v6109
    %7748 = vmatmul.mubr.bf16.gmra.mxu0 %v6108
    %v7749 = vpop.f32.mrf.mxu0
    %v7750 = vadd.f32 %v6393, %v7749
    %v7751 = vpop.f32.mrf.mxu0
    %v7752 = vadd.f32 %v6397, %v7751
    %v7753 = vpop.f32.mrf.mxu0
    %v7754 = vadd.f32 %v6393, %v7753
    %v7755 = vpop.f32.mrf.mxu0
    %v7756 = vadd.f32 %v6397, %v7755
    %7757 = vmatprep.mubr.bf16.mxu0 %v6113
    %7758 = vmatmul.mubr.bf16.gmra.mxu0 %v6112
    %v7759 = vpop.f32.mrf.mxu0
    %v7760 = vadd.f32 %v6393, %v7759
    %v7761 = vpop.f32.mrf.mxu0
    %v7762 = vadd.f32 %v6397, %v7761
    %v7763 = vpop.f32.mrf.mxu0
    %v7764 = vadd.f32 %v6393, %v7763
    %v7765 = vpop.f32.mrf.mxu0
    %v7766 = vadd.f32 %v6397, %v7765
    %7767 = vmatprep.mubr.bf16.mxu0 %v6117
    %7768 = vmatmul.mubr.bf16.gmra.mxu0 %v6116
    %v7769 = vpop.f32.mrf.mxu0
    %v7770 = vadd.f32 %v6393, %v7769
    %v7771 = vpop.f32.mrf.mxu0
    %v7772 = vadd.f32 %v6397, %v7771
    %v7773 = vpop.f32.mrf.mxu0
    %v7774 = vadd.f32 %v6393, %v7773
    %v7775 = vpop.f32.mrf.mxu0
    %v7776 = vadd.f32 %v6397, %v7775
    %7777 = vmatprep.mubr.bf16.mxu0 %v6121
    %7778 = vmatmul.mubr.bf16.gmra.mxu0 %v6120
    %v7779 = vpop.f32.mrf.mxu0
    %v7780 = vadd.f32 %v6393, %v7779
    %v7781 = vpop.f32.mrf.mxu0
    %v7782 = vadd.f32 %v6397, %v7781
    %v7783 = vpop.f32.mrf.mxu0
    %v7784 = vadd.f32 %v6393, %v7783
    %v7785 = vpop.f32.mrf.mxu0
    %v7786 = vadd.f32 %v6397, %v7785
    %7787 = vdwg.mxu0
    %7788 = vmatprep.subr.bf16.mxu0 %v7285
    %7789 = vmatpush1.bf16.msra.mxu0 %v7284
    %7790 = vmatprep.subr.bf16.mxu0 %v7278
    %7791 = vmatpush1.bf16.msra.mxu0 %v7277
    %7792 = vmatprep.subr.bf16.mxu0 %v7271
    %7793 = vmatpush1.bf16.msra.mxu0 %v7270
    %7794 = vmatprep.subr.bf16.mxu0 %v7264
    %7795 = vmatpush1.bf16.msra.mxu0 %v7263
    %7796 = vmatprep.subr.bf16.mxu0 %v7257
    %7797 = vmatpush1.bf16.msra.mxu0 %v7256
    %7798 = vmatprep.subr.bf16.mxu0 %v7250
    %7799 = vmatpush1.bf16.msra.mxu0 %v7249
    %7800 = vmatprep.subr.bf16.mxu0 %v7243
    %7801 = vmatpush1.bf16.msra.mxu0 %v7242
    %7802 = vmatprep.subr.bf16.mxu0 %v7236
    %7803 = vmatpush1.bf16.msra.mxu0 %v7235
    %7804 = vmatprep.subr.bf16.mxu0 %v7341
    %7805 = vmatpush2.bf16.msra.mxu0 %v7340
    %7806 = vmatprep.subr.bf16.mxu0 %v7334
    %7807 = vmatpush2.bf16.msra.mxu0 %v7333
    %7808 = vmatprep.subr.bf16.mxu0 %v7327
    %7809 = vmatpush2.bf16.msra.mxu0 %v7326
    %7810 = vmatprep.subr.bf16.mxu0 %v7320
    %7811 = vmatpush2.bf16.msra.mxu0 %v7319
    %7812 = vmatprep.subr.bf16.mxu0 %v7313
    %7813 = vmatpush2.bf16.msra.mxu0 %v7312
    %7814 = vmatprep.subr.bf16.mxu0 %v7306
    %7815 = vmatpush2.bf16.msra.mxu0 %v7305
    %7816 = vmatprep.subr.bf16.mxu0 %v7299
    %7817 = vmatpush2.bf16.msra.mxu0 %v7298
    %7818 = vmatprep.subr.bf16.mxu0 %v7292
    %7819 = vmatpush2.bf16.msra.mxu0 %v7291
    %7820 = vmatprep.mubr.bf16.mxu0 %v6111
    %7821 = vmatmul.mubr.bf16.gmra.mxu0 %v6110
    %v7822 = vpop.f32.mrf.mxu0
    %v7823 = vadd.f32 %v7750, %v7822
    %v7824 = vpop.f32.mrf.mxu0
    %v7825 = vadd.f32 %v7752, %v7824
    %v7826 = vpop.f32.mrf.mxu0
    %v7827 = vadd.f32 %v7754, %v7826
    %v7828 = vpop.f32.mrf.mxu0
    %v7829 = vadd.f32 %v7756, %v7828
    %7830 = vmatprep.mubr.bf16.mxu0 %v6115
    %7831 = vmatmul.mubr.bf16.gmra.mxu0 %v6114
    %v7832 = vpop.f32.mrf.mxu0
    %v7833 = vadd.f32 %v7760, %v7832
    %v7834 = vpop.f32.mrf.mxu0
    %v7835 = vadd.f32 %v7762, %v7834
    %v7836 = vpop.f32.mrf.mxu0
    %v7837 = vadd.f32 %v7764, %v7836
    %v7838 = vpop.f32.mrf.mxu0
    %v7839 = vadd.f32 %v7766, %v7838
    %7840 = vmatprep.mubr.bf16.mxu0 %v6119
    %7841 = vmatmul.mubr.bf16.gmra.mxu0 %v6118
    %v7842 = vpop.f32.mrf.mxu0
    %v7843 = vadd.f32 %v7770, %v7842
    %v7844 = vpop.f32.mrf.mxu0
    %v7845 = vadd.f32 %v7772, %v7844
    %v7846 = vpop.f32.mrf.mxu0
    %v7847 = vadd.f32 %v7774, %v7846
    %v7848 = vpop.f32.mrf.mxu0
    %v7849 = vadd.f32 %v7776, %v7848
    %7850 = vmatprep.mubr.bf16.mxu0 %v6123
    %7851 = vmatmul.mubr.bf16.gmra.mxu0 %v6122
    %v7852 = vpop.f32.mrf.mxu0
    %v7853 = vadd.f32 %v7780, %v7852
    %v7854 = vpop.f32.mrf.mxu0
    %v7855 = vadd.f32 %v7782, %v7854
    %v7856 = vpop.f32.mrf.mxu0
    %v7857 = vadd.f32 %v7784, %v7856
    %v7858 = vpop.f32.mrf.mxu0
    %v7859 = vadd.f32 %v7786, %v7858
    %7860 = vdwg.mxu0
    %7861 = vmatprep.subr.bf16.mxu0 %v7175
    %7862 = vmatpush1.bf16.msra.mxu0 %v7174
    %7863 = vmatprep.subr.bf16.mxu0 %v7168
    %7864 = vmatpush1.bf16.msra.mxu0 %v7167
    %7865 = vmatprep.subr.bf16.mxu0 %v7161
    %7866 = vmatpush1.bf16.msra.mxu0 %v7160
    %7867 = vmatprep.subr.bf16.mxu0 %v7154
    %7868 = vmatpush1.bf16.msra.mxu0 %v7153
    %7869 = vmatprep.subr.bf16.mxu0 %v7147
    %7870 = vmatpush1.bf16.msra.mxu0 %v7146
    %7871 = vmatprep.subr.bf16.mxu0 %v7140
    %7872 = vmatpush1.bf16.msra.mxu0 %v7139
    %7873 = vmatprep.subr.bf16.mxu0 %v7133
    %7874 = vmatpush1.bf16.msra.mxu0 %v7132
    %7875 = vmatprep.subr.bf16.mxu0 %v7126
    %7876 = vmatpush1.bf16.msra.mxu0 %v7125
    %7877 = vmatprep.subr.bf16.mxu0 %v7231
    %7878 = vmatpush2.bf16.msra.mxu0 %v7230
    %7879 = vmatprep.subr.bf16.mxu0 %v7224
    %7880 = vmatpush2.bf16.msra.mxu0 %v7223
    %7881 = vmatprep.subr.bf16.mxu0 %v7217
    %7882 = vmatpush2.bf16.msra.mxu0 %v7216
    %7883 = vmatprep.subr.bf16.mxu0 %v7210
    %7884 = vmatpush2.bf16.msra.mxu0 %v7209
    %7885 = vmatprep.subr.bf16.mxu0 %v7203
    %7886 = vmatpush2.bf16.msra.mxu0 %v7202
    %7887 = vmatprep.subr.bf16.mxu0 %v7196
    %7888 = vmatpush2.bf16.msra.mxu0 %v7195
    %7889 = vmatprep.subr.bf16.mxu0 %v7189
    %7890 = vmatpush2.bf16.msra.mxu0 %v7188
    %7891 = vmatprep.subr.bf16.mxu0 %v7182
    %7892 = vmatpush2.bf16.msra.mxu0 %v7181
    %7893 = vmatprep.mubr.bf16.mxu0 %v6109
    %7894 = vmatmul.mubr.bf16.gmra.mxu0 %v6108
    %v7895 = vpop.f32.mrf.mxu0
    %v7896 = vadd.f32 %v6401, %v7895
    %v7897 = vpop.f32.mrf.mxu0
    %v7898 = vadd.f32 %v6405, %v7897
    %v7899 = vpop.f32.mrf.mxu0
    %v7900 = vadd.f32 %v6401, %v7899
    %v7901 = vpop.f32.mrf.mxu0
    %v7902 = vadd.f32 %v6405, %v7901
    %7903 = vmatprep.mubr.bf16.mxu0 %v6113
    %7904 = vmatmul.mubr.bf16.gmra.mxu0 %v6112
    %v7905 = vpop.f32.mrf.mxu0
    %v7906 = vadd.f32 %v6401, %v7905
    %v7907 = vpop.f32.mrf.mxu0
    %v7908 = vadd.f32 %v6405, %v7907
    %v7909 = vpop.f32.mrf.mxu0
    %v7910 = vadd.f32 %v6401, %v7909
    %v7911 = vpop.f32.mrf.mxu0
    %v7912 = vadd.f32 %v6405, %v7911
    %7913 = vmatprep.mubr.bf16.mxu0 %v6117
    %7914 = vmatmul.mubr.bf16.gmra.mxu0 %v6116
    %v7915 = vpop.f32.mrf.mxu0
    %v7916 = vadd.f32 %v6401, %v7915
    %v7917 = vpop.f32.mrf.mxu0
    %v7918 = vadd.f32 %v6405, %v7917
    %v7919 = vpop.f32.mrf.mxu0
    %v7920 = vadd.f32 %v6401, %v7919
    %v7921 = vpop.f32.mrf.mxu0
    %v7922 = vadd.f32 %v6405, %v7921
    %7923 = vmatprep.mubr.bf16.mxu0 %v6121
    %7924 = vmatmul.mubr.bf16.gmra.mxu0 %v6120
    %v7925 = vpop.f32.mrf.mxu0
    %v7926 = vadd.f32 %v6401, %v7925
    %v7927 = vpop.f32.mrf.mxu0
    %v7928 = vadd.f32 %v6405, %v7927
    %v7929 = vpop.f32.mrf.mxu0
    %v7930 = vadd.f32 %v6401, %v7929
    %v7931 = vpop.f32.mrf.mxu0
    %v7932 = vadd.f32 %v6405, %v7931
    %7933 = vdwg.mxu0
    %7934 = vmatprep.subr.bf16.mxu0 %v7287
    %7935 = vmatpush1.bf16.msra.mxu0 %v7286
    %7936 = vmatprep.subr.bf16.mxu0 %v7280
    %7937 = vmatpush1.bf16.msra.mxu0 %v7279
    %7938 = vmatprep.subr.bf16.mxu0 %v7273
    %7939 = vmatpush1.bf16.msra.mxu0 %v7272
    %7940 = vmatprep.subr.bf16.mxu0 %v7266
    %7941 = vmatpush1.bf16.msra.mxu0 %v7265
    %7942 = vmatprep.subr.bf16.mxu0 %v7259
    %7943 = vmatpush1.bf16.msra.mxu0 %v7258
    %7944 = vmatprep.subr.bf16.mxu0 %v7252
    %7945 = vmatpush1.bf16.msra.mxu0 %v7251
    %7946 = vmatprep.subr.bf16.mxu0 %v7245
    %7947 = vmatpush1.bf16.msra.mxu0 %v7244
    %7948 = vmatprep.subr.bf16.mxu0 %v7238
    %7949 = vmatpush1.bf16.msra.mxu0 %v7237
    %7950 = vmatprep.subr.bf16.mxu0 %v7343
    %7951 = vmatpush2.bf16.msra.mxu0 %v7342
    %7952 = vmatprep.subr.bf16.mxu0 %v7336
    %7953 = vmatpush2.bf16.msra.mxu0 %v7335
    %7954 = vmatprep.subr.bf16.mxu0 %v7329
    %7955 = vmatpush2.bf16.msra.mxu0 %v7328
    %7956 = vmatprep.subr.bf16.mxu0 %v7322
    %7957 = vmatpush2.bf16.msra.mxu0 %v7321
    %7958 = vmatprep.subr.bf16.mxu0 %v7315
    %7959 = vmatpush2.bf16.msra.mxu0 %v7314
    %7960 = vmatprep.subr.bf16.mxu0 %v7308
    %7961 = vmatpush2.bf16.msra.mxu0 %v7307
    %7962 = vmatprep.subr.bf16.mxu0 %v7301
    %7963 = vmatpush2.bf16.msra.mxu0 %v7300
    %7964 = vmatprep.subr.bf16.mxu0 %v7294
    %7965 = vmatpush2.bf16.msra.mxu0 %v7293
    %7966 = vmatprep.mubr.bf16.mxu0 %v6111
    %7967 = vmatmul.mubr.bf16.gmra.mxu0 %v6110
    %v7968 = vpop.f32.mrf.mxu0
    %v7969 = vadd.f32 %v7896, %v7968
    %v7970 = vpop.f32.mrf.mxu0
    %v7971 = vadd.f32 %v7898, %v7970
    %v7972 = vpop.f32.mrf.mxu0
    %v7973 = vadd.f32 %v7900, %v7972
    %v7974 = vpop.f32.mrf.mxu0
    %v7975 = vadd.f32 %v7902, %v7974
    %7976 = vmatprep.mubr.bf16.mxu0 %v6115
    %7977 = vmatmul.mubr.bf16.gmra.mxu0 %v6114
    %v7978 = vpop.f32.mrf.mxu0
    %v7979 = vadd.f32 %v7906, %v7978
    %v7980 = vpop.f32.mrf.mxu0
    %v7981 = vadd.f32 %v7908, %v7980
    %v7982 = vpop.f32.mrf.mxu0
    %v7983 = vadd.f32 %v7910, %v7982
    %v7984 = vpop.f32.mrf.mxu0
    %v7985 = vadd.f32 %v7912, %v7984
    %7986 = vmatprep.mubr.bf16.mxu0 %v6119
    %7987 = vmatmul.mubr.bf16.gmra.mxu0 %v6118
    %v7988 = vpop.f32.mrf.mxu0
    %v7989 = vadd.f32 %v7916, %v7988
    %v7990 = vpop.f32.mrf.mxu0
    %v7991 = vadd.f32 %v7918, %v7990
    %v7992 = vpop.f32.mrf.mxu0
    %v7993 = vadd.f32 %v7920, %v7992
    %v7994 = vpop.f32.mrf.mxu0
    %v7995 = vadd.f32 %v7922, %v7994
    %7996 = vmatprep.mubr.bf16.mxu0 %v6123
    %7997 = vmatmul.mubr.bf16.gmra.mxu0 %v6122
    %v7998 = vpop.f32.mrf.mxu0
    %v7999 = vadd.f32 %v7926, %v7998
    %v8000 = vpop.f32.mrf.mxu0
    %v8001 = vadd.f32 %v7928, %v8000
    %v8002 = vpop.f32.mrf.mxu0
    %v8003 = vadd.f32 %v7930, %v8002
    %v8004 = vpop.f32.mrf.mxu0
    %v8005 = vadd.f32 %v7932, %v8004
    %8006 = vdwg.mxu0
    %8007 = vmatprep.subr.bf16.mxu0 0
    %8008 = vmatpush1.bf16.msra.mxu0 %v7176
    %8009 = vmatprep.subr.bf16.mxu0 0
    %8010 = vmatpush1.bf16.msra.mxu0 %v7169
    %8011 = vmatprep.subr.bf16.mxu0 0
    %8012 = vmatpush1.bf16.msra.mxu0 %v7162
    %8013 = vmatprep.subr.bf16.mxu0 0
    %8014 = vmatpush1.bf16.msra.mxu0 %v7155
    %8015 = vmatprep.subr.bf16.mxu0 0
    %8016 = vmatpush1.bf16.msra.mxu0 %v7148
    %8017 = vmatprep.subr.bf16.mxu0 0
    %8018 = vmatpush1.bf16.msra.mxu0 %v7141
    %8019 = vmatprep.subr.bf16.mxu0 0
    %8020 = vmatpush1.bf16.msra.mxu0 %v7134
    %8021 = vmatprep.subr.bf16.mxu0 0
    %8022 = vmatpush1.bf16.msra.mxu0 %v7127
    %8023 = vmatprep.subr.bf16.mxu0 0
    %8024 = vmatpush2.bf16.msra.mxu0 %v7232
    %8025 = vmatprep.subr.bf16.mxu0 0
    %8026 = vmatpush2.bf16.msra.mxu0 %v7225
    %8027 = vmatprep.subr.bf16.mxu0 0
    %8028 = vmatpush2.bf16.msra.mxu0 %v7218
    %8029 = vmatprep.subr.bf16.mxu0 0
    %8030 = vmatpush2.bf16.msra.mxu0 %v7211
    %8031 = vmatprep.subr.bf16.mxu0 0
    %8032 = vmatpush2.bf16.msra.mxu0 %v7204
    %8033 = vmatprep.subr.bf16.mxu0 0
    %8034 = vmatpush2.bf16.msra.mxu0 %v7197
    %8035 = vmatprep.subr.bf16.mxu0 0
    %8036 = vmatpush2.bf16.msra.mxu0 %v7190
    %8037 = vmatprep.subr.bf16.mxu0 0
    %8038 = vmatpush2.bf16.msra.mxu0 %v7183
    %8039 = vmatprep.mubr.bf16.mxu0 %v6109
    %8040 = vmatmul.mubr.bf16.gmra.mxu0 %v6108
    %v8041 = vpop.f32.mrf.mxu0
    %v8042 = vadd.f32 %v6409, %v8041
    %v8043 = vpop.f32.mrf.mxu0
    %v8044 = vpop.f32.mrf.mxu0
    %v8045 = vadd.f32 %v6409, %v8044
    %v8046 = vpop.f32.mrf.mxu0
    %8047 = vmatprep.mubr.bf16.mxu0 %v6113
    %8048 = vmatmul.mubr.bf16.gmra.mxu0 %v6112
    %v8049 = vpop.f32.mrf.mxu0
    %v8050 = vadd.f32 %v6409, %v8049
    %v8051 = vpop.f32.mrf.mxu0
    %v8052 = vpop.f32.mrf.mxu0
    %v8053 = vadd.f32 %v6409, %v8052
    %v8054 = vpop.f32.mrf.mxu0
    %8055 = vmatprep.mubr.bf16.mxu0 %v6117
    %8056 = vmatmul.mubr.bf16.gmra.mxu0 %v6116
    %v8057 = vpop.f32.mrf.mxu0
    %v8058 = vadd.f32 %v6409, %v8057
    %v8059 = vpop.f32.mrf.mxu0
    %v8060 = vpop.f32.mrf.mxu0
    %v8061 = vadd.f32 %v6409, %v8060
    %v8062 = vpop.f32.mrf.mxu0
    %8063 = vmatprep.mubr.bf16.mxu0 %v6121
    %8064 = vmatmul.mubr.bf16.gmra.mxu0 %v6120
    %v8065 = vpop.f32.mrf.mxu0
    %v8066 = vadd.f32 %v6409, %v8065
    %v8067 = vpop.f32.mrf.mxu0
    %v8068 = vpop.f32.mrf.mxu0
    %v8069 = vadd.f32 %v6409, %v8068
    %v8070 = vpop.f32.mrf.mxu0
    %8071 = vdwg.mxu0
    %8072 = vmatprep.subr.bf16.mxu0 0
    %8073 = vmatpush1.bf16.msra.mxu0 %v7288
    %8074 = vmatprep.subr.bf16.mxu0 0
    %8075 = vmatpush1.bf16.msra.mxu0 %v7281
    %8076 = vmatprep.subr.bf16.mxu0 0
    %8077 = vmatpush1.bf16.msra.mxu0 %v7274
    %8078 = vmatprep.subr.bf16.mxu0 0
    %8079 = vmatpush1.bf16.msra.mxu0 %v7267
    %8080 = vmatprep.subr.bf16.mxu0 0
    %8081 = vmatpush1.bf16.msra.mxu0 %v7260
    %8082 = vmatprep.subr.bf16.mxu0 0
    %8083 = vmatpush1.bf16.msra.mxu0 %v7253
    %8084 = vmatprep.subr.bf16.mxu0 0
    %8085 = vmatpush1.bf16.msra.mxu0 %v7246
    %8086 = vmatprep.subr.bf16.mxu0 0
    %8087 = vmatpush1.bf16.msra.mxu0 %v7239
    %8088 = vmatprep.subr.bf16.mxu0 0
    %8089 = vmatpush2.bf16.msra.mxu0 %v7344
    %8090 = vmatprep.subr.bf16.mxu0 0
    %8091 = vmatpush2.bf16.msra.mxu0 %v7337
    %8092 = vmatprep.subr.bf16.mxu0 0
    %8093 = vmatpush2.bf16.msra.mxu0 %v7330
    %8094 = vmatprep.subr.bf16.mxu0 0
    %8095 = vmatpush2.bf16.msra.mxu0 %v7323
    %8096 = vmatprep.subr.bf16.mxu0 0
    %8097 = vmatpush2.bf16.msra.mxu0 %v7316
    %8098 = vmatprep.subr.bf16.mxu0 0
    %8099 = vmatpush2.bf16.msra.mxu0 %v7309
    %8100 = vmatprep.subr.bf16.mxu0 0
    %8101 = vmatpush2.bf16.msra.mxu0 %v7302
    %8102 = vmatprep.subr.bf16.mxu0 0
    %8103 = vmatpush2.bf16.msra.mxu0 %v7295
    %8104 = vmatprep.mubr.bf16.mxu0 %v6111
    %8105 = vmatmul.mubr.bf16.gmra.mxu0 %v6110
    %v8106 = vpop.f32.mrf.mxu0
    %v8107 = vadd.f32 %v8042, %v8106
    %v8108 = vpop.f32.mrf.mxu0
    %v8109 = vpop.f32.mrf.mxu0
    %v8110 = vadd.f32 %v8045, %v8109
    %v8111 = vpop.f32.mrf.mxu0
    %8112 = vmatprep.mubr.bf16.mxu0 %v6115
    %8113 = vmatmul.mubr.bf16.gmra.mxu0 %v6114
    %v8114 = vpop.f32.mrf.mxu0
    %v8115 = vadd.f32 %v8050, %v8114
    %v8116 = vpop.f32.mrf.mxu0
    %v8117 = vpop.f32.mrf.mxu0
    %v8118 = vadd.f32 %v8053, %v8117
    %v8119 = vpop.f32.mrf.mxu0
    %8120 = vmatprep.mubr.bf16.mxu0 %v6119
    %8121 = vmatmul.mubr.bf16.gmra.mxu0 %v6118
    %v8122 = vpop.f32.mrf.mxu0
    %v8123 = vadd.f32 %v8058, %v8122
    %v8124 = vpop.f32.mrf.mxu0
    %v8125 = vpop.f32.mrf.mxu0
    %v8126 = vadd.f32 %v8061, %v8125
    %v8127 = vpop.f32.mrf.mxu0
    %8128 = vmatprep.mubr.bf16.mxu0 %v6123
    %8129 = vmatmul.mubr.bf16.gmra.mxu0 %v6122
    %v8130 = vpop.f32.mrf.mxu0
    %v8131 = vadd.f32 %v8066, %v8130
    %v8132 = vpop.f32.mrf.mxu0
    %v8133 = vpop.f32.mrf.mxu0
    %v8134 = vadd.f32 %v8069, %v8133
    %v8135 = vpop.f32.mrf.mxu0
    %8136 = vdwg.mxu0
    %v8137 = vmul.f32 %v7677, 0.5
    %v8138 = vmul.f32 %v7679, 0.5
    %v8139 = vmul.f32 %v7823, 0.5
    %v8140 = vmul.f32 %v7825, 0.5
    %v8141 = vmul.f32 %v7969, 0.5
    %v8142 = vmul.f32 %v7971, 0.5
    %v8143 = vmul.f32 %v8107, 0.5
    %v8144 = vmul.f32 %v7681, 0.5
    %v8145 = vmul.f32 %v7683, 0.5
    %v8146 = vmul.f32 %v7827, 0.5
    %v8147 = vmul.f32 %v7829, 0.5
    %v8148 = vmul.f32 %v7973, 0.5
    %v8149 = vmul.f32 %v7975, 0.5
    %v8150 = vmul.f32 %v8110, 0.5
    %v8151 = vmul.f32 %v7687, 0.5
    %v8152 = vmul.f32 %v7689, 0.5
    %v8153 = vmul.f32 %v7833, 0.5
    %v8154 = vmul.f32 %v7835, 0.5
    %v8155 = vmul.f32 %v7979, 0.5
    %v8156 = vmul.f32 %v7981, 0.5
    %v8157 = vmul.f32 %v8115, 0.5
    %v8158 = vmul.f32 %v7691, 0.5
    %v8159 = vmul.f32 %v7693, 0.5
    %v8160 = vmul.f32 %v7837, 0.5
    %v8161 = vmul.f32 %v7839, 0.5
    %v8162 = vmul.f32 %v7983, 0.5
    %v8163 = vmul.f32 %v7985, 0.5
    %v8164 = vmul.f32 %v8118, 0.5
    %v8165 = vmul.f32 %v7697, 0.5
    %v8166 = vmul.f32 %v7699, 0.5
    %v8167 = vmul.f32 %v7843, 0.5
    %v8168 = vmul.f32 %v7845, 0.5
    %v8169 = vmul.f32 %v7989, 0.5
    %v8170 = vmul.f32 %v7991, 0.5
    %v8171 = vmul.f32 %v8123, 0.5
    %v8172 = vmul.f32 %v7701, 0.5
    %v8173 = vmul.f32 %v7703, 0.5
    %v8174 = vmul.f32 %v7847, 0.5
    %v8175 = vmul.f32 %v7849, 0.5
    %v8176 = vmul.f32 %v7993, 0.5
    %v8177 = vmul.f32 %v7995, 0.5
    %v8178 = vmul.f32 %v8126, 0.5
    %v8179 = vmul.f32 %v7707, 0.5
    %v8180 = vmul.f32 %v7709, 0.5
    %v8181 = vmul.f32 %v7853, 0.5
    %v8182 = vmul.f32 %v7855, 0.5
    %v8183 = vmul.f32 %v7999, 0.5
    %v8184 = vmul.f32 %v8001, 0.5
    %v8185 = vmul.f32 %v8131, 0.5
    %v8186 = vmul.f32 %v7711, 0.5
    %v8187 = vmul.f32 %v7713, 0.5
    %v8188 = vmul.f32 %v7857, 0.5
    %v8189 = vmul.f32 %v7859, 0.5
    %v8190 = vmul.f32 %v8003, 0.5
    %v8191 = vmul.f32 %v8005, 0.5
    %v8192 = vmul.f32 %v8134, 0.5
    %v8193 = vtanh.pop %v8137
    %v8194 = vtanh.pop %v8138
    %v8195 = vtanh.pop %v8139
    %v8196 = vtanh.pop %v8140
    %v8197 = vtanh.pop %v8141
    %v8198 = vtanh.pop %v8142
    %v8199 = vtanh.pop %v8143
    %v8200 = vtanh.pop %v8144
    %v8201 = vtanh.pop %v8145
    %v8202 = vtanh.pop %v8146
    %v8203 = vtanh.pop %v8147
    %v8204 = vtanh.pop %v8148
    %v8205 = vtanh.pop %v8149
    %v8206 = vtanh.pop %v8150
    %v8207 = vtanh.pop %v8151
    %v8208 = vtanh.pop %v8152
    %v8209 = vtanh.pop %v8153
    %v8210 = vtanh.pop %v8154
    %v8211 = vtanh.pop %v8155
    %v8212 = vtanh.pop %v8156
    %v8213 = vtanh.pop %v8157
    %v8214 = vtanh.pop %v8158
    %v8215 = vtanh.pop %v8159
    %v8216 = vtanh.pop %v8160
    %v8217 = vtanh.pop %v8161
    %v8218 = vtanh.pop %v8162
    %v8219 = vtanh.pop %v8163
    %v8220 = vtanh.pop %v8164
    %v8221 = vtanh.pop %v8165
    %v8222 = vtanh.pop %v8166
    %v8223 = vtanh.pop %v8167
    %v8224 = vtanh.pop %v8168
    %v8225 = vtanh.pop %v8169
    %v8226 = vtanh.pop %v8170
    %v8227 = vtanh.pop %v8171
    %v8228 = vtanh.pop %v8172
    %v8229 = vtanh.pop %v8173
    %v8230 = vtanh.pop %v8174
    %v8231 = vtanh.pop %v8175
    %v8232 = vtanh.pop %v8176
    %v8233 = vtanh.pop %v8177
    %v8234 = vtanh.pop %v8178
    %v8235 = vtanh.pop %v8179
    %v8236 = vtanh.pop %v8180
    %v8237 = vtanh.pop %v8181
    %v8238 = vtanh.pop %v8182
    %v8239 = vtanh.pop %v8183
    %v8240 = vtanh.pop %v8184
    %v8241 = vtanh.pop %v8185
    %v8242 = vtanh.pop %v8186
    %v8243 = vtanh.pop %v8187
    %v8244 = vtanh.pop %v8188
    %v8245 = vtanh.pop %v8189
    %v8246 = vtanh.pop %v8190
    %v8247 = vtanh.pop %v8191
    %v8248 = vtanh.pop %v8192
    %v8249 = vmul.f32 %v8193, 0.5
    %v8250 = vmul.f32 %v8194, 0.5
    %v8251 = vmul.f32 %v8195, 0.5
    %v8252 = vmul.f32 %v8196, 0.5
    %v8253 = vmul.f32 %v8197, 0.5
    %v8254 = vmul.f32 %v8198, 0.5
    %v8255 = vmul.f32 %v8199, 0.5
    %v8256 = vmul.f32 %v8200, 0.5
    %v8257 = vmul.f32 %v8201, 0.5
    %v8258 = vmul.f32 %v8202, 0.5
    %v8259 = vmul.f32 %v8203, 0.5
    %v8260 = vmul.f32 %v8204, 0.5
    %v8261 = vmul.f32 %v8205, 0.5
    %v8262 = vmul.f32 %v8206, 0.5
    %v8263 = vmul.f32 %v8207, 0.5
    %v8264 = vmul.f32 %v8208, 0.5
    %v8265 = vmul.f32 %v8209, 0.5
    %v8266 = vmul.f32 %v8210, 0.5
    %v8267 = vmul.f32 %v8211, 0.5
    %v8268 = vmul.f32 %v8212, 0.5
    %v8269 = vmul.f32 %v8213, 0.5
    %v8270 = vmul.f32 %v8214, 0.5
    %v8271 = vmul.f32 %v8215, 0.5
    %v8272 = vmul.f32 %v8216, 0.5
    %v8273 = vmul.f32 %v8217, 0.5
    %v8274 = vmul.f32 %v8218, 0.5
    %v8275 = vmul.f32 %v8219, 0.5
    %v8276 = vmul.f32 %v8220, 0.5
    %v8277 = vmul.f32 %v8221, 0.5
    %v8278 = vmul.f32 %v8222, 0.5
    %v8279 = vmul.f32 %v8223, 0.5
    %v8280 = vmul.f32 %v8224, 0.5
    %v8281 = vmul.f32 %v8225, 0.5
    %v8282 = vmul.f32 %v8226, 0.5
    %v8283 = vmul.f32 %v8227, 0.5
    %v8284 = vmul.f32 %v8228, 0.5
    %v8285 = vmul.f32 %v8229, 0.5
    %v8286 = vmul.f32 %v8230, 0.5
    %v8287 = vmul.f32 %v8231, 0.5
    %v8288 = vmul.f32 %v8232, 0.5
    %v8289 = vmul.f32 %v8233, 0.5
    %v8290 = vmul.f32 %v8234, 0.5
    %v8291 = vmul.f32 %v8235, 0.5
    %v8292 = vmul.f32 %v8236, 0.5
    %v8293 = vmul.f32 %v8237, 0.5
    %v8294 = vmul.f32 %v8238, 0.5
    %v8295 = vmul.f32 %v8239, 0.5
    %v8296 = vmul.f32 %v8240, 0.5
    %v8297 = vmul.f32 %v8241, 0.5
    %v8298 = vmul.f32 %v8242, 0.5
    %v8299 = vmul.f32 %v8243, 0.5
    %v8300 = vmul.f32 %v8244, 0.5
    %v8301 = vmul.f32 %v8245, 0.5
    %v8302 = vmul.f32 %v8246, 0.5
    %v8303 = vmul.f32 %v8247, 0.5
    %v8304 = vmul.f32 %v8248, 0.5
    %v8305 = vadd.f32 %v8249, 0.5
    %v8306 = vadd.f32 %v8250, 0.5
    %v8307 = vadd.f32 %v8251, 0.5
    %v8308 = vadd.f32 %v8252, 0.5
    %v8309 = vadd.f32 %v8253, 0.5
    %v8310 = vadd.f32 %v8254, 0.5
    %v8311 = vadd.f32 %v8255, 0.5
    %v8312 = vadd.f32 %v8256, 0.5
    %v8313 = vadd.f32 %v8257, 0.5
    %v8314 = vadd.f32 %v8258, 0.5
    %v8315 = vadd.f32 %v8259, 0.5
    %v8316 = vadd.f32 %v8260, 0.5
    %v8317 = vadd.f32 %v8261, 0.5
    %v8318 = vadd.f32 %v8262, 0.5
    %v8319 = vadd.f32 %v8263, 0.5
    %v8320 = vadd.f32 %v8264, 0.5
    %v8321 = vadd.f32 %v8265, 0.5
    %v8322 = vadd.f32 %v8266, 0.5
    %v8323 = vadd.f32 %v8267, 0.5
    %v8324 = vadd.f32 %v8268, 0.5
    %v8325 = vadd.f32 %v8269, 0.5
    %v8326 = vadd.f32 %v8270, 0.5
    %v8327 = vadd.f32 %v8271, 0.5
    %v8328 = vadd.f32 %v8272, 0.5
    %v8329 = vadd.f32 %v8273, 0.5
    %v8330 = vadd.f32 %v8274, 0.5
    %v8331 = vadd.f32 %v8275, 0.5
    %v8332 = vadd.f32 %v8276, 0.5
    %v8333 = vadd.f32 %v8277, 0.5
    %v8334 = vadd.f32 %v8278, 0.5
    %v8335 = vadd.f32 %v8279, 0.5
    %v8336 = vadd.f32 %v8280, 0.5
    %v8337 = vadd.f32 %v8281, 0.5
    %v8338 = vadd.f32 %v8282, 0.5
    %v8339 = vadd.f32 %v8283, 0.5
    %v8340 = vadd.f32 %v8284, 0.5
    %v8341 = vadd.f32 %v8285, 0.5
    %v8342 = vadd.f32 %v8286, 0.5
    %v8343 = vadd.f32 %v8287, 0.5
    %v8344 = vadd.f32 %v8288, 0.5
    %v8345 = vadd.f32 %v8289, 0.5
    %v8346 = vadd.f32 %v8290, 0.5
    %v8347 = vadd.f32 %v8291, 0.5
    %v8348 = vadd.f32 %v8292, 0.5
    %v8349 = vadd.f32 %v8293, 0.5
    %v8350 = vadd.f32 %v8294, 0.5
    %v8351 = vadd.f32 %v8295, 0.5
    %v8352 = vadd.f32 %v8296, 0.5
    %v8353 = vadd.f32 %v8297, 0.5
    %v8354 = vadd.f32 %v8298, 0.5
    %v8355 = vadd.f32 %v8299, 0.5
    %v8356 = vadd.f32 %v8300, 0.5
    %v8357 = vadd.f32 %v8301, 0.5
    %v8358 = vadd.f32 %v8302, 0.5
    %v8359 = vadd.f32 %v8303, 0.5
    %v8360 = vadd.f32 %v8304, 0.5
    %8361 = vst [vmem:[#allocation5] sm:$0xff] %v8305
    %8362 = vst [vmem:[#allocation5 + $0x8] sm:$0xff] %v8306
    %8363 = vst [vmem:[#allocation5 + $0x10] sm:$0xff] %v8307
    %8364 = vst [vmem:[#allocation5 + $0x18] sm:$0xff] %v8308
    %8365 = vst [vmem:[#allocation5 + $0x20] sm:$0xff] %v8309
    %8366 = vst [vmem:[#allocation5 + $0x28] sm:$0xff] %v8310
    %8367 = vst.msk [vmem:[#allocation5 + $0x30] sm:$0xff] %vm1355, %v8311
    %8368 = vst [vmem:[#allocation5 + $0x38] sm:$0xff] %v8312
    %8369 = vst [vmem:[#allocation5 + $0x40] sm:$0xff] %v8313
    %8370 = vst [vmem:[#allocation5 + $0x48] sm:$0xff] %v8314
    %8371 = vst [vmem:[#allocation5 + $0x50] sm:$0xff] %v8315
    %8372 = vst [vmem:[#allocation5 + $0x58] sm:$0xff] %v8316
    %8373 = vst [vmem:[#allocation5 + $0x60] sm:$0xff] %v8317
    %8374 = vst.msk [vmem:[#allocation5 + $0x68] sm:$0xff] %vm1355, %v8318
    %8375 = vst [vmem:[#allocation5 + $0x70] sm:$0xff] %v8319
    %8376 = vst [vmem:[#allocation5 + $0x78] sm:$0xff] %v8320
    %8377 = vst [vmem:[#allocation5 + $0x80] sm:$0xff] %v8321
    %8378 = vst [vmem:[#allocation5 + $0x88] sm:$0xff] %v8322
    %8379 = vst [vmem:[#allocation5 + $0x90] sm:$0xff] %v8323
    %8380 = vst [vmem:[#allocation5 + $0x98] sm:$0xff] %v8324
    %8381 = vst.msk [vmem:[#allocation5 + $0xa0] sm:$0xff] %vm1355, %v8325
    %8382 = vst [vmem:[#allocation5 + $0xa8] sm:$0xff] %v8326
    %8383 = vst [vmem:[#allocation5 + $0xb0] sm:$0xff] %v8327
    %8384 = vst [vmem:[#allocation5 + $0xb8] sm:$0xff] %v8328
    %8385 = vst [vmem:[#allocation5 + $0xc0] sm:$0xff] %v8329
    %8386 = vst [vmem:[#allocation5 + $0xc8] sm:$0xff] %v8330
    %8387 = vst [vmem:[#allocation5 + $0xd0] sm:$0xff] %v8331
    %8388 = vst.msk [vmem:[#allocation5 + $0xd8] sm:$0xff] %vm1355, %v8332
    %8389 = vst [vmem:[#allocation5 + $0xe0] sm:$0xff] %v8333
    %8390 = vst [vmem:[#allocation5 + $0xe8] sm:$0xff] %v8334
    %8391 = vst [vmem:[#allocation5 + $0xf0] sm:$0xff] %v8335
    %8392 = vst [vmem:[#allocation5 + $0xf8] sm:$0xff] %v8336
    %8393 = vst [vmem:[#allocation5 + $0x100] sm:$0xff] %v8337
    %8394 = vst [vmem:[#allocation5 + $0x108] sm:$0xff] %v8338
    %8395 = vst.msk [vmem:[#allocation5 + $0x110] sm:$0xff] %vm1355, %v8339
    %8396 = vst [vmem:[#allocation5 + $0x118] sm:$0xff] %v8340
    %8397 = vst [vmem:[#allocation5 + $0x120] sm:$0xff] %v8341
    %8398 = vst [vmem:[#allocation5 + $0x128] sm:$0xff] %v8342
    %8399 = vst [vmem:[#allocation5 + $0x130] sm:$0xff] %v8343
    %8400 = vst [vmem:[#allocation5 + $0x138] sm:$0xff] %v8344
    %8401 = vst [vmem:[#allocation5 + $0x140] sm:$0xff] %v8345
    %8402 = vst.msk [vmem:[#allocation5 + $0x148] sm:$0xff] %vm1355, %v8346
    %8403 = vst [vmem:[#allocation5 + $0x150] sm:$0xff] %v8347
    %8404 = vst [vmem:[#allocation5 + $0x158] sm:$0xff] %v8348
    %8405 = vst [vmem:[#allocation5 + $0x160] sm:$0xff] %v8349
    %8406 = vst [vmem:[#allocation5 + $0x168] sm:$0xff] %v8350
    %8407 = vst [vmem:[#allocation5 + $0x170] sm:$0xff] %v8351
    %8408 = vst [vmem:[#allocation5 + $0x178] sm:$0xff] %v8352
    %8409 = vst.msk [vmem:[#allocation5 + $0x180] sm:$0xff] %vm1355, %v8353
    %8410 = vst [vmem:[#allocation5 + $0x188] sm:$0xff] %v8354
    %8411 = vst [vmem:[#allocation5 + $0x190] sm:$0xff] %v8355
    %8412 = vst [vmem:[#allocation5 + $0x198] sm:$0xff] %v8356
    %8413 = vst [vmem:[#allocation5 + $0x1a0] sm:$0xff] %v8357
    %8414 = vst [vmem:[#allocation5 + $0x1a8] sm:$0xff] %v8358
    %8415 = vst [vmem:[#allocation5 + $0x1b0] sm:$0xff] %v8359
    %8416 = vst.msk [vmem:[#allocation5 + $0x1b8] sm:$0xff] %vm1355, %v8360
    // Predicated region
    $region70: #{tpu_custom_call.1} parent=1 // pred_check
      _
    $region71: #{tpu_custom_call.1} parent=1 // pred_check_branch
      %8418 = sbr.rel (0) target = $region73
    $region72: #{tpu_custom_call.1} parent=1 // pred_region
      _
    $region73: #{tpu_custom_call.1} parent=1 // pred_fallthru
      _
    // Predicated region
    $region74: #{tpu_custom_call.1} parent=1 // pred_check
      _
    $region75: #{tpu_custom_call.1} parent=1 // pred_check_branch
      %8420 = sbr.rel (0) target = $region77
    $region76: #{tpu_custom_call.1} parent=1 // pred_region
      _
    $region77: #{tpu_custom_call.1} parent=1 // pred_fallthru
      _
    // Predicated region
    $region78: #{tpu_custom_call.1} parent=1 // pred_check
      _
    $region79: #{tpu_custom_call.1} parent=1 // pred_check_branch
      %8422 = sbr.rel (0) target = $region81
    $region80: #{tpu_custom_call.1} parent=1 // pred_region
      _
    $region81: #{tpu_custom_call.1} parent=1 // pred_fallthru
      _
    // Predicated region
    $region82: #{tpu_custom_call.1} parent=1 // pred_check
      _
    $region83: #{tpu_custom_call.1} parent=1 // pred_check_branch
      %8424 = sbr.rel (0) target = $region85
    $region84: #{tpu_custom_call.1} parent=1 // pred_region
      %s8426 = ssub.s32 7168, 7168
      %8427 = vsyncadd [#allocation4], %s8426
      %s8428 = sshll.u32 [#allocation5], 4
      %s8429 = int_to_ptr.vmem [resolvable:$true] %s8428
      %8434 = dma.vmem_to_hbm [thread:$0]  %s8429, 7168, %s19, [#allocation4], 896, 896, 56
    $region85: #{tpu_custom_call.1} parent=1 // pred_fallthru
      _
    // Predicated region
    $region86: #{tpu_custom_call.1} parent=1 // pred_check
      _
    $region87: #{tpu_custom_call.1} parent=1 // pred_check_branch
      %8436 = sbr.rel (0) target = $region89
    $region88: #{tpu_custom_call.1} parent=1 // pred_region
      _
    $region89: #{tpu_custom_call.1} parent=1 // pred_fallthru
      _
    // Predicated region
    $region90: #{tpu_custom_call.1} parent=1 // pred_check
      _
    $region91: #{tpu_custom_call.1} parent=1 // pred_check_branch
      %8438 = sbr.rel (0) target = $region93
    $region92: #{tpu_custom_call.1} parent=1 // pred_region
      _
    $region93: #{tpu_custom_call.1} parent=1 // pred_fallthru
      _
    // Predicated region
    $region94: #{tpu_custom_call.1} parent=1 // pred_check
      _
    $region95: #{tpu_custom_call.1} parent=1 // pred_check_branch
      %8440 = sbr.rel (0) target = $region97
    $region96: #{tpu_custom_call.1} parent=1 // pred_region
      _
    $region97: #{tpu_custom_call.1} parent=1 // pred_fallthru
      _
    // Predicated region
    $region98: #{tpu_custom_call.1} parent=1 // pred_check
      _
    $region99: #{tpu_custom_call.1} parent=1 // pred_check_branch
      %8442 = sbr.rel (0) target = $region101
    $region100: #{tpu_custom_call.1} parent=1 // pred_region
      %8443 = dma.done [#allocation4], 7168
    $region101: #{tpu_custom_call.1} parent=1 // pred_fallthru
      _
    %8444 = vsyncpa [#allocation3], 1
    %8445 = vsyncpa [#allocation4], 1

</llo_original>
